<compile_context>
chip_gen: v7x
topology: tpu7x:2x2x1
jax: 0.10.0
libtpu: 0.0.40
codegen_flags: <defaults>
</compile_context>

<pallas_src>
import functools

import numpy as np

import jax
import jax.numpy as jnp
from jax.experimental import pallas as pl
from jax.experimental.pallas import tpu as pltpu


# ----------------------------------------------------------------------------
# Fused kernel: conv3x3 + LReLU + conv3x3 + LReLU + adaptive avg pool
# ----------------------------------------------------------------------------
def _make_fused_kernel(W, HW, PAD, Cout):
    """Builds the per-batch fused kernel for a fixed (W, H*W, PAD, Cout)."""

    def kernel(x_ref, w1_ref, b1_ref, w2_ref, b2_ref,
               ml_ref, mr_ref, pool_ref, o_ref, y1p_ref):
        # (HW, 1) masks: 1.0 everywhere except the image columns where a
        # left/right tap would wrap into the neighbouring row.
        ml = ml_ref[...]            # zero where w == 0       (tap reads w-1)
        mr = mr_ref[...]            # zero where w == W - 1   (tap reads w+1)

        def conv3x3(load_rows, w_ref):
            """9 accumulated MXU matmuls over row-shifted slices."""
            acc = jnp.zeros((HW, Cout), jnp.float32)
            for t in range(9):                       # static unroll: LLO sees all
                dy, dx = divmod(t, 3)
                shift = (dy - 1) * W + (dx - 1)      # flat row shift of this tap
                lhs = load_rows(PAD + shift).astype(jnp.bfloat16)
                c = jnp.dot(lhs, w_ref[t], preferred_element_type=jnp.float32)
                if dx == 0:
                    c = c * ml
                elif dx == 2:
                    c = c * mr
                acc = acc + c
            return acc

        # ---- conv1 + LeakyReLU(0.2): input slices come straight from x ------
        acc1 = conv3x3(lambda r: x_ref[0, r:r + HW, :], w1_ref)
        y1 = acc1 + b1_ref[...]
        y1 = jnp.where(y1 > 0, y1, 0.2 * y1)

        # Park y1 inside a zero-padded VMEM scratch so conv2's taps are plain
        # static slices (y1 never round-trips HBM).
        y1p_ref[0:PAD, :] = jnp.zeros((PAD, Cout), jnp.float32)
        y1p_ref[PAD + HW:PAD + HW + PAD, :] = jnp.zeros((PAD, Cout), jnp.float32)
        y1p_ref[PAD:PAD + HW, :] = y1

        # ---- conv2 + LeakyReLU(0.2) -----------------------------------------
        acc2 = conv3x3(lambda r: y1p_ref[r:r + HW, :], w2_ref)
        y2 = acc2 + b2_ref[...]
        y2 = jnp.where(y2 > 0, y2, 0.2 * y2)

        # ---- adaptive average pool as one matmul ----------------------------
        o_ref[0] = jnp.dot(pool_ref[...], y2,
                           preferred_element_type=jnp.float32).astype(o_ref.dtype)

    return kernel


def _adaptive_avg_pool_matrix(H, W, out_h, out_w):
    """(out_h*out_w, H*W) matrix reproducing AdaptiveAvgPool2d exactly
    (PyTorch's floor/ceil window rule → also handles non-divisible sizes)."""
    P = np.zeros((out_h * out_w, H * W), np.float32)
    for oh in range(out_h):
        h0 = (oh * H) // out_h
        h1 = -((-(oh + 1) * H) // out_h)            # ceil
        for ow in range(out_w):
            w0 = (ow * W) // out_w
            w1 = -((-(ow + 1) * W) // out_w)
            val = 1.0 / ((h1 - h0) * (w1 - w0))
            for hh in range(h0, h1):
                P[oh * out_w + ow, hh * W + w0: hh * W + w1] = val
    return jnp.asarray(P)


# ----------------------------------------------------------------------------
# Module wrapper
# ----------------------------------------------------------------------------
class ConvModuleDPallas:
    """final=False branch of ConvModuleD (the module default)."""

    def __init__(self, out_size, inch, outch, key):
        self.out_size = out_size
        self.inch = inch
        self.outch = outch
        k1, k2, k3, k4 = jax.random.split(key, 4)
        # Weights stored as (3, 3, Cin, Cout) (HWIO); deterministic init.
        self.w1 = (jax.random.normal(k1, (3, 3, inch, outch), jnp.float32)
                   * (2.0 / (9 * inch)) ** 0.5)
        self.b1 = jax.random.normal(k2, (outch,), jnp.float32) * 0.01
        self.w2 = (jax.random.normal(k3, (3, 3, outch, outch), jnp.float32)
                   * (2.0 / (9 * outch)) ** 0.5)
        self.b2 = jax.random.normal(k4, (outch,), jnp.float32) * 0.01

    @functools.partial(jax.jit, static_argnums=0)
    def forward(self, x_nchw):
        N, Cin, H, W = x_nchw.shape
        Cout, OS = self.outch, self.out_size
        HW = H * W
        PAD = (W + 1 + 7) // 8 * 8              # >= W+1, 8-aligned VMEM store
        HWP = HW + 2 * PAD

        # NCHW -> NHWC -> row-flattened with zero pad rows on both ends
        # (1.1x of the input; replaces the old 9x im2col HBM blow-up).
        x = jnp.transpose(x_nchw, (0, 2, 3, 1)).reshape(N, HW, Cin)
        x = jnp.pad(x, ((0, 0), (PAD, PAD), (0, 0)))

        # Host-built constants (tiny): boundary masks + adaptive-pool matrix.
        wcol = np.arange(HW, dtype=np.int64) % W
        mask_l = jnp.asarray((wcol > 0).astype(np.float32).reshape(HW, 1))
        mask_r = jnp.asarray((wcol < W - 1).astype(np.float32).reshape(HW, 1))
        pool = _adaptive_avg_pool_matrix(H, W, OS, OS)          # (OS*OS, HW)

        # bf16 MXU operands (f32 accumulation inside the kernel).
        w1 = self.w1.reshape(9, Cin, Cout).astype(jnp.bfloat16)
        w2 = self.w2.reshape(9, Cout, Cout).astype(jnp.bfloat16)
        b1 = self.b1.reshape(1, Cout)
        b2 = self.b2.reshape(1, Cout)

        kernel = _make_fused_kernel(W, HW, PAD, Cout)
        out = pl.pallas_call(
            kernel,
            out_shape=jax.ShapeDtypeStruct((N, OS * OS, Cout), jnp.float32),
            grid=(N,),
            in_specs=[
                pl.BlockSpec((1, HWP, Cin), lambda n: (n, 0, 0)),
                pl.BlockSpec((9, Cin, Cout), lambda n: (0, 0, 0)),
                pl.BlockSpec((1, Cout), lambda n: (0, 0)),
                pl.BlockSpec((9, Cout, Cout), lambda n: (0, 0, 0)),
                pl.BlockSpec((1, Cout), lambda n: (0, 0)),
                pl.BlockSpec((HW, 1), lambda n: (0, 0)),
                pl.BlockSpec((HW, 1), lambda n: (0, 0)),
                pl.BlockSpec((OS * OS, HW), lambda n: (0, 0)),
            ],
            out_specs=pl.BlockSpec((1, OS * OS, Cout), lambda n: (n, 0, 0)),
            scratch_shapes=[pltpu.VMEM((HWP, Cout), jnp.float32)],
            compiler_params=pltpu.CompilerParams(
                dimension_semantics=("parallel",),
                vmem_limit_bytes=32 * 1024 * 1024),
        )(x, w1, b1, w2, b2, mask_l, mask_r, pool)

        out = out.reshape(N, OS, OS, Cout)
        x_tf = jnp.transpose(out, (0, 3, 1, 2))                 # back to NCHW
        return x_tf, None, None


# ----------------------------------------------------------------------------
# Pure-JAX references (for correctness checks)
# ----------------------------------------------------------------------------
def _reference_forward(mod, x_nchw, operand_dtype=jnp.float32):
    """operand_dtype=bf16 mirrors the kernel's MXU operand rounding exactly
    (products are exact in f32, accumulation in f32)."""
    x = jnp.transpose(x_nchw, (0, 2, 3, 1))
    dn = ("NHWC", "HWIO", "NHWC")

    def conv(xx, w, b):
        y = jax.lax.conv_general_dilated(
            xx.astype(operand_dtype), w.astype(operand_dtype), (1, 1), "SAME",
            dimension_numbers=dn, preferred_element_type=jnp.float32)
        y = y + b[None, None, None, :]
        return jnp.where(y > 0, y, 0.2 * y)

    y = conv(x, mod.w1, mod.b1)
    y = conv(y, mod.w2, mod.b2)
    N, H, W, C = y.shape
    kh, kw = H // mod.out_size, W // mod.out_size
    y = y.reshape(N, mod.out_size, kh, mod.out_size, kw, C).mean(axis=(2, 4))
    return jnp.transpose(y, (0, 3, 1, 2))


if __name__ == "__main__":
    key = jax.random.PRNGKey(0)
    kx, kp = jax.random.split(key)

    # Small shapes: batch=2, inch=4, outch=8, spatial 16 -> pooled to 8.
    N, INCH, OUTCH, H, OUT_SIZE = 2, 4, 8, 16, 8
    x = jax.random.normal(kx, (N, INCH, H, H), jnp.float32)

    mod = ConvModuleDPallas(OUT_SIZE, INCH, OUTCH, kp)

    x_tf, x_char, x_imp = mod.forward(x)
    x_tf = jax.block_until_ready(x_tf)
    assert x_tf.shape == (N, OUTCH, OUT_SIZE, OUT_SIZE)
    assert x_char is None and x_imp is None

    # Tight check vs. a reference that uses the same bf16 operand rounding
    # (differences come only from f32 accumulation order).
    ref_bf16 = jax.block_until_ready(_reference_forward(mod, x, jnp.bfloat16))
    assert jnp.allclose(x_tf, ref_bf16, atol=1e-3, rtol=1e-3), (
        float(jnp.max(jnp.abs(x_tf - ref_bf16))))

    # Semantics check vs. the pure-f32 reference; tolerance budgets the bf16
    # operand rounding of the two conv matmuls (~1e-2 worst case here).
    ref_f32 = jax.block_until_ready(_reference_forward(mod, x, jnp.float32))
    assert jnp.allclose(x_tf, ref_f32, atol=3e-2, rtol=3e-2), (
        float(jnp.max(jnp.abs(x_tf - ref_f32))))

    print("KERNEL_OK")
</pallas_src>

<mosaic_0001>
module attributes {stable_mosaic.version = 11 : i64} {
  func.func @kernel(%arg0: i32, %arg1: memref<1x304x4xf32, #tpu.memory_space<vmem>>, %arg2: memref<9x4x8xbf16, #tpu.memory_space<vmem>>, %arg3: memref<1x8xf32, #tpu.memory_space<vmem>>, %arg4: memref<9x8x8xbf16, #tpu.memory_space<vmem>>, %arg5: memref<1x8xf32, #tpu.memory_space<vmem>>, %arg6: memref<256x1xf32, #tpu.memory_space<vmem>>, %arg7: memref<256x1xf32, #tpu.memory_space<vmem>>, %arg8: memref<64x256xf32, #tpu.memory_space<vmem>>, %arg9: memref<1x64x8xf32, #tpu.memory_space<vmem>>, %arg10: memref<304x8xf32, #tpu.memory_space<vmem>>) attributes {dimension_semantics = [#tpu.dimension_semantics<parallel>], iteration_bounds = array<i64: 2>, scalar_prefetch = 0 : i64, scratch_operands = 1 : i64, tpu.core_type = #tpu.core_type<tc>, window_params = [{transform_indices = @transform_0, window_bounds = array<i64: 1, 304, 4>}, {pipeline_mode = #tpu.pipeline_mode<synchronous>, transform_indices = @transform_1, window_bounds = array<i64: 9, 4, 8>}, {pipeline_mode = #tpu.pipeline_mode<synchronous>, transform_indices = @transform_2, window_bounds = array<i64: 1, 8>}, {pipeline_mode = #tpu.pipeline_mode<synchronous>, transform_indices = @transform_3, window_bounds = array<i64: 9, 8, 8>}, {pipeline_mode = #tpu.pipeline_mode<synchronous>, transform_indices = @transform_4, window_bounds = array<i64: 1, 8>}, {pipeline_mode = #tpu.pipeline_mode<synchronous>, transform_indices = @transform_5, window_bounds = array<i64: 256, 1>}, {pipeline_mode = #tpu.pipeline_mode<synchronous>, transform_indices = @transform_6, window_bounds = array<i64: 256, 1>}, {pipeline_mode = #tpu.pipeline_mode<synchronous>, transform_indices = @transform_7, window_bounds = array<i64: 64, 256>}, {transform_indices = @transform_8, window_bounds = array<i64: 1, 64, 8>}]} {
    %c0 = arith.constant 0 : index
    %c0_0 = arith.constant 0 : index
    %0 = vector.load %arg6[%c0, %c0_0] : memref<256x1xf32, #tpu.memory_space<vmem>>, vector<256x1xf32>
    %c0_1 = arith.constant 0 : index
    %c0_2 = arith.constant 0 : index
    %1 = vector.load %arg7[%c0_1, %c0_2] : memref<256x1xf32, #tpu.memory_space<vmem>>, vector<256x1xf32>
    %cst = arith.constant 0.000000e+00 : f32
    %2 = vector.broadcast %cst : f32 to vector<256x8xf32>
    %c0_3 = arith.constant 0 : index
    %c7 = arith.constant 7 : index
    %c0_4 = arith.constant 0 : index
    %3 = vector.load %arg1[%c0_3, %c7, %c0_4] : memref<1x304x4xf32, #tpu.memory_space<vmem>>, vector<1x256x4xf32>
    %4 = vector.shape_cast %3 : vector<1x256x4xf32> to vector<256x4xf32>
    %5 = arith.truncf %4 : vector<256x4xf32> to vector<256x4xbf16>
    %c0_5 = arith.constant 0 : index
    %c0_6 = arith.constant 0 : index
    %c0_7 = arith.constant 0 : index
    %6 = vector.load %arg2[%c0_5, %c0_6, %c0_7] : memref<9x4x8xbf16, #tpu.memory_space<vmem>>, vector<1x4x8xbf16>
    %7 = vector.shape_cast %6 : vector<1x4x8xbf16> to vector<4x8xbf16>
    %cst_8 = arith.constant dense<0.000000e+00> : vector<256x8xf32>
    %8 = tpu.matmul %5, %7, %cst_8 {dimension_numbers = #tpu.dot_dimension_numbers<[1], [0], [0], [1], [0, 0, 1, 1], [], []>} : vector<256x4xbf16>, vector<4x8xbf16>, vector<256x8xf32> -> vector<256x8xf32>
    %9 = vector.broadcast %0 : vector<256x1xf32> to vector<256x8xf32>
    %10 = arith.mulf %8, %9 : vector<256x8xf32>
    %11 = arith.addf %2, %10 : vector<256x8xf32>
    %c0_9 = arith.constant 0 : index
    %c8 = arith.constant 8 : index
    %c0_10 = arith.constant 0 : index
    %12 = vector.load %arg1[%c0_9, %c8, %c0_10] : memref<1x304x4xf32, #tpu.memory_space<vmem>>, vector<1x256x4xf32>
    %13 = vector.shape_cast %12 : vector<1x256x4xf32> to vector<256x4xf32>
    %14 = arith.truncf %13 : vector<256x4xf32> to vector<256x4xbf16>
    %c1 = arith.constant 1 : index
    %c0_11 = arith.constant 0 : index
    %c0_12 = arith.constant 0 : index
    %15 = vector.load %arg2[%c1, %c0_11, %c0_12] : memref<9x4x8xbf16, #tpu.memory_space<vmem>>, vector<1x4x8xbf16>
    %16 = vector.shape_cast %15 : vector<1x4x8xbf16> to vector<4x8xbf16>
    %cst_13 = arith.constant dense<0.000000e+00> : vector<256x8xf32>
    %17 = tpu.matmul %14, %16, %cst_13 {dimension_numbers = #tpu.dot_dimension_numbers<[1], [0], [0], [1], [0, 0, 1, 1], [], []>} : vector<256x4xbf16>, vector<4x8xbf16>, vector<256x8xf32> -> vector<256x8xf32>
    %18 = arith.addf %11, %17 : vector<256x8xf32>
    %c0_14 = arith.constant 0 : index
    %c9 = arith.constant 9 : index
    %c0_15 = arith.constant 0 : index
    %19 = vector.load %arg1[%c0_14, %c9, %c0_15] : memref<1x304x4xf32, #tpu.memory_space<vmem>>, vector<1x256x4xf32>
    %20 = vector.shape_cast %19 : vector<1x256x4xf32> to vector<256x4xf32>
    %21 = arith.truncf %20 : vector<256x4xf32> to vector<256x4xbf16>
    %c2 = arith.constant 2 : index
    %c0_16 = arith.constant 0 : index
    %c0_17 = arith.constant 0 : index
    %22 = vector.load %arg2[%c2, %c0_16, %c0_17] : memref<9x4x8xbf16, #tpu.memory_space<vmem>>, vector<1x4x8xbf16>
    %23 = vector.shape_cast %22 : vector<1x4x8xbf16> to vector<4x8xbf16>
    %cst_18 = arith.constant dense<0.000000e+00> : vector<256x8xf32>
    %24 = tpu.matmul %21, %23, %cst_18 {dimension_numbers = #tpu.dot_dimension_numbers<[1], [0], [0], [1], [0, 0, 1, 1], [], []>} : vector<256x4xbf16>, vector<4x8xbf16>, vector<256x8xf32> -> vector<256x8xf32>
    %25 = vector.broadcast %1 : vector<256x1xf32> to vector<256x8xf32>
    %26 = arith.mulf %24, %25 : vector<256x8xf32>
    %27 = arith.addf %18, %26 : vector<256x8xf32>
    %c0_19 = arith.constant 0 : index
    %c23 = arith.constant 23 : index
    %c0_20 = arith.constant 0 : index
    %28 = vector.load %arg1[%c0_19, %c23, %c0_20] : memref<1x304x4xf32, #tpu.memory_space<vmem>>, vector<1x256x4xf32>
    %29 = vector.shape_cast %28 : vector<1x256x4xf32> to vector<256x4xf32>
    %30 = arith.truncf %29 : vector<256x4xf32> to vector<256x4xbf16>
    %c3 = arith.constant 3 : index
    %c0_21 = arith.constant 0 : index
    %c0_22 = arith.constant 0 : index
    %31 = vector.load %arg2[%c3, %c0_21, %c0_22] : memref<9x4x8xbf16, #tpu.memory_space<vmem>>, vector<1x4x8xbf16>
    %32 = vector.shape_cast %31 : vector<1x4x8xbf16> to vector<4x8xbf16>
    %cst_23 = arith.constant dense<0.000000e+00> : vector<256x8xf32>
    %33 = tpu.matmul %30, %32, %cst_23 {dimension_numbers = #tpu.dot_dimension_numbers<[1], [0], [0], [1], [0, 0, 1, 1], [], []>} : vector<256x4xbf16>, vector<4x8xbf16>, vector<256x8xf32> -> vector<256x8xf32>
    %34 = vector.broadcast %0 : vector<256x1xf32> to vector<256x8xf32>
    %35 = arith.mulf %33, %34 : vector<256x8xf32>
    %36 = arith.addf %27, %35 : vector<256x8xf32>
    %c0_24 = arith.constant 0 : index
    %c24 = arith.constant 24 : index
    %c0_25 = arith.constant 0 : index
    %37 = vector.load %arg1[%c0_24, %c24, %c0_25] : memref<1x304x4xf32, #tpu.memory_space<vmem>>, vector<1x256x4xf32>
    %38 = vector.shape_cast %37 : vector<1x256x4xf32> to vector<256x4xf32>
    %39 = arith.truncf %38 : vector<256x4xf32> to vector<256x4xbf16>
    %c4 = arith.constant 4 : index
    %c0_26 = arith.constant 0 : index
    %c0_27 = arith.constant 0 : index
    %40 = vector.load %arg2[%c4, %c0_26, %c0_27] : memref<9x4x8xbf16, #tpu.memory_space<vmem>>, vector<1x4x8xbf16>
    %41 = vector.shape_cast %40 : vector<1x4x8xbf16> to vector<4x8xbf16>
    %cst_28 = arith.constant dense<0.000000e+00> : vector<256x8xf32>
    %42 = tpu.matmul %39, %41, %cst_28 {dimension_numbers = #tpu.dot_dimension_numbers<[1], [0], [0], [1], [0, 0, 1, 1], [], []>} : vector<256x4xbf16>, vector<4x8xbf16>, vector<256x8xf32> -> vector<256x8xf32>
    %43 = arith.addf %36, %42 : vector<256x8xf32>
    %c0_29 = arith.constant 0 : index
    %c25 = arith.constant 25 : index
    %c0_30 = arith.constant 0 : index
    %44 = vector.load %arg1[%c0_29, %c25, %c0_30] : memref<1x304x4xf32, #tpu.memory_space<vmem>>, vector<1x256x4xf32>
    %45 = vector.shape_cast %44 : vector<1x256x4xf32> to vector<256x4xf32>
    %46 = arith.truncf %45 : vector<256x4xf32> to vector<256x4xbf16>
    %c5 = arith.constant 5 : index
    %c0_31 = arith.constant 0 : index
    %c0_32 = arith.constant 0 : index
    %47 = vector.load %arg2[%c5, %c0_31, %c0_32] : memref<9x4x8xbf16, #tpu.memory_space<vmem>>, vector<1x4x8xbf16>
    %48 = vector.shape_cast %47 : vector<1x4x8xbf16> to vector<4x8xbf16>
    %cst_33 = arith.constant dense<0.000000e+00> : vector<256x8xf32>
    %49 = tpu.matmul %46, %48, %cst_33 {dimension_numbers = #tpu.dot_dimension_numbers<[1], [0], [0], [1], [0, 0, 1, 1], [], []>} : vector<256x4xbf16>, vector<4x8xbf16>, vector<256x8xf32> -> vector<256x8xf32>
    %50 = vector.broadcast %1 : vector<256x1xf32> to vector<256x8xf32>
    %51 = arith.mulf %49, %50 : vector<256x8xf32>
    %52 = arith.addf %43, %51 : vector<256x8xf32>
    %c0_34 = arith.constant 0 : index
    %c39 = arith.constant 39 : index
    %c0_35 = arith.constant 0 : index
    %53 = vector.load %arg1[%c0_34, %c39, %c0_35] : memref<1x304x4xf32, #tpu.memory_space<vmem>>, vector<1x256x4xf32>
    %54 = vector.shape_cast %53 : vector<1x256x4xf32> to vector<256x4xf32>
    %55 = arith.truncf %54 : vector<256x4xf32> to vector<256x4xbf16>
    %c6 = arith.constant 6 : index
    %c0_36 = arith.constant 0 : index
    %c0_37 = arith.constant 0 : index
    %56 = vector.load %arg2[%c6, %c0_36, %c0_37] : memref<9x4x8xbf16, #tpu.memory_space<vmem>>, vector<1x4x8xbf16>
    %57 = vector.shape_cast %56 : vector<1x4x8xbf16> to vector<4x8xbf16>
    %cst_38 = arith.constant dense<0.000000e+00> : vector<256x8xf32>
    %58 = tpu.matmul %55, %57, %cst_38 {dimension_numbers = #tpu.dot_dimension_numbers<[1], [0], [0], [1], [0, 0, 1, 1], [], []>} : vector<256x4xbf16>, vector<4x8xbf16>, vector<256x8xf32> -> vector<256x8xf32>
    %59 = vector.broadcast %0 : vector<256x1xf32> to vector<256x8xf32>
    %60 = arith.mulf %58, %59 : vector<256x8xf32>
    %61 = arith.addf %52, %60 : vector<256x8xf32>
    %c0_39 = arith.constant 0 : index
    %c40 = arith.constant 40 : index
    %c0_40 = arith.constant 0 : index
    %62 = vector.load %arg1[%c0_39, %c40, %c0_40] : memref<1x304x4xf32, #tpu.memory_space<vmem>>, vector<1x256x4xf32>
    %63 = vector.shape_cast %62 : vector<1x256x4xf32> to vector<256x4xf32>
    %64 = arith.truncf %63 : vector<256x4xf32> to vector<256x4xbf16>
    %c7_41 = arith.constant 7 : index
    %c0_42 = arith.constant 0 : index
    %c0_43 = arith.constant 0 : index
    %65 = vector.load %arg2[%c7_41, %c0_42, %c0_43] : memref<9x4x8xbf16, #tpu.memory_space<vmem>>, vector<1x4x8xbf16>
    %66 = vector.shape_cast %65 : vector<1x4x8xbf16> to vector<4x8xbf16>
    %cst_44 = arith.constant dense<0.000000e+00> : vector<256x8xf32>
    %67 = tpu.matmul %64, %66, %cst_44 {dimension_numbers = #tpu.dot_dimension_numbers<[1], [0], [0], [1], [0, 0, 1, 1], [], []>} : vector<256x4xbf16>, vector<4x8xbf16>, vector<256x8xf32> -> vector<256x8xf32>
    %68 = arith.addf %61, %67 : vector<256x8xf32>
    %c0_45 = arith.constant 0 : index
    %c41 = arith.constant 41 : index
    %c0_46 = arith.constant 0 : index
    %69 = vector.load %arg1[%c0_45, %c41, %c0_46] : memref<1x304x4xf32, #tpu.memory_space<vmem>>, vector<1x256x4xf32>
    %70 = vector.shape_cast %69 : vector<1x256x4xf32> to vector<256x4xf32>
    %71 = arith.truncf %70 : vector<256x4xf32> to vector<256x4xbf16>
    %c8_47 = arith.constant 8 : index
    %c0_48 = arith.constant 0 : index
    %c0_49 = arith.constant 0 : index
    %72 = vector.load %arg2[%c8_47, %c0_48, %c0_49] : memref<9x4x8xbf16, #tpu.memory_space<vmem>>, vector<1x4x8xbf16>
    %73 = vector.shape_cast %72 : vector<1x4x8xbf16> to vector<4x8xbf16>
    %cst_50 = arith.constant dense<0.000000e+00> : vector<256x8xf32>
    %74 = tpu.matmul %71, %73, %cst_50 {dimension_numbers = #tpu.dot_dimension_numbers<[1], [0], [0], [1], [0, 0, 1, 1], [], []>} : vector<256x4xbf16>, vector<4x8xbf16>, vector<256x8xf32> -> vector<256x8xf32>
    %75 = vector.broadcast %1 : vector<256x1xf32> to vector<256x8xf32>
    %76 = arith.mulf %74, %75 : vector<256x8xf32>
    %77 = arith.addf %68, %76 : vector<256x8xf32>
    %c0_51 = arith.constant 0 : index
    %c0_52 = arith.constant 0 : index
    %78 = vector.load %arg3[%c0_51, %c0_52] : memref<1x8xf32, #tpu.memory_space<vmem>>, vector<1x8xf32>
    %79 = vector.broadcast %78 : vector<1x8xf32> to vector<256x8xf32>
    %80 = arith.addf %77, %79 : vector<256x8xf32>
    %cst_53 = arith.constant 0.000000e+00 : f32
    %81 = vector.broadcast %cst_53 : f32 to vector<256x8xf32>
    %82 = arith.cmpf ogt, %80, %81 : vector<256x8xf32>
    %cst_54 = arith.constant 2.000000e-01 : f32
    %83 = vector.broadcast %cst_54 : f32 to vector<256x8xf32>
    %84 = arith.mulf %83, %80 : vector<256x8xf32>
    %85 = arith.select %82, %80, %84 : vector<256x8xi1>, vector<256x8xf32>
    %cst_55 = arith.constant 0.000000e+00 : f32
    %86 = vector.broadcast %cst_55 : f32 to vector<24x8xf32>
    %c0_56 = arith.constant 0 : index
    %c0_57 = arith.constant 0 : index
    %87 = vector.load %arg10[%c0_56, %c0_57] : memref<304x8xf32, #tpu.memory_space<vmem>>, vector<24x8xf32>
    tpu.vector_store %arg10[%c0_56, %c0_57], %86 {strides = array<i32>} : memref<304x8xf32, #tpu.memory_space<vmem>>, vector<24x8xf32>,
    %cst_58 = arith.constant 0.000000e+00 : f32
    %88 = vector.broadcast %cst_58 : f32 to vector<24x8xf32>
    %c280 = arith.constant 280 : index
    %c0_59 = arith.constant 0 : index
    %89 = vector.load %arg10[%c280, %c0_59] : memref<304x8xf32, #tpu.memory_space<vmem>>, vector<24x8xf32>
    tpu.vector_store %arg10[%c280, %c0_59], %88 {strides = array<i32>} : memref<304x8xf32, #tpu.memory_space<vmem>>, vector<24x8xf32>,
    %c24_60 = arith.constant 24 : index
    %c0_61 = arith.constant 0 : index
    %90 = vector.load %arg10[%c24_60, %c0_61] : memref<304x8xf32, #tpu.memory_space<vmem>>, vector<256x8xf32>
    tpu.vector_store %arg10[%c24_60, %c0_61], %85 {strides = array<i32>} : memref<304x8xf32, #tpu.memory_space<vmem>>, vector<256x8xf32>,
    %cst_62 = arith.constant 0.000000e+00 : f32
    %91 = vector.broadcast %cst_62 : f32 to vector<256x8xf32>
    %c7_63 = arith.constant 7 : index
    %c0_64 = arith.constant 0 : index
    %92 = vector.load %arg10[%c7_63, %c0_64] : memref<304x8xf32, #tpu.memory_space<vmem>>, vector<256x8xf32>
    %93 = arith.truncf %92 : vector<256x8xf32> to vector<256x8xbf16>
    %c0_65 = arith.constant 0 : index
    %c0_66 = arith.constant 0 : index
    %c0_67 = arith.constant 0 : index
    %94 = vector.load %arg4[%c0_65, %c0_66, %c0_67] : memref<9x8x8xbf16, #tpu.memory_space<vmem>>, vector<1x8x8xbf16>
    %95 = vector.shape_cast %94 : vector<1x8x8xbf16> to vector<8x8xbf16>
    %cst_68 = arith.constant dense<0.000000e+00> : vector<256x8xf32>
    %96 = tpu.matmul %93, %95, %cst_68 {dimension_numbers = #tpu.dot_dimension_numbers<[1], [0], [0], [1], [0, 0, 1, 1], [], []>} : vector<256x8xbf16>, vector<8x8xbf16>, vector<256x8xf32> -> vector<256x8xf32>
    %97 = vector.broadcast %0 : vector<256x1xf32> to vector<256x8xf32>
    %98 = arith.mulf %96, %97 : vector<256x8xf32>
    %99 = arith.addf %91, %98 : vector<256x8xf32>
    %c8_69 = arith.constant 8 : index
    %c0_70 = arith.constant 0 : index
    %100 = vector.load %arg10[%c8_69, %c0_70] : memref<304x8xf32, #tpu.memory_space<vmem>>, vector<256x8xf32>
    %101 = arith.truncf %100 : vector<256x8xf32> to vector<256x8xbf16>
    %c1_71 = arith.constant 1 : index
    %c0_72 = arith.constant 0 : index
    %c0_73 = arith.constant 0 : index
    %102 = vector.load %arg4[%c1_71, %c0_72, %c0_73] : memref<9x8x8xbf16, #tpu.memory_space<vmem>>, vector<1x8x8xbf16>
    %103 = vector.shape_cast %102 : vector<1x8x8xbf16> to vector<8x8xbf16>
    %cst_74 = arith.constant dense<0.000000e+00> : vector<256x8xf32>
    %104 = tpu.matmul %101, %103, %cst_74 {dimension_numbers = #tpu.dot_dimension_numbers<[1], [0], [0], [1], [0, 0, 1, 1], [], []>} : vector<256x8xbf16>, vector<8x8xbf16>, vector<256x8xf32> -> vector<256x8xf32>
    %105 = arith.addf %99, %104 : vector<256x8xf32>
    %c9_75 = arith.constant 9 : index
    %c0_76 = arith.constant 0 : index
    %106 = vector.load %arg10[%c9_75, %c0_76] : memref<304x8xf32, #tpu.memory_space<vmem>>, vector<256x8xf32>
    %107 = arith.truncf %106 : vector<256x8xf32> to vector<256x8xbf16>
    %c2_77 = arith.constant 2 : index
    %c0_78 = arith.constant 0 : index
    %c0_79 = arith.constant 0 : index
    %108 = vector.load %arg4[%c2_77, %c0_78, %c0_79] : memref<9x8x8xbf16, #tpu.memory_space<vmem>>, vector<1x8x8xbf16>
    %109 = vector.shape_cast %108 : vector<1x8x8xbf16> to vector<8x8xbf16>
    %cst_80 = arith.constant dense<0.000000e+00> : vector<256x8xf32>
    %110 = tpu.matmul %107, %109, %cst_80 {dimension_numbers = #tpu.dot_dimension_numbers<[1], [0], [0], [1], [0, 0, 1, 1], [], []>} : vector<256x8xbf16>, vector<8x8xbf16>, vector<256x8xf32> -> vector<256x8xf32>
    %111 = vector.broadcast %1 : vector<256x1xf32> to vector<256x8xf32>
    %112 = arith.mulf %110, %111 : vector<256x8xf32>
    %113 = arith.addf %105, %112 : vector<256x8xf32>
    %c23_81 = arith.constant 23 : index
    %c0_82 = arith.constant 0 : index
    %114 = vector.load %arg10[%c23_81, %c0_82] : memref<304x8xf32, #tpu.memory_space<vmem>>, vector<256x8xf32>
    %115 = arith.truncf %114 : vector<256x8xf32> to vector<256x8xbf16>
    %c3_83 = arith.constant 3 : index
    %c0_84 = arith.constant 0 : index
    %c0_85 = arith.constant 0 : index
    %116 = vector.load %arg4[%c3_83, %c0_84, %c0_85] : memref<9x8x8xbf16, #tpu.memory_space<vmem>>, vector<1x8x8xbf16>
    %117 = vector.shape_cast %116 : vector<1x8x8xbf16> to vector<8x8xbf16>
    %cst_86 = arith.constant dense<0.000000e+00> : vector<256x8xf32>
    %118 = tpu.matmul %115, %117, %cst_86 {dimension_numbers = #tpu.dot_dimension_numbers<[1], [0], [0], [1], [0, 0, 1, 1], [], []>} : vector<256x8xbf16>, vector<8x8xbf16>, vector<256x8xf32> -> vector<256x8xf32>
    %119 = vector.broadcast %0 : vector<256x1xf32> to vector<256x8xf32>
    %120 = arith.mulf %118, %119 : vector<256x8xf32>
    %121 = arith.addf %113, %120 : vector<256x8xf32>
    %c24_87 = arith.constant 24 : index
    %c0_88 = arith.constant 0 : index
    %122 = vector.load %arg10[%c24_87, %c0_88] : memref<304x8xf32, #tpu.memory_space<vmem>>, vector<256x8xf32>
    %123 = arith.truncf %122 : vector<256x8xf32> to vector<256x8xbf16>
    %c4_89 = arith.constant 4 : index
    %c0_90 = arith.constant 0 : index
    %c0_91 = arith.constant 0 : index
    %124 = vector.load %arg4[%c4_89, %c0_90, %c0_91] : memref<9x8x8xbf16, #tpu.memory_space<vmem>>, vector<1x8x8xbf16>
    %125 = vector.shape_cast %124 : vector<1x8x8xbf16> to vector<8x8xbf16>
    %cst_92 = arith.constant dense<0.000000e+00> : vector<256x8xf32>
    %126 = tpu.matmul %123, %125, %cst_92 {dimension_numbers = #tpu.dot_dimension_numbers<[1], [0], [0], [1], [0, 0, 1, 1], [], []>} : vector<256x8xbf16>, vector<8x8xbf16>, vector<256x8xf32> -> vector<256x8xf32>
    %127 = arith.addf %121, %126 : vector<256x8xf32>
    %c25_93 = arith.constant 25 : index
    %c0_94 = arith.constant 0 : index
    %128 = vector.load %arg10[%c25_93, %c0_94] : memref<304x8xf32, #tpu.memory_space<vmem>>, vector<256x8xf32>
    %129 = arith.truncf %128 : vector<256x8xf32> to vector<256x8xbf16>
    %c5_95 = arith.constant 5 : index
    %c0_96 = arith.constant 0 : index
    %c0_97 = arith.constant 0 : index
    %130 = vector.load %arg4[%c5_95, %c0_96, %c0_97] : memref<9x8x8xbf16, #tpu.memory_space<vmem>>, vector<1x8x8xbf16>
    %131 = vector.shape_cast %130 : vector<1x8x8xbf16> to vector<8x8xbf16>
    %cst_98 = arith.constant dense<0.000000e+00> : vector<256x8xf32>
    %132 = tpu.matmul %129, %131, %cst_98 {dimension_numbers = #tpu.dot_dimension_numbers<[1], [0], [0], [1], [0, 0, 1, 1], [], []>} : vector<256x8xbf16>, vector<8x8xbf16>, vector<256x8xf32> -> vector<256x8xf32>
    %133 = vector.broadcast %1 : vector<256x1xf32> to vector<256x8xf32>
    %134 = arith.mulf %132, %133 : vector<256x8xf32>
    %135 = arith.addf %127, %134 : vector<256x8xf32>
    %c39_99 = arith.constant 39 : index
    %c0_100 = arith.constant 0 : index
    %136 = vector.load %arg10[%c39_99, %c0_100] : memref<304x8xf32, #tpu.memory_space<vmem>>, vector<256x8xf32>
    %137 = arith.truncf %136 : vector<256x8xf32> to vector<256x8xbf16>
    %c6_101 = arith.constant 6 : index
    %c0_102 = arith.constant 0 : index
    %c0_103 = arith.constant 0 : index
    %138 = vector.load %arg4[%c6_101, %c0_102, %c0_103] : memref<9x8x8xbf16, #tpu.memory_space<vmem>>, vector<1x8x8xbf16>
    %139 = vector.shape_cast %138 : vector<1x8x8xbf16> to vector<8x8xbf16>
    %cst_104 = arith.constant dense<0.000000e+00> : vector<256x8xf32>
    %140 = tpu.matmul %137, %139, %cst_104 {dimension_numbers = #tpu.dot_dimension_numbers<[1], [0], [0], [1], [0, 0, 1, 1], [], []>} : vector<256x8xbf16>, vector<8x8xbf16>, vector<256x8xf32> -> vector<256x8xf32>
    %141 = vector.broadcast %0 : vector<256x1xf32> to vector<256x8xf32>
    %142 = arith.mulf %140, %141 : vector<256x8xf32>
    %143 = arith.addf %135, %142 : vector<256x8xf32>
    %c40_105 = arith.constant 40 : index
    %c0_106 = arith.constant 0 : index
    %144 = vector.load %arg10[%c40_105, %c0_106] : memref<304x8xf32, #tpu.memory_space<vmem>>, vector<256x8xf32>
    %145 = arith.truncf %144 : vector<256x8xf32> to vector<256x8xbf16>
    %c7_107 = arith.constant 7 : index
    %c0_108 = arith.constant 0 : index
    %c0_109 = arith.constant 0 : index
    %146 = vector.load %arg4[%c7_107, %c0_108, %c0_109] : memref<9x8x8xbf16, #tpu.memory_space<vmem>>, vector<1x8x8xbf16>
    %147 = vector.shape_cast %146 : vector<1x8x8xbf16> to vector<8x8xbf16>
    %cst_110 = arith.constant dense<0.000000e+00> : vector<256x8xf32>
    %148 = tpu.matmul %145, %147, %cst_110 {dimension_numbers = #tpu.dot_dimension_numbers<[1], [0], [0], [1], [0, 0, 1, 1], [], []>} : vector<256x8xbf16>, vector<8x8xbf16>, vector<256x8xf32> -> vector<256x8xf32>
    %149 = arith.addf %143, %148 : vector<256x8xf32>
    %c41_111 = arith.constant 41 : index
    %c0_112 = arith.constant 0 : index
    %150 = vector.load %arg10[%c41_111, %c0_112] : memref<304x8xf32, #tpu.memory_space<vmem>>, vector<256x8xf32>
    %151 = arith.truncf %150 : vector<256x8xf32> to vector<256x8xbf16>
    %c8_113 = arith.constant 8 : index
    %c0_114 = arith.constant 0 : index
    %c0_115 = arith.constant 0 : index
    %152 = vector.load %arg4[%c8_113, %c0_114, %c0_115] : memref<9x8x8xbf16, #tpu.memory_space<vmem>>, vector<1x8x8xbf16>
    %153 = vector.shape_cast %152 : vector<1x8x8xbf16> to vector<8x8xbf16>
    %cst_116 = arith.constant dense<0.000000e+00> : vector<256x8xf32>
    %154 = tpu.matmul %151, %153, %cst_116 {dimension_numbers = #tpu.dot_dimension_numbers<[1], [0], [0], [1], [0, 0, 1, 1], [], []>} : vector<256x8xbf16>, vector<8x8xbf16>, vector<256x8xf32> -> vector<256x8xf32>
    %155 = vector.broadcast %1 : vector<256x1xf32> to vector<256x8xf32>
    %156 = arith.mulf %154, %155 : vector<256x8xf32>
    %157 = arith.addf %149, %156 : vector<256x8xf32>
    %c0_117 = arith.constant 0 : index
    %c0_118 = arith.constant 0 : index
    %158 = vector.load %arg5[%c0_117, %c0_118] : memref<1x8xf32, #tpu.memory_space<vmem>>, vector<1x8xf32>
    %159 = vector.broadcast %158 : vector<1x8xf32> to vector<256x8xf32>
    %160 = arith.addf %157, %159 : vector<256x8xf32>
    %cst_119 = arith.constant 0.000000e+00 : f32
    %161 = vector.broadcast %cst_119 : f32 to vector<256x8xf32>
    %162 = arith.cmpf ogt, %160, %161 : vector<256x8xf32>
    %cst_120 = arith.constant 2.000000e-01 : f32
    %163 = vector.broadcast %cst_120 : f32 to vector<256x8xf32>
    %164 = arith.mulf %163, %160 : vector<256x8xf32>
    %165 = arith.select %162, %160, %164 : vector<256x8xi1>, vector<256x8xf32>
    %c0_121 = arith.constant 0 : index
    %c0_122 = arith.constant 0 : index
    %166 = vector.load %arg8[%c0_121, %c0_122] : memref<64x256xf32, #tpu.memory_space<vmem>>, vector<64x256xf32>
    %cst_123 = arith.constant dense<0.000000e+00> : vector<64x8xf32>
    %167 = tpu.matmul %166, %165, %cst_123 {dimension_numbers = #tpu.dot_dimension_numbers<[1], [0], [0], [1], [0, 0, 1, 1], [], []>} : vector<64x256xf32>, vector<256x8xf32>, vector<64x8xf32> -> vector<64x8xf32>
    %c0_124 = arith.constant 0 : index
    %c0_125 = arith.constant 0 : index
    %c0_126 = arith.constant 0 : index
    %168 = vector.load %arg9[%c0_124, %c0_125, %c0_126] : memref<1x64x8xf32, #tpu.memory_space<vmem>>, vector<1x64x8xf32>
    %169 = vector.shape_cast %168 : vector<1x64x8xf32> to vector<64x8xf32>
    %170 = vector.shape_cast %167 : vector<64x8xf32> to vector<1x64x8xf32>
    tpu.vector_store %arg9[%c0_124, %c0_125, %c0_126], %170 {strides = array<i32>} : memref<1x64x8xf32, #tpu.memory_space<vmem>>, vector<1x64x8xf32>,
    return
  }
  func.func @transform_0(%arg0: i32) -> (i32, i32, i32) {
    %c0_i32 = arith.constant 0 : i32
    %c0_i32_0 = arith.constant 0 : i32
    %c0_i32_1 = arith.constant 0 : i32
    return %arg0, %c0_i32, %c0_i32_0 : i32, i32, i32
  }
  func.func @transform_1(%arg0: i32) -> (i32, i32, i32) {
    %c0_i32 = arith.constant 0 : i32
    %c0_i32_0 = arith.constant 0 : i32
    %c0_i32_1 = arith.constant 0 : i32
    %c0_i32_2 = arith.constant 0 : i32
    return %c0_i32, %c0_i32_0, %c0_i32_1 : i32, i32, i32
  }
  func.func @transform_2(%arg0: i32) -> (i32, i32) {
    %c0_i32 = arith.constant 0 : i32
    %c0_i32_0 = arith.constant 0 : i32
    %c0_i32_1 = arith.constant 0 : i32
    return %c0_i32, %c0_i32_0 : i32, i32
  }
  func.func @transform_3(%arg0: i32) -> (i32, i32, i32) {
    %c0_i32 = arith.constant 0 : i32
    %c0_i32_0 = arith.constant 0 : i32
    %c0_i32_1 = arith.constant 0 : i32
    %c0_i32_2 = arith.constant 0 : i32
    return %c0_i32, %c0_i32_0, %c0_i32_1 : i32, i32, i32
  }
  func.func @transform_4(%arg0: i32) -> (i32, i32) {
    %c0_i32 = arith.constant 0 : i32
    %c0_i32_0 = arith.constant 0 : i32
    %c0_i32_1 = arith.constant 0 : i32
    return %c0_i32, %c0_i32_0 : i32, i32
  }
  func.func @transform_5(%arg0: i32) -> (i32, i32) {
    %c0_i32 = arith.constant 0 : i32
    %c0_i32_0 = arith.constant 0 : i32
    %c0_i32_1 = arith.constant 0 : i32
    return %c0_i32, %c0_i32_0 : i32, i32
  }
  func.func @transform_6(%arg0: i32) -> (i32, i32) {
    %c0_i32 = arith.constant 0 : i32
    %c0_i32_0 = arith.constant 0 : i32
    %c0_i32_1 = arith.constant 0 : i32
    return %c0_i32, %c0_i32_0 : i32, i32
  }
  func.func @transform_7(%arg0: i32) -> (i32, i32) {
    %c0_i32 = arith.constant 0 : i32
    %c0_i32_0 = arith.constant 0 : i32
    %c0_i32_1 = arith.constant 0 : i32
    return %c0_i32, %c0_i32_0 : i32, i32
  }
  func.func @transform_8(%arg0: i32) -> (i32, i32, i32) {
    %c0_i32 = arith.constant 0 : i32
    %c0_i32_0 = arith.constant 0 : i32
    %c0_i32_1 = arith.constant 0 : i32
    return %arg0, %c0_i32, %c0_i32_0 : i32, i32, i32
  }
}

</mosaic_0001>

<llo_original>
// kernel: forward.1
$region0: #{forward.1}
  #allocation0 [shape = 'u32[]', space=smem, size = 0x4, offset = 0x4, fixed_abs, tag = 'smem constant byte address 0x4 - core index']
  #allocation1 [shape = 'u32[144,128]{1,0:T(1,128)}', space=vmem, size = 0x12000, scoped, tag = 'internal scratch']
  #allocation2 [shape = 'f32[304,8]{1,0:T(8,128)}', space=vmem, size = 0x26000, scoped, tag = 'scratch operand']
  %s0 = inlined_call_operand.vmem [shape: f32[2,304,4], index: 0, kind: input, shape index: {}]
  %s1 = inlined_call_operand.vmem [shape: bf16[9,4,8], index: 1, kind: input, shape index: {}]
  %s2 = inlined_call_operand.vmem [shape: f32[1,8], index: 2, kind: input, shape index: {}]
  %s3 = inlined_call_operand.vmem [shape: bf16[9,8,8], index: 3, kind: input, shape index: {}]
  %s4 = inlined_call_operand.vmem [shape: f32[1,8], index: 4, kind: input, shape index: {}]
  %s5 = inlined_call_operand.vmem [shape: f32[256,1], index: 5, kind: input, shape index: {}]
  %s6 = inlined_call_operand.vmem [shape: f32[256,1], index: 6, kind: input, shape index: {}]
  %s7 = inlined_call_operand.vmem [shape: f32[64,256], index: 7, kind: input, shape index: {}]
  %s8 = inlined_call_operand.vmem [shape: f32[2,64,8], index: 8, kind: output, shape index: {}]
  %s9 = sld [smem:[#allocation0]]
  $region65: #{forward.1} parent=0
    _
  %s11 = ssub.s32 1, %s9
  %s12 = scalar_select 0, %s11, %s9
  loop: start=0, step=1, limit=4
  $region2: #{forward.1} parent=0 // loop_pre_header
    _
  $region3: #{forward.1} parent=0 // loop_header
    %s14 = sphi 0, %s18
    %p15 = scmp.ge.s32.totalorder %s14, 4
    %s24 = sphi 0, %s26
    %s27 = sphi 0, %s24
    %s28 = sphi 0, %s27
    %s44 = sphi 0, %s28
    %s48 = sphi 0, %s48
    %s50 = sphi 0, %s48
    %s51 = sphi 0, %s50
    %s65 = sphi 0, %s51
    %s69 = sphi 0, %s69
    %s71 = sphi 0, %s69
    %s72 = sphi 0, %s71
    %s86 = sphi 0, %s72
    %s90 = sphi 0, %s90
    %s92 = sphi 0, %s90
    %s93 = sphi 0, %s92
    %s107 = sphi 0, %s93
    %s111 = sphi 0, %s111
    %s113 = sphi 0, %s111
    %s114 = sphi 0, %s113
    %s128 = sphi 0, %s114
    %s132 = sphi 0, %s132
    %s134 = sphi 0, %s132
    %s135 = sphi 0, %s134
    %s149 = sphi 0, %s135
    %s153 = sphi 0, %s153
    %s155 = sphi 0, %s153
    %s156 = sphi 0, %s155
    %s170 = sphi 0, %s156
    %s174 = sphi 0, %s174
    %s176 = sphi 0, %s174
    %s177 = sphi 0, %s176
    %s191 = sphi 0, %s177
    %s197 = sphi 0, %s199
    %s200 = sphi 0, %s197
    %s201 = sphi 0, %s200
    %s217 = sphi 0, %s201
  $region4: #{forward.1} parent=0 // loop_header_branch
    %17 = sbr.rel (%p15) target = $region8
  $region5: #{forward.1} parent=0 // loop_body
    %s19 = ssub.s32 %s14, 1
    %s20 = ssub.s32 %s14, 2
    %s21 = sadd.s32 %s14, 1
    %s22 = ssub.s32 %s14, %s21
    %p23 = scmp.eq.s32.totalorder %s22, 0
    %s25 = sadd.s32 %s24, 1
    %s26 = scalar_select %p23, %s24, %s25
    %p29 = pneg %p23
    %p30 = scmp.eq.s32.totalorder %s14, 1
    %p31 = por %p29, %p30
    %p32 = scmp.ne.s32.totalorder %s24, %s27
    %p33 = scmp.eq.s32.totalorder %s14, 0
    %p34 = por %p32, %p33
    %p35 = scmp.ne.s32.totalorder %s24, %s27
    %p36 = scmp.eq.s32.totalorder %s19, 1
    %p37 = por %p35, %p36
    %p38 = scmp.ne.s32.totalorder %s27, %s28
    %p39 = scmp.eq.s32.totalorder %s19, 0
    %p40 = por %p38, %p39
    %p41 = scmp.ne.s32.totalorder %s27, %s28
    %p42 = scmp.eq.s32.totalorder %s20, 1
    %p43 = por %p41, %p42
    %p45 = scmp.ne.s32.totalorder %s28, %s44
    %p46 = scmp.eq.s32.totalorder %s20, 0
    %p47 = por %p45, %p46
    %s49 = sadd.s32 %s48, 1
    %p52 = scmp.eq.s32.totalorder %s14, 1
    %p53 = scmp.ne.s32.totalorder %s48, %s50
    %p54 = scmp.eq.s32.totalorder %s14, 0
    %p55 = por %p53, %p54
    %p56 = scmp.ne.s32.totalorder %s48, %s50
    %p57 = scmp.eq.s32.totalorder %s19, 1
    %p58 = por %p56, %p57
    %p59 = scmp.ne.s32.totalorder %s50, %s51
    %p60 = scmp.eq.s32.totalorder %s19, 0
    %p61 = por %p59, %p60
    %p62 = scmp.ne.s32.totalorder %s50, %s51
    %p63 = scmp.eq.s32.totalorder %s20, 1
    %p64 = por %p62, %p63
    %p66 = scmp.ne.s32.totalorder %s51, %s65
    %p67 = scmp.eq.s32.totalorder %s20, 0
    %p68 = por %p66, %p67
    %s70 = sadd.s32 %s69, 1
    %p73 = scmp.eq.s32.totalorder %s14, 1
    %p74 = scmp.ne.s32.totalorder %s69, %s71
    %p75 = scmp.eq.s32.totalorder %s14, 0
    %p76 = por %p74, %p75
    %p77 = scmp.ne.s32.totalorder %s69, %s71
    %p78 = scmp.eq.s32.totalorder %s19, 1
    %p79 = por %p77, %p78
    %p80 = scmp.ne.s32.totalorder %s71, %s72
    %p81 = scmp.eq.s32.totalorder %s19, 0
    %p82 = por %p80, %p81
    %p83 = scmp.ne.s32.totalorder %s71, %s72
    %p84 = scmp.eq.s32.totalorder %s20, 1
    %p85 = por %p83, %p84
    %p87 = scmp.ne.s32.totalorder %s72, %s86
    %p88 = scmp.eq.s32.totalorder %s20, 0
    %p89 = por %p87, %p88
    %s91 = sadd.s32 %s90, 1
    %p94 = scmp.eq.s32.totalorder %s14, 1
    %p95 = scmp.ne.s32.totalorder %s90, %s92
    %p96 = scmp.eq.s32.totalorder %s14, 0
    %p97 = por %p95, %p96
    %p98 = scmp.ne.s32.totalorder %s90, %s92
    %p99 = scmp.eq.s32.totalorder %s19, 1
    %p100 = por %p98, %p99
    %p101 = scmp.ne.s32.totalorder %s92, %s93
    %p102 = scmp.eq.s32.totalorder %s19, 0
    %p103 = por %p101, %p102
    %p104 = scmp.ne.s32.totalorder %s92, %s93
    %p105 = scmp.eq.s32.totalorder %s20, 1
    %p106 = por %p104, %p105
    %p108 = scmp.ne.s32.totalorder %s93, %s107
    %p109 = scmp.eq.s32.totalorder %s20, 0
    %p110 = por %p108, %p109
    %s112 = sadd.s32 %s111, 1
    %p115 = scmp.eq.s32.totalorder %s14, 1
    %p116 = scmp.ne.s32.totalorder %s111, %s113
    %p117 = scmp.eq.s32.totalorder %s14, 0
    %p118 = por %p116, %p117
    %p119 = scmp.ne.s32.totalorder %s111, %s113
    %p120 = scmp.eq.s32.totalorder %s19, 1
    %p121 = por %p119, %p120
    %p122 = scmp.ne.s32.totalorder %s113, %s114
    %p123 = scmp.eq.s32.totalorder %s19, 0
    %p124 = por %p122, %p123
    %p125 = scmp.ne.s32.totalorder %s113, %s114
    %p126 = scmp.eq.s32.totalorder %s20, 1
    %p127 = por %p125, %p126
    %p129 = scmp.ne.s32.totalorder %s114, %s128
    %p130 = scmp.eq.s32.totalorder %s20, 0
    %p131 = por %p129, %p130
    %s133 = sadd.s32 %s132, 1
    %p136 = scmp.eq.s32.totalorder %s14, 1
    %p137 = scmp.ne.s32.totalorder %s132, %s134
    %p138 = scmp.eq.s32.totalorder %s14, 0
    %p139 = por %p137, %p138
    %p140 = scmp.ne.s32.totalorder %s132, %s134
    %p141 = scmp.eq.s32.totalorder %s19, 1
    %p142 = por %p140, %p141
    %p143 = scmp.ne.s32.totalorder %s134, %s135
    %p144 = scmp.eq.s32.totalorder %s19, 0
    %p145 = por %p143, %p144
    %p146 = scmp.ne.s32.totalorder %s134, %s135
    %p147 = scmp.eq.s32.totalorder %s20, 1
    %p148 = por %p146, %p147
    %p150 = scmp.ne.s32.totalorder %s135, %s149
    %p151 = scmp.eq.s32.totalorder %s20, 0
    %p152 = por %p150, %p151
    %s154 = sadd.s32 %s153, 1
    %p157 = scmp.eq.s32.totalorder %s14, 1
    %p158 = scmp.ne.s32.totalorder %s153, %s155
    %p159 = scmp.eq.s32.totalorder %s14, 0
    %p160 = por %p158, %p159
    %p161 = scmp.ne.s32.totalorder %s153, %s155
    %p162 = scmp.eq.s32.totalorder %s19, 1
    %p163 = por %p161, %p162
    %p164 = scmp.ne.s32.totalorder %s155, %s156
    %p165 = scmp.eq.s32.totalorder %s19, 0
    %p166 = por %p164, %p165
    %p167 = scmp.ne.s32.totalorder %s155, %s156
    %p168 = scmp.eq.s32.totalorder %s20, 1
    %p169 = por %p167, %p168
    %p171 = scmp.ne.s32.totalorder %s156, %s170
    %p172 = scmp.eq.s32.totalorder %s20, 0
    %p173 = por %p171, %p172
    %s175 = sadd.s32 %s174, 1
    %p178 = scmp.eq.s32.totalorder %s14, 1
    %p179 = scmp.ne.s32.totalorder %s174, %s176
    %p180 = scmp.eq.s32.totalorder %s14, 0
    %p181 = por %p179, %p180
    %p182 = scmp.ne.s32.totalorder %s174, %s176
    %p183 = scmp.eq.s32.totalorder %s19, 1
    %p184 = por %p182, %p183
    %p185 = scmp.ne.s32.totalorder %s176, %s177
    %p186 = scmp.eq.s32.totalorder %s19, 0
    %p187 = por %p185, %p186
    %p188 = scmp.ne.s32.totalorder %s176, %s177
    %p189 = scmp.eq.s32.totalorder %s20, 1
    %p190 = por %p188, %p189
    %p192 = scmp.ne.s32.totalorder %s177, %s191
    %p193 = scmp.eq.s32.totalorder %s20, 0
    %p194 = por %p192, %p193
    %s195 = ssub.s32 %s14, %s21
    %p196 = scmp.eq.s32.totalorder %s195, 0
    %s198 = sadd.s32 %s197, 1
    %s199 = scalar_select %p196, %s197, %s198
    %p202 = pneg %p196
    %p203 = scmp.eq.s32.totalorder %s14, 1
    %p204 = por %p202, %p203
    %p205 = scmp.ne.s32.totalorder %s197, %s200
    %p206 = scmp.eq.s32.totalorder %s14, 0
    %p207 = por %p205, %p206
    %p208 = scmp.ne.s32.totalorder %s197, %s200
    %p209 = scmp.eq.s32.totalorder %s19, 1
    %p210 = por %p208, %p209
    %p211 = scmp.ne.s32.totalorder %s200, %s201
    %p212 = scmp.eq.s32.totalorder %s19, 0
    %p213 = por %p211, %p212
    %p214 = scmp.ne.s32.totalorder %s200, %s201
    %p215 = scmp.eq.s32.totalorder %s20, 1
    %p216 = por %p214, %p215
    %p218 = scmp.ne.s32.totalorder %s201, %s217
    %p219 = scmp.eq.s32.totalorder %s20, 0
    %p220 = por %p218, %p219
    %p221 = scmp.le.s32.totalorder 1, %s14
    %p222 = scmp.lt.s32.totalorder %s14, 3
    %p223 = pnand %p221, %p222
    %p224 = pneg %p223
    // Predicated region
    $region9: #{forward.1} parent=5 // pred_check
      _
    $region10: #{forward.1} parent=5 // pred_check_branch
      %226 = sbr.rel (%p223) target = $region12
    $region11: #{forward.1} parent=5 // pred_region
      %s227 = ssub.s32 %s14, 1
      // Predicated region
      $region13: #{forward.1} parent=11 // pred_check
        %p228 = pneg %p61
      $region14: #{forward.1} parent=11 // pred_check_branch
        %230 = sbr.rel (%p228) target = $region16
      $region15: #{forward.1} parent=11 // pred_region
        _
      $region16: #{forward.1} parent=11 // pred_fallthru
        _
      // Predicated region
      $region17: #{forward.1} parent=11 // pred_check
        %p231 = pneg %p82
      $region18: #{forward.1} parent=11 // pred_check_branch
        %233 = sbr.rel (%p231) target = $region20
      $region19: #{forward.1} parent=11 // pred_region
        _
      $region20: #{forward.1} parent=11 // pred_fallthru
        _
      // Predicated region
      $region21: #{forward.1} parent=11 // pred_check
        %p234 = pneg %p103
      $region22: #{forward.1} parent=11 // pred_check_branch
        %236 = sbr.rel (%p234) target = $region24
      $region23: #{forward.1} parent=11 // pred_region
        _
      $region24: #{forward.1} parent=11 // pred_fallthru
        _
      // Predicated region
      $region25: #{forward.1} parent=11 // pred_check
        %p237 = pneg %p124
      $region26: #{forward.1} parent=11 // pred_check_branch
        %239 = sbr.rel (%p237) target = $region28
      $region27: #{forward.1} parent=11 // pred_region
        _
      $region28: #{forward.1} parent=11 // pred_fallthru
        _
      // Predicated region
      $region29: #{forward.1} parent=11 // pred_check
        %p240 = pneg %p145
      $region30: #{forward.1} parent=11 // pred_check_branch
        %242 = sbr.rel (%p240) target = $region32
      $region31: #{forward.1} parent=11 // pred_region
        _
      $region32: #{forward.1} parent=11 // pred_fallthru
        _
      // Predicated region
      $region33: #{forward.1} parent=11 // pred_check
        %p243 = pneg %p166
      $region34: #{forward.1} parent=11 // pred_check_branch
        %245 = sbr.rel (%p243) target = $region36
      $region35: #{forward.1} parent=11 // pred_region
        _
      $region36: #{forward.1} parent=11 // pred_fallthru
        _
      // Predicated region
      $region37: #{forward.1} parent=11 // pred_check
        %p246 = pneg %p187
      $region38: #{forward.1} parent=11 // pred_check_branch
        %248 = sbr.rel (%p246) target = $region40
      $region39: #{forward.1} parent=11 // pred_region
        _
      $region40: #{forward.1} parent=11 // pred_fallthru
        _
    $region12: #{forward.1} parent=5 // pred_fallthru
      _
    %p249 = scmp.lt.s32.totalorder %s14, 2
    // Predicated region
    $region41: #{forward.1} parent=5 // pred_check
      %p250 = pneg %p249
    $region42: #{forward.1} parent=5 // pred_check_branch
      %252 = sbr.rel (%p250) target = $region44
    $region43: #{forward.1} parent=5 // pred_region
      // Predicated region
      $region45: #{forward.1} parent=43 // pred_check
        %p253 = pneg %p34
      $region46: #{forward.1} parent=43 // pred_check_branch
        %255 = sbr.rel (%p253) target = $region48
      $region47: #{forward.1} parent=43 // pred_region
        %p256 = scmp.lt.s32.totalorder %s14, 1
        %s257 = scalar_select %p256, %s14, 1
        %s258 = smul.addr %s257, 38
        %s259 = smul.addr %s258, 8
        %s260 = scalar_lea.vmem %s0, %s259
      $region48: #{forward.1} parent=43 // pred_fallthru
        _
    $region44: #{forward.1} parent=5 // pred_fallthru
      _
    %p261 = scmp.le.s32.totalorder 1, %s14
    %p262 = scmp.lt.s32.totalorder %s14, 3
    %p263 = pnand %p261, %p262
    %p264 = pneg %p263
    // Predicated region
    $region49: #{forward.1} parent=5 // pred_check
      _
    $region50: #{forward.1} parent=5 // pred_check_branch
      %266 = sbr.rel (%p263) target = $region52
    $region51: #{forward.1} parent=5 // pred_region
      %s267 = ssub.s32 %s14, 1
      %p268 = scmp.lt.s32.totalorder %s19, 1
      %s269 = scalar_select %p268, %s19, 1
      %s270 = smul.addr %s269, 38
      %s271 = smul.addr %s270, 8
      %s272 = scalar_lea.vmem %s0, %s271
      %p273 = pneg %p40
      %p274 = pneg %p37
      %p275 = pneg %p61
      %p276 = pneg %p58
      %p277 = pneg %p82
      %p278 = pneg %p79
      %p279 = pneg %p103
      %p280 = pneg %p100
      %p281 = pneg %p124
      %p282 = pneg %p121
      %p283 = pneg %p145
      %p284 = pneg %p142
      %p285 = pneg %p166
      %p286 = pneg %p163
      %p287 = pneg %p187
      %p288 = pneg %p184
      %p289 = pneg %p213
      %p290 = pneg %p210
      %p291 = scmp.lt.s32.totalorder %s19, 1
      %s292 = scalar_select %p291, %s19, 1
      %s293 = smul.addr %s292, 8
      %s294 = smul.addr %s293, 8
      %s295 = scalar_lea.vmem %s8, %s294
      %p296 = scmp.lt.s32.totalorder %s19, 1
      %s297 = scalar_select %p296, %s19, 1
      %s298 = smul.addr %s297, 38
      %s299 = smul.addr %s298, 8
      %s300 = scalar_lea.vmem %s0, %s299
      %p301 = scmp.lt.s32.totalorder %s19, 1
      %s302 = scalar_select %p301, %s19, 1
      %s303 = smul.addr %s302, 8
      %s304 = smul.addr %s303, 8
      %s305 = scalar_lea.vmem %s8, %s304
      %v307 = vld [vmem:[%s5] sm:$0xff]
      %v308 = vld [vmem:[%s5 + $0x8] sm:$0xff]
      %v309 = vld [vmem:[%s5 + $0x10] sm:$0xff]
      %v310 = vld [vmem:[%s5 + $0x18] sm:$0xff]
      %v311 = vld [vmem:[%s5 + $0x20] sm:$0xff]
      %v312 = vld [vmem:[%s5 + $0x28] sm:$0xff]
      %v313 = vld [vmem:[%s5 + $0x30] sm:$0xff]
      %v314 = vld [vmem:[%s5 + $0x38] sm:$0xff]
      %v315 = vld [vmem:[%s5 + $0x40] sm:$0xff]
      %v316 = vld [vmem:[%s5 + $0x48] sm:$0xff]
      %v317 = vld [vmem:[%s5 + $0x50] sm:$0xff]
      %v318 = vld [vmem:[%s5 + $0x58] sm:$0xff]
      %v319 = vld [vmem:[%s5 + $0x60] sm:$0xff]
      %v320 = vld [vmem:[%s5 + $0x68] sm:$0xff]
      %v321 = vld [vmem:[%s5 + $0x70] sm:$0xff]
      %v322 = vld [vmem:[%s5 + $0x78] sm:$0xff]
      %v323 = vld [vmem:[%s5 + $0x80] sm:$0xff]
      %v324 = vld [vmem:[%s5 + $0x88] sm:$0xff]
      %v325 = vld [vmem:[%s5 + $0x90] sm:$0xff]
      %v326 = vld [vmem:[%s5 + $0x98] sm:$0xff]
      %v327 = vld [vmem:[%s5 + $0xa0] sm:$0xff]
      %v328 = vld [vmem:[%s5 + $0xa8] sm:$0xff]
      %v329 = vld [vmem:[%s5 + $0xb0] sm:$0xff]
      %v330 = vld [vmem:[%s5 + $0xb8] sm:$0xff]
      %v331 = vld [vmem:[%s5 + $0xc0] sm:$0xff]
      %v332 = vld [vmem:[%s5 + $0xc8] sm:$0xff]
      %v333 = vld [vmem:[%s5 + $0xd0] sm:$0xff]
      %v334 = vld [vmem:[%s5 + $0xd8] sm:$0xff]
      %v335 = vld [vmem:[%s5 + $0xe0] sm:$0xff]
      %v336 = vld [vmem:[%s5 + $0xe8] sm:$0xff]
      %v337 = vld [vmem:[%s5 + $0xf0] sm:$0xff]
      %v338 = vld [vmem:[%s5 + $0xf8] sm:$0xff]
      %v339 = vld [vmem:[%s6] sm:$0xff]
      %v340 = vld [vmem:[%s6 + $0x8] sm:$0xff]
      %v341 = vld [vmem:[%s6 + $0x10] sm:$0xff]
      %v342 = vld [vmem:[%s6 + $0x18] sm:$0xff]
      %v343 = vld [vmem:[%s6 + $0x20] sm:$0xff]
      %v344 = vld [vmem:[%s6 + $0x28] sm:$0xff]
      %v345 = vld [vmem:[%s6 + $0x30] sm:$0xff]
      %v346 = vld [vmem:[%s6 + $0x38] sm:$0xff]
      %v347 = vld [vmem:[%s6 + $0x40] sm:$0xff]
      %v348 = vld [vmem:[%s6 + $0x48] sm:$0xff]
      %v349 = vld [vmem:[%s6 + $0x50] sm:$0xff]
      %v350 = vld [vmem:[%s6 + $0x58] sm:$0xff]
      %v351 = vld [vmem:[%s6 + $0x60] sm:$0xff]
      %v352 = vld [vmem:[%s6 + $0x68] sm:$0xff]
      %v353 = vld [vmem:[%s6 + $0x70] sm:$0xff]
      %v354 = vld [vmem:[%s6 + $0x78] sm:$0xff]
      %v355 = vld [vmem:[%s6 + $0x80] sm:$0xff]
      %v356 = vld [vmem:[%s6 + $0x88] sm:$0xff]
      %v357 = vld [vmem:[%s6 + $0x90] sm:$0xff]
      %v358 = vld [vmem:[%s6 + $0x98] sm:$0xff]
      %v359 = vld [vmem:[%s6 + $0xa0] sm:$0xff]
      %v360 = vld [vmem:[%s6 + $0xa8] sm:$0xff]
      %v361 = vld [vmem:[%s6 + $0xb0] sm:$0xff]
      %v362 = vld [vmem:[%s6 + $0xb8] sm:$0xff]
      %v363 = vld [vmem:[%s6 + $0xc0] sm:$0xff]
      %v364 = vld [vmem:[%s6 + $0xc8] sm:$0xff]
      %v365 = vld [vmem:[%s6 + $0xd0] sm:$0xff]
      %v366 = vld [vmem:[%s6 + $0xd8] sm:$0xff]
      %v367 = vld [vmem:[%s6 + $0xe0] sm:$0xff]
      %v368 = vld [vmem:[%s6 + $0xe8] sm:$0xff]
      %v369 = vld [vmem:[%s6 + $0xf0] sm:$0xff]
      %v370 = vld [vmem:[%s6 + $0xf8] sm:$0xff]
      %v371 = vld [vmem:[%s300 + $0x7] sm:$0xff]
      %v372 = vld [vmem:[%s300 + $0xf] sm:$0xff]
      %v373 = vld [vmem:[%s300 + $0x17] sm:$0xff]
      %v374 = vld [vmem:[%s300 + $0x1f] sm:$0xff]
      %v375 = vld [vmem:[%s300 + $0x27] sm:$0xff]
      %v376 = vld [vmem:[%s300 + $0x2f] sm:$0xff]
      %v377 = vld [vmem:[%s300 + $0x37] sm:$0xff]
      %v378 = vld [vmem:[%s300 + $0x3f] sm:$0xff]
      %v379 = vld [vmem:[%s300 + $0x47] sm:$0xff]
      %v380 = vld [vmem:[%s300 + $0x4f] sm:$0xff]
      %v381 = vld [vmem:[%s300 + $0x57] sm:$0xff]
      %v382 = vld [vmem:[%s300 + $0x5f] sm:$0xff]
      %v383 = vld [vmem:[%s300 + $0x67] sm:$0xff]
      %v384 = vld [vmem:[%s300 + $0x6f] sm:$0xff]
      %v385 = vld [vmem:[%s300 + $0x77] sm:$0xff]
      %v386 = vld [vmem:[%s300 + $0x7f] sm:$0xff]
      %v387 = vld [vmem:[%s300 + $0x87] sm:$0xff]
      %v388 = vld [vmem:[%s300 + $0x8f] sm:$0xff]
      %v389 = vld [vmem:[%s300 + $0x97] sm:$0xff]
      %v390 = vld [vmem:[%s300 + $0x9f] sm:$0xff]
      %v391 = vld [vmem:[%s300 + $0xa7] sm:$0xff]
      %v392 = vld [vmem:[%s300 + $0xaf] sm:$0xff]
      %v393 = vld [vmem:[%s300 + $0xb7] sm:$0xff]
      %v394 = vld [vmem:[%s300 + $0xbf] sm:$0xff]
      %v395 = vld [vmem:[%s300 + $0xc7] sm:$0xff]
      %v396 = vld [vmem:[%s300 + $0xcf] sm:$0xff]
      %v397 = vld [vmem:[%s300 + $0xd7] sm:$0xff]
      %v398 = vld [vmem:[%s300 + $0xdf] sm:$0xff]
      %v399 = vld [vmem:[%s300 + $0xe7] sm:$0xff]
      %v400 = vld [vmem:[%s300 + $0xef] sm:$0xff]
      %v401 = vld [vmem:[%s300 + $0xf7] sm:$0xff]
      %v402 = vld [vmem:[%s300 + $0xff] sm:$0xff]
      %v403 = vpack.c.bf16 %v372, %v371
      %v404 = vpack.c.bf16 %v374, %v373
      %v405 = vpack.c.bf16 %v376, %v375
      %v406 = vpack.c.bf16 %v378, %v377
      %v407 = vpack.c.bf16 %v380, %v379
      %v408 = vpack.c.bf16 %v382, %v381
      %v409 = vpack.c.bf16 %v384, %v383
      %v410 = vpack.c.bf16 %v386, %v385
      %v411 = vpack.c.bf16 %v388, %v387
      %v412 = vpack.c.bf16 %v390, %v389
      %v413 = vpack.c.bf16 %v392, %v391
      %v414 = vpack.c.bf16 %v394, %v393
      %v415 = vpack.c.bf16 %v396, %v395
      %v416 = vpack.c.bf16 %v398, %v397
      %v417 = vpack.c.bf16 %v400, %v399
      %v418 = vpack.c.bf16 %v402, %v401
      %v419 = vld [vmem:[%s1] sm:$0x3]
      %vm420 = vcmask 31744
      %v422 = vsel %vm420, %v403, 0
      %v425 = vsel %vm420, %v404, 0
      %v428 = vsel %vm420, %v405, 0
      %v431 = vsel %vm420, %v406, 0
      %v434 = vsel %vm420, %v407, 0
      %v437 = vsel %vm420, %v408, 0
      %v440 = vsel %vm420, %v409, 0
      %v443 = vsel %vm420, %v410, 0
      %v446 = vsel %vm420, %v411, 0
      %v449 = vsel %vm420, %v412, 0
      %v452 = vsel %vm420, %v413, 0
      %v455 = vsel %vm420, %v414, 0
      %v458 = vsel %vm420, %v415, 0
      %v461 = vsel %vm420, %v416, 0
      %v464 = vsel %vm420, %v417, 0
      %v467 = vsel %vm420, %v418, 0
      %vm469 = vcmask 1041408
      %v471 = vsel %vm469, %v419, 0
      %473 = vmatprep.subr.bf16.mxu0 0
      %474 = vmatpush1.bf16.msra.mxu0 %v471
      %475 = vmatprep.subr.bf16.mxu0 0
      %476 = vmatpush1.bf16.msra.mxu0 0
      %477 = vmatprep.subr.bf16.mxu0 0
      %478 = vmatpush1.bf16.msra.mxu0 0
      %479 = vmatprep.subr.bf16.mxu0 0
      %480 = vmatpush1.bf16.msra.mxu0 0
      %481 = vmatprep.subr.bf16.mxu0 0
      %482 = vmatpush1.bf16.msra.mxu0 0
      %483 = vmatprep.subr.bf16.mxu0 0
      %484 = vmatpush1.bf16.msra.mxu0 0
      %485 = vmatprep.subr.bf16.mxu0 0
      %486 = vmatpush1.bf16.msra.mxu0 0
      %487 = vmatprep.subr.bf16.mxu0 0
      %488 = vmatpush1.bf16.msra.mxu0 0
      %489 = vmatprep.subr.bf16.mxu0 0
      %490 = vmatpush1.bf16.msra.mxu0 0
      %491 = vmatprep.subr.bf16.mxu0 0
      %492 = vmatpush1.bf16.msra.mxu0 0
      %493 = vmatprep.subr.bf16.mxu0 0
      %494 = vmatpush1.bf16.msra.mxu0 0
      %495 = vmatprep.subr.bf16.mxu0 0
      %496 = vmatpush1.bf16.msra.mxu0 0
      %497 = vmatprep.subr.bf16.mxu0 0
      %498 = vmatpush1.bf16.msra.mxu0 0
      %499 = vmatprep.subr.bf16.mxu0 0
      %500 = vmatpush1.bf16.msra.mxu0 0
      %501 = vmatprep.subr.bf16.mxu0 0
      %502 = vmatpush1.bf16.msra.mxu0 0
      %503 = vmatprep.subr.bf16.mxu0 0
      %504 = vmatpush1.bf16.msra.mxu0 0
      %505 = vmatprep.mubr.bf16.mxu0 0
      %506 = vmatmul.mubr.bf16.gmra.mrb[0].mxu0 %v422
      %v507 = vpop.f32.mrb[0].mxu0
      %v508 = vadd.f32 0.0, %v507
      %v509 = vpop.f32.mrb[0].mxu0
      %v510 = vpop.f32.mrb[0].mxu0
      %v511 = vadd.f32 0.0, %v510
      %v512 = vpop.f32.mrb[0].mxu0
      %513 = vmatprep.mubr.bf16.mxu0 0
      %514 = vmatmul.mubr.bf16.gmra.mrb[0].mxu0 %v425
      %v515 = vpop.f32.mrb[0].mxu0
      %v516 = vadd.f32 0.0, %v515
      %v517 = vpop.f32.mrb[0].mxu0
      %v518 = vpop.f32.mrb[0].mxu0
      %v519 = vadd.f32 0.0, %v518
      %v520 = vpop.f32.mrb[0].mxu0
      %521 = vmatprep.mubr.bf16.mxu0 0
      %522 = vmatmul.mubr.bf16.gmra.mrb[0].mxu0 %v428
      %v523 = vpop.f32.mrb[0].mxu0
      %v524 = vadd.f32 0.0, %v523
      %v525 = vpop.f32.mrb[0].mxu0
      %v526 = vpop.f32.mrb[0].mxu0
      %v527 = vadd.f32 0.0, %v526
      %v528 = vpop.f32.mrb[0].mxu0
      %529 = vmatprep.mubr.bf16.mxu0 0
      %530 = vmatmul.mubr.bf16.gmra.mrb[0].mxu0 %v431
      %v531 = vpop.f32.mrb[0].mxu0
      %v532 = vadd.f32 0.0, %v531
      %v533 = vpop.f32.mrb[0].mxu0
      %v534 = vpop.f32.mrb[0].mxu0
      %v535 = vadd.f32 0.0, %v534
      %v536 = vpop.f32.mrb[0].mxu0
      %537 = vmatprep.mubr.bf16.mxu0 0
      %538 = vmatmul.mubr.bf16.gmra.mrb[0].mxu0 %v434
      %v539 = vpop.f32.mrb[0].mxu0
      %v540 = vadd.f32 0.0, %v539
      %v541 = vpop.f32.mrb[0].mxu0
      %v542 = vpop.f32.mrb[0].mxu0
      %v543 = vadd.f32 0.0, %v542
      %v544 = vpop.f32.mrb[0].mxu0
      %545 = vmatprep.mubr.bf16.mxu0 0
      %546 = vmatmul.mubr.bf16.gmra.mrb[0].mxu0 %v437
      %v547 = vpop.f32.mrb[0].mxu0
      %v548 = vadd.f32 0.0, %v547
      %v549 = vpop.f32.mrb[0].mxu0
      %v550 = vpop.f32.mrb[0].mxu0
      %v551 = vadd.f32 0.0, %v550
      %v552 = vpop.f32.mrb[0].mxu0
      %553 = vmatprep.mubr.bf16.mxu0 0
      %554 = vmatmul.mubr.bf16.gmra.mrb[0].mxu0 %v440
      %v555 = vpop.f32.mrb[0].mxu0
      %v556 = vadd.f32 0.0, %v555
      %v557 = vpop.f32.mrb[0].mxu0
      %v558 = vpop.f32.mrb[0].mxu0
      %v559 = vadd.f32 0.0, %v558
      %v560 = vpop.f32.mrb[0].mxu0
      %561 = vmatprep.mubr.bf16.mxu0 0
      %562 = vmatmul.mubr.bf16.gmra.mrb[0].mxu0 %v443
      %v563 = vpop.f32.mrb[0].mxu0
      %v564 = vadd.f32 0.0, %v563
      %v565 = vpop.f32.mrb[0].mxu0
      %v566 = vpop.f32.mrb[0].mxu0
      %v567 = vadd.f32 0.0, %v566
      %v568 = vpop.f32.mrb[0].mxu0
      %569 = vmatprep.mubr.bf16.mxu0 0
      %570 = vmatmul.mubr.bf16.gmra.mrb[0].mxu0 %v446
      %v571 = vpop.f32.mrb[0].mxu0
      %v572 = vadd.f32 0.0, %v571
      %v573 = vpop.f32.mrb[0].mxu0
      %v574 = vpop.f32.mrb[0].mxu0
      %v575 = vadd.f32 0.0, %v574
      %v576 = vpop.f32.mrb[0].mxu0
      %577 = vmatprep.mubr.bf16.mxu0 0
      %578 = vmatmul.mubr.bf16.gmra.mrb[0].mxu0 %v449
      %v579 = vpop.f32.mrb[0].mxu0
      %v580 = vadd.f32 0.0, %v579
      %v581 = vpop.f32.mrb[0].mxu0
      %v582 = vpop.f32.mrb[0].mxu0
      %v583 = vadd.f32 0.0, %v582
      %v584 = vpop.f32.mrb[0].mxu0
      %585 = vmatprep.mubr.bf16.mxu0 0
      %586 = vmatmul.mubr.bf16.gmra.mrb[0].mxu0 %v452
      %v587 = vpop.f32.mrb[0].mxu0
      %v588 = vadd.f32 0.0, %v587
      %v589 = vpop.f32.mrb[0].mxu0
      %v590 = vpop.f32.mrb[0].mxu0
      %v591 = vadd.f32 0.0, %v590
      %v592 = vpop.f32.mrb[0].mxu0
      %593 = vmatprep.mubr.bf16.mxu0 0
      %594 = vmatmul.mubr.bf16.gmra.mrb[0].mxu0 %v455
      %v595 = vpop.f32.mrb[0].mxu0
      %v596 = vadd.f32 0.0, %v595
      %v597 = vpop.f32.mrb[0].mxu0
      %v598 = vpop.f32.mrb[0].mxu0
      %v599 = vadd.f32 0.0, %v598
      %v600 = vpop.f32.mrb[0].mxu0
      %601 = vmatprep.mubr.bf16.mxu0 0
      %602 = vmatmul.mubr.bf16.gmra.mrb[0].mxu0 %v458
      %v603 = vpop.f32.mrb[0].mxu0
      %v604 = vadd.f32 0.0, %v603
      %v605 = vpop.f32.mrb[0].mxu0
      %v606 = vpop.f32.mrb[0].mxu0
      %v607 = vadd.f32 0.0, %v606
      %v608 = vpop.f32.mrb[0].mxu0
      %609 = vmatprep.mubr.bf16.mxu0 0
      %610 = vmatmul.mubr.bf16.gmra.mrb[0].mxu0 %v461
      %v611 = vpop.f32.mrb[0].mxu0
      %v612 = vadd.f32 0.0, %v611
      %v613 = vpop.f32.mrb[0].mxu0
      %v614 = vpop.f32.mrb[0].mxu0
      %v615 = vadd.f32 0.0, %v614
      %v616 = vpop.f32.mrb[0].mxu0
      %617 = vmatprep.mubr.bf16.mxu0 0
      %618 = vmatmul.mubr.bf16.gmra.mrb[0].mxu0 %v464
      %v619 = vpop.f32.mrb[0].mxu0
      %v620 = vadd.f32 0.0, %v619
      %v621 = vpop.f32.mrb[0].mxu0
      %v622 = vpop.f32.mrb[0].mxu0
      %v623 = vadd.f32 0.0, %v622
      %v624 = vpop.f32.mrb[0].mxu0
      %625 = vmatprep.mubr.bf16.mxu0 0
      %626 = vmatmul.mubr.bf16.gmra.mrb[0].mxu0 %v467
      %v627 = vpop.f32.mrb[0].mxu0
      %v628 = vadd.f32 0.0, %v627
      %v629 = vpop.f32.mrb[0].mxu0
      %v630 = vpop.f32.mrb[0].mxu0
      %v631 = vadd.f32 0.0, %v630
      %v632 = vpop.f32.mrb[0].mxu0
      %633 = vdwg.mxu0
      %635 = vset.pattern.permute.xlu0 0
      %636 = vperm.xlu0 %635, %v307
      %v637 = vpop.permute.xlu0 %636
      %640 = vset.pattern.permute.xlu0 0
      %641 = vperm.xlu0 %640, %v308
      %v642 = vpop.permute.xlu0 %641
      %645 = vset.pattern.permute.xlu0 0
      %646 = vperm.xlu0 %645, %v309
      %v647 = vpop.permute.xlu0 %646
      %650 = vset.pattern.permute.xlu0 0
      %651 = vperm.xlu0 %650, %v310
      %v652 = vpop.permute.xlu0 %651
      %655 = vset.pattern.permute.xlu0 0
      %656 = vperm.xlu0 %655, %v311
      %v657 = vpop.permute.xlu0 %656
      %660 = vset.pattern.permute.xlu0 0
      %661 = vperm.xlu0 %660, %v312
      %v662 = vpop.permute.xlu0 %661
      %665 = vset.pattern.permute.xlu0 0
      %666 = vperm.xlu0 %665, %v313
      %v667 = vpop.permute.xlu0 %666
      %670 = vset.pattern.permute.xlu0 0
      %671 = vperm.xlu0 %670, %v314
      %v672 = vpop.permute.xlu0 %671
      %675 = vset.pattern.permute.xlu0 0
      %676 = vperm.xlu0 %675, %v315
      %v677 = vpop.permute.xlu0 %676
      %680 = vset.pattern.permute.xlu0 0
      %681 = vperm.xlu0 %680, %v316
      %v682 = vpop.permute.xlu0 %681
      %685 = vset.pattern.permute.xlu0 0
      %686 = vperm.xlu0 %685, %v317
      %v687 = vpop.permute.xlu0 %686
      %690 = vset.pattern.permute.xlu0 0
      %691 = vperm.xlu0 %690, %v318
      %v692 = vpop.permute.xlu0 %691
      %695 = vset.pattern.permute.xlu0 0
      %696 = vperm.xlu0 %695, %v319
      %v697 = vpop.permute.xlu0 %696
      %700 = vset.pattern.permute.xlu0 0
      %701 = vperm.xlu0 %700, %v320
      %v702 = vpop.permute.xlu0 %701
      %705 = vset.pattern.permute.xlu0 0
      %706 = vperm.xlu0 %705, %v321
      %v707 = vpop.permute.xlu0 %706
      %710 = vset.pattern.permute.xlu0 0
      %711 = vperm.xlu0 %710, %v322
      %v712 = vpop.permute.xlu0 %711
      %715 = vset.pattern.permute.xlu0 0
      %716 = vperm.xlu0 %715, %v323
      %v717 = vpop.permute.xlu0 %716
      %720 = vset.pattern.permute.xlu0 0
      %721 = vperm.xlu0 %720, %v324
      %v722 = vpop.permute.xlu0 %721
      %725 = vset.pattern.permute.xlu0 0
      %726 = vperm.xlu0 %725, %v325
      %v727 = vpop.permute.xlu0 %726
      %730 = vset.pattern.permute.xlu0 0
      %731 = vperm.xlu0 %730, %v326
      %v732 = vpop.permute.xlu0 %731
      %735 = vset.pattern.permute.xlu0 0
      %736 = vperm.xlu0 %735, %v327
      %v737 = vpop.permute.xlu0 %736
      %740 = vset.pattern.permute.xlu0 0
      %741 = vperm.xlu0 %740, %v328
      %v742 = vpop.permute.xlu0 %741
      %745 = vset.pattern.permute.xlu0 0
      %746 = vperm.xlu0 %745, %v329
      %v747 = vpop.permute.xlu0 %746
      %750 = vset.pattern.permute.xlu0 0
      %751 = vperm.xlu0 %750, %v330
      %v752 = vpop.permute.xlu0 %751
      %755 = vset.pattern.permute.xlu0 0
      %756 = vperm.xlu0 %755, %v331
      %v757 = vpop.permute.xlu0 %756
      %760 = vset.pattern.permute.xlu0 0
      %761 = vperm.xlu0 %760, %v332
      %v762 = vpop.permute.xlu0 %761
      %765 = vset.pattern.permute.xlu0 0
      %766 = vperm.xlu0 %765, %v333
      %v767 = vpop.permute.xlu0 %766
      %770 = vset.pattern.permute.xlu0 0
      %771 = vperm.xlu0 %770, %v334
      %v772 = vpop.permute.xlu0 %771
      %775 = vset.pattern.permute.xlu0 0
      %776 = vperm.xlu0 %775, %v335
      %v777 = vpop.permute.xlu0 %776
      %780 = vset.pattern.permute.xlu0 0
      %781 = vperm.xlu0 %780, %v336
      %v782 = vpop.permute.xlu0 %781
      %785 = vset.pattern.permute.xlu0 0
      %786 = vperm.xlu0 %785, %v337
      %v787 = vpop.permute.xlu0 %786
      %790 = vset.pattern.permute.xlu0 0
      %791 = vperm.xlu0 %790, %v338
      %v792 = vpop.permute.xlu0 %791
      %v794 = vmul.f32 %v508, %v637
      %v795 = vmul.f32 %v511, %v642
      %v796 = vmul.f32 %v516, %v647
      %v797 = vmul.f32 %v519, %v652
      %v798 = vmul.f32 %v524, %v657
      %v799 = vmul.f32 %v527, %v662
      %v800 = vmul.f32 %v532, %v667
      %v801 = vmul.f32 %v535, %v672
      %v802 = vmul.f32 %v540, %v677
      %v803 = vmul.f32 %v543, %v682
      %v804 = vmul.f32 %v548, %v687
      %v805 = vmul.f32 %v551, %v692
      %v806 = vmul.f32 %v556, %v697
      %v807 = vmul.f32 %v559, %v702
      %v808 = vmul.f32 %v564, %v707
      %v809 = vmul.f32 %v567, %v712
      %v810 = vmul.f32 %v572, %v717
      %v811 = vmul.f32 %v575, %v722
      %v812 = vmul.f32 %v580, %v727
      %v813 = vmul.f32 %v583, %v732
      %v814 = vmul.f32 %v588, %v737
      %v815 = vmul.f32 %v591, %v742
      %v816 = vmul.f32 %v596, %v747
      %v817 = vmul.f32 %v599, %v752
      %v818 = vmul.f32 %v604, %v757
      %v819 = vmul.f32 %v607, %v762
      %v820 = vmul.f32 %v612, %v767
      %v821 = vmul.f32 %v615, %v772
      %v822 = vmul.f32 %v620, %v777
      %v823 = vmul.f32 %v623, %v782
      %v824 = vmul.f32 %v628, %v787
      %v825 = vmul.f32 %v631, %v792
      %v826 = vadd.f32 %v794, 0.0
      %v827 = vadd.f32 %v795, 0.0
      %v828 = vadd.f32 %v796, 0.0
      %v829 = vadd.f32 %v797, 0.0
      %v830 = vadd.f32 %v798, 0.0
      %v831 = vadd.f32 %v799, 0.0
      %v832 = vadd.f32 %v800, 0.0
      %v833 = vadd.f32 %v801, 0.0
      %v834 = vadd.f32 %v802, 0.0
      %v835 = vadd.f32 %v803, 0.0
      %v836 = vadd.f32 %v804, 0.0
      %v837 = vadd.f32 %v805, 0.0
      %v838 = vadd.f32 %v806, 0.0
      %v839 = vadd.f32 %v807, 0.0
      %v840 = vadd.f32 %v808, 0.0
      %v841 = vadd.f32 %v809, 0.0
      %v842 = vadd.f32 %v810, 0.0
      %v843 = vadd.f32 %v811, 0.0
      %v844 = vadd.f32 %v812, 0.0
      %v845 = vadd.f32 %v813, 0.0
      %v846 = vadd.f32 %v814, 0.0
      %v847 = vadd.f32 %v815, 0.0
      %v848 = vadd.f32 %v816, 0.0
      %v849 = vadd.f32 %v817, 0.0
      %v850 = vadd.f32 %v818, 0.0
      %v851 = vadd.f32 %v819, 0.0
      %v852 = vadd.f32 %v820, 0.0
      %v853 = vadd.f32 %v821, 0.0
      %v854 = vadd.f32 %v822, 0.0
      %v855 = vadd.f32 %v823, 0.0
      %v856 = vadd.f32 %v824, 0.0
      %v857 = vadd.f32 %v825, 0.0
      %v858 = vld [vmem:[%s300 + $0x8] sm:$0xff]
      %v859 = vld [vmem:[%s300 + $0x10] sm:$0xff]
      %v860 = vld [vmem:[%s300 + $0x18] sm:$0xff]
      %v861 = vld [vmem:[%s300 + $0x20] sm:$0xff]
      %v862 = vld [vmem:[%s300 + $0x28] sm:$0xff]
      %v863 = vld [vmem:[%s300 + $0x30] sm:$0xff]
      %v864 = vld [vmem:[%s300 + $0x38] sm:$0xff]
      %v865 = vld [vmem:[%s300 + $0x40] sm:$0xff]
      %v866 = vld [vmem:[%s300 + $0x48] sm:$0xff]
      %v867 = vld [vmem:[%s300 + $0x50] sm:$0xff]
      %v868 = vld [vmem:[%s300 + $0x58] sm:$0xff]
      %v869 = vld [vmem:[%s300 + $0x60] sm:$0xff]
      %v870 = vld [vmem:[%s300 + $0x68] sm:$0xff]
      %v871 = vld [vmem:[%s300 + $0x70] sm:$0xff]
      %v872 = vld [vmem:[%s300 + $0x78] sm:$0xff]
      %v873 = vld [vmem:[%s300 + $0x80] sm:$0xff]
      %v874 = vld [vmem:[%s300 + $0x88] sm:$0xff]
      %v875 = vld [vmem:[%s300 + $0x90] sm:$0xff]
      %v876 = vld [vmem:[%s300 + $0x98] sm:$0xff]
      %v877 = vld [vmem:[%s300 + $0xa0] sm:$0xff]
      %v878 = vld [vmem:[%s300 + $0xa8] sm:$0xff]
      %v879 = vld [vmem:[%s300 + $0xb0] sm:$0xff]
      %v880 = vld [vmem:[%s300 + $0xb8] sm:$0xff]
      %v881 = vld [vmem:[%s300 + $0xc0] sm:$0xff]
      %v882 = vld [vmem:[%s300 + $0xc8] sm:$0xff]
      %v883 = vld [vmem:[%s300 + $0xd0] sm:$0xff]
      %v884 = vld [vmem:[%s300 + $0xd8] sm:$0xff]
      %v885 = vld [vmem:[%s300 + $0xe0] sm:$0xff]
      %v886 = vld [vmem:[%s300 + $0xe8] sm:$0xff]
      %v887 = vld [vmem:[%s300 + $0xf0] sm:$0xff]
      %v888 = vld [vmem:[%s300 + $0xf8] sm:$0xff]
      %v889 = vld [vmem:[%s300 + $0x100] sm:$0xff]
      %v890 = vpack.c.bf16 %v859, %v858
      %v891 = vpack.c.bf16 %v861, %v860
      %v892 = vpack.c.bf16 %v863, %v862
      %v893 = vpack.c.bf16 %v865, %v864
      %v894 = vpack.c.bf16 %v867, %v866
      %v895 = vpack.c.bf16 %v869, %v868
      %v896 = vpack.c.bf16 %v871, %v870
      %v897 = vpack.c.bf16 %v873, %v872
      %v898 = vpack.c.bf16 %v875, %v874
      %v899 = vpack.c.bf16 %v877, %v876
      %v900 = vpack.c.bf16 %v879, %v878
      %v901 = vpack.c.bf16 %v881, %v880
      %v902 = vpack.c.bf16 %v883, %v882
      %v903 = vpack.c.bf16 %v885, %v884
      %v904 = vpack.c.bf16 %v887, %v886
      %v905 = vpack.c.bf16 %v889, %v888
      %s906 = scalar_lea.vmem %s1, 2
      %v907 = vld [vmem:[%s906] sm:$0x3]
      %v909 = vsel %vm420, %v890, 0
      %v912 = vsel %vm420, %v891, 0
      %v915 = vsel %vm420, %v892, 0
      %v918 = vsel %vm420, %v893, 0
      %v921 = vsel %vm420, %v894, 0
      %v924 = vsel %vm420, %v895, 0
      %v927 = vsel %vm420, %v896, 0
      %v930 = vsel %vm420, %v897, 0
      %v933 = vsel %vm420, %v898, 0
      %v936 = vsel %vm420, %v899, 0
      %v939 = vsel %vm420, %v900, 0
      %v942 = vsel %vm420, %v901, 0
      %v945 = vsel %vm420, %v902, 0
      %v948 = vsel %vm420, %v903, 0
      %v951 = vsel %vm420, %v904, 0
      %v954 = vsel %vm420, %v905, 0
      %v957 = vsel %vm469, %v907, 0
      %959 = vmatprep.subr.bf16.mxu0 0
      %960 = vmatpush1.bf16.msra.mxu0 %v957
      %961 = vmatprep.subr.bf16.mxu0 0
      %962 = vmatpush1.bf16.msra.mxu0 0
      %963 = vmatprep.subr.bf16.mxu0 0
      %964 = vmatpush1.bf16.msra.mxu0 0
      %965 = vmatprep.subr.bf16.mxu0 0
      %966 = vmatpush1.bf16.msra.mxu0 0
      %967 = vmatprep.subr.bf16.mxu0 0
      %968 = vmatpush1.bf16.msra.mxu0 0
      %969 = vmatprep.subr.bf16.mxu0 0
      %970 = vmatpush1.bf16.msra.mxu0 0
      %971 = vmatprep.subr.bf16.mxu0 0
      %972 = vmatpush1.bf16.msra.mxu0 0
      %973 = vmatprep.subr.bf16.mxu0 0
      %974 = vmatpush1.bf16.msra.mxu0 0
      %975 = vmatprep.subr.bf16.mxu0 0
      %976 = vmatpush1.bf16.msra.mxu0 0
      %977 = vmatprep.subr.bf16.mxu0 0
      %978 = vmatpush1.bf16.msra.mxu0 0
      %979 = vmatprep.subr.bf16.mxu0 0
      %980 = vmatpush1.bf16.msra.mxu0 0
      %981 = vmatprep.subr.bf16.mxu0 0
      %982 = vmatpush1.bf16.msra.mxu0 0
      %983 = vmatprep.subr.bf16.mxu0 0
      %984 = vmatpush1.bf16.msra.mxu0 0
      %985 = vmatprep.subr.bf16.mxu0 0
      %986 = vmatpush1.bf16.msra.mxu0 0
      %987 = vmatprep.subr.bf16.mxu0 0
      %988 = vmatpush1.bf16.msra.mxu0 0
      %989 = vmatprep.subr.bf16.mxu0 0
      %990 = vmatpush1.bf16.msra.mxu0 0
      %991 = vmatprep.mubr.bf16.mxu0 0
      %992 = vmatmul.mubr.bf16.gmra.mrb[0].mxu0 %v909
      %v993 = vpop.f32.mrb[0].mxu0
      %v994 = vadd.f32 0.0, %v993
      %v995 = vpop.f32.mrb[0].mxu0
      %v996 = vpop.f32.mrb[0].mxu0
      %v997 = vadd.f32 0.0, %v996
      %v998 = vpop.f32.mrb[0].mxu0
      %999 = vmatprep.mubr.bf16.mxu0 0
      %1000 = vmatmul.mubr.bf16.gmra.mrb[0].mxu0 %v912
      %v1001 = vpop.f32.mrb[0].mxu0
      %v1002 = vadd.f32 0.0, %v1001
      %v1003 = vpop.f32.mrb[0].mxu0
      %v1004 = vpop.f32.mrb[0].mxu0
      %v1005 = vadd.f32 0.0, %v1004
      %v1006 = vpop.f32.mrb[0].mxu0
      %1007 = vmatprep.mubr.bf16.mxu0 0
      %1008 = vmatmul.mubr.bf16.gmra.mrb[0].mxu0 %v915
      %v1009 = vpop.f32.mrb[0].mxu0
      %v1010 = vadd.f32 0.0, %v1009
      %v1011 = vpop.f32.mrb[0].mxu0
      %v1012 = vpop.f32.mrb[0].mxu0
      %v1013 = vadd.f32 0.0, %v1012
      %v1014 = vpop.f32.mrb[0].mxu0
      %1015 = vmatprep.mubr.bf16.mxu0 0
      %1016 = vmatmul.mubr.bf16.gmra.mrb[0].mxu0 %v918
      %v1017 = vpop.f32.mrb[0].mxu0
      %v1018 = vadd.f32 0.0, %v1017
      %v1019 = vpop.f32.mrb[0].mxu0
      %v1020 = vpop.f32.mrb[0].mxu0
      %v1021 = vadd.f32 0.0, %v1020
      %v1022 = vpop.f32.mrb[0].mxu0
      %1023 = vmatprep.mubr.bf16.mxu0 0
      %1024 = vmatmul.mubr.bf16.gmra.mrb[0].mxu0 %v921
      %v1025 = vpop.f32.mrb[0].mxu0
      %v1026 = vadd.f32 0.0, %v1025
      %v1027 = vpop.f32.mrb[0].mxu0
      %v1028 = vpop.f32.mrb[0].mxu0
      %v1029 = vadd.f32 0.0, %v1028
      %v1030 = vpop.f32.mrb[0].mxu0
      %1031 = vmatprep.mubr.bf16.mxu0 0
      %1032 = vmatmul.mubr.bf16.gmra.mrb[0].mxu0 %v924
      %v1033 = vpop.f32.mrb[0].mxu0
      %v1034 = vadd.f32 0.0, %v1033
      %v1035 = vpop.f32.mrb[0].mxu0
      %v1036 = vpop.f32.mrb[0].mxu0
      %v1037 = vadd.f32 0.0, %v1036
      %v1038 = vpop.f32.mrb[0].mxu0
      %1039 = vmatprep.mubr.bf16.mxu0 0
      %1040 = vmatmul.mubr.bf16.gmra.mrb[0].mxu0 %v927
      %v1041 = vpop.f32.mrb[0].mxu0
      %v1042 = vadd.f32 0.0, %v1041
      %v1043 = vpop.f32.mrb[0].mxu0
      %v1044 = vpop.f32.mrb[0].mxu0
      %v1045 = vadd.f32 0.0, %v1044
      %v1046 = vpop.f32.mrb[0].mxu0
      %1047 = vmatprep.mubr.bf16.mxu0 0
      %1048 = vmatmul.mubr.bf16.gmra.mrb[0].mxu0 %v930
      %v1049 = vpop.f32.mrb[0].mxu0
      %v1050 = vadd.f32 0.0, %v1049
      %v1051 = vpop.f32.mrb[0].mxu0
      %v1052 = vpop.f32.mrb[0].mxu0
      %v1053 = vadd.f32 0.0, %v1052
      %v1054 = vpop.f32.mrb[0].mxu0
      %1055 = vmatprep.mubr.bf16.mxu0 0
      %1056 = vmatmul.mubr.bf16.gmra.mrb[0].mxu0 %v933
      %v1057 = vpop.f32.mrb[0].mxu0
      %v1058 = vadd.f32 0.0, %v1057
      %v1059 = vpop.f32.mrb[0].mxu0
      %v1060 = vpop.f32.mrb[0].mxu0
      %v1061 = vadd.f32 0.0, %v1060
      %v1062 = vpop.f32.mrb[0].mxu0
      %1063 = vmatprep.mubr.bf16.mxu0 0
      %1064 = vmatmul.mubr.bf16.gmra.mrb[0].mxu0 %v936
      %v1065 = vpop.f32.mrb[0].mxu0
      %v1066 = vadd.f32 0.0, %v1065
      %v1067 = vpop.f32.mrb[0].mxu0
      %v1068 = vpop.f32.mrb[0].mxu0
      %v1069 = vadd.f32 0.0, %v1068
      %v1070 = vpop.f32.mrb[0].mxu0
      %1071 = vmatprep.mubr.bf16.mxu0 0
      %1072 = vmatmul.mubr.bf16.gmra.mrb[0].mxu0 %v939
      %v1073 = vpop.f32.mrb[0].mxu0
      %v1074 = vadd.f32 0.0, %v1073
      %v1075 = vpop.f32.mrb[0].mxu0
      %v1076 = vpop.f32.mrb[0].mxu0
      %v1077 = vadd.f32 0.0, %v1076
      %v1078 = vpop.f32.mrb[0].mxu0
      %1079 = vmatprep.mubr.bf16.mxu0 0
      %1080 = vmatmul.mubr.bf16.gmra.mrb[0].mxu0 %v942
      %v1081 = vpop.f32.mrb[0].mxu0
      %v1082 = vadd.f32 0.0, %v1081
      %v1083 = vpop.f32.mrb[0].mxu0
      %v1084 = vpop.f32.mrb[0].mxu0
      %v1085 = vadd.f32 0.0, %v1084
      %v1086 = vpop.f32.mrb[0].mxu0
      %1087 = vmatprep.mubr.bf16.mxu0 0
      %1088 = vmatmul.mubr.bf16.gmra.mrb[0].mxu0 %v945
      %v1089 = vpop.f32.mrb[0].mxu0
      %v1090 = vadd.f32 0.0, %v1089
      %v1091 = vpop.f32.mrb[0].mxu0
      %v1092 = vpop.f32.mrb[0].mxu0
      %v1093 = vadd.f32 0.0, %v1092
      %v1094 = vpop.f32.mrb[0].mxu0
      %1095 = vmatprep.mubr.bf16.mxu0 0
      %1096 = vmatmul.mubr.bf16.gmra.mrb[0].mxu0 %v948
      %v1097 = vpop.f32.mrb[0].mxu0
      %v1098 = vadd.f32 0.0, %v1097
      %v1099 = vpop.f32.mrb[0].mxu0
      %v1100 = vpop.f32.mrb[0].mxu0
      %v1101 = vadd.f32 0.0, %v1100
      %v1102 = vpop.f32.mrb[0].mxu0
      %1103 = vmatprep.mubr.bf16.mxu0 0
      %1104 = vmatmul.mubr.bf16.gmra.mrb[0].mxu0 %v951
      %v1105 = vpop.f32.mrb[0].mxu0
      %v1106 = vadd.f32 0.0, %v1105
      %v1107 = vpop.f32.mrb[0].mxu0
      %v1108 = vpop.f32.mrb[0].mxu0
      %v1109 = vadd.f32 0.0, %v1108
      %v1110 = vpop.f32.mrb[0].mxu0
      %1111 = vmatprep.mubr.bf16.mxu0 0
      %1112 = vmatmul.mubr.bf16.gmra.mrb[0].mxu0 %v954
      %v1113 = vpop.f32.mrb[0].mxu0
      %v1114 = vadd.f32 0.0, %v1113
      %v1115 = vpop.f32.mrb[0].mxu0
      %v1116 = vpop.f32.mrb[0].mxu0
      %v1117 = vadd.f32 0.0, %v1116
      %v1118 = vpop.f32.mrb[0].mxu0
      %1119 = vdwg.mxu0
      %v1120 = vadd.f32 %v826, %v994
      %v1121 = vadd.f32 %v827, %v997
      %v1122 = vadd.f32 %v828, %v1002
      %v1123 = vadd.f32 %v829, %v1005
      %v1124 = vadd.f32 %v830, %v1010
      %v1125 = vadd.f32 %v831, %v1013
      %v1126 = vadd.f32 %v832, %v1018
      %v1127 = vadd.f32 %v833, %v1021
      %v1128 = vadd.f32 %v834, %v1026
      %v1129 = vadd.f32 %v835, %v1029
      %v1130 = vadd.f32 %v836, %v1034
      %v1131 = vadd.f32 %v837, %v1037
      %v1132 = vadd.f32 %v838, %v1042
      %v1133 = vadd.f32 %v839, %v1045
      %v1134 = vadd.f32 %v840, %v1050
      %v1135 = vadd.f32 %v841, %v1053
      %v1136 = vadd.f32 %v842, %v1058
      %v1137 = vadd.f32 %v843, %v1061
      %v1138 = vadd.f32 %v844, %v1066
      %v1139 = vadd.f32 %v845, %v1069
      %v1140 = vadd.f32 %v846, %v1074
      %v1141 = vadd.f32 %v847, %v1077
      %v1142 = vadd.f32 %v848, %v1082
      %v1143 = vadd.f32 %v849, %v1085
      %v1144 = vadd.f32 %v850, %v1090
      %v1145 = vadd.f32 %v851, %v1093
      %v1146 = vadd.f32 %v852, %v1098
      %v1147 = vadd.f32 %v853, %v1101
      %v1148 = vadd.f32 %v854, %v1106
      %v1149 = vadd.f32 %v855, %v1109
      %v1150 = vadd.f32 %v856, %v1114
      %v1151 = vadd.f32 %v857, %v1117
      %v1152 = vld [vmem:[%s300 + $0x9] sm:$0xff]
      %v1153 = vld [vmem:[%s300 + $0x11] sm:$0xff]
      %v1154 = vld [vmem:[%s300 + $0x19] sm:$0xff]
      %v1155 = vld [vmem:[%s300 + $0x21] sm:$0xff]
      %v1156 = vld [vmem:[%s300 + $0x29] sm:$0xff]
      %v1157 = vld [vmem:[%s300 + $0x31] sm:$0xff]
      %v1158 = vld [vmem:[%s300 + $0x39] sm:$0xff]
      %v1159 = vld [vmem:[%s300 + $0x41] sm:$0xff]
      %v1160 = vld [vmem:[%s300 + $0x49] sm:$0xff]
      %v1161 = vld [vmem:[%s300 + $0x51] sm:$0xff]
      %v1162 = vld [vmem:[%s300 + $0x59] sm:$0xff]
      %v1163 = vld [vmem:[%s300 + $0x61] sm:$0xff]
      %v1164 = vld [vmem:[%s300 + $0x69] sm:$0xff]
      %v1165 = vld [vmem:[%s300 + $0x71] sm:$0xff]
      %v1166 = vld [vmem:[%s300 + $0x79] sm:$0xff]
      %v1167 = vld [vmem:[%s300 + $0x81] sm:$0xff]
      %v1168 = vld [vmem:[%s300 + $0x89] sm:$0xff]
      %v1169 = vld [vmem:[%s300 + $0x91] sm:$0xff]
      %v1170 = vld [vmem:[%s300 + $0x99] sm:$0xff]
      %v1171 = vld [vmem:[%s300 + $0xa1] sm:$0xff]
      %v1172 = vld [vmem:[%s300 + $0xa9] sm:$0xff]
      %v1173 = vld [vmem:[%s300 + $0xb1] sm:$0xff]
      %v1174 = vld [vmem:[%s300 + $0xb9] sm:$0xff]
      %v1175 = vld [vmem:[%s300 + $0xc1] sm:$0xff]
      %v1176 = vld [vmem:[%s300 + $0xc9] sm:$0xff]
      %v1177 = vld [vmem:[%s300 + $0xd1] sm:$0xff]
      %v1178 = vld [vmem:[%s300 + $0xd9] sm:$0xff]
      %v1179 = vld [vmem:[%s300 + $0xe1] sm:$0xff]
      %v1180 = vld [vmem:[%s300 + $0xe9] sm:$0xff]
      %v1181 = vld [vmem:[%s300 + $0xf1] sm:$0xff]
      %v1182 = vld [vmem:[%s300 + $0xf9] sm:$0xff]
      %v1183 = vld [vmem:[%s300 + $0x101] sm:$0xff]
      %v1184 = vpack.c.bf16 %v1153, %v1152
      %v1185 = vpack.c.bf16 %v1155, %v1154
      %v1186 = vpack.c.bf16 %v1157, %v1156
      %v1187 = vpack.c.bf16 %v1159, %v1158
      %v1188 = vpack.c.bf16 %v1161, %v1160
      %v1189 = vpack.c.bf16 %v1163, %v1162
      %v1190 = vpack.c.bf16 %v1165, %v1164
      %v1191 = vpack.c.bf16 %v1167, %v1166
      %v1192 = vpack.c.bf16 %v1169, %v1168
      %v1193 = vpack.c.bf16 %v1171, %v1170
      %v1194 = vpack.c.bf16 %v1173, %v1172
      %v1195 = vpack.c.bf16 %v1175, %v1174
      %v1196 = vpack.c.bf16 %v1177, %v1176
      %v1197 = vpack.c.bf16 %v1179, %v1178
      %v1198 = vpack.c.bf16 %v1181, %v1180
      %v1199 = vpack.c.bf16 %v1183, %v1182
      %s1200 = scalar_lea.vmem %s1, 4
      %v1201 = vld [vmem:[%s1200] sm:$0x3]
      %v1203 = vsel %vm420, %v1184, 0
      %v1206 = vsel %vm420, %v1185, 0
      %v1209 = vsel %vm420, %v1186, 0
      %v1212 = vsel %vm420, %v1187, 0
      %v1215 = vsel %vm420, %v1188, 0
      %v1218 = vsel %vm420, %v1189, 0
      %v1221 = vsel %vm420, %v1190, 0
      %v1224 = vsel %vm420, %v1191, 0
      %v1227 = vsel %vm420, %v1192, 0
      %v1230 = vsel %vm420, %v1193, 0
      %v1233 = vsel %vm420, %v1194, 0
      %v1236 = vsel %vm420, %v1195, 0
      %v1239 = vsel %vm420, %v1196, 0
      %v1242 = vsel %vm420, %v1197, 0
      %v1245 = vsel %vm420, %v1198, 0
      %v1248 = vsel %vm420, %v1199, 0
      %v1251 = vsel %vm469, %v1201, 0
      %1253 = vmatprep.subr.bf16.mxu0 0
      %1254 = vmatpush1.bf16.msra.mxu0 %v1251
      %1255 = vmatprep.subr.bf16.mxu0 0
      %1256 = vmatpush1.bf16.msra.mxu0 0
      %1257 = vmatprep.subr.bf16.mxu0 0
      %1258 = vmatpush1.bf16.msra.mxu0 0
      %1259 = vmatprep.subr.bf16.mxu0 0
      %1260 = vmatpush1.bf16.msra.mxu0 0
      %1261 = vmatprep.subr.bf16.mxu0 0
      %1262 = vmatpush1.bf16.msra.mxu0 0
      %1263 = vmatprep.subr.bf16.mxu0 0
      %1264 = vmatpush1.bf16.msra.mxu0 0
      %1265 = vmatprep.subr.bf16.mxu0 0
      %1266 = vmatpush1.bf16.msra.mxu0 0
      %1267 = vmatprep.subr.bf16.mxu0 0
      %1268 = vmatpush1.bf16.msra.mxu0 0
      %1269 = vmatprep.subr.bf16.mxu0 0
      %1270 = vmatpush1.bf16.msra.mxu0 0
      %1271 = vmatprep.subr.bf16.mxu0 0
      %1272 = vmatpush1.bf16.msra.mxu0 0
      %1273 = vmatprep.subr.bf16.mxu0 0
      %1274 = vmatpush1.bf16.msra.mxu0 0
      %1275 = vmatprep.subr.bf16.mxu0 0
      %1276 = vmatpush1.bf16.msra.mxu0 0
      %1277 = vmatprep.subr.bf16.mxu0 0
      %1278 = vmatpush1.bf16.msra.mxu0 0
      %1279 = vmatprep.subr.bf16.mxu0 0
      %1280 = vmatpush1.bf16.msra.mxu0 0
      %1281 = vmatprep.subr.bf16.mxu0 0
      %1282 = vmatpush1.bf16.msra.mxu0 0
      %1283 = vmatprep.subr.bf16.mxu0 0
      %1284 = vmatpush1.bf16.msra.mxu0 0
      %1285 = vmatprep.mubr.bf16.mxu0 0
      %1286 = vmatmul.mubr.bf16.gmra.mrb[0].mxu0 %v1203
      %v1287 = vpop.f32.mrb[0].mxu0
      %v1288 = vadd.f32 0.0, %v1287
      %v1289 = vpop.f32.mrb[0].mxu0
      %v1290 = vpop.f32.mrb[0].mxu0
      %v1291 = vadd.f32 0.0, %v1290
      %v1292 = vpop.f32.mrb[0].mxu0
      %1293 = vmatprep.mubr.bf16.mxu0 0
      %1294 = vmatmul.mubr.bf16.gmra.mrb[0].mxu0 %v1206
      %v1295 = vpop.f32.mrb[0].mxu0
      %v1296 = vadd.f32 0.0, %v1295
      %v1297 = vpop.f32.mrb[0].mxu0
      %v1298 = vpop.f32.mrb[0].mxu0
      %v1299 = vadd.f32 0.0, %v1298
      %v1300 = vpop.f32.mrb[0].mxu0
      %1301 = vmatprep.mubr.bf16.mxu0 0
      %1302 = vmatmul.mubr.bf16.gmra.mrb[0].mxu0 %v1209
      %v1303 = vpop.f32.mrb[0].mxu0
      %v1304 = vadd.f32 0.0, %v1303
      %v1305 = vpop.f32.mrb[0].mxu0
      %v1306 = vpop.f32.mrb[0].mxu0
      %v1307 = vadd.f32 0.0, %v1306
      %v1308 = vpop.f32.mrb[0].mxu0
      %1309 = vmatprep.mubr.bf16.mxu0 0
      %1310 = vmatmul.mubr.bf16.gmra.mrb[0].mxu0 %v1212
      %v1311 = vpop.f32.mrb[0].mxu0
      %v1312 = vadd.f32 0.0, %v1311
      %v1313 = vpop.f32.mrb[0].mxu0
      %v1314 = vpop.f32.mrb[0].mxu0
      %v1315 = vadd.f32 0.0, %v1314
      %v1316 = vpop.f32.mrb[0].mxu0
      %1317 = vmatprep.mubr.bf16.mxu0 0
      %1318 = vmatmul.mubr.bf16.gmra.mrb[0].mxu0 %v1215
      %v1319 = vpop.f32.mrb[0].mxu0
      %v1320 = vadd.f32 0.0, %v1319
      %v1321 = vpop.f32.mrb[0].mxu0
      %v1322 = vpop.f32.mrb[0].mxu0
      %v1323 = vadd.f32 0.0, %v1322
      %v1324 = vpop.f32.mrb[0].mxu0
      %1325 = vmatprep.mubr.bf16.mxu0 0
      %1326 = vmatmul.mubr.bf16.gmra.mrb[0].mxu0 %v1218
      %v1327 = vpop.f32.mrb[0].mxu0
      %v1328 = vadd.f32 0.0, %v1327
      %v1329 = vpop.f32.mrb[0].mxu0
      %v1330 = vpop.f32.mrb[0].mxu0
      %v1331 = vadd.f32 0.0, %v1330
      %v1332 = vpop.f32.mrb[0].mxu0
      %1333 = vmatprep.mubr.bf16.mxu0 0
      %1334 = vmatmul.mubr.bf16.gmra.mrb[0].mxu0 %v1221
      %v1335 = vpop.f32.mrb[0].mxu0
      %v1336 = vadd.f32 0.0, %v1335
      %v1337 = vpop.f32.mrb[0].mxu0
      %v1338 = vpop.f32.mrb[0].mxu0
      %v1339 = vadd.f32 0.0, %v1338
      %v1340 = vpop.f32.mrb[0].mxu0
      %1341 = vmatprep.mubr.bf16.mxu0 0
      %1342 = vmatmul.mubr.bf16.gmra.mrb[0].mxu0 %v1224
      %v1343 = vpop.f32.mrb[0].mxu0
      %v1344 = vadd.f32 0.0, %v1343
      %v1345 = vpop.f32.mrb[0].mxu0
      %v1346 = vpop.f32.mrb[0].mxu0
      %v1347 = vadd.f32 0.0, %v1346
      %v1348 = vpop.f32.mrb[0].mxu0
      %1349 = vmatprep.mubr.bf16.mxu0 0
      %1350 = vmatmul.mubr.bf16.gmra.mrb[0].mxu0 %v1227
      %v1351 = vpop.f32.mrb[0].mxu0
      %v1352 = vadd.f32 0.0, %v1351
      %v1353 = vpop.f32.mrb[0].mxu0
      %v1354 = vpop.f32.mrb[0].mxu0
      %v1355 = vadd.f32 0.0, %v1354
      %v1356 = vpop.f32.mrb[0].mxu0
      %1357 = vmatprep.mubr.bf16.mxu0 0
      %1358 = vmatmul.mubr.bf16.gmra.mrb[0].mxu0 %v1230
      %v1359 = vpop.f32.mrb[0].mxu0
      %v1360 = vadd.f32 0.0, %v1359
      %v1361 = vpop.f32.mrb[0].mxu0
      %v1362 = vpop.f32.mrb[0].mxu0
      %v1363 = vadd.f32 0.0, %v1362
      %v1364 = vpop.f32.mrb[0].mxu0
      %1365 = vmatprep.mubr.bf16.mxu0 0
      %1366 = vmatmul.mubr.bf16.gmra.mrb[0].mxu0 %v1233
      %v1367 = vpop.f32.mrb[0].mxu0
      %v1368 = vadd.f32 0.0, %v1367
      %v1369 = vpop.f32.mrb[0].mxu0
      %v1370 = vpop.f32.mrb[0].mxu0
      %v1371 = vadd.f32 0.0, %v1370
      %v1372 = vpop.f32.mrb[0].mxu0
      %1373 = vmatprep.mubr.bf16.mxu0 0
      %1374 = vmatmul.mubr.bf16.gmra.mrb[0].mxu0 %v1236
      %v1375 = vpop.f32.mrb[0].mxu0
      %v1376 = vadd.f32 0.0, %v1375
      %v1377 = vpop.f32.mrb[0].mxu0
      %v1378 = vpop.f32.mrb[0].mxu0
      %v1379 = vadd.f32 0.0, %v1378
      %v1380 = vpop.f32.mrb[0].mxu0
      %1381 = vmatprep.mubr.bf16.mxu0 0
      %1382 = vmatmul.mubr.bf16.gmra.mrb[0].mxu0 %v1239
      %v1383 = vpop.f32.mrb[0].mxu0
      %v1384 = vadd.f32 0.0, %v1383
      %v1385 = vpop.f32.mrb[0].mxu0
      %v1386 = vpop.f32.mrb[0].mxu0
      %v1387 = vadd.f32 0.0, %v1386
      %v1388 = vpop.f32.mrb[0].mxu0
      %1389 = vmatprep.mubr.bf16.mxu0 0
      %1390 = vmatmul.mubr.bf16.gmra.mrb[0].mxu0 %v1242
      %v1391 = vpop.f32.mrb[0].mxu0
      %v1392 = vadd.f32 0.0, %v1391
      %v1393 = vpop.f32.mrb[0].mxu0
      %v1394 = vpop.f32.mrb[0].mxu0
      %v1395 = vadd.f32 0.0, %v1394
      %v1396 = vpop.f32.mrb[0].mxu0
      %1397 = vmatprep.mubr.bf16.mxu0 0
      %1398 = vmatmul.mubr.bf16.gmra.mrb[0].mxu0 %v1245
      %v1399 = vpop.f32.mrb[0].mxu0
      %v1400 = vadd.f32 0.0, %v1399
      %v1401 = vpop.f32.mrb[0].mxu0
      %v1402 = vpop.f32.mrb[0].mxu0
      %v1403 = vadd.f32 0.0, %v1402
      %v1404 = vpop.f32.mrb[0].mxu0
      %1405 = vmatprep.mubr.bf16.mxu0 0
      %1406 = vmatmul.mubr.bf16.gmra.mrb[0].mxu0 %v1248
      %v1407 = vpop.f32.mrb[0].mxu0
      %v1408 = vadd.f32 0.0, %v1407
      %v1409 = vpop.f32.mrb[0].mxu0
      %v1410 = vpop.f32.mrb[0].mxu0
      %v1411 = vadd.f32 0.0, %v1410
      %v1412 = vpop.f32.mrb[0].mxu0
      %1413 = vdwg.mxu0
      %1415 = vset.pattern.permute.xlu0 0
      %1416 = vperm.xlu0 %1415, %v339
      %v1417 = vpop.permute.xlu0 %1416
      %1420 = vset.pattern.permute.xlu0 0
      %1421 = vperm.xlu0 %1420, %v340
      %v1422 = vpop.permute.xlu0 %1421
      %1425 = vset.pattern.permute.xlu0 0
      %1426 = vperm.xlu0 %1425, %v341
      %v1427 = vpop.permute.xlu0 %1426
      %1430 = vset.pattern.permute.xlu0 0
      %1431 = vperm.xlu0 %1430, %v342
      %v1432 = vpop.permute.xlu0 %1431
      %1435 = vset.pattern.permute.xlu0 0
      %1436 = vperm.xlu0 %1435, %v343
      %v1437 = vpop.permute.xlu0 %1436
      %1440 = vset.pattern.permute.xlu0 0
      %1441 = vperm.xlu0 %1440, %v344
      %v1442 = vpop.permute.xlu0 %1441
      %1445 = vset.pattern.permute.xlu0 0
      %1446 = vperm.xlu0 %1445, %v345
      %v1447 = vpop.permute.xlu0 %1446
      %1450 = vset.pattern.permute.xlu0 0
      %1451 = vperm.xlu0 %1450, %v346
      %v1452 = vpop.permute.xlu0 %1451
      %1455 = vset.pattern.permute.xlu0 0
      %1456 = vperm.xlu0 %1455, %v347
      %v1457 = vpop.permute.xlu0 %1456
      %1460 = vset.pattern.permute.xlu0 0
      %1461 = vperm.xlu0 %1460, %v348
      %v1462 = vpop.permute.xlu0 %1461
      %1465 = vset.pattern.permute.xlu0 0
      %1466 = vperm.xlu0 %1465, %v349
      %v1467 = vpop.permute.xlu0 %1466
      %1470 = vset.pattern.permute.xlu0 0
      %1471 = vperm.xlu0 %1470, %v350
      %v1472 = vpop.permute.xlu0 %1471
      %1475 = vset.pattern.permute.xlu0 0
      %1476 = vperm.xlu0 %1475, %v351
      %v1477 = vpop.permute.xlu0 %1476
      %1480 = vset.pattern.permute.xlu0 0
      %1481 = vperm.xlu0 %1480, %v352
      %v1482 = vpop.permute.xlu0 %1481
      %1485 = vset.pattern.permute.xlu0 0
      %1486 = vperm.xlu0 %1485, %v353
      %v1487 = vpop.permute.xlu0 %1486
      %1490 = vset.pattern.permute.xlu0 0
      %1491 = vperm.xlu0 %1490, %v354
      %v1492 = vpop.permute.xlu0 %1491
      %1495 = vset.pattern.permute.xlu0 0
      %1496 = vperm.xlu0 %1495, %v355
      %v1497 = vpop.permute.xlu0 %1496
      %1500 = vset.pattern.permute.xlu0 0
      %1501 = vperm.xlu0 %1500, %v356
      %v1502 = vpop.permute.xlu0 %1501
      %1505 = vset.pattern.permute.xlu0 0
      %1506 = vperm.xlu0 %1505, %v357
      %v1507 = vpop.permute.xlu0 %1506
      %1510 = vset.pattern.permute.xlu0 0
      %1511 = vperm.xlu0 %1510, %v358
      %v1512 = vpop.permute.xlu0 %1511
      %1515 = vset.pattern.permute.xlu0 0
      %1516 = vperm.xlu0 %1515, %v359
      %v1517 = vpop.permute.xlu0 %1516
      %1520 = vset.pattern.permute.xlu0 0
      %1521 = vperm.xlu0 %1520, %v360
      %v1522 = vpop.permute.xlu0 %1521
      %1525 = vset.pattern.permute.xlu0 0
      %1526 = vperm.xlu0 %1525, %v361
      %v1527 = vpop.permute.xlu0 %1526
      %1530 = vset.pattern.permute.xlu0 0
      %1531 = vperm.xlu0 %1530, %v362
      %v1532 = vpop.permute.xlu0 %1531
      %1535 = vset.pattern.permute.xlu0 0
      %1536 = vperm.xlu0 %1535, %v363
      %v1537 = vpop.permute.xlu0 %1536
      %1540 = vset.pattern.permute.xlu0 0
      %1541 = vperm.xlu0 %1540, %v364
      %v1542 = vpop.permute.xlu0 %1541
      %1545 = vset.pattern.permute.xlu0 0
      %1546 = vperm.xlu0 %1545, %v365
      %v1547 = vpop.permute.xlu0 %1546
      %1550 = vset.pattern.permute.xlu0 0
      %1551 = vperm.xlu0 %1550, %v366
      %v1552 = vpop.permute.xlu0 %1551
      %1555 = vset.pattern.permute.xlu0 0
      %1556 = vperm.xlu0 %1555, %v367
      %v1557 = vpop.permute.xlu0 %1556
      %1560 = vset.pattern.permute.xlu0 0
      %1561 = vperm.xlu0 %1560, %v368
      %v1562 = vpop.permute.xlu0 %1561
      %1565 = vset.pattern.permute.xlu0 0
      %1566 = vperm.xlu0 %1565, %v369
      %v1567 = vpop.permute.xlu0 %1566
      %1570 = vset.pattern.permute.xlu0 0
      %1571 = vperm.xlu0 %1570, %v370
      %v1572 = vpop.permute.xlu0 %1571
      %v1574 = vmul.f32 %v1288, %v1417
      %v1575 = vmul.f32 %v1291, %v1422
      %v1576 = vmul.f32 %v1296, %v1427
      %v1577 = vmul.f32 %v1299, %v1432
      %v1578 = vmul.f32 %v1304, %v1437
      %v1579 = vmul.f32 %v1307, %v1442
      %v1580 = vmul.f32 %v1312, %v1447
      %v1581 = vmul.f32 %v1315, %v1452
      %v1582 = vmul.f32 %v1320, %v1457
      %v1583 = vmul.f32 %v1323, %v1462
      %v1584 = vmul.f32 %v1328, %v1467
      %v1585 = vmul.f32 %v1331, %v1472
      %v1586 = vmul.f32 %v1336, %v1477
      %v1587 = vmul.f32 %v1339, %v1482
      %v1588 = vmul.f32 %v1344, %v1487
      %v1589 = vmul.f32 %v1347, %v1492
      %v1590 = vmul.f32 %v1352, %v1497
      %v1591 = vmul.f32 %v1355, %v1502
      %v1592 = vmul.f32 %v1360, %v1507
      %v1593 = vmul.f32 %v1363, %v1512
      %v1594 = vmul.f32 %v1368, %v1517
      %v1595 = vmul.f32 %v1371, %v1522
      %v1596 = vmul.f32 %v1376, %v1527
      %v1597 = vmul.f32 %v1379, %v1532
      %v1598 = vmul.f32 %v1384, %v1537
      %v1599 = vmul.f32 %v1387, %v1542
      %v1600 = vmul.f32 %v1392, %v1547
      %v1601 = vmul.f32 %v1395, %v1552
      %v1602 = vmul.f32 %v1400, %v1557
      %v1603 = vmul.f32 %v1403, %v1562
      %v1604 = vmul.f32 %v1408, %v1567
      %v1605 = vmul.f32 %v1411, %v1572
      %v1606 = vadd.f32 %v1120, %v1574
      %v1607 = vadd.f32 %v1121, %v1575
      %v1608 = vadd.f32 %v1122, %v1576
      %v1609 = vadd.f32 %v1123, %v1577
      %v1610 = vadd.f32 %v1124, %v1578
      %v1611 = vadd.f32 %v1125, %v1579
      %v1612 = vadd.f32 %v1126, %v1580
      %v1613 = vadd.f32 %v1127, %v1581
      %v1614 = vadd.f32 %v1128, %v1582
      %v1615 = vadd.f32 %v1129, %v1583
      %v1616 = vadd.f32 %v1130, %v1584
      %v1617 = vadd.f32 %v1131, %v1585
      %v1618 = vadd.f32 %v1132, %v1586
      %v1619 = vadd.f32 %v1133, %v1587
      %v1620 = vadd.f32 %v1134, %v1588
      %v1621 = vadd.f32 %v1135, %v1589
      %v1622 = vadd.f32 %v1136, %v1590
      %v1623 = vadd.f32 %v1137, %v1591
      %v1624 = vadd.f32 %v1138, %v1592
      %v1625 = vadd.f32 %v1139, %v1593
      %v1626 = vadd.f32 %v1140, %v1594
      %v1627 = vadd.f32 %v1141, %v1595
      %v1628 = vadd.f32 %v1142, %v1596
      %v1629 = vadd.f32 %v1143, %v1597
      %v1630 = vadd.f32 %v1144, %v1598
      %v1631 = vadd.f32 %v1145, %v1599
      %v1632 = vadd.f32 %v1146, %v1600
      %v1633 = vadd.f32 %v1147, %v1601
      %v1634 = vadd.f32 %v1148, %v1602
      %v1635 = vadd.f32 %v1149, %v1603
      %v1636 = vadd.f32 %v1150, %v1604
      %v1637 = vadd.f32 %v1151, %v1605
      %v1638 = vld [vmem:[%s300 + $0x17] sm:$0xff]
      %v1639 = vld [vmem:[%s300 + $0x1f] sm:$0xff]
      %v1640 = vld [vmem:[%s300 + $0x27] sm:$0xff]
      %v1641 = vld [vmem:[%s300 + $0x2f] sm:$0xff]
      %v1642 = vld [vmem:[%s300 + $0x37] sm:$0xff]
      %v1643 = vld [vmem:[%s300 + $0x3f] sm:$0xff]
      %v1644 = vld [vmem:[%s300 + $0x47] sm:$0xff]
      %v1645 = vld [vmem:[%s300 + $0x4f] sm:$0xff]
      %v1646 = vld [vmem:[%s300 + $0x57] sm:$0xff]
      %v1647 = vld [vmem:[%s300 + $0x5f] sm:$0xff]
      %v1648 = vld [vmem:[%s300 + $0x67] sm:$0xff]
      %v1649 = vld [vmem:[%s300 + $0x6f] sm:$0xff]
      %v1650 = vld [vmem:[%s300 + $0x77] sm:$0xff]
      %v1651 = vld [vmem:[%s300 + $0x7f] sm:$0xff]
      %v1652 = vld [vmem:[%s300 + $0x87] sm:$0xff]
      %v1653 = vld [vmem:[%s300 + $0x8f] sm:$0xff]
      %v1654 = vld [vmem:[%s300 + $0x97] sm:$0xff]
      %v1655 = vld [vmem:[%s300 + $0x9f] sm:$0xff]
      %v1656 = vld [vmem:[%s300 + $0xa7] sm:$0xff]
      %v1657 = vld [vmem:[%s300 + $0xaf] sm:$0xff]
      %v1658 = vld [vmem:[%s300 + $0xb7] sm:$0xff]
      %v1659 = vld [vmem:[%s300 + $0xbf] sm:$0xff]
      %v1660 = vld [vmem:[%s300 + $0xc7] sm:$0xff]
      %v1661 = vld [vmem:[%s300 + $0xcf] sm:$0xff]
      %v1662 = vld [vmem:[%s300 + $0xd7] sm:$0xff]
      %v1663 = vld [vmem:[%s300 + $0xdf] sm:$0xff]
      %v1664 = vld [vmem:[%s300 + $0xe7] sm:$0xff]
      %v1665 = vld [vmem:[%s300 + $0xef] sm:$0xff]
      %v1666 = vld [vmem:[%s300 + $0xf7] sm:$0xff]
      %v1667 = vld [vmem:[%s300 + $0xff] sm:$0xff]
      %v1668 = vld [vmem:[%s300 + $0x107] sm:$0xff]
      %v1669 = vld [vmem:[%s300 + $0x10f] sm:$0xff]
      %v1670 = vpack.c.bf16 %v1639, %v1638
      %v1671 = vpack.c.bf16 %v1641, %v1640
      %v1672 = vpack.c.bf16 %v1643, %v1642
      %v1673 = vpack.c.bf16 %v1645, %v1644
      %v1674 = vpack.c.bf16 %v1647, %v1646
      %v1675 = vpack.c.bf16 %v1649, %v1648
      %v1676 = vpack.c.bf16 %v1651, %v1650
      %v1677 = vpack.c.bf16 %v1653, %v1652
      %v1678 = vpack.c.bf16 %v1655, %v1654
      %v1679 = vpack.c.bf16 %v1657, %v1656
      %v1680 = vpack.c.bf16 %v1659, %v1658
      %v1681 = vpack.c.bf16 %v1661, %v1660
      %v1682 = vpack.c.bf16 %v1663, %v1662
      %v1683 = vpack.c.bf16 %v1665, %v1664
      %v1684 = vpack.c.bf16 %v1667, %v1666
      %v1685 = vpack.c.bf16 %v1669, %v1668
      %s1686 = scalar_lea.vmem %s1, 6
      %v1687 = vld [vmem:[%s1686] sm:$0x3]
      %v1689 = vsel %vm420, %v1670, 0
      %v1692 = vsel %vm420, %v1671, 0
      %v1695 = vsel %vm420, %v1672, 0
      %v1698 = vsel %vm420, %v1673, 0
      %v1701 = vsel %vm420, %v1674, 0
      %v1704 = vsel %vm420, %v1675, 0
      %v1707 = vsel %vm420, %v1676, 0
      %v1710 = vsel %vm420, %v1677, 0
      %v1713 = vsel %vm420, %v1678, 0
      %v1716 = vsel %vm420, %v1679, 0
      %v1719 = vsel %vm420, %v1680, 0
      %v1722 = vsel %vm420, %v1681, 0
      %v1725 = vsel %vm420, %v1682, 0
      %v1728 = vsel %vm420, %v1683, 0
      %v1731 = vsel %vm420, %v1684, 0
      %v1734 = vsel %vm420, %v1685, 0
      %v1737 = vsel %vm469, %v1687, 0
      %1739 = vmatprep.subr.bf16.mxu0 0
      %1740 = vmatpush1.bf16.msra.mxu0 %v1737
      %1741 = vmatprep.subr.bf16.mxu0 0
      %1742 = vmatpush1.bf16.msra.mxu0 0
      %1743 = vmatprep.subr.bf16.mxu0 0
      %1744 = vmatpush1.bf16.msra.mxu0 0
      %1745 = vmatprep.subr.bf16.mxu0 0
      %1746 = vmatpush1.bf16.msra.mxu0 0
      %1747 = vmatprep.subr.bf16.mxu0 0
      %1748 = vmatpush1.bf16.msra.mxu0 0
      %1749 = vmatprep.subr.bf16.mxu0 0
      %1750 = vmatpush1.bf16.msra.mxu0 0
      %1751 = vmatprep.subr.bf16.mxu0 0
      %1752 = vmatpush1.bf16.msra.mxu0 0
      %1753 = vmatprep.subr.bf16.mxu0 0
      %1754 = vmatpush1.bf16.msra.mxu0 0
      %1755 = vmatprep.subr.bf16.mxu0 0
      %1756 = vmatpush1.bf16.msra.mxu0 0
      %1757 = vmatprep.subr.bf16.mxu0 0
      %1758 = vmatpush1.bf16.msra.mxu0 0
      %1759 = vmatprep.subr.bf16.mxu0 0
      %1760 = vmatpush1.bf16.msra.mxu0 0
      %1761 = vmatprep.subr.bf16.mxu0 0
      %1762 = vmatpush1.bf16.msra.mxu0 0
      %1763 = vmatprep.subr.bf16.mxu0 0
      %1764 = vmatpush1.bf16.msra.mxu0 0
      %1765 = vmatprep.subr.bf16.mxu0 0
      %1766 = vmatpush1.bf16.msra.mxu0 0
      %1767 = vmatprep.subr.bf16.mxu0 0
      %1768 = vmatpush1.bf16.msra.mxu0 0
      %1769 = vmatprep.subr.bf16.mxu0 0
      %1770 = vmatpush1.bf16.msra.mxu0 0
      %1771 = vmatprep.mubr.bf16.mxu0 0
      %1772 = vmatmul.mubr.bf16.gmra.mrb[0].mxu0 %v1689
      %v1773 = vpop.f32.mrb[0].mxu0
      %v1774 = vadd.f32 0.0, %v1773
      %v1775 = vpop.f32.mrb[0].mxu0
      %v1776 = vpop.f32.mrb[0].mxu0
      %v1777 = vadd.f32 0.0, %v1776
      %v1778 = vpop.f32.mrb[0].mxu0
      %1779 = vmatprep.mubr.bf16.mxu0 0
      %1780 = vmatmul.mubr.bf16.gmra.mrb[0].mxu0 %v1692
      %v1781 = vpop.f32.mrb[0].mxu0
      %v1782 = vadd.f32 0.0, %v1781
      %v1783 = vpop.f32.mrb[0].mxu0
      %v1784 = vpop.f32.mrb[0].mxu0
      %v1785 = vadd.f32 0.0, %v1784
      %v1786 = vpop.f32.mrb[0].mxu0
      %1787 = vmatprep.mubr.bf16.mxu0 0
      %1788 = vmatmul.mubr.bf16.gmra.mrb[0].mxu0 %v1695
      %v1789 = vpop.f32.mrb[0].mxu0
      %v1790 = vadd.f32 0.0, %v1789
      %v1791 = vpop.f32.mrb[0].mxu0
      %v1792 = vpop.f32.mrb[0].mxu0
      %v1793 = vadd.f32 0.0, %v1792
      %v1794 = vpop.f32.mrb[0].mxu0
      %1795 = vmatprep.mubr.bf16.mxu0 0
      %1796 = vmatmul.mubr.bf16.gmra.mrb[0].mxu0 %v1698
      %v1797 = vpop.f32.mrb[0].mxu0
      %v1798 = vadd.f32 0.0, %v1797
      %v1799 = vpop.f32.mrb[0].mxu0
      %v1800 = vpop.f32.mrb[0].mxu0
      %v1801 = vadd.f32 0.0, %v1800
      %v1802 = vpop.f32.mrb[0].mxu0
      %1803 = vmatprep.mubr.bf16.mxu0 0
      %1804 = vmatmul.mubr.bf16.gmra.mrb[0].mxu0 %v1701
      %v1805 = vpop.f32.mrb[0].mxu0
      %v1806 = vadd.f32 0.0, %v1805
      %v1807 = vpop.f32.mrb[0].mxu0
      %v1808 = vpop.f32.mrb[0].mxu0
      %v1809 = vadd.f32 0.0, %v1808
      %v1810 = vpop.f32.mrb[0].mxu0
      %1811 = vmatprep.mubr.bf16.mxu0 0
      %1812 = vmatmul.mubr.bf16.gmra.mrb[0].mxu0 %v1704
      %v1813 = vpop.f32.mrb[0].mxu0
      %v1814 = vadd.f32 0.0, %v1813
      %v1815 = vpop.f32.mrb[0].mxu0
      %v1816 = vpop.f32.mrb[0].mxu0
      %v1817 = vadd.f32 0.0, %v1816
      %v1818 = vpop.f32.mrb[0].mxu0
      %1819 = vmatprep.mubr.bf16.mxu0 0
      %1820 = vmatmul.mubr.bf16.gmra.mrb[0].mxu0 %v1707
      %v1821 = vpop.f32.mrb[0].mxu0
      %v1822 = vadd.f32 0.0, %v1821
      %v1823 = vpop.f32.mrb[0].mxu0
      %v1824 = vpop.f32.mrb[0].mxu0
      %v1825 = vadd.f32 0.0, %v1824
      %v1826 = vpop.f32.mrb[0].mxu0
      %1827 = vmatprep.mubr.bf16.mxu0 0
      %1828 = vmatmul.mubr.bf16.gmra.mrb[0].mxu0 %v1710
      %v1829 = vpop.f32.mrb[0].mxu0
      %v1830 = vadd.f32 0.0, %v1829
      %v1831 = vpop.f32.mrb[0].mxu0
      %v1832 = vpop.f32.mrb[0].mxu0
      %v1833 = vadd.f32 0.0, %v1832
      %v1834 = vpop.f32.mrb[0].mxu0
      %1835 = vmatprep.mubr.bf16.mxu0 0
      %1836 = vmatmul.mubr.bf16.gmra.mrb[0].mxu0 %v1713
      %v1837 = vpop.f32.mrb[0].mxu0
      %v1838 = vadd.f32 0.0, %v1837
      %v1839 = vpop.f32.mrb[0].mxu0
      %v1840 = vpop.f32.mrb[0].mxu0
      %v1841 = vadd.f32 0.0, %v1840
      %v1842 = vpop.f32.mrb[0].mxu0
      %1843 = vmatprep.mubr.bf16.mxu0 0
      %1844 = vmatmul.mubr.bf16.gmra.mrb[0].mxu0 %v1716
      %v1845 = vpop.f32.mrb[0].mxu0
      %v1846 = vadd.f32 0.0, %v1845
      %v1847 = vpop.f32.mrb[0].mxu0
      %v1848 = vpop.f32.mrb[0].mxu0
      %v1849 = vadd.f32 0.0, %v1848
      %v1850 = vpop.f32.mrb[0].mxu0
      %1851 = vmatprep.mubr.bf16.mxu0 0
      %1852 = vmatmul.mubr.bf16.gmra.mrb[0].mxu0 %v1719
      %v1853 = vpop.f32.mrb[0].mxu0
      %v1854 = vadd.f32 0.0, %v1853
      %v1855 = vpop.f32.mrb[0].mxu0
      %v1856 = vpop.f32.mrb[0].mxu0
      %v1857 = vadd.f32 0.0, %v1856
      %v1858 = vpop.f32.mrb[0].mxu0
      %1859 = vmatprep.mubr.bf16.mxu0 0
      %1860 = vmatmul.mubr.bf16.gmra.mrb[0].mxu0 %v1722
      %v1861 = vpop.f32.mrb[0].mxu0
      %v1862 = vadd.f32 0.0, %v1861
      %v1863 = vpop.f32.mrb[0].mxu0
      %v1864 = vpop.f32.mrb[0].mxu0
      %v1865 = vadd.f32 0.0, %v1864
      %v1866 = vpop.f32.mrb[0].mxu0
      %1867 = vmatprep.mubr.bf16.mxu0 0
      %1868 = vmatmul.mubr.bf16.gmra.mrb[0].mxu0 %v1725
      %v1869 = vpop.f32.mrb[0].mxu0
      %v1870 = vadd.f32 0.0, %v1869
      %v1871 = vpop.f32.mrb[0].mxu0
      %v1872 = vpop.f32.mrb[0].mxu0
      %v1873 = vadd.f32 0.0, %v1872
      %v1874 = vpop.f32.mrb[0].mxu0
      %1875 = vmatprep.mubr.bf16.mxu0 0
      %1876 = vmatmul.mubr.bf16.gmra.mrb[0].mxu0 %v1728
      %v1877 = vpop.f32.mrb[0].mxu0
      %v1878 = vadd.f32 0.0, %v1877
      %v1879 = vpop.f32.mrb[0].mxu0
      %v1880 = vpop.f32.mrb[0].mxu0
      %v1881 = vadd.f32 0.0, %v1880
      %v1882 = vpop.f32.mrb[0].mxu0
      %1883 = vmatprep.mubr.bf16.mxu0 0
      %1884 = vmatmul.mubr.bf16.gmra.mrb[0].mxu0 %v1731
      %v1885 = vpop.f32.mrb[0].mxu0
      %v1886 = vadd.f32 0.0, %v1885
      %v1887 = vpop.f32.mrb[0].mxu0
      %v1888 = vpop.f32.mrb[0].mxu0
      %v1889 = vadd.f32 0.0, %v1888
      %v1890 = vpop.f32.mrb[0].mxu0
      %1891 = vmatprep.mubr.bf16.mxu0 0
      %1892 = vmatmul.mubr.bf16.gmra.mrb[0].mxu0 %v1734
      %v1893 = vpop.f32.mrb[0].mxu0
      %v1894 = vadd.f32 0.0, %v1893
      %v1895 = vpop.f32.mrb[0].mxu0
      %v1896 = vpop.f32.mrb[0].mxu0
      %v1897 = vadd.f32 0.0, %v1896
      %v1898 = vpop.f32.mrb[0].mxu0
      %1899 = vdwg.mxu0
      %v1900 = vmul.f32 %v1774, %v637
      %v1901 = vmul.f32 %v1777, %v642
      %v1902 = vmul.f32 %v1782, %v647
      %v1903 = vmul.f32 %v1785, %v652
      %v1904 = vmul.f32 %v1790, %v657
      %v1905 = vmul.f32 %v1793, %v662
      %v1906 = vmul.f32 %v1798, %v667
      %v1907 = vmul.f32 %v1801, %v672
      %v1908 = vmul.f32 %v1806, %v677
      %v1909 = vmul.f32 %v1809, %v682
      %v1910 = vmul.f32 %v1814, %v687
      %v1911 = vmul.f32 %v1817, %v692
      %v1912 = vmul.f32 %v1822, %v697
      %v1913 = vmul.f32 %v1825, %v702
      %v1914 = vmul.f32 %v1830, %v707
      %v1915 = vmul.f32 %v1833, %v712
      %v1916 = vmul.f32 %v1838, %v717
      %v1917 = vmul.f32 %v1841, %v722
      %v1918 = vmul.f32 %v1846, %v727
      %v1919 = vmul.f32 %v1849, %v732
      %v1920 = vmul.f32 %v1854, %v737
      %v1921 = vmul.f32 %v1857, %v742
      %v1922 = vmul.f32 %v1862, %v747
      %v1923 = vmul.f32 %v1865, %v752
      %v1924 = vmul.f32 %v1870, %v757
      %v1925 = vmul.f32 %v1873, %v762
      %v1926 = vmul.f32 %v1878, %v767
      %v1927 = vmul.f32 %v1881, %v772
      %v1928 = vmul.f32 %v1886, %v777
      %v1929 = vmul.f32 %v1889, %v782
      %v1930 = vmul.f32 %v1894, %v787
      %v1931 = vmul.f32 %v1897, %v792
      %v1932 = vadd.f32 %v1606, %v1900
      %v1933 = vadd.f32 %v1607, %v1901
      %v1934 = vadd.f32 %v1608, %v1902
      %v1935 = vadd.f32 %v1609, %v1903
      %v1936 = vadd.f32 %v1610, %v1904
      %v1937 = vadd.f32 %v1611, %v1905
      %v1938 = vadd.f32 %v1612, %v1906
      %v1939 = vadd.f32 %v1613, %v1907
      %v1940 = vadd.f32 %v1614, %v1908
      %v1941 = vadd.f32 %v1615, %v1909
      %v1942 = vadd.f32 %v1616, %v1910
      %v1943 = vadd.f32 %v1617, %v1911
      %v1944 = vadd.f32 %v1618, %v1912
      %v1945 = vadd.f32 %v1619, %v1913
      %v1946 = vadd.f32 %v1620, %v1914
      %v1947 = vadd.f32 %v1621, %v1915
      %v1948 = vadd.f32 %v1622, %v1916
      %v1949 = vadd.f32 %v1623, %v1917
      %v1950 = vadd.f32 %v1624, %v1918
      %v1951 = vadd.f32 %v1625, %v1919
      %v1952 = vadd.f32 %v1626, %v1920
      %v1953 = vadd.f32 %v1627, %v1921
      %v1954 = vadd.f32 %v1628, %v1922
      %v1955 = vadd.f32 %v1629, %v1923
      %v1956 = vadd.f32 %v1630, %v1924
      %v1957 = vadd.f32 %v1631, %v1925
      %v1958 = vadd.f32 %v1632, %v1926
      %v1959 = vadd.f32 %v1633, %v1927
      %v1960 = vadd.f32 %v1634, %v1928
      %v1961 = vadd.f32 %v1635, %v1929
      %v1962 = vadd.f32 %v1636, %v1930
      %v1963 = vadd.f32 %v1637, %v1931
      %v1964 = vld [vmem:[%s300 + $0x18] sm:$0xff]
      %v1965 = vld [vmem:[%s300 + $0x20] sm:$0xff]
      %v1966 = vld [vmem:[%s300 + $0x28] sm:$0xff]
      %v1967 = vld [vmem:[%s300 + $0x30] sm:$0xff]
      %v1968 = vld [vmem:[%s300 + $0x38] sm:$0xff]
      %v1969 = vld [vmem:[%s300 + $0x40] sm:$0xff]
      %v1970 = vld [vmem:[%s300 + $0x48] sm:$0xff]
      %v1971 = vld [vmem:[%s300 + $0x50] sm:$0xff]
      %v1972 = vld [vmem:[%s300 + $0x58] sm:$0xff]
      %v1973 = vld [vmem:[%s300 + $0x60] sm:$0xff]
      %v1974 = vld [vmem:[%s300 + $0x68] sm:$0xff]
      %v1975 = vld [vmem:[%s300 + $0x70] sm:$0xff]
      %v1976 = vld [vmem:[%s300 + $0x78] sm:$0xff]
      %v1977 = vld [vmem:[%s300 + $0x80] sm:$0xff]
      %v1978 = vld [vmem:[%s300 + $0x88] sm:$0xff]
      %v1979 = vld [vmem:[%s300 + $0x90] sm:$0xff]
      %v1980 = vld [vmem:[%s300 + $0x98] sm:$0xff]
      %v1981 = vld [vmem:[%s300 + $0xa0] sm:$0xff]
      %v1982 = vld [vmem:[%s300 + $0xa8] sm:$0xff]
      %v1983 = vld [vmem:[%s300 + $0xb0] sm:$0xff]
      %v1984 = vld [vmem:[%s300 + $0xb8] sm:$0xff]
      %v1985 = vld [vmem:[%s300 + $0xc0] sm:$0xff]
      %v1986 = vld [vmem:[%s300 + $0xc8] sm:$0xff]
      %v1987 = vld [vmem:[%s300 + $0xd0] sm:$0xff]
      %v1988 = vld [vmem:[%s300 + $0xd8] sm:$0xff]
      %v1989 = vld [vmem:[%s300 + $0xe0] sm:$0xff]
      %v1990 = vld [vmem:[%s300 + $0xe8] sm:$0xff]
      %v1991 = vld [vmem:[%s300 + $0xf0] sm:$0xff]
      %v1992 = vld [vmem:[%s300 + $0xf8] sm:$0xff]
      %v1993 = vld [vmem:[%s300 + $0x100] sm:$0xff]
      %v1994 = vld [vmem:[%s300 + $0x108] sm:$0xff]
      %v1995 = vld [vmem:[%s300 + $0x110] sm:$0xff]
      %v1996 = vpack.c.bf16 %v1965, %v1964
      %v1997 = vpack.c.bf16 %v1967, %v1966
      %v1998 = vpack.c.bf16 %v1969, %v1968
      %v1999 = vpack.c.bf16 %v1971, %v1970
      %v2000 = vpack.c.bf16 %v1973, %v1972
      %v2001 = vpack.c.bf16 %v1975, %v1974
      %v2002 = vpack.c.bf16 %v1977, %v1976
      %v2003 = vpack.c.bf16 %v1979, %v1978
      %v2004 = vpack.c.bf16 %v1981, %v1980
      %v2005 = vpack.c.bf16 %v1983, %v1982
      %v2006 = vpack.c.bf16 %v1985, %v1984
      %v2007 = vpack.c.bf16 %v1987, %v1986
      %v2008 = vpack.c.bf16 %v1989, %v1988
      %v2009 = vpack.c.bf16 %v1991, %v1990
      %v2010 = vpack.c.bf16 %v1993, %v1992
      %v2011 = vpack.c.bf16 %v1995, %v1994
      %s2012 = scalar_lea.vmem %s1, 8
      %v2013 = vld [vmem:[%s2012] sm:$0x3]
      %v2015 = vsel %vm420, %v1996, 0
      %v2018 = vsel %vm420, %v1997, 0
      %v2021 = vsel %vm420, %v1998, 0
      %v2024 = vsel %vm420, %v1999, 0
      %v2027 = vsel %vm420, %v2000, 0
      %v2030 = vsel %vm420, %v2001, 0
      %v2033 = vsel %vm420, %v2002, 0
      %v2036 = vsel %vm420, %v2003, 0
      %v2039 = vsel %vm420, %v2004, 0
      %v2042 = vsel %vm420, %v2005, 0
      %v2045 = vsel %vm420, %v2006, 0
      %v2048 = vsel %vm420, %v2007, 0
      %v2051 = vsel %vm420, %v2008, 0
      %v2054 = vsel %vm420, %v2009, 0
      %v2057 = vsel %vm420, %v2010, 0
      %v2060 = vsel %vm420, %v2011, 0
      %v2063 = vsel %vm469, %v2013, 0
      %2065 = vmatprep.subr.bf16.mxu0 0
      %2066 = vmatpush1.bf16.msra.mxu0 %v2063
      %2067 = vmatprep.subr.bf16.mxu0 0
      %2068 = vmatpush1.bf16.msra.mxu0 0
      %2069 = vmatprep.subr.bf16.mxu0 0
      %2070 = vmatpush1.bf16.msra.mxu0 0
      %2071 = vmatprep.subr.bf16.mxu0 0
      %2072 = vmatpush1.bf16.msra.mxu0 0
      %2073 = vmatprep.subr.bf16.mxu0 0
      %2074 = vmatpush1.bf16.msra.mxu0 0
      %2075 = vmatprep.subr.bf16.mxu0 0
      %2076 = vmatpush1.bf16.msra.mxu0 0
      %2077 = vmatprep.subr.bf16.mxu0 0
      %2078 = vmatpush1.bf16.msra.mxu0 0
      %2079 = vmatprep.subr.bf16.mxu0 0
      %2080 = vmatpush1.bf16.msra.mxu0 0
      %2081 = vmatprep.subr.bf16.mxu0 0
      %2082 = vmatpush1.bf16.msra.mxu0 0
      %2083 = vmatprep.subr.bf16.mxu0 0
      %2084 = vmatpush1.bf16.msra.mxu0 0
      %2085 = vmatprep.subr.bf16.mxu0 0
      %2086 = vmatpush1.bf16.msra.mxu0 0
      %2087 = vmatprep.subr.bf16.mxu0 0
      %2088 = vmatpush1.bf16.msra.mxu0 0
      %2089 = vmatprep.subr.bf16.mxu0 0
      %2090 = vmatpush1.bf16.msra.mxu0 0
      %2091 = vmatprep.subr.bf16.mxu0 0
      %2092 = vmatpush1.bf16.msra.mxu0 0
      %2093 = vmatprep.subr.bf16.mxu0 0
      %2094 = vmatpush1.bf16.msra.mxu0 0
      %2095 = vmatprep.subr.bf16.mxu0 0
      %2096 = vmatpush1.bf16.msra.mxu0 0
      %2097 = vmatprep.mubr.bf16.mxu0 0
      %2098 = vmatmul.mubr.bf16.gmra.mrb[0].mxu0 %v2015
      %v2099 = vpop.f32.mrb[0].mxu0
      %v2100 = vadd.f32 0.0, %v2099
      %v2101 = vpop.f32.mrb[0].mxu0
      %v2102 = vpop.f32.mrb[0].mxu0
      %v2103 = vadd.f32 0.0, %v2102
      %v2104 = vpop.f32.mrb[0].mxu0
      %2105 = vmatprep.mubr.bf16.mxu0 0
      %2106 = vmatmul.mubr.bf16.gmra.mrb[0].mxu0 %v2018
      %v2107 = vpop.f32.mrb[0].mxu0
      %v2108 = vadd.f32 0.0, %v2107
      %v2109 = vpop.f32.mrb[0].mxu0
      %v2110 = vpop.f32.mrb[0].mxu0
      %v2111 = vadd.f32 0.0, %v2110
      %v2112 = vpop.f32.mrb[0].mxu0
      %2113 = vmatprep.mubr.bf16.mxu0 0
      %2114 = vmatmul.mubr.bf16.gmra.mrb[0].mxu0 %v2021
      %v2115 = vpop.f32.mrb[0].mxu0
      %v2116 = vadd.f32 0.0, %v2115
      %v2117 = vpop.f32.mrb[0].mxu0
      %v2118 = vpop.f32.mrb[0].mxu0
      %v2119 = vadd.f32 0.0, %v2118
      %v2120 = vpop.f32.mrb[0].mxu0
      %2121 = vmatprep.mubr.bf16.mxu0 0
      %2122 = vmatmul.mubr.bf16.gmra.mrb[0].mxu0 %v2024
      %v2123 = vpop.f32.mrb[0].mxu0
      %v2124 = vadd.f32 0.0, %v2123
      %v2125 = vpop.f32.mrb[0].mxu0
      %v2126 = vpop.f32.mrb[0].mxu0
      %v2127 = vadd.f32 0.0, %v2126
      %v2128 = vpop.f32.mrb[0].mxu0
      %2129 = vmatprep.mubr.bf16.mxu0 0
      %2130 = vmatmul.mubr.bf16.gmra.mrb[0].mxu0 %v2027
      %v2131 = vpop.f32.mrb[0].mxu0
      %v2132 = vadd.f32 0.0, %v2131
      %v2133 = vpop.f32.mrb[0].mxu0
      %v2134 = vpop.f32.mrb[0].mxu0
      %v2135 = vadd.f32 0.0, %v2134
      %v2136 = vpop.f32.mrb[0].mxu0
      %2137 = vmatprep.mubr.bf16.mxu0 0
      %2138 = vmatmul.mubr.bf16.gmra.mrb[0].mxu0 %v2030
      %v2139 = vpop.f32.mrb[0].mxu0
      %v2140 = vadd.f32 0.0, %v2139
      %v2141 = vpop.f32.mrb[0].mxu0
      %v2142 = vpop.f32.mrb[0].mxu0
      %v2143 = vadd.f32 0.0, %v2142
      %v2144 = vpop.f32.mrb[0].mxu0
      %2145 = vmatprep.mubr.bf16.mxu0 0
      %2146 = vmatmul.mubr.bf16.gmra.mrb[0].mxu0 %v2033
      %v2147 = vpop.f32.mrb[0].mxu0
      %v2148 = vadd.f32 0.0, %v2147
      %v2149 = vpop.f32.mrb[0].mxu0
      %v2150 = vpop.f32.mrb[0].mxu0
      %v2151 = vadd.f32 0.0, %v2150
      %v2152 = vpop.f32.mrb[0].mxu0
      %2153 = vmatprep.mubr.bf16.mxu0 0
      %2154 = vmatmul.mubr.bf16.gmra.mrb[0].mxu0 %v2036
      %v2155 = vpop.f32.mrb[0].mxu0
      %v2156 = vadd.f32 0.0, %v2155
      %v2157 = vpop.f32.mrb[0].mxu0
      %v2158 = vpop.f32.mrb[0].mxu0
      %v2159 = vadd.f32 0.0, %v2158
      %v2160 = vpop.f32.mrb[0].mxu0
      %2161 = vmatprep.mubr.bf16.mxu0 0
      %2162 = vmatmul.mubr.bf16.gmra.mrb[0].mxu0 %v2039
      %v2163 = vpop.f32.mrb[0].mxu0
      %v2164 = vadd.f32 0.0, %v2163
      %v2165 = vpop.f32.mrb[0].mxu0
      %v2166 = vpop.f32.mrb[0].mxu0
      %v2167 = vadd.f32 0.0, %v2166
      %v2168 = vpop.f32.mrb[0].mxu0
      %2169 = vmatprep.mubr.bf16.mxu0 0
      %2170 = vmatmul.mubr.bf16.gmra.mrb[0].mxu0 %v2042
      %v2171 = vpop.f32.mrb[0].mxu0
      %v2172 = vadd.f32 0.0, %v2171
      %v2173 = vpop.f32.mrb[0].mxu0
      %v2174 = vpop.f32.mrb[0].mxu0
      %v2175 = vadd.f32 0.0, %v2174
      %v2176 = vpop.f32.mrb[0].mxu0
      %2177 = vmatprep.mubr.bf16.mxu0 0
      %2178 = vmatmul.mubr.bf16.gmra.mrb[0].mxu0 %v2045
      %v2179 = vpop.f32.mrb[0].mxu0
      %v2180 = vadd.f32 0.0, %v2179
      %v2181 = vpop.f32.mrb[0].mxu0
      %v2182 = vpop.f32.mrb[0].mxu0
      %v2183 = vadd.f32 0.0, %v2182
      %v2184 = vpop.f32.mrb[0].mxu0
      %2185 = vmatprep.mubr.bf16.mxu0 0
      %2186 = vmatmul.mubr.bf16.gmra.mrb[0].mxu0 %v2048
      %v2187 = vpop.f32.mrb[0].mxu0
      %v2188 = vadd.f32 0.0, %v2187
      %v2189 = vpop.f32.mrb[0].mxu0
      %v2190 = vpop.f32.mrb[0].mxu0
      %v2191 = vadd.f32 0.0, %v2190
      %v2192 = vpop.f32.mrb[0].mxu0
      %2193 = vmatprep.mubr.bf16.mxu0 0
      %2194 = vmatmul.mubr.bf16.gmra.mrb[0].mxu0 %v2051
      %v2195 = vpop.f32.mrb[0].mxu0
      %v2196 = vadd.f32 0.0, %v2195
      %v2197 = vpop.f32.mrb[0].mxu0
      %v2198 = vpop.f32.mrb[0].mxu0
      %v2199 = vadd.f32 0.0, %v2198
      %v2200 = vpop.f32.mrb[0].mxu0
      %2201 = vmatprep.mubr.bf16.mxu0 0
      %2202 = vmatmul.mubr.bf16.gmra.mrb[0].mxu0 %v2054
      %v2203 = vpop.f32.mrb[0].mxu0
      %v2204 = vadd.f32 0.0, %v2203
      %v2205 = vpop.f32.mrb[0].mxu0
      %v2206 = vpop.f32.mrb[0].mxu0
      %v2207 = vadd.f32 0.0, %v2206
      %v2208 = vpop.f32.mrb[0].mxu0
      %2209 = vmatprep.mubr.bf16.mxu0 0
      %2210 = vmatmul.mubr.bf16.gmra.mrb[0].mxu0 %v2057
      %v2211 = vpop.f32.mrb[0].mxu0
      %v2212 = vadd.f32 0.0, %v2211
      %v2213 = vpop.f32.mrb[0].mxu0
      %v2214 = vpop.f32.mrb[0].mxu0
      %v2215 = vadd.f32 0.0, %v2214
      %v2216 = vpop.f32.mrb[0].mxu0
      %2217 = vmatprep.mubr.bf16.mxu0 0
      %2218 = vmatmul.mubr.bf16.gmra.mrb[0].mxu0 %v2060
      %v2219 = vpop.f32.mrb[0].mxu0
      %v2220 = vadd.f32 0.0, %v2219
      %v2221 = vpop.f32.mrb[0].mxu0
      %v2222 = vpop.f32.mrb[0].mxu0
      %v2223 = vadd.f32 0.0, %v2222
      %v2224 = vpop.f32.mrb[0].mxu0
      %2225 = vdwg.mxu0
      %v2226 = vadd.f32 %v1932, %v2100
      %v2227 = vadd.f32 %v1933, %v2103
      %v2228 = vadd.f32 %v1934, %v2108
      %v2229 = vadd.f32 %v1935, %v2111
      %v2230 = vadd.f32 %v1936, %v2116
      %v2231 = vadd.f32 %v1937, %v2119
      %v2232 = vadd.f32 %v1938, %v2124
      %v2233 = vadd.f32 %v1939, %v2127
      %v2234 = vadd.f32 %v1940, %v2132
      %v2235 = vadd.f32 %v1941, %v2135
      %v2236 = vadd.f32 %v1942, %v2140
      %v2237 = vadd.f32 %v1943, %v2143
      %v2238 = vadd.f32 %v1944, %v2148
      %v2239 = vadd.f32 %v1945, %v2151
      %v2240 = vadd.f32 %v1946, %v2156
      %v2241 = vadd.f32 %v1947, %v2159
      %v2242 = vadd.f32 %v1948, %v2164
      %v2243 = vadd.f32 %v1949, %v2167
      %v2244 = vadd.f32 %v1950, %v2172
      %v2245 = vadd.f32 %v1951, %v2175
      %v2246 = vadd.f32 %v1952, %v2180
      %v2247 = vadd.f32 %v1953, %v2183
      %v2248 = vadd.f32 %v1954, %v2188
      %v2249 = vadd.f32 %v1955, %v2191
      %v2250 = vadd.f32 %v1956, %v2196
      %v2251 = vadd.f32 %v1957, %v2199
      %v2252 = vadd.f32 %v1958, %v2204
      %v2253 = vadd.f32 %v1959, %v2207
      %v2254 = vadd.f32 %v1960, %v2212
      %v2255 = vadd.f32 %v1961, %v2215
      %v2256 = vadd.f32 %v1962, %v2220
      %v2257 = vadd.f32 %v1963, %v2223
      %v2258 = vld [vmem:[%s300 + $0x19] sm:$0xff]
      %v2259 = vld [vmem:[%s300 + $0x21] sm:$0xff]
      %v2260 = vld [vmem:[%s300 + $0x29] sm:$0xff]
      %v2261 = vld [vmem:[%s300 + $0x31] sm:$0xff]
      %v2262 = vld [vmem:[%s300 + $0x39] sm:$0xff]
      %v2263 = vld [vmem:[%s300 + $0x41] sm:$0xff]
      %v2264 = vld [vmem:[%s300 + $0x49] sm:$0xff]
      %v2265 = vld [vmem:[%s300 + $0x51] sm:$0xff]
      %v2266 = vld [vmem:[%s300 + $0x59] sm:$0xff]
      %v2267 = vld [vmem:[%s300 + $0x61] sm:$0xff]
      %v2268 = vld [vmem:[%s300 + $0x69] sm:$0xff]
      %v2269 = vld [vmem:[%s300 + $0x71] sm:$0xff]
      %v2270 = vld [vmem:[%s300 + $0x79] sm:$0xff]
      %v2271 = vld [vmem:[%s300 + $0x81] sm:$0xff]
      %v2272 = vld [vmem:[%s300 + $0x89] sm:$0xff]
      %v2273 = vld [vmem:[%s300 + $0x91] sm:$0xff]
      %v2274 = vld [vmem:[%s300 + $0x99] sm:$0xff]
      %v2275 = vld [vmem:[%s300 + $0xa1] sm:$0xff]
      %v2276 = vld [vmem:[%s300 + $0xa9] sm:$0xff]
      %v2277 = vld [vmem:[%s300 + $0xb1] sm:$0xff]
      %v2278 = vld [vmem:[%s300 + $0xb9] sm:$0xff]
      %v2279 = vld [vmem:[%s300 + $0xc1] sm:$0xff]
      %v2280 = vld [vmem:[%s300 + $0xc9] sm:$0xff]
      %v2281 = vld [vmem:[%s300 + $0xd1] sm:$0xff]
      %v2282 = vld [vmem:[%s300 + $0xd9] sm:$0xff]
      %v2283 = vld [vmem:[%s300 + $0xe1] sm:$0xff]
      %v2284 = vld [vmem:[%s300 + $0xe9] sm:$0xff]
      %v2285 = vld [vmem:[%s300 + $0xf1] sm:$0xff]
      %v2286 = vld [vmem:[%s300 + $0xf9] sm:$0xff]
      %v2287 = vld [vmem:[%s300 + $0x101] sm:$0xff]
      %v2288 = vld [vmem:[%s300 + $0x109] sm:$0xff]
      %v2289 = vld [vmem:[%s300 + $0x111] sm:$0xff]
      %v2290 = vpack.c.bf16 %v2259, %v2258
      %v2291 = vpack.c.bf16 %v2261, %v2260
      %v2292 = vpack.c.bf16 %v2263, %v2262
      %v2293 = vpack.c.bf16 %v2265, %v2264
      %v2294 = vpack.c.bf16 %v2267, %v2266
      %v2295 = vpack.c.bf16 %v2269, %v2268
      %v2296 = vpack.c.bf16 %v2271, %v2270
      %v2297 = vpack.c.bf16 %v2273, %v2272
      %v2298 = vpack.c.bf16 %v2275, %v2274
      %v2299 = vpack.c.bf16 %v2277, %v2276
      %v2300 = vpack.c.bf16 %v2279, %v2278
      %v2301 = vpack.c.bf16 %v2281, %v2280
      %v2302 = vpack.c.bf16 %v2283, %v2282
      %v2303 = vpack.c.bf16 %v2285, %v2284
      %v2304 = vpack.c.bf16 %v2287, %v2286
      %v2305 = vpack.c.bf16 %v2289, %v2288
      %s2306 = scalar_lea.vmem %s1, 10
      %v2307 = vld [vmem:[%s2306] sm:$0x3]
      %v2309 = vsel %vm420, %v2290, 0
      %v2312 = vsel %vm420, %v2291, 0
      %v2315 = vsel %vm420, %v2292, 0
      %v2318 = vsel %vm420, %v2293, 0
      %v2321 = vsel %vm420, %v2294, 0
      %v2324 = vsel %vm420, %v2295, 0
      %v2327 = vsel %vm420, %v2296, 0
      %v2330 = vsel %vm420, %v2297, 0
      %v2333 = vsel %vm420, %v2298, 0
      %v2336 = vsel %vm420, %v2299, 0
      %v2339 = vsel %vm420, %v2300, 0
      %v2342 = vsel %vm420, %v2301, 0
      %v2345 = vsel %vm420, %v2302, 0
      %v2348 = vsel %vm420, %v2303, 0
      %v2351 = vsel %vm420, %v2304, 0
      %v2354 = vsel %vm420, %v2305, 0
      %v2357 = vsel %vm469, %v2307, 0
      %2359 = vmatprep.subr.bf16.mxu0 0
      %2360 = vmatpush1.bf16.msra.mxu0 %v2357
      %2361 = vmatprep.subr.bf16.mxu0 0
      %2362 = vmatpush1.bf16.msra.mxu0 0
      %2363 = vmatprep.subr.bf16.mxu0 0
      %2364 = vmatpush1.bf16.msra.mxu0 0
      %2365 = vmatprep.subr.bf16.mxu0 0
      %2366 = vmatpush1.bf16.msra.mxu0 0
      %2367 = vmatprep.subr.bf16.mxu0 0
      %2368 = vmatpush1.bf16.msra.mxu0 0
      %2369 = vmatprep.subr.bf16.mxu0 0
      %2370 = vmatpush1.bf16.msra.mxu0 0
      %2371 = vmatprep.subr.bf16.mxu0 0
      %2372 = vmatpush1.bf16.msra.mxu0 0
      %2373 = vmatprep.subr.bf16.mxu0 0
      %2374 = vmatpush1.bf16.msra.mxu0 0
      %2375 = vmatprep.subr.bf16.mxu0 0
      %2376 = vmatpush1.bf16.msra.mxu0 0
      %2377 = vmatprep.subr.bf16.mxu0 0
      %2378 = vmatpush1.bf16.msra.mxu0 0
      %2379 = vmatprep.subr.bf16.mxu0 0
      %2380 = vmatpush1.bf16.msra.mxu0 0
      %2381 = vmatprep.subr.bf16.mxu0 0
      %2382 = vmatpush1.bf16.msra.mxu0 0
      %2383 = vmatprep.subr.bf16.mxu0 0
      %2384 = vmatpush1.bf16.msra.mxu0 0
      %2385 = vmatprep.subr.bf16.mxu0 0
      %2386 = vmatpush1.bf16.msra.mxu0 0
      %2387 = vmatprep.subr.bf16.mxu0 0
      %2388 = vmatpush1.bf16.msra.mxu0 0
      %2389 = vmatprep.subr.bf16.mxu0 0
      %2390 = vmatpush1.bf16.msra.mxu0 0
      %2391 = vmatprep.mubr.bf16.mxu0 0
      %2392 = vmatmul.mubr.bf16.gmra.mrb[0].mxu0 %v2309
      %v2393 = vpop.f32.mrb[0].mxu0
      %v2394 = vadd.f32 0.0, %v2393
      %v2395 = vpop.f32.mrb[0].mxu0
      %v2396 = vpop.f32.mrb[0].mxu0
      %v2397 = vadd.f32 0.0, %v2396
      %v2398 = vpop.f32.mrb[0].mxu0
      %2399 = vmatprep.mubr.bf16.mxu0 0
      %2400 = vmatmul.mubr.bf16.gmra.mrb[0].mxu0 %v2312
      %v2401 = vpop.f32.mrb[0].mxu0
      %v2402 = vadd.f32 0.0, %v2401
      %v2403 = vpop.f32.mrb[0].mxu0
      %v2404 = vpop.f32.mrb[0].mxu0
      %v2405 = vadd.f32 0.0, %v2404
      %v2406 = vpop.f32.mrb[0].mxu0
      %2407 = vmatprep.mubr.bf16.mxu0 0
      %2408 = vmatmul.mubr.bf16.gmra.mrb[0].mxu0 %v2315
      %v2409 = vpop.f32.mrb[0].mxu0
      %v2410 = vadd.f32 0.0, %v2409
      %v2411 = vpop.f32.mrb[0].mxu0
      %v2412 = vpop.f32.mrb[0].mxu0
      %v2413 = vadd.f32 0.0, %v2412
      %v2414 = vpop.f32.mrb[0].mxu0
      %2415 = vmatprep.mubr.bf16.mxu0 0
      %2416 = vmatmul.mubr.bf16.gmra.mrb[0].mxu0 %v2318
      %v2417 = vpop.f32.mrb[0].mxu0
      %v2418 = vadd.f32 0.0, %v2417
      %v2419 = vpop.f32.mrb[0].mxu0
      %v2420 = vpop.f32.mrb[0].mxu0
      %v2421 = vadd.f32 0.0, %v2420
      %v2422 = vpop.f32.mrb[0].mxu0
      %2423 = vmatprep.mubr.bf16.mxu0 0
      %2424 = vmatmul.mubr.bf16.gmra.mrb[0].mxu0 %v2321
      %v2425 = vpop.f32.mrb[0].mxu0
      %v2426 = vadd.f32 0.0, %v2425
      %v2427 = vpop.f32.mrb[0].mxu0
      %v2428 = vpop.f32.mrb[0].mxu0
      %v2429 = vadd.f32 0.0, %v2428
      %v2430 = vpop.f32.mrb[0].mxu0
      %2431 = vmatprep.mubr.bf16.mxu0 0
      %2432 = vmatmul.mubr.bf16.gmra.mrb[0].mxu0 %v2324
      %v2433 = vpop.f32.mrb[0].mxu0
      %v2434 = vadd.f32 0.0, %v2433
      %v2435 = vpop.f32.mrb[0].mxu0
      %v2436 = vpop.f32.mrb[0].mxu0
      %v2437 = vadd.f32 0.0, %v2436
      %v2438 = vpop.f32.mrb[0].mxu0
      %2439 = vmatprep.mubr.bf16.mxu0 0
      %2440 = vmatmul.mubr.bf16.gmra.mrb[0].mxu0 %v2327
      %v2441 = vpop.f32.mrb[0].mxu0
      %v2442 = vadd.f32 0.0, %v2441
      %v2443 = vpop.f32.mrb[0].mxu0
      %v2444 = vpop.f32.mrb[0].mxu0
      %v2445 = vadd.f32 0.0, %v2444
      %v2446 = vpop.f32.mrb[0].mxu0
      %2447 = vmatprep.mubr.bf16.mxu0 0
      %2448 = vmatmul.mubr.bf16.gmra.mrb[0].mxu0 %v2330
      %v2449 = vpop.f32.mrb[0].mxu0
      %v2450 = vadd.f32 0.0, %v2449
      %v2451 = vpop.f32.mrb[0].mxu0
      %v2452 = vpop.f32.mrb[0].mxu0
      %v2453 = vadd.f32 0.0, %v2452
      %v2454 = vpop.f32.mrb[0].mxu0
      %2455 = vmatprep.mubr.bf16.mxu0 0
      %2456 = vmatmul.mubr.bf16.gmra.mrb[0].mxu0 %v2333
      %v2457 = vpop.f32.mrb[0].mxu0
      %v2458 = vadd.f32 0.0, %v2457
      %v2459 = vpop.f32.mrb[0].mxu0
      %v2460 = vpop.f32.mrb[0].mxu0
      %v2461 = vadd.f32 0.0, %v2460
      %v2462 = vpop.f32.mrb[0].mxu0
      %2463 = vmatprep.mubr.bf16.mxu0 0
      %2464 = vmatmul.mubr.bf16.gmra.mrb[0].mxu0 %v2336
      %v2465 = vpop.f32.mrb[0].mxu0
      %v2466 = vadd.f32 0.0, %v2465
      %v2467 = vpop.f32.mrb[0].mxu0
      %v2468 = vpop.f32.mrb[0].mxu0
      %v2469 = vadd.f32 0.0, %v2468
      %v2470 = vpop.f32.mrb[0].mxu0
      %2471 = vmatprep.mubr.bf16.mxu0 0
      %2472 = vmatmul.mubr.bf16.gmra.mrb[0].mxu0 %v2339
      %v2473 = vpop.f32.mrb[0].mxu0
      %v2474 = vadd.f32 0.0, %v2473
      %v2475 = vpop.f32.mrb[0].mxu0
      %v2476 = vpop.f32.mrb[0].mxu0
      %v2477 = vadd.f32 0.0, %v2476
      %v2478 = vpop.f32.mrb[0].mxu0
      %2479 = vmatprep.mubr.bf16.mxu0 0
      %2480 = vmatmul.mubr.bf16.gmra.mrb[0].mxu0 %v2342
      %v2481 = vpop.f32.mrb[0].mxu0
      %v2482 = vadd.f32 0.0, %v2481
      %v2483 = vpop.f32.mrb[0].mxu0
      %v2484 = vpop.f32.mrb[0].mxu0
      %v2485 = vadd.f32 0.0, %v2484
      %v2486 = vpop.f32.mrb[0].mxu0
      %2487 = vmatprep.mubr.bf16.mxu0 0
      %2488 = vmatmul.mubr.bf16.gmra.mrb[0].mxu0 %v2345
      %v2489 = vpop.f32.mrb[0].mxu0
      %v2490 = vadd.f32 0.0, %v2489
      %v2491 = vpop.f32.mrb[0].mxu0
      %v2492 = vpop.f32.mrb[0].mxu0
      %v2493 = vadd.f32 0.0, %v2492
      %v2494 = vpop.f32.mrb[0].mxu0
      %2495 = vmatprep.mubr.bf16.mxu0 0
      %2496 = vmatmul.mubr.bf16.gmra.mrb[0].mxu0 %v2348
      %v2497 = vpop.f32.mrb[0].mxu0
      %v2498 = vadd.f32 0.0, %v2497
      %v2499 = vpop.f32.mrb[0].mxu0
      %v2500 = vpop.f32.mrb[0].mxu0
      %v2501 = vadd.f32 0.0, %v2500
      %v2502 = vpop.f32.mrb[0].mxu0
      %2503 = vmatprep.mubr.bf16.mxu0 0
      %2504 = vmatmul.mubr.bf16.gmra.mrb[0].mxu0 %v2351
      %v2505 = vpop.f32.mrb[0].mxu0
      %v2506 = vadd.f32 0.0, %v2505
      %v2507 = vpop.f32.mrb[0].mxu0
      %v2508 = vpop.f32.mrb[0].mxu0
      %v2509 = vadd.f32 0.0, %v2508
      %v2510 = vpop.f32.mrb[0].mxu0
      %2511 = vmatprep.mubr.bf16.mxu0 0
      %2512 = vmatmul.mubr.bf16.gmra.mrb[0].mxu0 %v2354
      %v2513 = vpop.f32.mrb[0].mxu0
      %v2514 = vadd.f32 0.0, %v2513
      %v2515 = vpop.f32.mrb[0].mxu0
      %v2516 = vpop.f32.mrb[0].mxu0
      %v2517 = vadd.f32 0.0, %v2516
      %v2518 = vpop.f32.mrb[0].mxu0
      %2519 = vdwg.mxu0
      %v2520 = vmul.f32 %v2394, %v1417
      %v2521 = vmul.f32 %v2397, %v1422
      %v2522 = vmul.f32 %v2402, %v1427
      %v2523 = vmul.f32 %v2405, %v1432
      %v2524 = vmul.f32 %v2410, %v1437
      %v2525 = vmul.f32 %v2413, %v1442
      %v2526 = vmul.f32 %v2418, %v1447
      %v2527 = vmul.f32 %v2421, %v1452
      %v2528 = vmul.f32 %v2426, %v1457
      %v2529 = vmul.f32 %v2429, %v1462
      %v2530 = vmul.f32 %v2434, %v1467
      %v2531 = vmul.f32 %v2437, %v1472
      %v2532 = vmul.f32 %v2442, %v1477
      %v2533 = vmul.f32 %v2445, %v1482
      %v2534 = vmul.f32 %v2450, %v1487
      %v2535 = vmul.f32 %v2453, %v1492
      %v2536 = vmul.f32 %v2458, %v1497
      %v2537 = vmul.f32 %v2461, %v1502
      %v2538 = vmul.f32 %v2466, %v1507
      %v2539 = vmul.f32 %v2469, %v1512
      %v2540 = vmul.f32 %v2474, %v1517
      %v2541 = vmul.f32 %v2477, %v1522
      %v2542 = vmul.f32 %v2482, %v1527
      %v2543 = vmul.f32 %v2485, %v1532
      %v2544 = vmul.f32 %v2490, %v1537
      %v2545 = vmul.f32 %v2493, %v1542
      %v2546 = vmul.f32 %v2498, %v1547
      %v2547 = vmul.f32 %v2501, %v1552
      %v2548 = vmul.f32 %v2506, %v1557
      %v2549 = vmul.f32 %v2509, %v1562
      %v2550 = vmul.f32 %v2514, %v1567
      %v2551 = vmul.f32 %v2517, %v1572
      %v2552 = vadd.f32 %v2226, %v2520
      %v2553 = vadd.f32 %v2227, %v2521
      %v2554 = vadd.f32 %v2228, %v2522
      %v2555 = vadd.f32 %v2229, %v2523
      %v2556 = vadd.f32 %v2230, %v2524
      %v2557 = vadd.f32 %v2231, %v2525
      %v2558 = vadd.f32 %v2232, %v2526
      %v2559 = vadd.f32 %v2233, %v2527
      %v2560 = vadd.f32 %v2234, %v2528
      %v2561 = vadd.f32 %v2235, %v2529
      %v2562 = vadd.f32 %v2236, %v2530
      %v2563 = vadd.f32 %v2237, %v2531
      %v2564 = vadd.f32 %v2238, %v2532
      %v2565 = vadd.f32 %v2239, %v2533
      %v2566 = vadd.f32 %v2240, %v2534
      %v2567 = vadd.f32 %v2241, %v2535
      %v2568 = vadd.f32 %v2242, %v2536
      %v2569 = vadd.f32 %v2243, %v2537
      %v2570 = vadd.f32 %v2244, %v2538
      %v2571 = vadd.f32 %v2245, %v2539
      %v2572 = vadd.f32 %v2246, %v2540
      %v2573 = vadd.f32 %v2247, %v2541
      %v2574 = vadd.f32 %v2248, %v2542
      %v2575 = vadd.f32 %v2249, %v2543
      %v2576 = vadd.f32 %v2250, %v2544
      %v2577 = vadd.f32 %v2251, %v2545
      %v2578 = vadd.f32 %v2252, %v2546
      %v2579 = vadd.f32 %v2253, %v2547
      %v2580 = vadd.f32 %v2254, %v2548
      %v2581 = vadd.f32 %v2255, %v2549
      %v2582 = vadd.f32 %v2256, %v2550
      %v2583 = vadd.f32 %v2257, %v2551
      %v2584 = vld [vmem:[%s300 + $0x27] sm:$0xff]
      %v2585 = vld [vmem:[%s300 + $0x2f] sm:$0xff]
      %v2586 = vld [vmem:[%s300 + $0x37] sm:$0xff]
      %v2587 = vld [vmem:[%s300 + $0x3f] sm:$0xff]
      %v2588 = vld [vmem:[%s300 + $0x47] sm:$0xff]
      %v2589 = vld [vmem:[%s300 + $0x4f] sm:$0xff]
      %v2590 = vld [vmem:[%s300 + $0x57] sm:$0xff]
      %v2591 = vld [vmem:[%s300 + $0x5f] sm:$0xff]
      %v2592 = vld [vmem:[%s300 + $0x67] sm:$0xff]
      %v2593 = vld [vmem:[%s300 + $0x6f] sm:$0xff]
      %v2594 = vld [vmem:[%s300 + $0x77] sm:$0xff]
      %v2595 = vld [vmem:[%s300 + $0x7f] sm:$0xff]
      %v2596 = vld [vmem:[%s300 + $0x87] sm:$0xff]
      %v2597 = vld [vmem:[%s300 + $0x8f] sm:$0xff]
      %v2598 = vld [vmem:[%s300 + $0x97] sm:$0xff]
      %v2599 = vld [vmem:[%s300 + $0x9f] sm:$0xff]
      %v2600 = vld [vmem:[%s300 + $0xa7] sm:$0xff]
      %v2601 = vld [vmem:[%s300 + $0xaf] sm:$0xff]
      %v2602 = vld [vmem:[%s300 + $0xb7] sm:$0xff]
      %v2603 = vld [vmem:[%s300 + $0xbf] sm:$0xff]
      %v2604 = vld [vmem:[%s300 + $0xc7] sm:$0xff]
      %v2605 = vld [vmem:[%s300 + $0xcf] sm:$0xff]
      %v2606 = vld [vmem:[%s300 + $0xd7] sm:$0xff]
      %v2607 = vld [vmem:[%s300 + $0xdf] sm:$0xff]
      %v2608 = vld [vmem:[%s300 + $0xe7] sm:$0xff]
      %v2609 = vld [vmem:[%s300 + $0xef] sm:$0xff]
      %v2610 = vld [vmem:[%s300 + $0xf7] sm:$0xff]
      %v2611 = vld [vmem:[%s300 + $0xff] sm:$0xff]
      %v2612 = vld [vmem:[%s300 + $0x107] sm:$0xff]
      %v2613 = vld [vmem:[%s300 + $0x10f] sm:$0xff]
      %v2614 = vld [vmem:[%s300 + $0x117] sm:$0xff]
      %v2615 = vld [vmem:[%s300 + $0x11f] sm:$0xff]
      %v2616 = vpack.c.bf16 %v2585, %v2584
      %v2617 = vpack.c.bf16 %v2587, %v2586
      %v2618 = vpack.c.bf16 %v2589, %v2588
      %v2619 = vpack.c.bf16 %v2591, %v2590
      %v2620 = vpack.c.bf16 %v2593, %v2592
      %v2621 = vpack.c.bf16 %v2595, %v2594
      %v2622 = vpack.c.bf16 %v2597, %v2596
      %v2623 = vpack.c.bf16 %v2599, %v2598
      %v2624 = vpack.c.bf16 %v2601, %v2600
      %v2625 = vpack.c.bf16 %v2603, %v2602
      %v2626 = vpack.c.bf16 %v2605, %v2604
      %v2627 = vpack.c.bf16 %v2607, %v2606
      %v2628 = vpack.c.bf16 %v2609, %v2608
      %v2629 = vpack.c.bf16 %v2611, %v2610
      %v2630 = vpack.c.bf16 %v2613, %v2612
      %v2631 = vpack.c.bf16 %v2615, %v2614
      %s2632 = scalar_lea.vmem %s1, 12
      %v2633 = vld [vmem:[%s2632] sm:$0x3]
      %v2635 = vsel %vm420, %v2616, 0
      %v2638 = vsel %vm420, %v2617, 0
      %v2641 = vsel %vm420, %v2618, 0
      %v2644 = vsel %vm420, %v2619, 0
      %v2647 = vsel %vm420, %v2620, 0
      %v2650 = vsel %vm420, %v2621, 0
      %v2653 = vsel %vm420, %v2622, 0
      %v2656 = vsel %vm420, %v2623, 0
      %v2659 = vsel %vm420, %v2624, 0
      %v2662 = vsel %vm420, %v2625, 0
      %v2665 = vsel %vm420, %v2626, 0
      %v2668 = vsel %vm420, %v2627, 0
      %v2671 = vsel %vm420, %v2628, 0
      %v2674 = vsel %vm420, %v2629, 0
      %v2677 = vsel %vm420, %v2630, 0
      %v2680 = vsel %vm420, %v2631, 0
      %v2683 = vsel %vm469, %v2633, 0
      %2685 = vmatprep.subr.bf16.mxu0 0
      %2686 = vmatpush1.bf16.msra.mxu0 %v2683
      %2687 = vmatprep.subr.bf16.mxu0 0
      %2688 = vmatpush1.bf16.msra.mxu0 0
      %2689 = vmatprep.subr.bf16.mxu0 0
      %2690 = vmatpush1.bf16.msra.mxu0 0
      %2691 = vmatprep.subr.bf16.mxu0 0
      %2692 = vmatpush1.bf16.msra.mxu0 0
      %2693 = vmatprep.subr.bf16.mxu0 0
      %2694 = vmatpush1.bf16.msra.mxu0 0
      %2695 = vmatprep.subr.bf16.mxu0 0
      %2696 = vmatpush1.bf16.msra.mxu0 0
      %2697 = vmatprep.subr.bf16.mxu0 0
      %2698 = vmatpush1.bf16.msra.mxu0 0
      %2699 = vmatprep.subr.bf16.mxu0 0
      %2700 = vmatpush1.bf16.msra.mxu0 0
      %2701 = vmatprep.subr.bf16.mxu0 0
      %2702 = vmatpush1.bf16.msra.mxu0 0
      %2703 = vmatprep.subr.bf16.mxu0 0
      %2704 = vmatpush1.bf16.msra.mxu0 0
      %2705 = vmatprep.subr.bf16.mxu0 0
      %2706 = vmatpush1.bf16.msra.mxu0 0
      %2707 = vmatprep.subr.bf16.mxu0 0
      %2708 = vmatpush1.bf16.msra.mxu0 0
      %2709 = vmatprep.subr.bf16.mxu0 0
      %2710 = vmatpush1.bf16.msra.mxu0 0
      %2711 = vmatprep.subr.bf16.mxu0 0
      %2712 = vmatpush1.bf16.msra.mxu0 0
      %2713 = vmatprep.subr.bf16.mxu0 0
      %2714 = vmatpush1.bf16.msra.mxu0 0
      %2715 = vmatprep.subr.bf16.mxu0 0
      %2716 = vmatpush1.bf16.msra.mxu0 0
      %2717 = vmatprep.mubr.bf16.mxu0 0
      %2718 = vmatmul.mubr.bf16.gmra.mrb[0].mxu0 %v2635
      %v2719 = vpop.f32.mrb[0].mxu0
      %v2720 = vadd.f32 0.0, %v2719
      %v2721 = vpop.f32.mrb[0].mxu0
      %v2722 = vpop.f32.mrb[0].mxu0
      %v2723 = vadd.f32 0.0, %v2722
      %v2724 = vpop.f32.mrb[0].mxu0
      %2725 = vmatprep.mubr.bf16.mxu0 0
      %2726 = vmatmul.mubr.bf16.gmra.mrb[0].mxu0 %v2638
      %v2727 = vpop.f32.mrb[0].mxu0
      %v2728 = vadd.f32 0.0, %v2727
      %v2729 = vpop.f32.mrb[0].mxu0
      %v2730 = vpop.f32.mrb[0].mxu0
      %v2731 = vadd.f32 0.0, %v2730
      %v2732 = vpop.f32.mrb[0].mxu0
      %2733 = vmatprep.mubr.bf16.mxu0 0
      %2734 = vmatmul.mubr.bf16.gmra.mrb[0].mxu0 %v2641
      %v2735 = vpop.f32.mrb[0].mxu0
      %v2736 = vadd.f32 0.0, %v2735
      %v2737 = vpop.f32.mrb[0].mxu0
      %v2738 = vpop.f32.mrb[0].mxu0
      %v2739 = vadd.f32 0.0, %v2738
      %v2740 = vpop.f32.mrb[0].mxu0
      %2741 = vmatprep.mubr.bf16.mxu0 0
      %2742 = vmatmul.mubr.bf16.gmra.mrb[0].mxu0 %v2644
      %v2743 = vpop.f32.mrb[0].mxu0
      %v2744 = vadd.f32 0.0, %v2743
      %v2745 = vpop.f32.mrb[0].mxu0
      %v2746 = vpop.f32.mrb[0].mxu0
      %v2747 = vadd.f32 0.0, %v2746
      %v2748 = vpop.f32.mrb[0].mxu0
      %2749 = vmatprep.mubr.bf16.mxu0 0
      %2750 = vmatmul.mubr.bf16.gmra.mrb[0].mxu0 %v2647
      %v2751 = vpop.f32.mrb[0].mxu0
      %v2752 = vadd.f32 0.0, %v2751
      %v2753 = vpop.f32.mrb[0].mxu0
      %v2754 = vpop.f32.mrb[0].mxu0
      %v2755 = vadd.f32 0.0, %v2754
      %v2756 = vpop.f32.mrb[0].mxu0
      %2757 = vmatprep.mubr.bf16.mxu0 0
      %2758 = vmatmul.mubr.bf16.gmra.mrb[0].mxu0 %v2650
      %v2759 = vpop.f32.mrb[0].mxu0
      %v2760 = vadd.f32 0.0, %v2759
      %v2761 = vpop.f32.mrb[0].mxu0
      %v2762 = vpop.f32.mrb[0].mxu0
      %v2763 = vadd.f32 0.0, %v2762
      %v2764 = vpop.f32.mrb[0].mxu0
      %2765 = vmatprep.mubr.bf16.mxu0 0
      %2766 = vmatmul.mubr.bf16.gmra.mrb[0].mxu0 %v2653
      %v2767 = vpop.f32.mrb[0].mxu0
      %v2768 = vadd.f32 0.0, %v2767
      %v2769 = vpop.f32.mrb[0].mxu0
      %v2770 = vpop.f32.mrb[0].mxu0
      %v2771 = vadd.f32 0.0, %v2770
      %v2772 = vpop.f32.mrb[0].mxu0
      %2773 = vmatprep.mubr.bf16.mxu0 0
      %2774 = vmatmul.mubr.bf16.gmra.mrb[0].mxu0 %v2656
      %v2775 = vpop.f32.mrb[0].mxu0
      %v2776 = vadd.f32 0.0, %v2775
      %v2777 = vpop.f32.mrb[0].mxu0
      %v2778 = vpop.f32.mrb[0].mxu0
      %v2779 = vadd.f32 0.0, %v2778
      %v2780 = vpop.f32.mrb[0].mxu0
      %2781 = vmatprep.mubr.bf16.mxu0 0
      %2782 = vmatmul.mubr.bf16.gmra.mrb[0].mxu0 %v2659
      %v2783 = vpop.f32.mrb[0].mxu0
      %v2784 = vadd.f32 0.0, %v2783
      %v2785 = vpop.f32.mrb[0].mxu0
      %v2786 = vpop.f32.mrb[0].mxu0
      %v2787 = vadd.f32 0.0, %v2786
      %v2788 = vpop.f32.mrb[0].mxu0
      %2789 = vmatprep.mubr.bf16.mxu0 0
      %2790 = vmatmul.mubr.bf16.gmra.mrb[0].mxu0 %v2662
      %v2791 = vpop.f32.mrb[0].mxu0
      %v2792 = vadd.f32 0.0, %v2791
      %v2793 = vpop.f32.mrb[0].mxu0
      %v2794 = vpop.f32.mrb[0].mxu0
      %v2795 = vadd.f32 0.0, %v2794
      %v2796 = vpop.f32.mrb[0].mxu0
      %2797 = vmatprep.mubr.bf16.mxu0 0
      %2798 = vmatmul.mubr.bf16.gmra.mrb[0].mxu0 %v2665
      %v2799 = vpop.f32.mrb[0].mxu0
      %v2800 = vadd.f32 0.0, %v2799
      %v2801 = vpop.f32.mrb[0].mxu0
      %v2802 = vpop.f32.mrb[0].mxu0
      %v2803 = vadd.f32 0.0, %v2802
      %v2804 = vpop.f32.mrb[0].mxu0
      %2805 = vmatprep.mubr.bf16.mxu0 0
      %2806 = vmatmul.mubr.bf16.gmra.mrb[0].mxu0 %v2668
      %v2807 = vpop.f32.mrb[0].mxu0
      %v2808 = vadd.f32 0.0, %v2807
      %v2809 = vpop.f32.mrb[0].mxu0
      %v2810 = vpop.f32.mrb[0].mxu0
      %v2811 = vadd.f32 0.0, %v2810
      %v2812 = vpop.f32.mrb[0].mxu0
      %2813 = vmatprep.mubr.bf16.mxu0 0
      %2814 = vmatmul.mubr.bf16.gmra.mrb[0].mxu0 %v2671
      %v2815 = vpop.f32.mrb[0].mxu0
      %v2816 = vadd.f32 0.0, %v2815
      %v2817 = vpop.f32.mrb[0].mxu0
      %v2818 = vpop.f32.mrb[0].mxu0
      %v2819 = vadd.f32 0.0, %v2818
      %v2820 = vpop.f32.mrb[0].mxu0
      %2821 = vmatprep.mubr.bf16.mxu0 0
      %2822 = vmatmul.mubr.bf16.gmra.mrb[0].mxu0 %v2674
      %v2823 = vpop.f32.mrb[0].mxu0
      %v2824 = vadd.f32 0.0, %v2823
      %v2825 = vpop.f32.mrb[0].mxu0
      %v2826 = vpop.f32.mrb[0].mxu0
      %v2827 = vadd.f32 0.0, %v2826
      %v2828 = vpop.f32.mrb[0].mxu0
      %2829 = vmatprep.mubr.bf16.mxu0 0
      %2830 = vmatmul.mubr.bf16.gmra.mrb[0].mxu0 %v2677
      %v2831 = vpop.f32.mrb[0].mxu0
      %v2832 = vadd.f32 0.0, %v2831
      %v2833 = vpop.f32.mrb[0].mxu0
      %v2834 = vpop.f32.mrb[0].mxu0
      %v2835 = vadd.f32 0.0, %v2834
      %v2836 = vpop.f32.mrb[0].mxu0
      %2837 = vmatprep.mubr.bf16.mxu0 0
      %2838 = vmatmul.mubr.bf16.gmra.mrb[0].mxu0 %v2680
      %v2839 = vpop.f32.mrb[0].mxu0
      %v2840 = vadd.f32 0.0, %v2839
      %v2841 = vpop.f32.mrb[0].mxu0
      %v2842 = vpop.f32.mrb[0].mxu0
      %v2843 = vadd.f32 0.0, %v2842
      %v2844 = vpop.f32.mrb[0].mxu0
      %2845 = vdwg.mxu0
      %v2846 = vmul.f32 %v2720, %v637
      %v2847 = vmul.f32 %v2723, %v642
      %v2848 = vmul.f32 %v2728, %v647
      %v2849 = vmul.f32 %v2731, %v652
      %v2850 = vmul.f32 %v2736, %v657
      %v2851 = vmul.f32 %v2739, %v662
      %v2852 = vmul.f32 %v2744, %v667
      %v2853 = vmul.f32 %v2747, %v672
      %v2854 = vmul.f32 %v2752, %v677
      %v2855 = vmul.f32 %v2755, %v682
      %v2856 = vmul.f32 %v2760, %v687
      %v2857 = vmul.f32 %v2763, %v692
      %v2858 = vmul.f32 %v2768, %v697
      %v2859 = vmul.f32 %v2771, %v702
      %v2860 = vmul.f32 %v2776, %v707
      %v2861 = vmul.f32 %v2779, %v712
      %v2862 = vmul.f32 %v2784, %v717
      %v2863 = vmul.f32 %v2787, %v722
      %v2864 = vmul.f32 %v2792, %v727
      %v2865 = vmul.f32 %v2795, %v732
      %v2866 = vmul.f32 %v2800, %v737
      %v2867 = vmul.f32 %v2803, %v742
      %v2868 = vmul.f32 %v2808, %v747
      %v2869 = vmul.f32 %v2811, %v752
      %v2870 = vmul.f32 %v2816, %v757
      %v2871 = vmul.f32 %v2819, %v762
      %v2872 = vmul.f32 %v2824, %v767
      %v2873 = vmul.f32 %v2827, %v772
      %v2874 = vmul.f32 %v2832, %v777
      %v2875 = vmul.f32 %v2835, %v782
      %v2876 = vmul.f32 %v2840, %v787
      %v2877 = vmul.f32 %v2843, %v792
      %v2878 = vadd.f32 %v2552, %v2846
      %v2879 = vadd.f32 %v2553, %v2847
      %v2880 = vadd.f32 %v2554, %v2848
      %v2881 = vadd.f32 %v2555, %v2849
      %v2882 = vadd.f32 %v2556, %v2850
      %v2883 = vadd.f32 %v2557, %v2851
      %v2884 = vadd.f32 %v2558, %v2852
      %v2885 = vadd.f32 %v2559, %v2853
      %v2886 = vadd.f32 %v2560, %v2854
      %v2887 = vadd.f32 %v2561, %v2855
      %v2888 = vadd.f32 %v2562, %v2856
      %v2889 = vadd.f32 %v2563, %v2857
      %v2890 = vadd.f32 %v2564, %v2858
      %v2891 = vadd.f32 %v2565, %v2859
      %v2892 = vadd.f32 %v2566, %v2860
      %v2893 = vadd.f32 %v2567, %v2861
      %v2894 = vadd.f32 %v2568, %v2862
      %v2895 = vadd.f32 %v2569, %v2863
      %v2896 = vadd.f32 %v2570, %v2864
      %v2897 = vadd.f32 %v2571, %v2865
      %v2898 = vadd.f32 %v2572, %v2866
      %v2899 = vadd.f32 %v2573, %v2867
      %v2900 = vadd.f32 %v2574, %v2868
      %v2901 = vadd.f32 %v2575, %v2869
      %v2902 = vadd.f32 %v2576, %v2870
      %v2903 = vadd.f32 %v2577, %v2871
      %v2904 = vadd.f32 %v2578, %v2872
      %v2905 = vadd.f32 %v2579, %v2873
      %v2906 = vadd.f32 %v2580, %v2874
      %v2907 = vadd.f32 %v2581, %v2875
      %v2908 = vadd.f32 %v2582, %v2876
      %v2909 = vadd.f32 %v2583, %v2877
      %v2910 = vld [vmem:[%s300 + $0x28] sm:$0xff]
      %v2911 = vld [vmem:[%s300 + $0x30] sm:$0xff]
      %v2912 = vld [vmem:[%s300 + $0x38] sm:$0xff]
      %v2913 = vld [vmem:[%s300 + $0x40] sm:$0xff]
      %v2914 = vld [vmem:[%s300 + $0x48] sm:$0xff]
      %v2915 = vld [vmem:[%s300 + $0x50] sm:$0xff]
      %v2916 = vld [vmem:[%s300 + $0x58] sm:$0xff]
      %v2917 = vld [vmem:[%s300 + $0x60] sm:$0xff]
      %v2918 = vld [vmem:[%s300 + $0x68] sm:$0xff]
      %v2919 = vld [vmem:[%s300 + $0x70] sm:$0xff]
      %v2920 = vld [vmem:[%s300 + $0x78] sm:$0xff]
      %v2921 = vld [vmem:[%s300 + $0x80] sm:$0xff]
      %v2922 = vld [vmem:[%s300 + $0x88] sm:$0xff]
      %v2923 = vld [vmem:[%s300 + $0x90] sm:$0xff]
      %v2924 = vld [vmem:[%s300 + $0x98] sm:$0xff]
      %v2925 = vld [vmem:[%s300 + $0xa0] sm:$0xff]
      %v2926 = vld [vmem:[%s300 + $0xa8] sm:$0xff]
      %v2927 = vld [vmem:[%s300 + $0xb0] sm:$0xff]
      %v2928 = vld [vmem:[%s300 + $0xb8] sm:$0xff]
      %v2929 = vld [vmem:[%s300 + $0xc0] sm:$0xff]
      %v2930 = vld [vmem:[%s300 + $0xc8] sm:$0xff]
      %v2931 = vld [vmem:[%s300 + $0xd0] sm:$0xff]
      %v2932 = vld [vmem:[%s300 + $0xd8] sm:$0xff]
      %v2933 = vld [vmem:[%s300 + $0xe0] sm:$0xff]
      %v2934 = vld [vmem:[%s300 + $0xe8] sm:$0xff]
      %v2935 = vld [vmem:[%s300 + $0xf0] sm:$0xff]
      %v2936 = vld [vmem:[%s300 + $0xf8] sm:$0xff]
      %v2937 = vld [vmem:[%s300 + $0x100] sm:$0xff]
      %v2938 = vld [vmem:[%s300 + $0x108] sm:$0xff]
      %v2939 = vld [vmem:[%s300 + $0x110] sm:$0xff]
      %v2940 = vld [vmem:[%s300 + $0x118] sm:$0xff]
      %v2941 = vld [vmem:[%s300 + $0x120] sm:$0xff]
      %v2942 = vpack.c.bf16 %v2911, %v2910
      %v2943 = vpack.c.bf16 %v2913, %v2912
      %v2944 = vpack.c.bf16 %v2915, %v2914
      %v2945 = vpack.c.bf16 %v2917, %v2916
      %v2946 = vpack.c.bf16 %v2919, %v2918
      %v2947 = vpack.c.bf16 %v2921, %v2920
      %v2948 = vpack.c.bf16 %v2923, %v2922
      %v2949 = vpack.c.bf16 %v2925, %v2924
      %v2950 = vpack.c.bf16 %v2927, %v2926
      %v2951 = vpack.c.bf16 %v2929, %v2928
      %v2952 = vpack.c.bf16 %v2931, %v2930
      %v2953 = vpack.c.bf16 %v2933, %v2932
      %v2954 = vpack.c.bf16 %v2935, %v2934
      %v2955 = vpack.c.bf16 %v2937, %v2936
      %v2956 = vpack.c.bf16 %v2939, %v2938
      %v2957 = vpack.c.bf16 %v2941, %v2940
      %s2958 = scalar_lea.vmem %s1, 14
      %v2959 = vld [vmem:[%s2958] sm:$0x3]
      %v2961 = vsel %vm420, %v2942, 0
      %v2964 = vsel %vm420, %v2943, 0
      %v2967 = vsel %vm420, %v2944, 0
      %v2970 = vsel %vm420, %v2945, 0
      %v2973 = vsel %vm420, %v2946, 0
      %v2976 = vsel %vm420, %v2947, 0
      %v2979 = vsel %vm420, %v2948, 0
      %v2982 = vsel %vm420, %v2949, 0
      %v2985 = vsel %vm420, %v2950, 0
      %v2988 = vsel %vm420, %v2951, 0
      %v2991 = vsel %vm420, %v2952, 0
      %v2994 = vsel %vm420, %v2953, 0
      %v2997 = vsel %vm420, %v2954, 0
      %v3000 = vsel %vm420, %v2955, 0
      %v3003 = vsel %vm420, %v2956, 0
      %v3006 = vsel %vm420, %v2957, 0
      %v3009 = vsel %vm469, %v2959, 0
      %3011 = vmatprep.subr.bf16.mxu0 0
      %3012 = vmatpush1.bf16.msra.mxu0 %v3009
      %3013 = vmatprep.subr.bf16.mxu0 0
      %3014 = vmatpush1.bf16.msra.mxu0 0
      %3015 = vmatprep.subr.bf16.mxu0 0
      %3016 = vmatpush1.bf16.msra.mxu0 0
      %3017 = vmatprep.subr.bf16.mxu0 0
      %3018 = vmatpush1.bf16.msra.mxu0 0
      %3019 = vmatprep.subr.bf16.mxu0 0
      %3020 = vmatpush1.bf16.msra.mxu0 0
      %3021 = vmatprep.subr.bf16.mxu0 0
      %3022 = vmatpush1.bf16.msra.mxu0 0
      %3023 = vmatprep.subr.bf16.mxu0 0
      %3024 = vmatpush1.bf16.msra.mxu0 0
      %3025 = vmatprep.subr.bf16.mxu0 0
      %3026 = vmatpush1.bf16.msra.mxu0 0
      %3027 = vmatprep.subr.bf16.mxu0 0
      %3028 = vmatpush1.bf16.msra.mxu0 0
      %3029 = vmatprep.subr.bf16.mxu0 0
      %3030 = vmatpush1.bf16.msra.mxu0 0
      %3031 = vmatprep.subr.bf16.mxu0 0
      %3032 = vmatpush1.bf16.msra.mxu0 0
      %3033 = vmatprep.subr.bf16.mxu0 0
      %3034 = vmatpush1.bf16.msra.mxu0 0
      %3035 = vmatprep.subr.bf16.mxu0 0
      %3036 = vmatpush1.bf16.msra.mxu0 0
      %3037 = vmatprep.subr.bf16.mxu0 0
      %3038 = vmatpush1.bf16.msra.mxu0 0
      %3039 = vmatprep.subr.bf16.mxu0 0
      %3040 = vmatpush1.bf16.msra.mxu0 0
      %3041 = vmatprep.subr.bf16.mxu0 0
      %3042 = vmatpush1.bf16.msra.mxu0 0
      %3043 = vmatprep.mubr.bf16.mxu0 0
      %3044 = vmatmul.mubr.bf16.gmra.mrb[0].mxu0 %v2961
      %v3045 = vpop.f32.mrb[0].mxu0
      %v3046 = vadd.f32 0.0, %v3045
      %v3047 = vpop.f32.mrb[0].mxu0
      %v3048 = vpop.f32.mrb[0].mxu0
      %v3049 = vadd.f32 0.0, %v3048
      %v3050 = vpop.f32.mrb[0].mxu0
      %3051 = vmatprep.mubr.bf16.mxu0 0
      %3052 = vmatmul.mubr.bf16.gmra.mrb[0].mxu0 %v2964
      %v3053 = vpop.f32.mrb[0].mxu0
      %v3054 = vadd.f32 0.0, %v3053
      %v3055 = vpop.f32.mrb[0].mxu0
      %v3056 = vpop.f32.mrb[0].mxu0
      %v3057 = vadd.f32 0.0, %v3056
      %v3058 = vpop.f32.mrb[0].mxu0
      %3059 = vmatprep.mubr.bf16.mxu0 0
      %3060 = vmatmul.mubr.bf16.gmra.mrb[0].mxu0 %v2967
      %v3061 = vpop.f32.mrb[0].mxu0
      %v3062 = vadd.f32 0.0, %v3061
      %v3063 = vpop.f32.mrb[0].mxu0
      %v3064 = vpop.f32.mrb[0].mxu0
      %v3065 = vadd.f32 0.0, %v3064
      %v3066 = vpop.f32.mrb[0].mxu0
      %3067 = vmatprep.mubr.bf16.mxu0 0
      %3068 = vmatmul.mubr.bf16.gmra.mrb[0].mxu0 %v2970
      %v3069 = vpop.f32.mrb[0].mxu0
      %v3070 = vadd.f32 0.0, %v3069
      %v3071 = vpop.f32.mrb[0].mxu0
      %v3072 = vpop.f32.mrb[0].mxu0
      %v3073 = vadd.f32 0.0, %v3072
      %v3074 = vpop.f32.mrb[0].mxu0
      %3075 = vmatprep.mubr.bf16.mxu0 0
      %3076 = vmatmul.mubr.bf16.gmra.mrb[0].mxu0 %v2973
      %v3077 = vpop.f32.mrb[0].mxu0
      %v3078 = vadd.f32 0.0, %v3077
      %v3079 = vpop.f32.mrb[0].mxu0
      %v3080 = vpop.f32.mrb[0].mxu0
      %v3081 = vadd.f32 0.0, %v3080
      %v3082 = vpop.f32.mrb[0].mxu0
      %3083 = vmatprep.mubr.bf16.mxu0 0
      %3084 = vmatmul.mubr.bf16.gmra.mrb[0].mxu0 %v2976
      %v3085 = vpop.f32.mrb[0].mxu0
      %v3086 = vadd.f32 0.0, %v3085
      %v3087 = vpop.f32.mrb[0].mxu0
      %v3088 = vpop.f32.mrb[0].mxu0
      %v3089 = vadd.f32 0.0, %v3088
      %v3090 = vpop.f32.mrb[0].mxu0
      %3091 = vmatprep.mubr.bf16.mxu0 0
      %3092 = vmatmul.mubr.bf16.gmra.mrb[0].mxu0 %v2979
      %v3093 = vpop.f32.mrb[0].mxu0
      %v3094 = vadd.f32 0.0, %v3093
      %v3095 = vpop.f32.mrb[0].mxu0
      %v3096 = vpop.f32.mrb[0].mxu0
      %v3097 = vadd.f32 0.0, %v3096
      %v3098 = vpop.f32.mrb[0].mxu0
      %3099 = vmatprep.mubr.bf16.mxu0 0
      %3100 = vmatmul.mubr.bf16.gmra.mrb[0].mxu0 %v2982
      %v3101 = vpop.f32.mrb[0].mxu0
      %v3102 = vadd.f32 0.0, %v3101
      %v3103 = vpop.f32.mrb[0].mxu0
      %v3104 = vpop.f32.mrb[0].mxu0
      %v3105 = vadd.f32 0.0, %v3104
      %v3106 = vpop.f32.mrb[0].mxu0
      %3107 = vmatprep.mubr.bf16.mxu0 0
      %3108 = vmatmul.mubr.bf16.gmra.mrb[0].mxu0 %v2985
      %v3109 = vpop.f32.mrb[0].mxu0
      %v3110 = vadd.f32 0.0, %v3109
      %v3111 = vpop.f32.mrb[0].mxu0
      %v3112 = vpop.f32.mrb[0].mxu0
      %v3113 = vadd.f32 0.0, %v3112
      %v3114 = vpop.f32.mrb[0].mxu0
      %3115 = vmatprep.mubr.bf16.mxu0 0
      %3116 = vmatmul.mubr.bf16.gmra.mrb[0].mxu0 %v2988
      %v3117 = vpop.f32.mrb[0].mxu0
      %v3118 = vadd.f32 0.0, %v3117
      %v3119 = vpop.f32.mrb[0].mxu0
      %v3120 = vpop.f32.mrb[0].mxu0
      %v3121 = vadd.f32 0.0, %v3120
      %v3122 = vpop.f32.mrb[0].mxu0
      %3123 = vmatprep.mubr.bf16.mxu0 0
      %3124 = vmatmul.mubr.bf16.gmra.mrb[0].mxu0 %v2991
      %v3125 = vpop.f32.mrb[0].mxu0
      %v3126 = vadd.f32 0.0, %v3125
      %v3127 = vpop.f32.mrb[0].mxu0
      %v3128 = vpop.f32.mrb[0].mxu0
      %v3129 = vadd.f32 0.0, %v3128
      %v3130 = vpop.f32.mrb[0].mxu0
      %3131 = vmatprep.mubr.bf16.mxu0 0
      %3132 = vmatmul.mubr.bf16.gmra.mrb[0].mxu0 %v2994
      %v3133 = vpop.f32.mrb[0].mxu0
      %v3134 = vadd.f32 0.0, %v3133
      %v3135 = vpop.f32.mrb[0].mxu0
      %v3136 = vpop.f32.mrb[0].mxu0
      %v3137 = vadd.f32 0.0, %v3136
      %v3138 = vpop.f32.mrb[0].mxu0
      %3139 = vmatprep.mubr.bf16.mxu0 0
      %3140 = vmatmul.mubr.bf16.gmra.mrb[0].mxu0 %v2997
      %v3141 = vpop.f32.mrb[0].mxu0
      %v3142 = vadd.f32 0.0, %v3141
      %v3143 = vpop.f32.mrb[0].mxu0
      %v3144 = vpop.f32.mrb[0].mxu0
      %v3145 = vadd.f32 0.0, %v3144
      %v3146 = vpop.f32.mrb[0].mxu0
      %3147 = vmatprep.mubr.bf16.mxu0 0
      %3148 = vmatmul.mubr.bf16.gmra.mrb[0].mxu0 %v3000
      %v3149 = vpop.f32.mrb[0].mxu0
      %v3150 = vadd.f32 0.0, %v3149
      %v3151 = vpop.f32.mrb[0].mxu0
      %v3152 = vpop.f32.mrb[0].mxu0
      %v3153 = vadd.f32 0.0, %v3152
      %v3154 = vpop.f32.mrb[0].mxu0
      %3155 = vmatprep.mubr.bf16.mxu0 0
      %3156 = vmatmul.mubr.bf16.gmra.mrb[0].mxu0 %v3003
      %v3157 = vpop.f32.mrb[0].mxu0
      %v3158 = vadd.f32 0.0, %v3157
      %v3159 = vpop.f32.mrb[0].mxu0
      %v3160 = vpop.f32.mrb[0].mxu0
      %v3161 = vadd.f32 0.0, %v3160
      %v3162 = vpop.f32.mrb[0].mxu0
      %3163 = vmatprep.mubr.bf16.mxu0 0
      %3164 = vmatmul.mubr.bf16.gmra.mrb[0].mxu0 %v3006
      %v3165 = vpop.f32.mrb[0].mxu0
      %v3166 = vadd.f32 0.0, %v3165
      %v3167 = vpop.f32.mrb[0].mxu0
      %v3168 = vpop.f32.mrb[0].mxu0
      %v3169 = vadd.f32 0.0, %v3168
      %v3170 = vpop.f32.mrb[0].mxu0
      %3171 = vdwg.mxu0
      %v3172 = vadd.f32 %v2878, %v3046
      %v3173 = vadd.f32 %v2879, %v3049
      %v3174 = vadd.f32 %v2880, %v3054
      %v3175 = vadd.f32 %v2881, %v3057
      %v3176 = vadd.f32 %v2882, %v3062
      %v3177 = vadd.f32 %v2883, %v3065
      %v3178 = vadd.f32 %v2884, %v3070
      %v3179 = vadd.f32 %v2885, %v3073
      %v3180 = vadd.f32 %v2886, %v3078
      %v3181 = vadd.f32 %v2887, %v3081
      %v3182 = vadd.f32 %v2888, %v3086
      %v3183 = vadd.f32 %v2889, %v3089
      %v3184 = vadd.f32 %v2890, %v3094
      %v3185 = vadd.f32 %v2891, %v3097
      %v3186 = vadd.f32 %v2892, %v3102
      %v3187 = vadd.f32 %v2893, %v3105
      %v3188 = vadd.f32 %v2894, %v3110
      %v3189 = vadd.f32 %v2895, %v3113
      %v3190 = vadd.f32 %v2896, %v3118
      %v3191 = vadd.f32 %v2897, %v3121
      %v3192 = vadd.f32 %v2898, %v3126
      %v3193 = vadd.f32 %v2899, %v3129
      %v3194 = vadd.f32 %v2900, %v3134
      %v3195 = vadd.f32 %v2901, %v3137
      %v3196 = vadd.f32 %v2902, %v3142
      %v3197 = vadd.f32 %v2903, %v3145
      %v3198 = vadd.f32 %v2904, %v3150
      %v3199 = vadd.f32 %v2905, %v3153
      %v3200 = vadd.f32 %v2906, %v3158
      %v3201 = vadd.f32 %v2907, %v3161
      %v3202 = vadd.f32 %v2908, %v3166
      %v3203 = vadd.f32 %v2909, %v3169
      %v3204 = vld [vmem:[%s300 + $0x29] sm:$0xff]
      %v3205 = vld [vmem:[%s300 + $0x31] sm:$0xff]
      %v3206 = vld [vmem:[%s300 + $0x39] sm:$0xff]
      %v3207 = vld [vmem:[%s300 + $0x41] sm:$0xff]
      %v3208 = vld [vmem:[%s300 + $0x49] sm:$0xff]
      %v3209 = vld [vmem:[%s300 + $0x51] sm:$0xff]
      %v3210 = vld [vmem:[%s300 + $0x59] sm:$0xff]
      %v3211 = vld [vmem:[%s300 + $0x61] sm:$0xff]
      %v3212 = vld [vmem:[%s300 + $0x69] sm:$0xff]
      %v3213 = vld [vmem:[%s300 + $0x71] sm:$0xff]
      %v3214 = vld [vmem:[%s300 + $0x79] sm:$0xff]
      %v3215 = vld [vmem:[%s300 + $0x81] sm:$0xff]
      %v3216 = vld [vmem:[%s300 + $0x89] sm:$0xff]
      %v3217 = vld [vmem:[%s300 + $0x91] sm:$0xff]
      %v3218 = vld [vmem:[%s300 + $0x99] sm:$0xff]
      %v3219 = vld [vmem:[%s300 + $0xa1] sm:$0xff]
      %v3220 = vld [vmem:[%s300 + $0xa9] sm:$0xff]
      %v3221 = vld [vmem:[%s300 + $0xb1] sm:$0xff]
      %v3222 = vld [vmem:[%s300 + $0xb9] sm:$0xff]
      %v3223 = vld [vmem:[%s300 + $0xc1] sm:$0xff]
      %v3224 = vld [vmem:[%s300 + $0xc9] sm:$0xff]
      %v3225 = vld [vmem:[%s300 + $0xd1] sm:$0xff]
      %v3226 = vld [vmem:[%s300 + $0xd9] sm:$0xff]
      %v3227 = vld [vmem:[%s300 + $0xe1] sm:$0xff]
      %v3228 = vld [vmem:[%s300 + $0xe9] sm:$0xff]
      %v3229 = vld [vmem:[%s300 + $0xf1] sm:$0xff]
      %v3230 = vld [vmem:[%s300 + $0xf9] sm:$0xff]
      %v3231 = vld [vmem:[%s300 + $0x101] sm:$0xff]
      %v3232 = vld [vmem:[%s300 + $0x109] sm:$0xff]
      %v3233 = vld [vmem:[%s300 + $0x111] sm:$0xff]
      %v3234 = vld [vmem:[%s300 + $0x119] sm:$0xff]
      %v3235 = vld [vmem:[%s300 + $0x121] sm:$0xff]
      %v3236 = vpack.c.bf16 %v3205, %v3204
      %v3237 = vpack.c.bf16 %v3207, %v3206
      %v3238 = vpack.c.bf16 %v3209, %v3208
      %v3239 = vpack.c.bf16 %v3211, %v3210
      %v3240 = vpack.c.bf16 %v3213, %v3212
      %v3241 = vpack.c.bf16 %v3215, %v3214
      %v3242 = vpack.c.bf16 %v3217, %v3216
      %v3243 = vpack.c.bf16 %v3219, %v3218
      %v3244 = vpack.c.bf16 %v3221, %v3220
      %v3245 = vpack.c.bf16 %v3223, %v3222
      %v3246 = vpack.c.bf16 %v3225, %v3224
      %v3247 = vpack.c.bf16 %v3227, %v3226
      %v3248 = vpack.c.bf16 %v3229, %v3228
      %v3249 = vpack.c.bf16 %v3231, %v3230
      %v3250 = vpack.c.bf16 %v3233, %v3232
      %v3251 = vpack.c.bf16 %v3235, %v3234
      %s3252 = scalar_lea.vmem %s1, 16
      %v3253 = vld [vmem:[%s3252] sm:$0x3]
      %v3255 = vsel %vm420, %v3236, 0
      %v3258 = vsel %vm420, %v3237, 0
      %v3261 = vsel %vm420, %v3238, 0
      %v3264 = vsel %vm420, %v3239, 0
      %v3267 = vsel %vm420, %v3240, 0
      %v3270 = vsel %vm420, %v3241, 0
      %v3273 = vsel %vm420, %v3242, 0
      %v3276 = vsel %vm420, %v3243, 0
      %v3279 = vsel %vm420, %v3244, 0
      %v3282 = vsel %vm420, %v3245, 0
      %v3285 = vsel %vm420, %v3246, 0
      %v3288 = vsel %vm420, %v3247, 0
      %v3291 = vsel %vm420, %v3248, 0
      %v3294 = vsel %vm420, %v3249, 0
      %v3297 = vsel %vm420, %v3250, 0
      %v3300 = vsel %vm420, %v3251, 0
      %v3303 = vsel %vm469, %v3253, 0
      %3305 = vmatprep.subr.bf16.mxu0 0
      %3306 = vmatpush1.bf16.msra.mxu0 %v3303
      %3307 = vmatprep.subr.bf16.mxu0 0
      %3308 = vmatpush1.bf16.msra.mxu0 0
      %3309 = vmatprep.subr.bf16.mxu0 0
      %3310 = vmatpush1.bf16.msra.mxu0 0
      %3311 = vmatprep.subr.bf16.mxu0 0
      %3312 = vmatpush1.bf16.msra.mxu0 0
      %3313 = vmatprep.subr.bf16.mxu0 0
      %3314 = vmatpush1.bf16.msra.mxu0 0
      %3315 = vmatprep.subr.bf16.mxu0 0
      %3316 = vmatpush1.bf16.msra.mxu0 0
      %3317 = vmatprep.subr.bf16.mxu0 0
      %3318 = vmatpush1.bf16.msra.mxu0 0
      %3319 = vmatprep.subr.bf16.mxu0 0
      %3320 = vmatpush1.bf16.msra.mxu0 0
      %3321 = vmatprep.subr.bf16.mxu0 0
      %3322 = vmatpush1.bf16.msra.mxu0 0
      %3323 = vmatprep.subr.bf16.mxu0 0
      %3324 = vmatpush1.bf16.msra.mxu0 0
      %3325 = vmatprep.subr.bf16.mxu0 0
      %3326 = vmatpush1.bf16.msra.mxu0 0
      %3327 = vmatprep.subr.bf16.mxu0 0
      %3328 = vmatpush1.bf16.msra.mxu0 0
      %3329 = vmatprep.subr.bf16.mxu0 0
      %3330 = vmatpush1.bf16.msra.mxu0 0
      %3331 = vmatprep.subr.bf16.mxu0 0
      %3332 = vmatpush1.bf16.msra.mxu0 0
      %3333 = vmatprep.subr.bf16.mxu0 0
      %3334 = vmatpush1.bf16.msra.mxu0 0
      %3335 = vmatprep.subr.bf16.mxu0 0
      %3336 = vmatpush1.bf16.msra.mxu0 0
      %3337 = vmatprep.mubr.bf16.mxu0 0
      %3338 = vmatmul.mubr.bf16.gmra.mrb[0].mxu0 %v3255
      %v3339 = vpop.f32.mrb[0].mxu0
      %v3340 = vadd.f32 0.0, %v3339
      %v3341 = vpop.f32.mrb[0].mxu0
      %v3342 = vpop.f32.mrb[0].mxu0
      %v3343 = vadd.f32 0.0, %v3342
      %v3344 = vpop.f32.mrb[0].mxu0
      %3345 = vmatprep.mubr.bf16.mxu0 0
      %3346 = vmatmul.mubr.bf16.gmra.mrb[0].mxu0 %v3258
      %v3347 = vpop.f32.mrb[0].mxu0
      %v3348 = vadd.f32 0.0, %v3347
      %v3349 = vpop.f32.mrb[0].mxu0
      %v3350 = vpop.f32.mrb[0].mxu0
      %v3351 = vadd.f32 0.0, %v3350
      %v3352 = vpop.f32.mrb[0].mxu0
      %3353 = vmatprep.mubr.bf16.mxu0 0
      %3354 = vmatmul.mubr.bf16.gmra.mrb[0].mxu0 %v3261
      %v3355 = vpop.f32.mrb[0].mxu0
      %v3356 = vadd.f32 0.0, %v3355
      %v3357 = vpop.f32.mrb[0].mxu0
      %v3358 = vpop.f32.mrb[0].mxu0
      %v3359 = vadd.f32 0.0, %v3358
      %v3360 = vpop.f32.mrb[0].mxu0
      %3361 = vmatprep.mubr.bf16.mxu0 0
      %3362 = vmatmul.mubr.bf16.gmra.mrb[0].mxu0 %v3264
      %v3363 = vpop.f32.mrb[0].mxu0
      %v3364 = vadd.f32 0.0, %v3363
      %v3365 = vpop.f32.mrb[0].mxu0
      %v3366 = vpop.f32.mrb[0].mxu0
      %v3367 = vadd.f32 0.0, %v3366
      %v3368 = vpop.f32.mrb[0].mxu0
      %3369 = vmatprep.mubr.bf16.mxu0 0
      %3370 = vmatmul.mubr.bf16.gmra.mrb[0].mxu0 %v3267
      %v3371 = vpop.f32.mrb[0].mxu0
      %v3372 = vadd.f32 0.0, %v3371
      %v3373 = vpop.f32.mrb[0].mxu0
      %v3374 = vpop.f32.mrb[0].mxu0
      %v3375 = vadd.f32 0.0, %v3374
      %v3376 = vpop.f32.mrb[0].mxu0
      %3377 = vmatprep.mubr.bf16.mxu0 0
      %3378 = vmatmul.mubr.bf16.gmra.mrb[0].mxu0 %v3270
      %v3379 = vpop.f32.mrb[0].mxu0
      %v3380 = vadd.f32 0.0, %v3379
      %v3381 = vpop.f32.mrb[0].mxu0
      %v3382 = vpop.f32.mrb[0].mxu0
      %v3383 = vadd.f32 0.0, %v3382
      %v3384 = vpop.f32.mrb[0].mxu0
      %3385 = vmatprep.mubr.bf16.mxu0 0
      %3386 = vmatmul.mubr.bf16.gmra.mrb[0].mxu0 %v3273
      %v3387 = vpop.f32.mrb[0].mxu0
      %v3388 = vadd.f32 0.0, %v3387
      %v3389 = vpop.f32.mrb[0].mxu0
      %v3390 = vpop.f32.mrb[0].mxu0
      %v3391 = vadd.f32 0.0, %v3390
      %v3392 = vpop.f32.mrb[0].mxu0
      %3393 = vmatprep.mubr.bf16.mxu0 0
      %3394 = vmatmul.mubr.bf16.gmra.mrb[0].mxu0 %v3276
      %v3395 = vpop.f32.mrb[0].mxu0
      %v3396 = vadd.f32 0.0, %v3395
      %v3397 = vpop.f32.mrb[0].mxu0
      %v3398 = vpop.f32.mrb[0].mxu0
      %v3399 = vadd.f32 0.0, %v3398
      %v3400 = vpop.f32.mrb[0].mxu0
      %3401 = vmatprep.mubr.bf16.mxu0 0
      %3402 = vmatmul.mubr.bf16.gmra.mrb[0].mxu0 %v3279
      %v3403 = vpop.f32.mrb[0].mxu0
      %v3404 = vadd.f32 0.0, %v3403
      %v3405 = vpop.f32.mrb[0].mxu0
      %v3406 = vpop.f32.mrb[0].mxu0
      %v3407 = vadd.f32 0.0, %v3406
      %v3408 = vpop.f32.mrb[0].mxu0
      %3409 = vmatprep.mubr.bf16.mxu0 0
      %3410 = vmatmul.mubr.bf16.gmra.mrb[0].mxu0 %v3282
      %v3411 = vpop.f32.mrb[0].mxu0
      %v3412 = vadd.f32 0.0, %v3411
      %v3413 = vpop.f32.mrb[0].mxu0
      %v3414 = vpop.f32.mrb[0].mxu0
      %v3415 = vadd.f32 0.0, %v3414
      %v3416 = vpop.f32.mrb[0].mxu0
      %3417 = vmatprep.mubr.bf16.mxu0 0
      %3418 = vmatmul.mubr.bf16.gmra.mrb[0].mxu0 %v3285
      %v3419 = vpop.f32.mrb[0].mxu0
      %v3420 = vadd.f32 0.0, %v3419
      %v3421 = vpop.f32.mrb[0].mxu0
      %v3422 = vpop.f32.mrb[0].mxu0
      %v3423 = vadd.f32 0.0, %v3422
      %v3424 = vpop.f32.mrb[0].mxu0
      %3425 = vmatprep.mubr.bf16.mxu0 0
      %3426 = vmatmul.mubr.bf16.gmra.mrb[0].mxu0 %v3288
      %v3427 = vpop.f32.mrb[0].mxu0
      %v3428 = vadd.f32 0.0, %v3427
      %v3429 = vpop.f32.mrb[0].mxu0
      %v3430 = vpop.f32.mrb[0].mxu0
      %v3431 = vadd.f32 0.0, %v3430
      %v3432 = vpop.f32.mrb[0].mxu0
      %3433 = vmatprep.mubr.bf16.mxu0 0
      %3434 = vmatmul.mubr.bf16.gmra.mrb[0].mxu0 %v3291
      %v3435 = vpop.f32.mrb[0].mxu0
      %v3436 = vadd.f32 0.0, %v3435
      %v3437 = vpop.f32.mrb[0].mxu0
      %v3438 = vpop.f32.mrb[0].mxu0
      %v3439 = vadd.f32 0.0, %v3438
      %v3440 = vpop.f32.mrb[0].mxu0
      %3441 = vmatprep.mubr.bf16.mxu0 0
      %3442 = vmatmul.mubr.bf16.gmra.mrb[0].mxu0 %v3294
      %v3443 = vpop.f32.mrb[0].mxu0
      %v3444 = vadd.f32 0.0, %v3443
      %v3445 = vpop.f32.mrb[0].mxu0
      %v3446 = vpop.f32.mrb[0].mxu0
      %v3447 = vadd.f32 0.0, %v3446
      %v3448 = vpop.f32.mrb[0].mxu0
      %3449 = vmatprep.mubr.bf16.mxu0 0
      %3450 = vmatmul.mubr.bf16.gmra.mrb[0].mxu0 %v3297
      %v3451 = vpop.f32.mrb[0].mxu0
      %v3452 = vadd.f32 0.0, %v3451
      %v3453 = vpop.f32.mrb[0].mxu0
      %v3454 = vpop.f32.mrb[0].mxu0
      %v3455 = vadd.f32 0.0, %v3454
      %v3456 = vpop.f32.mrb[0].mxu0
      %3457 = vmatprep.mubr.bf16.mxu0 0
      %3458 = vmatmul.mubr.bf16.gmra.mrb[0].mxu0 %v3300
      %v3459 = vpop.f32.mrb[0].mxu0
      %v3460 = vadd.f32 0.0, %v3459
      %v3461 = vpop.f32.mrb[0].mxu0
      %v3462 = vpop.f32.mrb[0].mxu0
      %v3463 = vadd.f32 0.0, %v3462
      %v3464 = vpop.f32.mrb[0].mxu0
      %3465 = vdwg.mxu0
      %v3466 = vmul.f32 %v3340, %v1417
      %v3467 = vmul.f32 %v3343, %v1422
      %v3468 = vmul.f32 %v3348, %v1427
      %v3469 = vmul.f32 %v3351, %v1432
      %v3470 = vmul.f32 %v3356, %v1437
      %v3471 = vmul.f32 %v3359, %v1442
      %v3472 = vmul.f32 %v3364, %v1447
      %v3473 = vmul.f32 %v3367, %v1452
      %v3474 = vmul.f32 %v3372, %v1457
      %v3475 = vmul.f32 %v3375, %v1462
      %v3476 = vmul.f32 %v3380, %v1467
      %v3477 = vmul.f32 %v3383, %v1472
      %v3478 = vmul.f32 %v3388, %v1477
      %v3479 = vmul.f32 %v3391, %v1482
      %v3480 = vmul.f32 %v3396, %v1487
      %v3481 = vmul.f32 %v3399, %v1492
      %v3482 = vmul.f32 %v3404, %v1497
      %v3483 = vmul.f32 %v3407, %v1502
      %v3484 = vmul.f32 %v3412, %v1507
      %v3485 = vmul.f32 %v3415, %v1512
      %v3486 = vmul.f32 %v3420, %v1517
      %v3487 = vmul.f32 %v3423, %v1522
      %v3488 = vmul.f32 %v3428, %v1527
      %v3489 = vmul.f32 %v3431, %v1532
      %v3490 = vmul.f32 %v3436, %v1537
      %v3491 = vmul.f32 %v3439, %v1542
      %v3492 = vmul.f32 %v3444, %v1547
      %v3493 = vmul.f32 %v3447, %v1552
      %v3494 = vmul.f32 %v3452, %v1557
      %v3495 = vmul.f32 %v3455, %v1562
      %v3496 = vmul.f32 %v3460, %v1567
      %v3497 = vmul.f32 %v3463, %v1572
      %v3498 = vadd.f32 %v3172, %v3466
      %v3499 = vadd.f32 %v3173, %v3467
      %v3500 = vadd.f32 %v3174, %v3468
      %v3501 = vadd.f32 %v3175, %v3469
      %v3502 = vadd.f32 %v3176, %v3470
      %v3503 = vadd.f32 %v3177, %v3471
      %v3504 = vadd.f32 %v3178, %v3472
      %v3505 = vadd.f32 %v3179, %v3473
      %v3506 = vadd.f32 %v3180, %v3474
      %v3507 = vadd.f32 %v3181, %v3475
      %v3508 = vadd.f32 %v3182, %v3476
      %v3509 = vadd.f32 %v3183, %v3477
      %v3510 = vadd.f32 %v3184, %v3478
      %v3511 = vadd.f32 %v3185, %v3479
      %v3512 = vadd.f32 %v3186, %v3480
      %v3513 = vadd.f32 %v3187, %v3481
      %v3514 = vadd.f32 %v3188, %v3482
      %v3515 = vadd.f32 %v3189, %v3483
      %v3516 = vadd.f32 %v3190, %v3484
      %v3517 = vadd.f32 %v3191, %v3485
      %v3518 = vadd.f32 %v3192, %v3486
      %v3519 = vadd.f32 %v3193, %v3487
      %v3520 = vadd.f32 %v3194, %v3488
      %v3521 = vadd.f32 %v3195, %v3489
      %v3522 = vadd.f32 %v3196, %v3490
      %v3523 = vadd.f32 %v3197, %v3491
      %v3524 = vadd.f32 %v3198, %v3492
      %v3525 = vadd.f32 %v3199, %v3493
      %v3526 = vadd.f32 %v3200, %v3494
      %v3527 = vadd.f32 %v3201, %v3495
      %v3528 = vadd.f32 %v3202, %v3496
      %v3529 = vadd.f32 %v3203, %v3497
      %v3530 = vld [vmem:[%s2] sm:$0x1]
      %v3532 = vlaneseq
      %v3533 = vshrl.u32 %v3532, 7
      %v3534 = vsub.s32 0, %v3533
      %v3535 = vrot.slane %v3530, %v3534
      %v3537 = vadd.f32 %v3498, %v3535
      %v3538 = vadd.f32 %v3499, %v3535
      %v3539 = vadd.f32 %v3500, %v3535
      %v3540 = vadd.f32 %v3501, %v3535
      %v3541 = vadd.f32 %v3502, %v3535
      %v3542 = vadd.f32 %v3503, %v3535
      %v3543 = vadd.f32 %v3504, %v3535
      %v3544 = vadd.f32 %v3505, %v3535
      %v3545 = vadd.f32 %v3506, %v3535
      %v3546 = vadd.f32 %v3507, %v3535
      %v3547 = vadd.f32 %v3508, %v3535
      %v3548 = vadd.f32 %v3509, %v3535
      %v3549 = vadd.f32 %v3510, %v3535
      %v3550 = vadd.f32 %v3511, %v3535
      %v3551 = vadd.f32 %v3512, %v3535
      %v3552 = vadd.f32 %v3513, %v3535
      %v3553 = vadd.f32 %v3514, %v3535
      %v3554 = vadd.f32 %v3515, %v3535
      %v3555 = vadd.f32 %v3516, %v3535
      %v3556 = vadd.f32 %v3517, %v3535
      %v3557 = vadd.f32 %v3518, %v3535
      %v3558 = vadd.f32 %v3519, %v3535
      %v3559 = vadd.f32 %v3520, %v3535
      %v3560 = vadd.f32 %v3521, %v3535
      %v3561 = vadd.f32 %v3522, %v3535
      %v3562 = vadd.f32 %v3523, %v3535
      %v3563 = vadd.f32 %v3524, %v3535
      %v3564 = vadd.f32 %v3525, %v3535
      %v3565 = vadd.f32 %v3526, %v3535
      %v3566 = vadd.f32 %v3527, %v3535
      %v3567 = vadd.f32 %v3528, %v3535
      %v3568 = vadd.f32 %v3529, %v3535
      %vm3569 = vcmp.gt.f32.partialorder %v3537, 0.0
      %vm3570 = vcmp.gt.f32.partialorder %v3538, 0.0
      %vm3571 = vcmp.gt.f32.partialorder %v3539, 0.0
      %vm3572 = vcmp.gt.f32.partialorder %v3540, 0.0
      %vm3573 = vcmp.gt.f32.partialorder %v3541, 0.0
      %vm3574 = vcmp.gt.f32.partialorder %v3542, 0.0
      %vm3575 = vcmp.gt.f32.partialorder %v3543, 0.0
      %vm3576 = vcmp.gt.f32.partialorder %v3544, 0.0
      %vm3577 = vcmp.gt.f32.partialorder %v3545, 0.0
      %vm3578 = vcmp.gt.f32.partialorder %v3546, 0.0
      %vm3579 = vcmp.gt.f32.partialorder %v3547, 0.0
      %vm3580 = vcmp.gt.f32.partialorder %v3548, 0.0
      %vm3581 = vcmp.gt.f32.partialorder %v3549, 0.0
      %vm3582 = vcmp.gt.f32.partialorder %v3550, 0.0
      %vm3583 = vcmp.gt.f32.partialorder %v3551, 0.0
      %vm3584 = vcmp.gt.f32.partialorder %v3552, 0.0
      %vm3585 = vcmp.gt.f32.partialorder %v3553, 0.0
      %vm3586 = vcmp.gt.f32.partialorder %v3554, 0.0
      %vm3587 = vcmp.gt.f32.partialorder %v3555, 0.0
      %vm3588 = vcmp.gt.f32.partialorder %v3556, 0.0
      %vm3589 = vcmp.gt.f32.partialorder %v3557, 0.0
      %vm3590 = vcmp.gt.f32.partialorder %v3558, 0.0
      %vm3591 = vcmp.gt.f32.partialorder %v3559, 0.0
      %vm3592 = vcmp.gt.f32.partialorder %v3560, 0.0
      %vm3593 = vcmp.gt.f32.partialorder %v3561, 0.0
      %vm3594 = vcmp.gt.f32.partialorder %v3562, 0.0
      %vm3595 = vcmp.gt.f32.partialorder %v3563, 0.0
      %vm3596 = vcmp.gt.f32.partialorder %v3564, 0.0
      %vm3597 = vcmp.gt.f32.partialorder %v3565, 0.0
      %vm3598 = vcmp.gt.f32.partialorder %v3566, 0.0
      %vm3599 = vcmp.gt.f32.partialorder %v3567, 0.0
      %vm3600 = vcmp.gt.f32.partialorder %v3568, 0.0
      %v3601 = vmul.f32 %v3537, 0.2
      %v3602 = vmul.f32 %v3538, 0.2
      %v3603 = vmul.f32 %v3539, 0.2
      %v3604 = vmul.f32 %v3540, 0.2
      %v3605 = vmul.f32 %v3541, 0.2
      %v3606 = vmul.f32 %v3542, 0.2
      %v3607 = vmul.f32 %v3543, 0.2
      %v3608 = vmul.f32 %v3544, 0.2
      %v3609 = vmul.f32 %v3545, 0.2
      %v3610 = vmul.f32 %v3546, 0.2
      %v3611 = vmul.f32 %v3547, 0.2
      %v3612 = vmul.f32 %v3548, 0.2
      %v3613 = vmul.f32 %v3549, 0.2
      %v3614 = vmul.f32 %v3550, 0.2
      %v3615 = vmul.f32 %v3551, 0.2
      %v3616 = vmul.f32 %v3552, 0.2
      %v3617 = vmul.f32 %v3553, 0.2
      %v3618 = vmul.f32 %v3554, 0.2
      %v3619 = vmul.f32 %v3555, 0.2
      %v3620 = vmul.f32 %v3556, 0.2
      %v3621 = vmul.f32 %v3557, 0.2
      %v3622 = vmul.f32 %v3558, 0.2
      %v3623 = vmul.f32 %v3559, 0.2
      %v3624 = vmul.f32 %v3560, 0.2
      %v3625 = vmul.f32 %v3561, 0.2
      %v3626 = vmul.f32 %v3562, 0.2
      %v3627 = vmul.f32 %v3563, 0.2
      %v3628 = vmul.f32 %v3564, 0.2
      %v3629 = vmul.f32 %v3565, 0.2
      %v3630 = vmul.f32 %v3566, 0.2
      %v3631 = vmul.f32 %v3567, 0.2
      %v3632 = vmul.f32 %v3568, 0.2
      %v3633 = vsel %vm3569, %v3537, %v3601
      %v3634 = vsel %vm3570, %v3538, %v3602
      %v3635 = vsel %vm3571, %v3539, %v3603
      %v3636 = vsel %vm3572, %v3540, %v3604
      %v3637 = vsel %vm3573, %v3541, %v3605
      %v3638 = vsel %vm3574, %v3542, %v3606
      %v3639 = vsel %vm3575, %v3543, %v3607
      %v3640 = vsel %vm3576, %v3544, %v3608
      %v3641 = vsel %vm3577, %v3545, %v3609
      %v3642 = vsel %vm3578, %v3546, %v3610
      %v3643 = vsel %vm3579, %v3547, %v3611
      %v3644 = vsel %vm3580, %v3548, %v3612
      %v3645 = vsel %vm3581, %v3549, %v3613
      %v3646 = vsel %vm3582, %v3550, %v3614
      %v3647 = vsel %vm3583, %v3551, %v3615
      %v3648 = vsel %vm3584, %v3552, %v3616
      %v3649 = vsel %vm3585, %v3553, %v3617
      %v3650 = vsel %vm3586, %v3554, %v3618
      %v3651 = vsel %vm3587, %v3555, %v3619
      %v3652 = vsel %vm3588, %v3556, %v3620
      %v3653 = vsel %vm3589, %v3557, %v3621
      %v3654 = vsel %vm3590, %v3558, %v3622
      %v3655 = vsel %vm3591, %v3559, %v3623
      %v3656 = vsel %vm3592, %v3560, %v3624
      %v3657 = vsel %vm3593, %v3561, %v3625
      %v3658 = vsel %vm3594, %v3562, %v3626
      %v3659 = vsel %vm3595, %v3563, %v3627
      %v3660 = vsel %vm3596, %v3564, %v3628
      %v3661 = vsel %vm3597, %v3565, %v3629
      %v3662 = vsel %vm3598, %v3566, %v3630
      %v3663 = vsel %vm3599, %v3567, %v3631
      %v3664 = vsel %vm3600, %v3568, %v3632
      %vm3665 = vcmask 64512
      %3666 = vst.msk [vmem:[#allocation2] sm:$0xff] %vm3665, 0.0
      %3667 = vst.msk [vmem:[#allocation2 + $0x8] sm:$0xff] %vm3665, 0.0
      %3668 = vst.msk [vmem:[#allocation2 + $0x10] sm:$0xff] %vm3665, 0.0
      %3669 = vst.msk [vmem:[#allocation2 + $0x118] sm:$0xff] %vm3665, 0.0
      %3670 = vst.msk [vmem:[#allocation2 + $0x120] sm:$0xff] %vm3665, 0.0
      %3671 = vst.msk [vmem:[#allocation2 + $0x128] sm:$0xff] %vm3665, 0.0
      %3672 = vst.msk [vmem:[#allocation2 + $0x18] sm:$0xff] %vm3665, %v3633
      %3673 = vst.msk [vmem:[#allocation2 + $0x20] sm:$0xff] %vm3665, %v3634
      %3674 = vst.msk [vmem:[#allocation2 + $0x28] sm:$0xff] %vm3665, %v3635
      %3675 = vst.msk [vmem:[#allocation2 + $0x30] sm:$0xff] %vm3665, %v3636
      %3676 = vst.msk [vmem:[#allocation2 + $0x38] sm:$0xff] %vm3665, %v3637
      %3677 = vst.msk [vmem:[#allocation2 + $0x40] sm:$0xff] %vm3665, %v3638
      %3678 = vst.msk [vmem:[#allocation2 + $0x48] sm:$0xff] %vm3665, %v3639
      %3679 = vst.msk [vmem:[#allocation2 + $0x50] sm:$0xff] %vm3665, %v3640
      %3680 = vst.msk [vmem:[#allocation2 + $0x58] sm:$0xff] %vm3665, %v3641
      %3681 = vst.msk [vmem:[#allocation2 + $0x60] sm:$0xff] %vm3665, %v3642
      %3682 = vst.msk [vmem:[#allocation2 + $0x68] sm:$0xff] %vm3665, %v3643
      %3683 = vst.msk [vmem:[#allocation2 + $0x70] sm:$0xff] %vm3665, %v3644
      %3684 = vst.msk [vmem:[#allocation2 + $0x78] sm:$0xff] %vm3665, %v3645
      %3685 = vst.msk [vmem:[#allocation2 + $0x80] sm:$0xff] %vm3665, %v3646
      %3686 = vst.msk [vmem:[#allocation2 + $0x88] sm:$0xff] %vm3665, %v3647
      %3687 = vst.msk [vmem:[#allocation2 + $0x90] sm:$0xff] %vm3665, %v3648
      %3688 = vst.msk [vmem:[#allocation2 + $0x98] sm:$0xff] %vm3665, %v3649
      %3689 = vst.msk [vmem:[#allocation2 + $0xa0] sm:$0xff] %vm3665, %v3650
      %3690 = vst.msk [vmem:[#allocation2 + $0xa8] sm:$0xff] %vm3665, %v3651
      %3691 = vst.msk [vmem:[#allocation2 + $0xb0] sm:$0xff] %vm3665, %v3652
      %3692 = vst.msk [vmem:[#allocation2 + $0xb8] sm:$0xff] %vm3665, %v3653
      %3693 = vst.msk [vmem:[#allocation2 + $0xc0] sm:$0xff] %vm3665, %v3654
      %3694 = vst.msk [vmem:[#allocation2 + $0xc8] sm:$0xff] %vm3665, %v3655
      %3695 = vst.msk [vmem:[#allocation2 + $0xd0] sm:$0xff] %vm3665, %v3656
      %3696 = vst.msk [vmem:[#allocation2 + $0xd8] sm:$0xff] %vm3665, %v3657
      %3697 = vst.msk [vmem:[#allocation2 + $0xe0] sm:$0xff] %vm3665, %v3658
      %3698 = vst.msk [vmem:[#allocation2 + $0xe8] sm:$0xff] %vm3665, %v3659
      %3699 = vst.msk [vmem:[#allocation2 + $0xf0] sm:$0xff] %vm3665, %v3660
      %3700 = vst.msk [vmem:[#allocation2 + $0xf8] sm:$0xff] %vm3665, %v3661
      %3701 = vst.msk [vmem:[#allocation2 + $0x100] sm:$0xff] %vm3665, %v3662
      %3702 = vst.msk [vmem:[#allocation2 + $0x108] sm:$0xff] %vm3665, %v3663
      %3703 = vst.msk [vmem:[#allocation2 + $0x110] sm:$0xff] %vm3665, %v3664
      %v3704 = vld [vmem:[#allocation2 + $0x7] sm:$0xff]
      %v3705 = vld [vmem:[#allocation2 + $0xf] sm:$0xff]
      %v3706 = vld [vmem:[#allocation2 + $0x17] sm:$0xff]
      %v3707 = vld [vmem:[#allocation2 + $0x1f] sm:$0xff]
      %v3708 = vld [vmem:[#allocation2 + $0x27] sm:$0xff]
      %v3709 = vld [vmem:[#allocation2 + $0x2f] sm:$0xff]
      %v3710 = vld [vmem:[#allocation2 + $0x37] sm:$0xff]
      %v3711 = vld [vmem:[#allocation2 + $0x3f] sm:$0xff]
      %v3712 = vld [vmem:[#allocation2 + $0x47] sm:$0xff]
      %v3713 = vld [vmem:[#allocation2 + $0x4f] sm:$0xff]
      %v3714 = vld [vmem:[#allocation2 + $0x57] sm:$0xff]
      %v3715 = vld [vmem:[#allocation2 + $0x5f] sm:$0xff]
      %v3716 = vld [vmem:[#allocation2 + $0x67] sm:$0xff]
      %v3717 = vld [vmem:[#allocation2 + $0x6f] sm:$0xff]
      %v3718 = vld [vmem:[#allocation2 + $0x77] sm:$0xff]
      %v3719 = vld [vmem:[#allocation2 + $0x7f] sm:$0xff]
      %v3720 = vld [vmem:[#allocation2 + $0x87] sm:$0xff]
      %v3721 = vld [vmem:[#allocation2 + $0x8f] sm:$0xff]
      %v3722 = vld [vmem:[#allocation2 + $0x97] sm:$0xff]
      %v3723 = vld [vmem:[#allocation2 + $0x9f] sm:$0xff]
      %v3724 = vld [vmem:[#allocation2 + $0xa7] sm:$0xff]
      %v3725 = vld [vmem:[#allocation2 + $0xaf] sm:$0xff]
      %v3726 = vld [vmem:[#allocation2 + $0xb7] sm:$0xff]
      %v3727 = vld [vmem:[#allocation2 + $0xbf] sm:$0xff]
      %v3728 = vld [vmem:[#allocation2 + $0xc7] sm:$0xff]
      %v3729 = vld [vmem:[#allocation2 + $0xcf] sm:$0xff]
      %v3730 = vld [vmem:[#allocation2 + $0xd7] sm:$0xff]
      %v3731 = vld [vmem:[#allocation2 + $0xdf] sm:$0xff]
      %v3732 = vld [vmem:[#allocation2 + $0xe7] sm:$0xff]
      %v3733 = vld [vmem:[#allocation2 + $0xef] sm:$0xff]
      %v3734 = vld [vmem:[#allocation2 + $0xf7] sm:$0xff]
      %v3735 = vld [vmem:[#allocation2 + $0xff] sm:$0xff]
      %v3736 = vpack.c.bf16 %v3705, %v3704
      %v3737 = vpack.c.bf16 %v3707, %v3706
      %v3738 = vpack.c.bf16 %v3709, %v3708
      %v3739 = vpack.c.bf16 %v3711, %v3710
      %v3740 = vpack.c.bf16 %v3713, %v3712
      %v3741 = vpack.c.bf16 %v3715, %v3714
      %v3742 = vpack.c.bf16 %v3717, %v3716
      %v3743 = vpack.c.bf16 %v3719, %v3718
      %v3744 = vpack.c.bf16 %v3721, %v3720
      %v3745 = vpack.c.bf16 %v3723, %v3722
      %v3746 = vpack.c.bf16 %v3725, %v3724
      %v3747 = vpack.c.bf16 %v3727, %v3726
      %v3748 = vpack.c.bf16 %v3729, %v3728
      %v3749 = vpack.c.bf16 %v3731, %v3730
      %v3750 = vpack.c.bf16 %v3733, %v3732
      %v3751 = vpack.c.bf16 %v3735, %v3734
      %v3752 = vld [vmem:[%s3] sm:$0xf]
      %v3754 = vsel %vm3665, %v3736, 0
      %v3757 = vsel %vm3665, %v3737, 0
      %v3760 = vsel %vm3665, %v3738, 0
      %v3763 = vsel %vm3665, %v3739, 0
      %v3766 = vsel %vm3665, %v3740, 0
      %v3769 = vsel %vm3665, %v3741, 0
      %v3772 = vsel %vm3665, %v3742, 0
      %v3775 = vsel %vm3665, %v3743, 0
      %v3778 = vsel %vm3665, %v3744, 0
      %v3781 = vsel %vm3665, %v3745, 0
      %v3784 = vsel %vm3665, %v3746, 0
      %v3787 = vsel %vm3665, %v3747, 0
      %v3790 = vsel %vm3665, %v3748, 0
      %v3793 = vsel %vm3665, %v3749, 0
      %v3796 = vsel %vm3665, %v3750, 0
      %v3799 = vsel %vm3665, %v3751, 0
      %vm3801 = vcmask 1043456
      %v3803 = vsel %vm3801, %v3752, 0
      %3805 = vmatprep.subr.bf16.mxu0 0
      %3806 = vmatpush1.bf16.msra.mxu0 %v3803
      %3807 = vmatprep.subr.bf16.mxu0 0
      %3808 = vmatpush1.bf16.msra.mxu0 0
      %3809 = vmatprep.subr.bf16.mxu0 0
      %3810 = vmatpush1.bf16.msra.mxu0 0
      %3811 = vmatprep.subr.bf16.mxu0 0
      %3812 = vmatpush1.bf16.msra.mxu0 0
      %3813 = vmatprep.subr.bf16.mxu0 0
      %3814 = vmatpush1.bf16.msra.mxu0 0
      %3815 = vmatprep.subr.bf16.mxu0 0
      %3816 = vmatpush1.bf16.msra.mxu0 0
      %3817 = vmatprep.subr.bf16.mxu0 0
      %3818 = vmatpush1.bf16.msra.mxu0 0
      %3819 = vmatprep.subr.bf16.mxu0 0
      %3820 = vmatpush1.bf16.msra.mxu0 0
      %3821 = vmatprep.subr.bf16.mxu0 0
      %3822 = vmatpush1.bf16.msra.mxu0 0
      %3823 = vmatprep.subr.bf16.mxu0 0
      %3824 = vmatpush1.bf16.msra.mxu0 0
      %3825 = vmatprep.subr.bf16.mxu0 0
      %3826 = vmatpush1.bf16.msra.mxu0 0
      %3827 = vmatprep.subr.bf16.mxu0 0
      %3828 = vmatpush1.bf16.msra.mxu0 0
      %3829 = vmatprep.subr.bf16.mxu0 0
      %3830 = vmatpush1.bf16.msra.mxu0 0
      %3831 = vmatprep.subr.bf16.mxu0 0
      %3832 = vmatpush1.bf16.msra.mxu0 0
      %3833 = vmatprep.subr.bf16.mxu0 0
      %3834 = vmatpush1.bf16.msra.mxu0 0
      %3835 = vmatprep.subr.bf16.mxu0 0
      %3836 = vmatpush1.bf16.msra.mxu0 0
      %3837 = vmatprep.mubr.bf16.mxu0 0
      %3838 = vmatmul.mubr.bf16.gmra.mrb[0].mxu0 %v3754
      %v3839 = vpop.f32.mrb[0].mxu0
      %v3840 = vadd.f32 0.0, %v3839
      %v3841 = vpop.f32.mrb[0].mxu0
      %v3842 = vpop.f32.mrb[0].mxu0
      %v3843 = vadd.f32 0.0, %v3842
      %v3844 = vpop.f32.mrb[0].mxu0
      %3845 = vmatprep.mubr.bf16.mxu0 0
      %3846 = vmatmul.mubr.bf16.gmra.mrb[0].mxu0 %v3757
      %v3847 = vpop.f32.mrb[0].mxu0
      %v3848 = vadd.f32 0.0, %v3847
      %v3849 = vpop.f32.mrb[0].mxu0
      %v3850 = vpop.f32.mrb[0].mxu0
      %v3851 = vadd.f32 0.0, %v3850
      %v3852 = vpop.f32.mrb[0].mxu0
      %3853 = vmatprep.mubr.bf16.mxu0 0
      %3854 = vmatmul.mubr.bf16.gmra.mrb[0].mxu0 %v3760
      %v3855 = vpop.f32.mrb[0].mxu0
      %v3856 = vadd.f32 0.0, %v3855
      %v3857 = vpop.f32.mrb[0].mxu0
      %v3858 = vpop.f32.mrb[0].mxu0
      %v3859 = vadd.f32 0.0, %v3858
      %v3860 = vpop.f32.mrb[0].mxu0
      %3861 = vmatprep.mubr.bf16.mxu0 0
      %3862 = vmatmul.mubr.bf16.gmra.mrb[0].mxu0 %v3763
      %v3863 = vpop.f32.mrb[0].mxu0
      %v3864 = vadd.f32 0.0, %v3863
      %v3865 = vpop.f32.mrb[0].mxu0
      %v3866 = vpop.f32.mrb[0].mxu0
      %v3867 = vadd.f32 0.0, %v3866
      %v3868 = vpop.f32.mrb[0].mxu0
      %3869 = vmatprep.mubr.bf16.mxu0 0
      %3870 = vmatmul.mubr.bf16.gmra.mrb[0].mxu0 %v3766
      %v3871 = vpop.f32.mrb[0].mxu0
      %v3872 = vadd.f32 0.0, %v3871
      %v3873 = vpop.f32.mrb[0].mxu0
      %v3874 = vpop.f32.mrb[0].mxu0
      %v3875 = vadd.f32 0.0, %v3874
      %v3876 = vpop.f32.mrb[0].mxu0
      %3877 = vmatprep.mubr.bf16.mxu0 0
      %3878 = vmatmul.mubr.bf16.gmra.mrb[0].mxu0 %v3769
      %v3879 = vpop.f32.mrb[0].mxu0
      %v3880 = vadd.f32 0.0, %v3879
      %v3881 = vpop.f32.mrb[0].mxu0
      %v3882 = vpop.f32.mrb[0].mxu0
      %v3883 = vadd.f32 0.0, %v3882
      %v3884 = vpop.f32.mrb[0].mxu0
      %3885 = vmatprep.mubr.bf16.mxu0 0
      %3886 = vmatmul.mubr.bf16.gmra.mrb[0].mxu0 %v3772
      %v3887 = vpop.f32.mrb[0].mxu0
      %v3888 = vadd.f32 0.0, %v3887
      %v3889 = vpop.f32.mrb[0].mxu0
      %v3890 = vpop.f32.mrb[0].mxu0
      %v3891 = vadd.f32 0.0, %v3890
      %v3892 = vpop.f32.mrb[0].mxu0
      %3893 = vmatprep.mubr.bf16.mxu0 0
      %3894 = vmatmul.mubr.bf16.gmra.mrb[0].mxu0 %v3775
      %v3895 = vpop.f32.mrb[0].mxu0
      %v3896 = vadd.f32 0.0, %v3895
      %v3897 = vpop.f32.mrb[0].mxu0
      %v3898 = vpop.f32.mrb[0].mxu0
      %v3899 = vadd.f32 0.0, %v3898
      %v3900 = vpop.f32.mrb[0].mxu0
      %3901 = vmatprep.mubr.bf16.mxu0 0
      %3902 = vmatmul.mubr.bf16.gmra.mrb[0].mxu0 %v3778
      %v3903 = vpop.f32.mrb[0].mxu0
      %v3904 = vadd.f32 0.0, %v3903
      %v3905 = vpop.f32.mrb[0].mxu0
      %v3906 = vpop.f32.mrb[0].mxu0
      %v3907 = vadd.f32 0.0, %v3906
      %v3908 = vpop.f32.mrb[0].mxu0
      %3909 = vmatprep.mubr.bf16.mxu0 0
      %3910 = vmatmul.mubr.bf16.gmra.mrb[0].mxu0 %v3781
      %v3911 = vpop.f32.mrb[0].mxu0
      %v3912 = vadd.f32 0.0, %v3911
      %v3913 = vpop.f32.mrb[0].mxu0
      %v3914 = vpop.f32.mrb[0].mxu0
      %v3915 = vadd.f32 0.0, %v3914
      %v3916 = vpop.f32.mrb[0].mxu0
      %3917 = vmatprep.mubr.bf16.mxu0 0
      %3918 = vmatmul.mubr.bf16.gmra.mrb[0].mxu0 %v3784
      %v3919 = vpop.f32.mrb[0].mxu0
      %v3920 = vadd.f32 0.0, %v3919
      %v3921 = vpop.f32.mrb[0].mxu0
      %v3922 = vpop.f32.mrb[0].mxu0
      %v3923 = vadd.f32 0.0, %v3922
      %v3924 = vpop.f32.mrb[0].mxu0
      %3925 = vmatprep.mubr.bf16.mxu0 0
      %3926 = vmatmul.mubr.bf16.gmra.mrb[0].mxu0 %v3787
      %v3927 = vpop.f32.mrb[0].mxu0
      %v3928 = vadd.f32 0.0, %v3927
      %v3929 = vpop.f32.mrb[0].mxu0
      %v3930 = vpop.f32.mrb[0].mxu0
      %v3931 = vadd.f32 0.0, %v3930
      %v3932 = vpop.f32.mrb[0].mxu0
      %3933 = vmatprep.mubr.bf16.mxu0 0
      %3934 = vmatmul.mubr.bf16.gmra.mrb[0].mxu0 %v3790
      %v3935 = vpop.f32.mrb[0].mxu0
      %v3936 = vadd.f32 0.0, %v3935
      %v3937 = vpop.f32.mrb[0].mxu0
      %v3938 = vpop.f32.mrb[0].mxu0
      %v3939 = vadd.f32 0.0, %v3938
      %v3940 = vpop.f32.mrb[0].mxu0
      %3941 = vmatprep.mubr.bf16.mxu0 0
      %3942 = vmatmul.mubr.bf16.gmra.mrb[0].mxu0 %v3793
      %v3943 = vpop.f32.mrb[0].mxu0
      %v3944 = vadd.f32 0.0, %v3943
      %v3945 = vpop.f32.mrb[0].mxu0
      %v3946 = vpop.f32.mrb[0].mxu0
      %v3947 = vadd.f32 0.0, %v3946
      %v3948 = vpop.f32.mrb[0].mxu0
      %3949 = vmatprep.mubr.bf16.mxu0 0
      %3950 = vmatmul.mubr.bf16.gmra.mrb[0].mxu0 %v3796
      %v3951 = vpop.f32.mrb[0].mxu0
      %v3952 = vadd.f32 0.0, %v3951
      %v3953 = vpop.f32.mrb[0].mxu0
      %v3954 = vpop.f32.mrb[0].mxu0
      %v3955 = vadd.f32 0.0, %v3954
      %v3956 = vpop.f32.mrb[0].mxu0
      %3957 = vmatprep.mubr.bf16.mxu0 0
      %3958 = vmatmul.mubr.bf16.gmra.mrb[0].mxu0 %v3799
      %v3959 = vpop.f32.mrb[0].mxu0
      %v3960 = vadd.f32 0.0, %v3959
      %v3961 = vpop.f32.mrb[0].mxu0
      %v3962 = vpop.f32.mrb[0].mxu0
      %v3963 = vadd.f32 0.0, %v3962
      %v3964 = vpop.f32.mrb[0].mxu0
      %3965 = vdwg.mxu0
      %v3966 = vmul.f32 %v3840, %v637
      %v3967 = vmul.f32 %v3843, %v642
      %v3968 = vmul.f32 %v3848, %v647
      %v3969 = vmul.f32 %v3851, %v652
      %v3970 = vmul.f32 %v3856, %v657
      %v3971 = vmul.f32 %v3859, %v662
      %v3972 = vmul.f32 %v3864, %v667
      %v3973 = vmul.f32 %v3867, %v672
      %v3974 = vmul.f32 %v3872, %v677
      %v3975 = vmul.f32 %v3875, %v682
      %v3976 = vmul.f32 %v3880, %v687
      %v3977 = vmul.f32 %v3883, %v692
      %v3978 = vmul.f32 %v3888, %v697
      %v3979 = vmul.f32 %v3891, %v702
      %v3980 = vmul.f32 %v3896, %v707
      %v3981 = vmul.f32 %v3899, %v712
      %v3982 = vmul.f32 %v3904, %v717
      %v3983 = vmul.f32 %v3907, %v722
      %v3984 = vmul.f32 %v3912, %v727
      %v3985 = vmul.f32 %v3915, %v732
      %v3986 = vmul.f32 %v3920, %v737
      %v3987 = vmul.f32 %v3923, %v742
      %v3988 = vmul.f32 %v3928, %v747
      %v3989 = vmul.f32 %v3931, %v752
      %v3990 = vmul.f32 %v3936, %v757
      %v3991 = vmul.f32 %v3939, %v762
      %v3992 = vmul.f32 %v3944, %v767
      %v3993 = vmul.f32 %v3947, %v772
      %v3994 = vmul.f32 %v3952, %v777
      %v3995 = vmul.f32 %v3955, %v782
      %v3996 = vmul.f32 %v3960, %v787
      %v3997 = vmul.f32 %v3963, %v792
      %v3998 = vadd.f32 %v3966, 0.0
      %v3999 = vadd.f32 %v3967, 0.0
      %v4000 = vadd.f32 %v3968, 0.0
      %v4001 = vadd.f32 %v3969, 0.0
      %v4002 = vadd.f32 %v3970, 0.0
      %v4003 = vadd.f32 %v3971, 0.0
      %v4004 = vadd.f32 %v3972, 0.0
      %v4005 = vadd.f32 %v3973, 0.0
      %v4006 = vadd.f32 %v3974, 0.0
      %v4007 = vadd.f32 %v3975, 0.0
      %v4008 = vadd.f32 %v3976, 0.0
      %v4009 = vadd.f32 %v3977, 0.0
      %v4010 = vadd.f32 %v3978, 0.0
      %v4011 = vadd.f32 %v3979, 0.0
      %v4012 = vadd.f32 %v3980, 0.0
      %v4013 = vadd.f32 %v3981, 0.0
      %v4014 = vadd.f32 %v3982, 0.0
      %v4015 = vadd.f32 %v3983, 0.0
      %v4016 = vadd.f32 %v3984, 0.0
      %v4017 = vadd.f32 %v3985, 0.0
      %v4018 = vadd.f32 %v3986, 0.0
      %v4019 = vadd.f32 %v3987, 0.0
      %v4020 = vadd.f32 %v3988, 0.0
      %v4021 = vadd.f32 %v3989, 0.0
      %v4022 = vadd.f32 %v3990, 0.0
      %v4023 = vadd.f32 %v3991, 0.0
      %v4024 = vadd.f32 %v3992, 0.0
      %v4025 = vadd.f32 %v3993, 0.0
      %v4026 = vadd.f32 %v3994, 0.0
      %v4027 = vadd.f32 %v3995, 0.0
      %v4028 = vadd.f32 %v3996, 0.0
      %v4029 = vadd.f32 %v3997, 0.0
      %v4030 = vld [vmem:[#allocation2 + $0x8] sm:$0xff]
      %v4031 = vld [vmem:[#allocation2 + $0x10] sm:$0xff]
      %v4032 = vld [vmem:[#allocation2 + $0x18] sm:$0xff]
      %v4033 = vld [vmem:[#allocation2 + $0x20] sm:$0xff]
      %v4034 = vld [vmem:[#allocation2 + $0x28] sm:$0xff]
      %v4035 = vld [vmem:[#allocation2 + $0x30] sm:$0xff]
      %v4036 = vld [vmem:[#allocation2 + $0x38] sm:$0xff]
      %v4037 = vld [vmem:[#allocation2 + $0x40] sm:$0xff]
      %v4038 = vld [vmem:[#allocation2 + $0x48] sm:$0xff]
      %v4039 = vld [vmem:[#allocation2 + $0x50] sm:$0xff]
      %v4040 = vld [vmem:[#allocation2 + $0x58] sm:$0xff]
      %v4041 = vld [vmem:[#allocation2 + $0x60] sm:$0xff]
      %v4042 = vld [vmem:[#allocation2 + $0x68] sm:$0xff]
      %v4043 = vld [vmem:[#allocation2 + $0x70] sm:$0xff]
      %v4044 = vld [vmem:[#allocation2 + $0x78] sm:$0xff]
      %v4045 = vld [vmem:[#allocation2 + $0x80] sm:$0xff]
      %v4046 = vld [vmem:[#allocation2 + $0x88] sm:$0xff]
      %v4047 = vld [vmem:[#allocation2 + $0x90] sm:$0xff]
      %v4048 = vld [vmem:[#allocation2 + $0x98] sm:$0xff]
      %v4049 = vld [vmem:[#allocation2 + $0xa0] sm:$0xff]
      %v4050 = vld [vmem:[#allocation2 + $0xa8] sm:$0xff]
      %v4051 = vld [vmem:[#allocation2 + $0xb0] sm:$0xff]
      %v4052 = vld [vmem:[#allocation2 + $0xb8] sm:$0xff]
      %v4053 = vld [vmem:[#allocation2 + $0xc0] sm:$0xff]
      %v4054 = vld [vmem:[#allocation2 + $0xc8] sm:$0xff]
      %v4055 = vld [vmem:[#allocation2 + $0xd0] sm:$0xff]
      %v4056 = vld [vmem:[#allocation2 + $0xd8] sm:$0xff]
      %v4057 = vld [vmem:[#allocation2 + $0xe0] sm:$0xff]
      %v4058 = vld [vmem:[#allocation2 + $0xe8] sm:$0xff]
      %v4059 = vld [vmem:[#allocation2 + $0xf0] sm:$0xff]
      %v4060 = vld [vmem:[#allocation2 + $0xf8] sm:$0xff]
      %v4061 = vld [vmem:[#allocation2 + $0x100] sm:$0xff]
      %v4062 = vpack.c.bf16 %v4031, %v4030
      %v4063 = vpack.c.bf16 %v4033, %v4032
      %v4064 = vpack.c.bf16 %v4035, %v4034
      %v4065 = vpack.c.bf16 %v4037, %v4036
      %v4066 = vpack.c.bf16 %v4039, %v4038
      %v4067 = vpack.c.bf16 %v4041, %v4040
      %v4068 = vpack.c.bf16 %v4043, %v4042
      %v4069 = vpack.c.bf16 %v4045, %v4044
      %v4070 = vpack.c.bf16 %v4047, %v4046
      %v4071 = vpack.c.bf16 %v4049, %v4048
      %v4072 = vpack.c.bf16 %v4051, %v4050
      %v4073 = vpack.c.bf16 %v4053, %v4052
      %v4074 = vpack.c.bf16 %v4055, %v4054
      %v4075 = vpack.c.bf16 %v4057, %v4056
      %v4076 = vpack.c.bf16 %v4059, %v4058
      %v4077 = vpack.c.bf16 %v4061, %v4060
      %s4078 = scalar_lea.vmem %s3, 4
      %v4079 = vld [vmem:[%s4078] sm:$0xf]
      %v4081 = vsel %vm3665, %v4062, 0
      %v4084 = vsel %vm3665, %v4063, 0
      %v4087 = vsel %vm3665, %v4064, 0
      %v4090 = vsel %vm3665, %v4065, 0
      %v4093 = vsel %vm3665, %v4066, 0
      %v4096 = vsel %vm3665, %v4067, 0
      %v4099 = vsel %vm3665, %v4068, 0
      %v4102 = vsel %vm3665, %v4069, 0
      %v4105 = vsel %vm3665, %v4070, 0
      %v4108 = vsel %vm3665, %v4071, 0
      %v4111 = vsel %vm3665, %v4072, 0
      %v4114 = vsel %vm3665, %v4073, 0
      %v4117 = vsel %vm3665, %v4074, 0
      %v4120 = vsel %vm3665, %v4075, 0
      %v4123 = vsel %vm3665, %v4076, 0
      %v4126 = vsel %vm3665, %v4077, 0
      %v4129 = vsel %vm3801, %v4079, 0
      %4131 = vmatprep.subr.bf16.mxu0 0
      %4132 = vmatpush1.bf16.msra.mxu0 %v4129
      %4133 = vmatprep.subr.bf16.mxu0 0
      %4134 = vmatpush1.bf16.msra.mxu0 0
      %4135 = vmatprep.subr.bf16.mxu0 0
      %4136 = vmatpush1.bf16.msra.mxu0 0
      %4137 = vmatprep.subr.bf16.mxu0 0
      %4138 = vmatpush1.bf16.msra.mxu0 0
      %4139 = vmatprep.subr.bf16.mxu0 0
      %4140 = vmatpush1.bf16.msra.mxu0 0
      %4141 = vmatprep.subr.bf16.mxu0 0
      %4142 = vmatpush1.bf16.msra.mxu0 0
      %4143 = vmatprep.subr.bf16.mxu0 0
      %4144 = vmatpush1.bf16.msra.mxu0 0
      %4145 = vmatprep.subr.bf16.mxu0 0
      %4146 = vmatpush1.bf16.msra.mxu0 0
      %4147 = vmatprep.subr.bf16.mxu0 0
      %4148 = vmatpush1.bf16.msra.mxu0 0
      %4149 = vmatprep.subr.bf16.mxu0 0
      %4150 = vmatpush1.bf16.msra.mxu0 0
      %4151 = vmatprep.subr.bf16.mxu0 0
      %4152 = vmatpush1.bf16.msra.mxu0 0
      %4153 = vmatprep.subr.bf16.mxu0 0
      %4154 = vmatpush1.bf16.msra.mxu0 0
      %4155 = vmatprep.subr.bf16.mxu0 0
      %4156 = vmatpush1.bf16.msra.mxu0 0
      %4157 = vmatprep.subr.bf16.mxu0 0
      %4158 = vmatpush1.bf16.msra.mxu0 0
      %4159 = vmatprep.subr.bf16.mxu0 0
      %4160 = vmatpush1.bf16.msra.mxu0 0
      %4161 = vmatprep.subr.bf16.mxu0 0
      %4162 = vmatpush1.bf16.msra.mxu0 0
      %4163 = vmatprep.mubr.bf16.mxu0 0
      %4164 = vmatmul.mubr.bf16.gmra.mrb[0].mxu0 %v4081
      %v4165 = vpop.f32.mrb[0].mxu0
      %v4166 = vadd.f32 0.0, %v4165
      %v4167 = vpop.f32.mrb[0].mxu0
      %v4168 = vpop.f32.mrb[0].mxu0
      %v4169 = vadd.f32 0.0, %v4168
      %v4170 = vpop.f32.mrb[0].mxu0
      %4171 = vmatprep.mubr.bf16.mxu0 0
      %4172 = vmatmul.mubr.bf16.gmra.mrb[0].mxu0 %v4084
      %v4173 = vpop.f32.mrb[0].mxu0
      %v4174 = vadd.f32 0.0, %v4173
      %v4175 = vpop.f32.mrb[0].mxu0
      %v4176 = vpop.f32.mrb[0].mxu0
      %v4177 = vadd.f32 0.0, %v4176
      %v4178 = vpop.f32.mrb[0].mxu0
      %4179 = vmatprep.mubr.bf16.mxu0 0
      %4180 = vmatmul.mubr.bf16.gmra.mrb[0].mxu0 %v4087
      %v4181 = vpop.f32.mrb[0].mxu0
      %v4182 = vadd.f32 0.0, %v4181
      %v4183 = vpop.f32.mrb[0].mxu0
      %v4184 = vpop.f32.mrb[0].mxu0
      %v4185 = vadd.f32 0.0, %v4184
      %v4186 = vpop.f32.mrb[0].mxu0
      %4187 = vmatprep.mubr.bf16.mxu0 0
      %4188 = vmatmul.mubr.bf16.gmra.mrb[0].mxu0 %v4090
      %v4189 = vpop.f32.mrb[0].mxu0
      %v4190 = vadd.f32 0.0, %v4189
      %v4191 = vpop.f32.mrb[0].mxu0
      %v4192 = vpop.f32.mrb[0].mxu0
      %v4193 = vadd.f32 0.0, %v4192
      %v4194 = vpop.f32.mrb[0].mxu0
      %4195 = vmatprep.mubr.bf16.mxu0 0
      %4196 = vmatmul.mubr.bf16.gmra.mrb[0].mxu0 %v4093
      %v4197 = vpop.f32.mrb[0].mxu0
      %v4198 = vadd.f32 0.0, %v4197
      %v4199 = vpop.f32.mrb[0].mxu0
      %v4200 = vpop.f32.mrb[0].mxu0
      %v4201 = vadd.f32 0.0, %v4200
      %v4202 = vpop.f32.mrb[0].mxu0
      %4203 = vmatprep.mubr.bf16.mxu0 0
      %4204 = vmatmul.mubr.bf16.gmra.mrb[0].mxu0 %v4096
      %v4205 = vpop.f32.mrb[0].mxu0
      %v4206 = vadd.f32 0.0, %v4205
      %v4207 = vpop.f32.mrb[0].mxu0
      %v4208 = vpop.f32.mrb[0].mxu0
      %v4209 = vadd.f32 0.0, %v4208
      %v4210 = vpop.f32.mrb[0].mxu0
      %4211 = vmatprep.mubr.bf16.mxu0 0
      %4212 = vmatmul.mubr.bf16.gmra.mrb[0].mxu0 %v4099
      %v4213 = vpop.f32.mrb[0].mxu0
      %v4214 = vadd.f32 0.0, %v4213
      %v4215 = vpop.f32.mrb[0].mxu0
      %v4216 = vpop.f32.mrb[0].mxu0
      %v4217 = vadd.f32 0.0, %v4216
      %v4218 = vpop.f32.mrb[0].mxu0
      %4219 = vmatprep.mubr.bf16.mxu0 0
      %4220 = vmatmul.mubr.bf16.gmra.mrb[0].mxu0 %v4102
      %v4221 = vpop.f32.mrb[0].mxu0
      %v4222 = vadd.f32 0.0, %v4221
      %v4223 = vpop.f32.mrb[0].mxu0
      %v4224 = vpop.f32.mrb[0].mxu0
      %v4225 = vadd.f32 0.0, %v4224
      %v4226 = vpop.f32.mrb[0].mxu0
      %4227 = vmatprep.mubr.bf16.mxu0 0
      %4228 = vmatmul.mubr.bf16.gmra.mrb[0].mxu0 %v4105
      %v4229 = vpop.f32.mrb[0].mxu0
      %v4230 = vadd.f32 0.0, %v4229
      %v4231 = vpop.f32.mrb[0].mxu0
      %v4232 = vpop.f32.mrb[0].mxu0
      %v4233 = vadd.f32 0.0, %v4232
      %v4234 = vpop.f32.mrb[0].mxu0
      %4235 = vmatprep.mubr.bf16.mxu0 0
      %4236 = vmatmul.mubr.bf16.gmra.mrb[0].mxu0 %v4108
      %v4237 = vpop.f32.mrb[0].mxu0
      %v4238 = vadd.f32 0.0, %v4237
      %v4239 = vpop.f32.mrb[0].mxu0
      %v4240 = vpop.f32.mrb[0].mxu0
      %v4241 = vadd.f32 0.0, %v4240
      %v4242 = vpop.f32.mrb[0].mxu0
      %4243 = vmatprep.mubr.bf16.mxu0 0
      %4244 = vmatmul.mubr.bf16.gmra.mrb[0].mxu0 %v4111
      %v4245 = vpop.f32.mrb[0].mxu0
      %v4246 = vadd.f32 0.0, %v4245
      %v4247 = vpop.f32.mrb[0].mxu0
      %v4248 = vpop.f32.mrb[0].mxu0
      %v4249 = vadd.f32 0.0, %v4248
      %v4250 = vpop.f32.mrb[0].mxu0
      %4251 = vmatprep.mubr.bf16.mxu0 0
      %4252 = vmatmul.mubr.bf16.gmra.mrb[0].mxu0 %v4114
      %v4253 = vpop.f32.mrb[0].mxu0
      %v4254 = vadd.f32 0.0, %v4253
      %v4255 = vpop.f32.mrb[0].mxu0
      %v4256 = vpop.f32.mrb[0].mxu0
      %v4257 = vadd.f32 0.0, %v4256
      %v4258 = vpop.f32.mrb[0].mxu0
      %4259 = vmatprep.mubr.bf16.mxu0 0
      %4260 = vmatmul.mubr.bf16.gmra.mrb[0].mxu0 %v4117
      %v4261 = vpop.f32.mrb[0].mxu0
      %v4262 = vadd.f32 0.0, %v4261
      %v4263 = vpop.f32.mrb[0].mxu0
      %v4264 = vpop.f32.mrb[0].mxu0
      %v4265 = vadd.f32 0.0, %v4264
      %v4266 = vpop.f32.mrb[0].mxu0
      %4267 = vmatprep.mubr.bf16.mxu0 0
      %4268 = vmatmul.mubr.bf16.gmra.mrb[0].mxu0 %v4120
      %v4269 = vpop.f32.mrb[0].mxu0
      %v4270 = vadd.f32 0.0, %v4269
      %v4271 = vpop.f32.mrb[0].mxu0
      %v4272 = vpop.f32.mrb[0].mxu0
      %v4273 = vadd.f32 0.0, %v4272
      %v4274 = vpop.f32.mrb[0].mxu0
      %4275 = vmatprep.mubr.bf16.mxu0 0
      %4276 = vmatmul.mubr.bf16.gmra.mrb[0].mxu0 %v4123
      %v4277 = vpop.f32.mrb[0].mxu0
      %v4278 = vadd.f32 0.0, %v4277
      %v4279 = vpop.f32.mrb[0].mxu0
      %v4280 = vpop.f32.mrb[0].mxu0
      %v4281 = vadd.f32 0.0, %v4280
      %v4282 = vpop.f32.mrb[0].mxu0
      %4283 = vmatprep.mubr.bf16.mxu0 0
      %4284 = vmatmul.mubr.bf16.gmra.mrb[0].mxu0 %v4126
      %v4285 = vpop.f32.mrb[0].mxu0
      %v4286 = vadd.f32 0.0, %v4285
      %v4287 = vpop.f32.mrb[0].mxu0
      %v4288 = vpop.f32.mrb[0].mxu0
      %v4289 = vadd.f32 0.0, %v4288
      %v4290 = vpop.f32.mrb[0].mxu0
      %4291 = vdwg.mxu0
      %v4292 = vadd.f32 %v3998, %v4166
      %v4293 = vadd.f32 %v3999, %v4169
      %v4294 = vadd.f32 %v4000, %v4174
      %v4295 = vadd.f32 %v4001, %v4177
      %v4296 = vadd.f32 %v4002, %v4182
      %v4297 = vadd.f32 %v4003, %v4185
      %v4298 = vadd.f32 %v4004, %v4190
      %v4299 = vadd.f32 %v4005, %v4193
      %v4300 = vadd.f32 %v4006, %v4198
      %v4301 = vadd.f32 %v4007, %v4201
      %v4302 = vadd.f32 %v4008, %v4206
      %v4303 = vadd.f32 %v4009, %v4209
      %v4304 = vadd.f32 %v4010, %v4214
      %v4305 = vadd.f32 %v4011, %v4217
      %v4306 = vadd.f32 %v4012, %v4222
      %v4307 = vadd.f32 %v4013, %v4225
      %v4308 = vadd.f32 %v4014, %v4230
      %v4309 = vadd.f32 %v4015, %v4233
      %v4310 = vadd.f32 %v4016, %v4238
      %v4311 = vadd.f32 %v4017, %v4241
      %v4312 = vadd.f32 %v4018, %v4246
      %v4313 = vadd.f32 %v4019, %v4249
      %v4314 = vadd.f32 %v4020, %v4254
      %v4315 = vadd.f32 %v4021, %v4257
      %v4316 = vadd.f32 %v4022, %v4262
      %v4317 = vadd.f32 %v4023, %v4265
      %v4318 = vadd.f32 %v4024, %v4270
      %v4319 = vadd.f32 %v4025, %v4273
      %v4320 = vadd.f32 %v4026, %v4278
      %v4321 = vadd.f32 %v4027, %v4281
      %v4322 = vadd.f32 %v4028, %v4286
      %v4323 = vadd.f32 %v4029, %v4289
      %v4324 = vld [vmem:[#allocation2 + $0x9] sm:$0xff]
      %v4325 = vld [vmem:[#allocation2 + $0x11] sm:$0xff]
      %v4326 = vld [vmem:[#allocation2 + $0x19] sm:$0xff]
      %v4327 = vld [vmem:[#allocation2 + $0x21] sm:$0xff]
      %v4328 = vld [vmem:[#allocation2 + $0x29] sm:$0xff]
      %v4329 = vld [vmem:[#allocation2 + $0x31] sm:$0xff]
      %v4330 = vld [vmem:[#allocation2 + $0x39] sm:$0xff]
      %v4331 = vld [vmem:[#allocation2 + $0x41] sm:$0xff]
      %v4332 = vld [vmem:[#allocation2 + $0x49] sm:$0xff]
      %v4333 = vld [vmem:[#allocation2 + $0x51] sm:$0xff]
      %v4334 = vld [vmem:[#allocation2 + $0x59] sm:$0xff]
      %v4335 = vld [vmem:[#allocation2 + $0x61] sm:$0xff]
      %v4336 = vld [vmem:[#allocation2 + $0x69] sm:$0xff]
      %v4337 = vld [vmem:[#allocation2 + $0x71] sm:$0xff]
      %v4338 = vld [vmem:[#allocation2 + $0x79] sm:$0xff]
      %v4339 = vld [vmem:[#allocation2 + $0x81] sm:$0xff]
      %v4340 = vld [vmem:[#allocation2 + $0x89] sm:$0xff]
      %v4341 = vld [vmem:[#allocation2 + $0x91] sm:$0xff]
      %v4342 = vld [vmem:[#allocation2 + $0x99] sm:$0xff]
      %v4343 = vld [vmem:[#allocation2 + $0xa1] sm:$0xff]
      %v4344 = vld [vmem:[#allocation2 + $0xa9] sm:$0xff]
      %v4345 = vld [vmem:[#allocation2 + $0xb1] sm:$0xff]
      %v4346 = vld [vmem:[#allocation2 + $0xb9] sm:$0xff]
      %v4347 = vld [vmem:[#allocation2 + $0xc1] sm:$0xff]
      %v4348 = vld [vmem:[#allocation2 + $0xc9] sm:$0xff]
      %v4349 = vld [vmem:[#allocation2 + $0xd1] sm:$0xff]
      %v4350 = vld [vmem:[#allocation2 + $0xd9] sm:$0xff]
      %v4351 = vld [vmem:[#allocation2 + $0xe1] sm:$0xff]
      %v4352 = vld [vmem:[#allocation2 + $0xe9] sm:$0xff]
      %v4353 = vld [vmem:[#allocation2 + $0xf1] sm:$0xff]
      %v4354 = vld [vmem:[#allocation2 + $0xf9] sm:$0xff]
      %v4355 = vld [vmem:[#allocation2 + $0x101] sm:$0xff]
      %v4356 = vpack.c.bf16 %v4325, %v4324
      %v4357 = vpack.c.bf16 %v4327, %v4326
      %v4358 = vpack.c.bf16 %v4329, %v4328
      %v4359 = vpack.c.bf16 %v4331, %v4330
      %v4360 = vpack.c.bf16 %v4333, %v4332
      %v4361 = vpack.c.bf16 %v4335, %v4334
      %v4362 = vpack.c.bf16 %v4337, %v4336
      %v4363 = vpack.c.bf16 %v4339, %v4338
      %v4364 = vpack.c.bf16 %v4341, %v4340
      %v4365 = vpack.c.bf16 %v4343, %v4342
      %v4366 = vpack.c.bf16 %v4345, %v4344
      %v4367 = vpack.c.bf16 %v4347, %v4346
      %v4368 = vpack.c.bf16 %v4349, %v4348
      %v4369 = vpack.c.bf16 %v4351, %v4350
      %v4370 = vpack.c.bf16 %v4353, %v4352
      %v4371 = vpack.c.bf16 %v4355, %v4354
      %s4372 = scalar_lea.vmem %s3, 8
      %v4373 = vld [vmem:[%s4372] sm:$0xf]
      %v4375 = vsel %vm3665, %v4356, 0
      %v4378 = vsel %vm3665, %v4357, 0
      %v4381 = vsel %vm3665, %v4358, 0
      %v4384 = vsel %vm3665, %v4359, 0
      %v4387 = vsel %vm3665, %v4360, 0
      %v4390 = vsel %vm3665, %v4361, 0
      %v4393 = vsel %vm3665, %v4362, 0
      %v4396 = vsel %vm3665, %v4363, 0
      %v4399 = vsel %vm3665, %v4364, 0
      %v4402 = vsel %vm3665, %v4365, 0
      %v4405 = vsel %vm3665, %v4366, 0
      %v4408 = vsel %vm3665, %v4367, 0
      %v4411 = vsel %vm3665, %v4368, 0
      %v4414 = vsel %vm3665, %v4369, 0
      %v4417 = vsel %vm3665, %v4370, 0
      %v4420 = vsel %vm3665, %v4371, 0
      %v4423 = vsel %vm3801, %v4373, 0
      %4425 = vmatprep.subr.bf16.mxu0 0
      %4426 = vmatpush1.bf16.msra.mxu0 %v4423
      %4427 = vmatprep.subr.bf16.mxu0 0
      %4428 = vmatpush1.bf16.msra.mxu0 0
      %4429 = vmatprep.subr.bf16.mxu0 0
      %4430 = vmatpush1.bf16.msra.mxu0 0
      %4431 = vmatprep.subr.bf16.mxu0 0
      %4432 = vmatpush1.bf16.msra.mxu0 0
      %4433 = vmatprep.subr.bf16.mxu0 0
      %4434 = vmatpush1.bf16.msra.mxu0 0
      %4435 = vmatprep.subr.bf16.mxu0 0
      %4436 = vmatpush1.bf16.msra.mxu0 0
      %4437 = vmatprep.subr.bf16.mxu0 0
      %4438 = vmatpush1.bf16.msra.mxu0 0
      %4439 = vmatprep.subr.bf16.mxu0 0
      %4440 = vmatpush1.bf16.msra.mxu0 0
      %4441 = vmatprep.subr.bf16.mxu0 0
      %4442 = vmatpush1.bf16.msra.mxu0 0
      %4443 = vmatprep.subr.bf16.mxu0 0
      %4444 = vmatpush1.bf16.msra.mxu0 0
      %4445 = vmatprep.subr.bf16.mxu0 0
      %4446 = vmatpush1.bf16.msra.mxu0 0
      %4447 = vmatprep.subr.bf16.mxu0 0
      %4448 = vmatpush1.bf16.msra.mxu0 0
      %4449 = vmatprep.subr.bf16.mxu0 0
      %4450 = vmatpush1.bf16.msra.mxu0 0
      %4451 = vmatprep.subr.bf16.mxu0 0
      %4452 = vmatpush1.bf16.msra.mxu0 0
      %4453 = vmatprep.subr.bf16.mxu0 0
      %4454 = vmatpush1.bf16.msra.mxu0 0
      %4455 = vmatprep.subr.bf16.mxu0 0
      %4456 = vmatpush1.bf16.msra.mxu0 0
      %4457 = vmatprep.mubr.bf16.mxu0 0
      %4458 = vmatmul.mubr.bf16.gmra.mrb[0].mxu0 %v4375
      %v4459 = vpop.f32.mrb[0].mxu0
      %v4460 = vadd.f32 0.0, %v4459
      %v4461 = vpop.f32.mrb[0].mxu0
      %v4462 = vpop.f32.mrb[0].mxu0
      %v4463 = vadd.f32 0.0, %v4462
      %v4464 = vpop.f32.mrb[0].mxu0
      %4465 = vmatprep.mubr.bf16.mxu0 0
      %4466 = vmatmul.mubr.bf16.gmra.mrb[0].mxu0 %v4378
      %v4467 = vpop.f32.mrb[0].mxu0
      %v4468 = vadd.f32 0.0, %v4467
      %v4469 = vpop.f32.mrb[0].mxu0
      %v4470 = vpop.f32.mrb[0].mxu0
      %v4471 = vadd.f32 0.0, %v4470
      %v4472 = vpop.f32.mrb[0].mxu0
      %4473 = vmatprep.mubr.bf16.mxu0 0
      %4474 = vmatmul.mubr.bf16.gmra.mrb[0].mxu0 %v4381
      %v4475 = vpop.f32.mrb[0].mxu0
      %v4476 = vadd.f32 0.0, %v4475
      %v4477 = vpop.f32.mrb[0].mxu0
      %v4478 = vpop.f32.mrb[0].mxu0
      %v4479 = vadd.f32 0.0, %v4478
      %v4480 = vpop.f32.mrb[0].mxu0
      %4481 = vmatprep.mubr.bf16.mxu0 0
      %4482 = vmatmul.mubr.bf16.gmra.mrb[0].mxu0 %v4384
      %v4483 = vpop.f32.mrb[0].mxu0
      %v4484 = vadd.f32 0.0, %v4483
      %v4485 = vpop.f32.mrb[0].mxu0
      %v4486 = vpop.f32.mrb[0].mxu0
      %v4487 = vadd.f32 0.0, %v4486
      %v4488 = vpop.f32.mrb[0].mxu0
      %4489 = vmatprep.mubr.bf16.mxu0 0
      %4490 = vmatmul.mubr.bf16.gmra.mrb[0].mxu0 %v4387
      %v4491 = vpop.f32.mrb[0].mxu0
      %v4492 = vadd.f32 0.0, %v4491
      %v4493 = vpop.f32.mrb[0].mxu0
      %v4494 = vpop.f32.mrb[0].mxu0
      %v4495 = vadd.f32 0.0, %v4494
      %v4496 = vpop.f32.mrb[0].mxu0
      %4497 = vmatprep.mubr.bf16.mxu0 0
      %4498 = vmatmul.mubr.bf16.gmra.mrb[0].mxu0 %v4390
      %v4499 = vpop.f32.mrb[0].mxu0
      %v4500 = vadd.f32 0.0, %v4499
      %v4501 = vpop.f32.mrb[0].mxu0
      %v4502 = vpop.f32.mrb[0].mxu0
      %v4503 = vadd.f32 0.0, %v4502
      %v4504 = vpop.f32.mrb[0].mxu0
      %4505 = vmatprep.mubr.bf16.mxu0 0
      %4506 = vmatmul.mubr.bf16.gmra.mrb[0].mxu0 %v4393
      %v4507 = vpop.f32.mrb[0].mxu0
      %v4508 = vadd.f32 0.0, %v4507
      %v4509 = vpop.f32.mrb[0].mxu0
      %v4510 = vpop.f32.mrb[0].mxu0
      %v4511 = vadd.f32 0.0, %v4510
      %v4512 = vpop.f32.mrb[0].mxu0
      %4513 = vmatprep.mubr.bf16.mxu0 0
      %4514 = vmatmul.mubr.bf16.gmra.mrb[0].mxu0 %v4396
      %v4515 = vpop.f32.mrb[0].mxu0
      %v4516 = vadd.f32 0.0, %v4515
      %v4517 = vpop.f32.mrb[0].mxu0
      %v4518 = vpop.f32.mrb[0].mxu0
      %v4519 = vadd.f32 0.0, %v4518
      %v4520 = vpop.f32.mrb[0].mxu0
      %4521 = vmatprep.mubr.bf16.mxu0 0
      %4522 = vmatmul.mubr.bf16.gmra.mrb[0].mxu0 %v4399
      %v4523 = vpop.f32.mrb[0].mxu0
      %v4524 = vadd.f32 0.0, %v4523
      %v4525 = vpop.f32.mrb[0].mxu0
      %v4526 = vpop.f32.mrb[0].mxu0
      %v4527 = vadd.f32 0.0, %v4526
      %v4528 = vpop.f32.mrb[0].mxu0
      %4529 = vmatprep.mubr.bf16.mxu0 0
      %4530 = vmatmul.mubr.bf16.gmra.mrb[0].mxu0 %v4402
      %v4531 = vpop.f32.mrb[0].mxu0
      %v4532 = vadd.f32 0.0, %v4531
      %v4533 = vpop.f32.mrb[0].mxu0
      %v4534 = vpop.f32.mrb[0].mxu0
      %v4535 = vadd.f32 0.0, %v4534
      %v4536 = vpop.f32.mrb[0].mxu0
      %4537 = vmatprep.mubr.bf16.mxu0 0
      %4538 = vmatmul.mubr.bf16.gmra.mrb[0].mxu0 %v4405
      %v4539 = vpop.f32.mrb[0].mxu0
      %v4540 = vadd.f32 0.0, %v4539
      %v4541 = vpop.f32.mrb[0].mxu0
      %v4542 = vpop.f32.mrb[0].mxu0
      %v4543 = vadd.f32 0.0, %v4542
      %v4544 = vpop.f32.mrb[0].mxu0
      %4545 = vmatprep.mubr.bf16.mxu0 0
      %4546 = vmatmul.mubr.bf16.gmra.mrb[0].mxu0 %v4408
      %v4547 = vpop.f32.mrb[0].mxu0
      %v4548 = vadd.f32 0.0, %v4547
      %v4549 = vpop.f32.mrb[0].mxu0
      %v4550 = vpop.f32.mrb[0].mxu0
      %v4551 = vadd.f32 0.0, %v4550
      %v4552 = vpop.f32.mrb[0].mxu0
      %4553 = vmatprep.mubr.bf16.mxu0 0
      %4554 = vmatmul.mubr.bf16.gmra.mrb[0].mxu0 %v4411
      %v4555 = vpop.f32.mrb[0].mxu0
      %v4556 = vadd.f32 0.0, %v4555
      %v4557 = vpop.f32.mrb[0].mxu0
      %v4558 = vpop.f32.mrb[0].mxu0
      %v4559 = vadd.f32 0.0, %v4558
      %v4560 = vpop.f32.mrb[0].mxu0
      %4561 = vmatprep.mubr.bf16.mxu0 0
      %4562 = vmatmul.mubr.bf16.gmra.mrb[0].mxu0 %v4414
      %v4563 = vpop.f32.mrb[0].mxu0
      %v4564 = vadd.f32 0.0, %v4563
      %v4565 = vpop.f32.mrb[0].mxu0
      %v4566 = vpop.f32.mrb[0].mxu0
      %v4567 = vadd.f32 0.0, %v4566
      %v4568 = vpop.f32.mrb[0].mxu0
      %4569 = vmatprep.mubr.bf16.mxu0 0
      %4570 = vmatmul.mubr.bf16.gmra.mrb[0].mxu0 %v4417
      %v4571 = vpop.f32.mrb[0].mxu0
      %v4572 = vadd.f32 0.0, %v4571
      %v4573 = vpop.f32.mrb[0].mxu0
      %v4574 = vpop.f32.mrb[0].mxu0
      %v4575 = vadd.f32 0.0, %v4574
      %v4576 = vpop.f32.mrb[0].mxu0
      %4577 = vmatprep.mubr.bf16.mxu0 0
      %4578 = vmatmul.mubr.bf16.gmra.mrb[0].mxu0 %v4420
      %v4579 = vpop.f32.mrb[0].mxu0
      %v4580 = vadd.f32 0.0, %v4579
      %v4581 = vpop.f32.mrb[0].mxu0
      %v4582 = vpop.f32.mrb[0].mxu0
      %v4583 = vadd.f32 0.0, %v4582
      %v4584 = vpop.f32.mrb[0].mxu0
      %4585 = vdwg.mxu0
      %v4586 = vmul.f32 %v4460, %v1417
      %v4587 = vmul.f32 %v4463, %v1422
      %v4588 = vmul.f32 %v4468, %v1427
      %v4589 = vmul.f32 %v4471, %v1432
      %v4590 = vmul.f32 %v4476, %v1437
      %v4591 = vmul.f32 %v4479, %v1442
      %v4592 = vmul.f32 %v4484, %v1447
      %v4593 = vmul.f32 %v4487, %v1452
      %v4594 = vmul.f32 %v4492, %v1457
      %v4595 = vmul.f32 %v4495, %v1462
      %v4596 = vmul.f32 %v4500, %v1467
      %v4597 = vmul.f32 %v4503, %v1472
      %v4598 = vmul.f32 %v4508, %v1477
      %v4599 = vmul.f32 %v4511, %v1482
      %v4600 = vmul.f32 %v4516, %v1487
      %v4601 = vmul.f32 %v4519, %v1492
      %v4602 = vmul.f32 %v4524, %v1497
      %v4603 = vmul.f32 %v4527, %v1502
      %v4604 = vmul.f32 %v4532, %v1507
      %v4605 = vmul.f32 %v4535, %v1512
      %v4606 = vmul.f32 %v4540, %v1517
      %v4607 = vmul.f32 %v4543, %v1522
      %v4608 = vmul.f32 %v4548, %v1527
      %v4609 = vmul.f32 %v4551, %v1532
      %v4610 = vmul.f32 %v4556, %v1537
      %v4611 = vmul.f32 %v4559, %v1542
      %v4612 = vmul.f32 %v4564, %v1547
      %v4613 = vmul.f32 %v4567, %v1552
      %v4614 = vmul.f32 %v4572, %v1557
      %v4615 = vmul.f32 %v4575, %v1562
      %v4616 = vmul.f32 %v4580, %v1567
      %v4617 = vmul.f32 %v4583, %v1572
      %v4618 = vadd.f32 %v4292, %v4586
      %v4619 = vadd.f32 %v4293, %v4587
      %v4620 = vadd.f32 %v4294, %v4588
      %v4621 = vadd.f32 %v4295, %v4589
      %v4622 = vadd.f32 %v4296, %v4590
      %v4623 = vadd.f32 %v4297, %v4591
      %v4624 = vadd.f32 %v4298, %v4592
      %v4625 = vadd.f32 %v4299, %v4593
      %v4626 = vadd.f32 %v4300, %v4594
      %v4627 = vadd.f32 %v4301, %v4595
      %v4628 = vadd.f32 %v4302, %v4596
      %v4629 = vadd.f32 %v4303, %v4597
      %v4630 = vadd.f32 %v4304, %v4598
      %v4631 = vadd.f32 %v4305, %v4599
      %v4632 = vadd.f32 %v4306, %v4600
      %v4633 = vadd.f32 %v4307, %v4601
      %v4634 = vadd.f32 %v4308, %v4602
      %v4635 = vadd.f32 %v4309, %v4603
      %v4636 = vadd.f32 %v4310, %v4604
      %v4637 = vadd.f32 %v4311, %v4605
      %v4638 = vadd.f32 %v4312, %v4606
      %v4639 = vadd.f32 %v4313, %v4607
      %v4640 = vadd.f32 %v4314, %v4608
      %v4641 = vadd.f32 %v4315, %v4609
      %v4642 = vadd.f32 %v4316, %v4610
      %v4643 = vadd.f32 %v4317, %v4611
      %v4644 = vadd.f32 %v4318, %v4612
      %v4645 = vadd.f32 %v4319, %v4613
      %v4646 = vadd.f32 %v4320, %v4614
      %v4647 = vadd.f32 %v4321, %v4615
      %v4648 = vadd.f32 %v4322, %v4616
      %v4649 = vadd.f32 %v4323, %v4617
      %v4650 = vld [vmem:[#allocation2 + $0x17] sm:$0xff]
      %v4651 = vld [vmem:[#allocation2 + $0x1f] sm:$0xff]
      %v4652 = vld [vmem:[#allocation2 + $0x27] sm:$0xff]
      %v4653 = vld [vmem:[#allocation2 + $0x2f] sm:$0xff]
      %v4654 = vld [vmem:[#allocation2 + $0x37] sm:$0xff]
      %v4655 = vld [vmem:[#allocation2 + $0x3f] sm:$0xff]
      %v4656 = vld [vmem:[#allocation2 + $0x47] sm:$0xff]
      %v4657 = vld [vmem:[#allocation2 + $0x4f] sm:$0xff]
      %v4658 = vld [vmem:[#allocation2 + $0x57] sm:$0xff]
      %v4659 = vld [vmem:[#allocation2 + $0x5f] sm:$0xff]
      %v4660 = vld [vmem:[#allocation2 + $0x67] sm:$0xff]
      %v4661 = vld [vmem:[#allocation2 + $0x6f] sm:$0xff]
      %v4662 = vld [vmem:[#allocation2 + $0x77] sm:$0xff]
      %v4663 = vld [vmem:[#allocation2 + $0x7f] sm:$0xff]
      %v4664 = vld [vmem:[#allocation2 + $0x87] sm:$0xff]
      %v4665 = vld [vmem:[#allocation2 + $0x8f] sm:$0xff]
      %v4666 = vld [vmem:[#allocation2 + $0x97] sm:$0xff]
      %v4667 = vld [vmem:[#allocation2 + $0x9f] sm:$0xff]
      %v4668 = vld [vmem:[#allocation2 + $0xa7] sm:$0xff]
      %v4669 = vld [vmem:[#allocation2 + $0xaf] sm:$0xff]
      %v4670 = vld [vmem:[#allocation2 + $0xb7] sm:$0xff]
      %v4671 = vld [vmem:[#allocation2 + $0xbf] sm:$0xff]
      %v4672 = vld [vmem:[#allocation2 + $0xc7] sm:$0xff]
      %v4673 = vld [vmem:[#allocation2 + $0xcf] sm:$0xff]
      %v4674 = vld [vmem:[#allocation2 + $0xd7] sm:$0xff]
      %v4675 = vld [vmem:[#allocation2 + $0xdf] sm:$0xff]
      %v4676 = vld [vmem:[#allocation2 + $0xe7] sm:$0xff]
      %v4677 = vld [vmem:[#allocation2 + $0xef] sm:$0xff]
      %v4678 = vld [vmem:[#allocation2 + $0xf7] sm:$0xff]
      %v4679 = vld [vmem:[#allocation2 + $0xff] sm:$0xff]
      %v4680 = vld [vmem:[#allocation2 + $0x107] sm:$0xff]
      %v4681 = vld [vmem:[#allocation2 + $0x10f] sm:$0xff]
      %v4682 = vpack.c.bf16 %v4651, %v4650
      %v4683 = vpack.c.bf16 %v4653, %v4652
      %v4684 = vpack.c.bf16 %v4655, %v4654
      %v4685 = vpack.c.bf16 %v4657, %v4656
      %v4686 = vpack.c.bf16 %v4659, %v4658
      %v4687 = vpack.c.bf16 %v4661, %v4660
      %v4688 = vpack.c.bf16 %v4663, %v4662
      %v4689 = vpack.c.bf16 %v4665, %v4664
      %v4690 = vpack.c.bf16 %v4667, %v4666
      %v4691 = vpack.c.bf16 %v4669, %v4668
      %v4692 = vpack.c.bf16 %v4671, %v4670
      %v4693 = vpack.c.bf16 %v4673, %v4672
      %v4694 = vpack.c.bf16 %v4675, %v4674
      %v4695 = vpack.c.bf16 %v4677, %v4676
      %v4696 = vpack.c.bf16 %v4679, %v4678
      %v4697 = vpack.c.bf16 %v4681, %v4680
      %s4698 = scalar_lea.vmem %s3, 12
      %v4699 = vld [vmem:[%s4698] sm:$0xf]
      %v4701 = vsel %vm3665, %v4682, 0
      %v4704 = vsel %vm3665, %v4683, 0
      %v4707 = vsel %vm3665, %v4684, 0
      %v4710 = vsel %vm3665, %v4685, 0
      %v4713 = vsel %vm3665, %v4686, 0
      %v4716 = vsel %vm3665, %v4687, 0
      %v4719 = vsel %vm3665, %v4688, 0
      %v4722 = vsel %vm3665, %v4689, 0
      %v4725 = vsel %vm3665, %v4690, 0
      %v4728 = vsel %vm3665, %v4691, 0
      %v4731 = vsel %vm3665, %v4692, 0
      %v4734 = vsel %vm3665, %v4693, 0
      %v4737 = vsel %vm3665, %v4694, 0
      %v4740 = vsel %vm3665, %v4695, 0
      %v4743 = vsel %vm3665, %v4696, 0
      %v4746 = vsel %vm3665, %v4697, 0
      %v4749 = vsel %vm3801, %v4699, 0
      %4751 = vmatprep.subr.bf16.mxu0 0
      %4752 = vmatpush1.bf16.msra.mxu0 %v4749
      %4753 = vmatprep.subr.bf16.mxu0 0
      %4754 = vmatpush1.bf16.msra.mxu0 0
      %4755 = vmatprep.subr.bf16.mxu0 0
      %4756 = vmatpush1.bf16.msra.mxu0 0
      %4757 = vmatprep.subr.bf16.mxu0 0
      %4758 = vmatpush1.bf16.msra.mxu0 0
      %4759 = vmatprep.subr.bf16.mxu0 0
      %4760 = vmatpush1.bf16.msra.mxu0 0
      %4761 = vmatprep.subr.bf16.mxu0 0
      %4762 = vmatpush1.bf16.msra.mxu0 0
      %4763 = vmatprep.subr.bf16.mxu0 0
      %4764 = vmatpush1.bf16.msra.mxu0 0
      %4765 = vmatprep.subr.bf16.mxu0 0
      %4766 = vmatpush1.bf16.msra.mxu0 0
      %4767 = vmatprep.subr.bf16.mxu0 0
      %4768 = vmatpush1.bf16.msra.mxu0 0
      %4769 = vmatprep.subr.bf16.mxu0 0
      %4770 = vmatpush1.bf16.msra.mxu0 0
      %4771 = vmatprep.subr.bf16.mxu0 0
      %4772 = vmatpush1.bf16.msra.mxu0 0
      %4773 = vmatprep.subr.bf16.mxu0 0
      %4774 = vmatpush1.bf16.msra.mxu0 0
      %4775 = vmatprep.subr.bf16.mxu0 0
      %4776 = vmatpush1.bf16.msra.mxu0 0
      %4777 = vmatprep.subr.bf16.mxu0 0
      %4778 = vmatpush1.bf16.msra.mxu0 0
      %4779 = vmatprep.subr.bf16.mxu0 0
      %4780 = vmatpush1.bf16.msra.mxu0 0
      %4781 = vmatprep.subr.bf16.mxu0 0
      %4782 = vmatpush1.bf16.msra.mxu0 0
      %4783 = vmatprep.mubr.bf16.mxu0 0
      %4784 = vmatmul.mubr.bf16.gmra.mrb[0].mxu0 %v4701
      %v4785 = vpop.f32.mrb[0].mxu0
      %v4786 = vadd.f32 0.0, %v4785
      %v4787 = vpop.f32.mrb[0].mxu0
      %v4788 = vpop.f32.mrb[0].mxu0
      %v4789 = vadd.f32 0.0, %v4788
      %v4790 = vpop.f32.mrb[0].mxu0
      %4791 = vmatprep.mubr.bf16.mxu0 0
      %4792 = vmatmul.mubr.bf16.gmra.mrb[0].mxu0 %v4704
      %v4793 = vpop.f32.mrb[0].mxu0
      %v4794 = vadd.f32 0.0, %v4793
      %v4795 = vpop.f32.mrb[0].mxu0
      %v4796 = vpop.f32.mrb[0].mxu0
      %v4797 = vadd.f32 0.0, %v4796
      %v4798 = vpop.f32.mrb[0].mxu0
      %4799 = vmatprep.mubr.bf16.mxu0 0
      %4800 = vmatmul.mubr.bf16.gmra.mrb[0].mxu0 %v4707
      %v4801 = vpop.f32.mrb[0].mxu0
      %v4802 = vadd.f32 0.0, %v4801
      %v4803 = vpop.f32.mrb[0].mxu0
      %v4804 = vpop.f32.mrb[0].mxu0
      %v4805 = vadd.f32 0.0, %v4804
      %v4806 = vpop.f32.mrb[0].mxu0
      %4807 = vmatprep.mubr.bf16.mxu0 0
      %4808 = vmatmul.mubr.bf16.gmra.mrb[0].mxu0 %v4710
      %v4809 = vpop.f32.mrb[0].mxu0
      %v4810 = vadd.f32 0.0, %v4809
      %v4811 = vpop.f32.mrb[0].mxu0
      %v4812 = vpop.f32.mrb[0].mxu0
      %v4813 = vadd.f32 0.0, %v4812
      %v4814 = vpop.f32.mrb[0].mxu0
      %4815 = vmatprep.mubr.bf16.mxu0 0
      %4816 = vmatmul.mubr.bf16.gmra.mrb[0].mxu0 %v4713
      %v4817 = vpop.f32.mrb[0].mxu0
      %v4818 = vadd.f32 0.0, %v4817
      %v4819 = vpop.f32.mrb[0].mxu0
      %v4820 = vpop.f32.mrb[0].mxu0
      %v4821 = vadd.f32 0.0, %v4820
      %v4822 = vpop.f32.mrb[0].mxu0
      %4823 = vmatprep.mubr.bf16.mxu0 0
      %4824 = vmatmul.mubr.bf16.gmra.mrb[0].mxu0 %v4716
      %v4825 = vpop.f32.mrb[0].mxu0
      %v4826 = vadd.f32 0.0, %v4825
      %v4827 = vpop.f32.mrb[0].mxu0
      %v4828 = vpop.f32.mrb[0].mxu0
      %v4829 = vadd.f32 0.0, %v4828
      %v4830 = vpop.f32.mrb[0].mxu0
      %4831 = vmatprep.mubr.bf16.mxu0 0
      %4832 = vmatmul.mubr.bf16.gmra.mrb[0].mxu0 %v4719
      %v4833 = vpop.f32.mrb[0].mxu0
      %v4834 = vadd.f32 0.0, %v4833
      %v4835 = vpop.f32.mrb[0].mxu0
      %v4836 = vpop.f32.mrb[0].mxu0
      %v4837 = vadd.f32 0.0, %v4836
      %v4838 = vpop.f32.mrb[0].mxu0
      %4839 = vmatprep.mubr.bf16.mxu0 0
      %4840 = vmatmul.mubr.bf16.gmra.mrb[0].mxu0 %v4722
      %v4841 = vpop.f32.mrb[0].mxu0
      %v4842 = vadd.f32 0.0, %v4841
      %v4843 = vpop.f32.mrb[0].mxu0
      %v4844 = vpop.f32.mrb[0].mxu0
      %v4845 = vadd.f32 0.0, %v4844
      %v4846 = vpop.f32.mrb[0].mxu0
      %4847 = vmatprep.mubr.bf16.mxu0 0
      %4848 = vmatmul.mubr.bf16.gmra.mrb[0].mxu0 %v4725
      %v4849 = vpop.f32.mrb[0].mxu0
      %v4850 = vadd.f32 0.0, %v4849
      %v4851 = vpop.f32.mrb[0].mxu0
      %v4852 = vpop.f32.mrb[0].mxu0
      %v4853 = vadd.f32 0.0, %v4852
      %v4854 = vpop.f32.mrb[0].mxu0
      %4855 = vmatprep.mubr.bf16.mxu0 0
      %4856 = vmatmul.mubr.bf16.gmra.mrb[0].mxu0 %v4728
      %v4857 = vpop.f32.mrb[0].mxu0
      %v4858 = vadd.f32 0.0, %v4857
      %v4859 = vpop.f32.mrb[0].mxu0
      %v4860 = vpop.f32.mrb[0].mxu0
      %v4861 = vadd.f32 0.0, %v4860
      %v4862 = vpop.f32.mrb[0].mxu0
      %4863 = vmatprep.mubr.bf16.mxu0 0
      %4864 = vmatmul.mubr.bf16.gmra.mrb[0].mxu0 %v4731
      %v4865 = vpop.f32.mrb[0].mxu0
      %v4866 = vadd.f32 0.0, %v4865
      %v4867 = vpop.f32.mrb[0].mxu0
      %v4868 = vpop.f32.mrb[0].mxu0
      %v4869 = vadd.f32 0.0, %v4868
      %v4870 = vpop.f32.mrb[0].mxu0
      %4871 = vmatprep.mubr.bf16.mxu0 0
      %4872 = vmatmul.mubr.bf16.gmra.mrb[0].mxu0 %v4734
      %v4873 = vpop.f32.mrb[0].mxu0
      %v4874 = vadd.f32 0.0, %v4873
      %v4875 = vpop.f32.mrb[0].mxu0
      %v4876 = vpop.f32.mrb[0].mxu0
      %v4877 = vadd.f32 0.0, %v4876
      %v4878 = vpop.f32.mrb[0].mxu0
      %4879 = vmatprep.mubr.bf16.mxu0 0
      %4880 = vmatmul.mubr.bf16.gmra.mrb[0].mxu0 %v4737
      %v4881 = vpop.f32.mrb[0].mxu0
      %v4882 = vadd.f32 0.0, %v4881
      %v4883 = vpop.f32.mrb[0].mxu0
      %v4884 = vpop.f32.mrb[0].mxu0
      %v4885 = vadd.f32 0.0, %v4884
      %v4886 = vpop.f32.mrb[0].mxu0
      %4887 = vmatprep.mubr.bf16.mxu0 0
      %4888 = vmatmul.mubr.bf16.gmra.mrb[0].mxu0 %v4740
      %v4889 = vpop.f32.mrb[0].mxu0
      %v4890 = vadd.f32 0.0, %v4889
      %v4891 = vpop.f32.mrb[0].mxu0
      %v4892 = vpop.f32.mrb[0].mxu0
      %v4893 = vadd.f32 0.0, %v4892
      %v4894 = vpop.f32.mrb[0].mxu0
      %4895 = vmatprep.mubr.bf16.mxu0 0
      %4896 = vmatmul.mubr.bf16.gmra.mrb[0].mxu0 %v4743
      %v4897 = vpop.f32.mrb[0].mxu0
      %v4898 = vadd.f32 0.0, %v4897
      %v4899 = vpop.f32.mrb[0].mxu0
      %v4900 = vpop.f32.mrb[0].mxu0
      %v4901 = vadd.f32 0.0, %v4900
      %v4902 = vpop.f32.mrb[0].mxu0
      %4903 = vmatprep.mubr.bf16.mxu0 0
      %4904 = vmatmul.mubr.bf16.gmra.mrb[0].mxu0 %v4746
      %v4905 = vpop.f32.mrb[0].mxu0
      %v4906 = vadd.f32 0.0, %v4905
      %v4907 = vpop.f32.mrb[0].mxu0
      %v4908 = vpop.f32.mrb[0].mxu0
      %v4909 = vadd.f32 0.0, %v4908
      %v4910 = vpop.f32.mrb[0].mxu0
      %4911 = vdwg.mxu0
      %v4912 = vmul.f32 %v4786, %v637
      %v4913 = vmul.f32 %v4789, %v642
      %v4914 = vmul.f32 %v4794, %v647
      %v4915 = vmul.f32 %v4797, %v652
      %v4916 = vmul.f32 %v4802, %v657
      %v4917 = vmul.f32 %v4805, %v662
      %v4918 = vmul.f32 %v4810, %v667
      %v4919 = vmul.f32 %v4813, %v672
      %v4920 = vmul.f32 %v4818, %v677
      %v4921 = vmul.f32 %v4821, %v682
      %v4922 = vmul.f32 %v4826, %v687
      %v4923 = vmul.f32 %v4829, %v692
      %v4924 = vmul.f32 %v4834, %v697
      %v4925 = vmul.f32 %v4837, %v702
      %v4926 = vmul.f32 %v4842, %v707
      %v4927 = vmul.f32 %v4845, %v712
      %v4928 = vmul.f32 %v4850, %v717
      %v4929 = vmul.f32 %v4853, %v722
      %v4930 = vmul.f32 %v4858, %v727
      %v4931 = vmul.f32 %v4861, %v732
      %v4932 = vmul.f32 %v4866, %v737
      %v4933 = vmul.f32 %v4869, %v742
      %v4934 = vmul.f32 %v4874, %v747
      %v4935 = vmul.f32 %v4877, %v752
      %v4936 = vmul.f32 %v4882, %v757
      %v4937 = vmul.f32 %v4885, %v762
      %v4938 = vmul.f32 %v4890, %v767
      %v4939 = vmul.f32 %v4893, %v772
      %v4940 = vmul.f32 %v4898, %v777
      %v4941 = vmul.f32 %v4901, %v782
      %v4942 = vmul.f32 %v4906, %v787
      %v4943 = vmul.f32 %v4909, %v792
      %v4944 = vadd.f32 %v4618, %v4912
      %v4945 = vadd.f32 %v4619, %v4913
      %v4946 = vadd.f32 %v4620, %v4914
      %v4947 = vadd.f32 %v4621, %v4915
      %v4948 = vadd.f32 %v4622, %v4916
      %v4949 = vadd.f32 %v4623, %v4917
      %v4950 = vadd.f32 %v4624, %v4918
      %v4951 = vadd.f32 %v4625, %v4919
      %v4952 = vadd.f32 %v4626, %v4920
      %v4953 = vadd.f32 %v4627, %v4921
      %v4954 = vadd.f32 %v4628, %v4922
      %v4955 = vadd.f32 %v4629, %v4923
      %v4956 = vadd.f32 %v4630, %v4924
      %v4957 = vadd.f32 %v4631, %v4925
      %v4958 = vadd.f32 %v4632, %v4926
      %v4959 = vadd.f32 %v4633, %v4927
      %v4960 = vadd.f32 %v4634, %v4928
      %v4961 = vadd.f32 %v4635, %v4929
      %v4962 = vadd.f32 %v4636, %v4930
      %v4963 = vadd.f32 %v4637, %v4931
      %v4964 = vadd.f32 %v4638, %v4932
      %v4965 = vadd.f32 %v4639, %v4933
      %v4966 = vadd.f32 %v4640, %v4934
      %v4967 = vadd.f32 %v4641, %v4935
      %v4968 = vadd.f32 %v4642, %v4936
      %v4969 = vadd.f32 %v4643, %v4937
      %v4970 = vadd.f32 %v4644, %v4938
      %v4971 = vadd.f32 %v4645, %v4939
      %v4972 = vadd.f32 %v4646, %v4940
      %v4973 = vadd.f32 %v4647, %v4941
      %v4974 = vadd.f32 %v4648, %v4942
      %v4975 = vadd.f32 %v4649, %v4943
      %v4976 = vld [vmem:[#allocation2 + $0x18] sm:$0xff]
      %v4977 = vld [vmem:[#allocation2 + $0x20] sm:$0xff]
      %v4978 = vld [vmem:[#allocation2 + $0x28] sm:$0xff]
      %v4979 = vld [vmem:[#allocation2 + $0x30] sm:$0xff]
      %v4980 = vld [vmem:[#allocation2 + $0x38] sm:$0xff]
      %v4981 = vld [vmem:[#allocation2 + $0x40] sm:$0xff]
      %v4982 = vld [vmem:[#allocation2 + $0x48] sm:$0xff]
      %v4983 = vld [vmem:[#allocation2 + $0x50] sm:$0xff]
      %v4984 = vld [vmem:[#allocation2 + $0x58] sm:$0xff]
      %v4985 = vld [vmem:[#allocation2 + $0x60] sm:$0xff]
      %v4986 = vld [vmem:[#allocation2 + $0x68] sm:$0xff]
      %v4987 = vld [vmem:[#allocation2 + $0x70] sm:$0xff]
      %v4988 = vld [vmem:[#allocation2 + $0x78] sm:$0xff]
      %v4989 = vld [vmem:[#allocation2 + $0x80] sm:$0xff]
      %v4990 = vld [vmem:[#allocation2 + $0x88] sm:$0xff]
      %v4991 = vld [vmem:[#allocation2 + $0x90] sm:$0xff]
      %v4992 = vld [vmem:[#allocation2 + $0x98] sm:$0xff]
      %v4993 = vld [vmem:[#allocation2 + $0xa0] sm:$0xff]
      %v4994 = vld [vmem:[#allocation2 + $0xa8] sm:$0xff]
      %v4995 = vld [vmem:[#allocation2 + $0xb0] sm:$0xff]
      %v4996 = vld [vmem:[#allocation2 + $0xb8] sm:$0xff]
      %v4997 = vld [vmem:[#allocation2 + $0xc0] sm:$0xff]
      %v4998 = vld [vmem:[#allocation2 + $0xc8] sm:$0xff]
      %v4999 = vld [vmem:[#allocation2 + $0xd0] sm:$0xff]
      %v5000 = vld [vmem:[#allocation2 + $0xd8] sm:$0xff]
      %v5001 = vld [vmem:[#allocation2 + $0xe0] sm:$0xff]
      %v5002 = vld [vmem:[#allocation2 + $0xe8] sm:$0xff]
      %v5003 = vld [vmem:[#allocation2 + $0xf0] sm:$0xff]
      %v5004 = vld [vmem:[#allocation2 + $0xf8] sm:$0xff]
      %v5005 = vld [vmem:[#allocation2 + $0x100] sm:$0xff]
      %v5006 = vld [vmem:[#allocation2 + $0x108] sm:$0xff]
      %v5007 = vld [vmem:[#allocation2 + $0x110] sm:$0xff]
      %v5008 = vpack.c.bf16 %v4977, %v4976
      %v5009 = vpack.c.bf16 %v4979, %v4978
      %v5010 = vpack.c.bf16 %v4981, %v4980
      %v5011 = vpack.c.bf16 %v4983, %v4982
      %v5012 = vpack.c.bf16 %v4985, %v4984
      %v5013 = vpack.c.bf16 %v4987, %v4986
      %v5014 = vpack.c.bf16 %v4989, %v4988
      %v5015 = vpack.c.bf16 %v4991, %v4990
      %v5016 = vpack.c.bf16 %v4993, %v4992
      %v5017 = vpack.c.bf16 %v4995, %v4994
      %v5018 = vpack.c.bf16 %v4997, %v4996
      %v5019 = vpack.c.bf16 %v4999, %v4998
      %v5020 = vpack.c.bf16 %v5001, %v5000
      %v5021 = vpack.c.bf16 %v5003, %v5002
      %v5022 = vpack.c.bf16 %v5005, %v5004
      %v5023 = vpack.c.bf16 %v5007, %v5006
      %s5024 = scalar_lea.vmem %s3, 16
      %v5025 = vld [vmem:[%s5024] sm:$0xf]
      %v5027 = vsel %vm3665, %v5008, 0
      %v5030 = vsel %vm3665, %v5009, 0
      %v5033 = vsel %vm3665, %v5010, 0
      %v5036 = vsel %vm3665, %v5011, 0
      %v5039 = vsel %vm3665, %v5012, 0
      %v5042 = vsel %vm3665, %v5013, 0
      %v5045 = vsel %vm3665, %v5014, 0
      %v5048 = vsel %vm3665, %v5015, 0
      %v5051 = vsel %vm3665, %v5016, 0
      %v5054 = vsel %vm3665, %v5017, 0
      %v5057 = vsel %vm3665, %v5018, 0
      %v5060 = vsel %vm3665, %v5019, 0
      %v5063 = vsel %vm3665, %v5020, 0
      %v5066 = vsel %vm3665, %v5021, 0
      %v5069 = vsel %vm3665, %v5022, 0
      %v5072 = vsel %vm3665, %v5023, 0
      %v5075 = vsel %vm3801, %v5025, 0
      %5077 = vmatprep.subr.bf16.mxu0 0
      %5078 = vmatpush1.bf16.msra.mxu0 %v5075
      %5079 = vmatprep.subr.bf16.mxu0 0
      %5080 = vmatpush1.bf16.msra.mxu0 0
      %5081 = vmatprep.subr.bf16.mxu0 0
      %5082 = vmatpush1.bf16.msra.mxu0 0
      %5083 = vmatprep.subr.bf16.mxu0 0
      %5084 = vmatpush1.bf16.msra.mxu0 0
      %5085 = vmatprep.subr.bf16.mxu0 0
      %5086 = vmatpush1.bf16.msra.mxu0 0
      %5087 = vmatprep.subr.bf16.mxu0 0
      %5088 = vmatpush1.bf16.msra.mxu0 0
      %5089 = vmatprep.subr.bf16.mxu0 0
      %5090 = vmatpush1.bf16.msra.mxu0 0
      %5091 = vmatprep.subr.bf16.mxu0 0
      %5092 = vmatpush1.bf16.msra.mxu0 0
      %5093 = vmatprep.subr.bf16.mxu0 0
      %5094 = vmatpush1.bf16.msra.mxu0 0
      %5095 = vmatprep.subr.bf16.mxu0 0
      %5096 = vmatpush1.bf16.msra.mxu0 0
      %5097 = vmatprep.subr.bf16.mxu0 0
      %5098 = vmatpush1.bf16.msra.mxu0 0
      %5099 = vmatprep.subr.bf16.mxu0 0
      %5100 = vmatpush1.bf16.msra.mxu0 0
      %5101 = vmatprep.subr.bf16.mxu0 0
      %5102 = vmatpush1.bf16.msra.mxu0 0
      %5103 = vmatprep.subr.bf16.mxu0 0
      %5104 = vmatpush1.bf16.msra.mxu0 0
      %5105 = vmatprep.subr.bf16.mxu0 0
      %5106 = vmatpush1.bf16.msra.mxu0 0
      %5107 = vmatprep.subr.bf16.mxu0 0
      %5108 = vmatpush1.bf16.msra.mxu0 0
      %5109 = vmatprep.mubr.bf16.mxu0 0
      %5110 = vmatmul.mubr.bf16.gmra.mrb[0].mxu0 %v5027
      %v5111 = vpop.f32.mrb[0].mxu0
      %v5112 = vadd.f32 0.0, %v5111
      %v5113 = vpop.f32.mrb[0].mxu0
      %v5114 = vpop.f32.mrb[0].mxu0
      %v5115 = vadd.f32 0.0, %v5114
      %v5116 = vpop.f32.mrb[0].mxu0
      %5117 = vmatprep.mubr.bf16.mxu0 0
      %5118 = vmatmul.mubr.bf16.gmra.mrb[0].mxu0 %v5030
      %v5119 = vpop.f32.mrb[0].mxu0
      %v5120 = vadd.f32 0.0, %v5119
      %v5121 = vpop.f32.mrb[0].mxu0
      %v5122 = vpop.f32.mrb[0].mxu0
      %v5123 = vadd.f32 0.0, %v5122
      %v5124 = vpop.f32.mrb[0].mxu0
      %5125 = vmatprep.mubr.bf16.mxu0 0
      %5126 = vmatmul.mubr.bf16.gmra.mrb[0].mxu0 %v5033
      %v5127 = vpop.f32.mrb[0].mxu0
      %v5128 = vadd.f32 0.0, %v5127
      %v5129 = vpop.f32.mrb[0].mxu0
      %v5130 = vpop.f32.mrb[0].mxu0
      %v5131 = vadd.f32 0.0, %v5130
      %v5132 = vpop.f32.mrb[0].mxu0
      %5133 = vmatprep.mubr.bf16.mxu0 0
      %5134 = vmatmul.mubr.bf16.gmra.mrb[0].mxu0 %v5036
      %v5135 = vpop.f32.mrb[0].mxu0
      %v5136 = vadd.f32 0.0, %v5135
      %v5137 = vpop.f32.mrb[0].mxu0
      %v5138 = vpop.f32.mrb[0].mxu0
      %v5139 = vadd.f32 0.0, %v5138
      %v5140 = vpop.f32.mrb[0].mxu0
      %5141 = vmatprep.mubr.bf16.mxu0 0
      %5142 = vmatmul.mubr.bf16.gmra.mrb[0].mxu0 %v5039
      %v5143 = vpop.f32.mrb[0].mxu0
      %v5144 = vadd.f32 0.0, %v5143
      %v5145 = vpop.f32.mrb[0].mxu0
      %v5146 = vpop.f32.mrb[0].mxu0
      %v5147 = vadd.f32 0.0, %v5146
      %v5148 = vpop.f32.mrb[0].mxu0
      %5149 = vmatprep.mubr.bf16.mxu0 0
      %5150 = vmatmul.mubr.bf16.gmra.mrb[0].mxu0 %v5042
      %v5151 = vpop.f32.mrb[0].mxu0
      %v5152 = vadd.f32 0.0, %v5151
      %v5153 = vpop.f32.mrb[0].mxu0
      %v5154 = vpop.f32.mrb[0].mxu0
      %v5155 = vadd.f32 0.0, %v5154
      %v5156 = vpop.f32.mrb[0].mxu0
      %5157 = vmatprep.mubr.bf16.mxu0 0
      %5158 = vmatmul.mubr.bf16.gmra.mrb[0].mxu0 %v5045
      %v5159 = vpop.f32.mrb[0].mxu0
      %v5160 = vadd.f32 0.0, %v5159
      %v5161 = vpop.f32.mrb[0].mxu0
      %v5162 = vpop.f32.mrb[0].mxu0
      %v5163 = vadd.f32 0.0, %v5162
      %v5164 = vpop.f32.mrb[0].mxu0
      %5165 = vmatprep.mubr.bf16.mxu0 0
      %5166 = vmatmul.mubr.bf16.gmra.mrb[0].mxu0 %v5048
      %v5167 = vpop.f32.mrb[0].mxu0
      %v5168 = vadd.f32 0.0, %v5167
      %v5169 = vpop.f32.mrb[0].mxu0
      %v5170 = vpop.f32.mrb[0].mxu0
      %v5171 = vadd.f32 0.0, %v5170
      %v5172 = vpop.f32.mrb[0].mxu0
      %5173 = vmatprep.mubr.bf16.mxu0 0
      %5174 = vmatmul.mubr.bf16.gmra.mrb[0].mxu0 %v5051
      %v5175 = vpop.f32.mrb[0].mxu0
      %v5176 = vadd.f32 0.0, %v5175
      %v5177 = vpop.f32.mrb[0].mxu0
      %v5178 = vpop.f32.mrb[0].mxu0
      %v5179 = vadd.f32 0.0, %v5178
      %v5180 = vpop.f32.mrb[0].mxu0
      %5181 = vmatprep.mubr.bf16.mxu0 0
      %5182 = vmatmul.mubr.bf16.gmra.mrb[0].mxu0 %v5054
      %v5183 = vpop.f32.mrb[0].mxu0
      %v5184 = vadd.f32 0.0, %v5183
      %v5185 = vpop.f32.mrb[0].mxu0
      %v5186 = vpop.f32.mrb[0].mxu0
      %v5187 = vadd.f32 0.0, %v5186
      %v5188 = vpop.f32.mrb[0].mxu0
      %5189 = vmatprep.mubr.bf16.mxu0 0
      %5190 = vmatmul.mubr.bf16.gmra.mrb[0].mxu0 %v5057
      %v5191 = vpop.f32.mrb[0].mxu0
      %v5192 = vadd.f32 0.0, %v5191
      %v5193 = vpop.f32.mrb[0].mxu0
      %v5194 = vpop.f32.mrb[0].mxu0
      %v5195 = vadd.f32 0.0, %v5194
      %v5196 = vpop.f32.mrb[0].mxu0
      %5197 = vmatprep.mubr.bf16.mxu0 0
      %5198 = vmatmul.mubr.bf16.gmra.mrb[0].mxu0 %v5060
      %v5199 = vpop.f32.mrb[0].mxu0
      %v5200 = vadd.f32 0.0, %v5199
      %v5201 = vpop.f32.mrb[0].mxu0
      %v5202 = vpop.f32.mrb[0].mxu0
      %v5203 = vadd.f32 0.0, %v5202
      %v5204 = vpop.f32.mrb[0].mxu0
      %5205 = vmatprep.mubr.bf16.mxu0 0
      %5206 = vmatmul.mubr.bf16.gmra.mrb[0].mxu0 %v5063
      %v5207 = vpop.f32.mrb[0].mxu0
      %v5208 = vadd.f32 0.0, %v5207
      %v5209 = vpop.f32.mrb[0].mxu0
      %v5210 = vpop.f32.mrb[0].mxu0
      %v5211 = vadd.f32 0.0, %v5210
      %v5212 = vpop.f32.mrb[0].mxu0
      %5213 = vmatprep.mubr.bf16.mxu0 0
      %5214 = vmatmul.mubr.bf16.gmra.mrb[0].mxu0 %v5066
      %v5215 = vpop.f32.mrb[0].mxu0
      %v5216 = vadd.f32 0.0, %v5215
      %v5217 = vpop.f32.mrb[0].mxu0
      %v5218 = vpop.f32.mrb[0].mxu0
      %v5219 = vadd.f32 0.0, %v5218
      %v5220 = vpop.f32.mrb[0].mxu0
      %5221 = vmatprep.mubr.bf16.mxu0 0
      %5222 = vmatmul.mubr.bf16.gmra.mrb[0].mxu0 %v5069
      %v5223 = vpop.f32.mrb[0].mxu0
      %v5224 = vadd.f32 0.0, %v5223
      %v5225 = vpop.f32.mrb[0].mxu0
      %v5226 = vpop.f32.mrb[0].mxu0
      %v5227 = vadd.f32 0.0, %v5226
      %v5228 = vpop.f32.mrb[0].mxu0
      %5229 = vmatprep.mubr.bf16.mxu0 0
      %5230 = vmatmul.mubr.bf16.gmra.mrb[0].mxu0 %v5072
      %v5231 = vpop.f32.mrb[0].mxu0
      %v5232 = vadd.f32 0.0, %v5231
      %v5233 = vpop.f32.mrb[0].mxu0
      %v5234 = vpop.f32.mrb[0].mxu0
      %v5235 = vadd.f32 0.0, %v5234
      %v5236 = vpop.f32.mrb[0].mxu0
      %5237 = vdwg.mxu0
      %v5238 = vadd.f32 %v4944, %v5112
      %v5239 = vadd.f32 %v4945, %v5115
      %v5240 = vadd.f32 %v4946, %v5120
      %v5241 = vadd.f32 %v4947, %v5123
      %v5242 = vadd.f32 %v4948, %v5128
      %v5243 = vadd.f32 %v4949, %v5131
      %v5244 = vadd.f32 %v4950, %v5136
      %v5245 = vadd.f32 %v4951, %v5139
      %v5246 = vadd.f32 %v4952, %v5144
      %v5247 = vadd.f32 %v4953, %v5147
      %v5248 = vadd.f32 %v4954, %v5152
      %v5249 = vadd.f32 %v4955, %v5155
      %v5250 = vadd.f32 %v4956, %v5160
      %v5251 = vadd.f32 %v4957, %v5163
      %v5252 = vadd.f32 %v4958, %v5168
      %v5253 = vadd.f32 %v4959, %v5171
      %v5254 = vadd.f32 %v4960, %v5176
      %v5255 = vadd.f32 %v4961, %v5179
      %v5256 = vadd.f32 %v4962, %v5184
      %v5257 = vadd.f32 %v4963, %v5187
      %v5258 = vadd.f32 %v4964, %v5192
      %v5259 = vadd.f32 %v4965, %v5195
      %v5260 = vadd.f32 %v4966, %v5200
      %v5261 = vadd.f32 %v4967, %v5203
      %v5262 = vadd.f32 %v4968, %v5208
      %v5263 = vadd.f32 %v4969, %v5211
      %v5264 = vadd.f32 %v4970, %v5216
      %v5265 = vadd.f32 %v4971, %v5219
      %v5266 = vadd.f32 %v4972, %v5224
      %v5267 = vadd.f32 %v4973, %v5227
      %v5268 = vadd.f32 %v4974, %v5232
      %v5269 = vadd.f32 %v4975, %v5235
      %v5270 = vld [vmem:[#allocation2 + $0x19] sm:$0xff]
      %v5271 = vld [vmem:[#allocation2 + $0x21] sm:$0xff]
      %v5272 = vld [vmem:[#allocation2 + $0x29] sm:$0xff]
      %v5273 = vld [vmem:[#allocation2 + $0x31] sm:$0xff]
      %v5274 = vld [vmem:[#allocation2 + $0x39] sm:$0xff]
      %v5275 = vld [vmem:[#allocation2 + $0x41] sm:$0xff]
      %v5276 = vld [vmem:[#allocation2 + $0x49] sm:$0xff]
      %v5277 = vld [vmem:[#allocation2 + $0x51] sm:$0xff]
      %v5278 = vld [vmem:[#allocation2 + $0x59] sm:$0xff]
      %v5279 = vld [vmem:[#allocation2 + $0x61] sm:$0xff]
      %v5280 = vld [vmem:[#allocation2 + $0x69] sm:$0xff]
      %v5281 = vld [vmem:[#allocation2 + $0x71] sm:$0xff]
      %v5282 = vld [vmem:[#allocation2 + $0x79] sm:$0xff]
      %v5283 = vld [vmem:[#allocation2 + $0x81] sm:$0xff]
      %v5284 = vld [vmem:[#allocation2 + $0x89] sm:$0xff]
      %v5285 = vld [vmem:[#allocation2 + $0x91] sm:$0xff]
      %v5286 = vld [vmem:[#allocation2 + $0x99] sm:$0xff]
      %v5287 = vld [vmem:[#allocation2 + $0xa1] sm:$0xff]
      %v5288 = vld [vmem:[#allocation2 + $0xa9] sm:$0xff]
      %v5289 = vld [vmem:[#allocation2 + $0xb1] sm:$0xff]
      %v5290 = vld [vmem:[#allocation2 + $0xb9] sm:$0xff]
      %v5291 = vld [vmem:[#allocation2 + $0xc1] sm:$0xff]
      %v5292 = vld [vmem:[#allocation2 + $0xc9] sm:$0xff]
      %v5293 = vld [vmem:[#allocation2 + $0xd1] sm:$0xff]
      %v5294 = vld [vmem:[#allocation2 + $0xd9] sm:$0xff]
      %v5295 = vld [vmem:[#allocation2 + $0xe1] sm:$0xff]
      %v5296 = vld [vmem:[#allocation2 + $0xe9] sm:$0xff]
      %v5297 = vld [vmem:[#allocation2 + $0xf1] sm:$0xff]
      %v5298 = vld [vmem:[#allocation2 + $0xf9] sm:$0xff]
      %v5299 = vld [vmem:[#allocation2 + $0x101] sm:$0xff]
      %v5300 = vld [vmem:[#allocation2 + $0x109] sm:$0xff]
      %v5301 = vld [vmem:[#allocation2 + $0x111] sm:$0xff]
      %v5302 = vpack.c.bf16 %v5271, %v5270
      %v5303 = vpack.c.bf16 %v5273, %v5272
      %v5304 = vpack.c.bf16 %v5275, %v5274
      %v5305 = vpack.c.bf16 %v5277, %v5276
      %v5306 = vpack.c.bf16 %v5279, %v5278
      %v5307 = vpack.c.bf16 %v5281, %v5280
      %v5308 = vpack.c.bf16 %v5283, %v5282
      %v5309 = vpack.c.bf16 %v5285, %v5284
      %v5310 = vpack.c.bf16 %v5287, %v5286
      %v5311 = vpack.c.bf16 %v5289, %v5288
      %v5312 = vpack.c.bf16 %v5291, %v5290
      %v5313 = vpack.c.bf16 %v5293, %v5292
      %v5314 = vpack.c.bf16 %v5295, %v5294
      %v5315 = vpack.c.bf16 %v5297, %v5296
      %v5316 = vpack.c.bf16 %v5299, %v5298
      %v5317 = vpack.c.bf16 %v5301, %v5300
      %s5318 = scalar_lea.vmem %s3, 20
      %v5319 = vld [vmem:[%s5318] sm:$0xf]
      %v5321 = vsel %vm3665, %v5302, 0
      %v5324 = vsel %vm3665, %v5303, 0
      %v5327 = vsel %vm3665, %v5304, 0
      %v5330 = vsel %vm3665, %v5305, 0
      %v5333 = vsel %vm3665, %v5306, 0
      %v5336 = vsel %vm3665, %v5307, 0
      %v5339 = vsel %vm3665, %v5308, 0
      %v5342 = vsel %vm3665, %v5309, 0
      %v5345 = vsel %vm3665, %v5310, 0
      %v5348 = vsel %vm3665, %v5311, 0
      %v5351 = vsel %vm3665, %v5312, 0
      %v5354 = vsel %vm3665, %v5313, 0
      %v5357 = vsel %vm3665, %v5314, 0
      %v5360 = vsel %vm3665, %v5315, 0
      %v5363 = vsel %vm3665, %v5316, 0
      %v5366 = vsel %vm3665, %v5317, 0
      %v5369 = vsel %vm3801, %v5319, 0
      %5371 = vmatprep.subr.bf16.mxu0 0
      %5372 = vmatpush1.bf16.msra.mxu0 %v5369
      %5373 = vmatprep.subr.bf16.mxu0 0
      %5374 = vmatpush1.bf16.msra.mxu0 0
      %5375 = vmatprep.subr.bf16.mxu0 0
      %5376 = vmatpush1.bf16.msra.mxu0 0
      %5377 = vmatprep.subr.bf16.mxu0 0
      %5378 = vmatpush1.bf16.msra.mxu0 0
      %5379 = vmatprep.subr.bf16.mxu0 0
      %5380 = vmatpush1.bf16.msra.mxu0 0
      %5381 = vmatprep.subr.bf16.mxu0 0
      %5382 = vmatpush1.bf16.msra.mxu0 0
      %5383 = vmatprep.subr.bf16.mxu0 0
      %5384 = vmatpush1.bf16.msra.mxu0 0
      %5385 = vmatprep.subr.bf16.mxu0 0
      %5386 = vmatpush1.bf16.msra.mxu0 0
      %5387 = vmatprep.subr.bf16.mxu0 0
      %5388 = vmatpush1.bf16.msra.mxu0 0
      %5389 = vmatprep.subr.bf16.mxu0 0
      %5390 = vmatpush1.bf16.msra.mxu0 0
      %5391 = vmatprep.subr.bf16.mxu0 0
      %5392 = vmatpush1.bf16.msra.mxu0 0
      %5393 = vmatprep.subr.bf16.mxu0 0
      %5394 = vmatpush1.bf16.msra.mxu0 0
      %5395 = vmatprep.subr.bf16.mxu0 0
      %5396 = vmatpush1.bf16.msra.mxu0 0
      %5397 = vmatprep.subr.bf16.mxu0 0
      %5398 = vmatpush1.bf16.msra.mxu0 0
      %5399 = vmatprep.subr.bf16.mxu0 0
      %5400 = vmatpush1.bf16.msra.mxu0 0
      %5401 = vmatprep.subr.bf16.mxu0 0
      %5402 = vmatpush1.bf16.msra.mxu0 0
      %5403 = vmatprep.mubr.bf16.mxu0 0
      %5404 = vmatmul.mubr.bf16.gmra.mrb[0].mxu0 %v5321
      %v5405 = vpop.f32.mrb[0].mxu0
      %v5406 = vadd.f32 0.0, %v5405
      %v5407 = vpop.f32.mrb[0].mxu0
      %v5408 = vpop.f32.mrb[0].mxu0
      %v5409 = vadd.f32 0.0, %v5408
      %v5410 = vpop.f32.mrb[0].mxu0
      %5411 = vmatprep.mubr.bf16.mxu0 0
      %5412 = vmatmul.mubr.bf16.gmra.mrb[0].mxu0 %v5324
      %v5413 = vpop.f32.mrb[0].mxu0
      %v5414 = vadd.f32 0.0, %v5413
      %v5415 = vpop.f32.mrb[0].mxu0
      %v5416 = vpop.f32.mrb[0].mxu0
      %v5417 = vadd.f32 0.0, %v5416
      %v5418 = vpop.f32.mrb[0].mxu0
      %5419 = vmatprep.mubr.bf16.mxu0 0
      %5420 = vmatmul.mubr.bf16.gmra.mrb[0].mxu0 %v5327
      %v5421 = vpop.f32.mrb[0].mxu0
      %v5422 = vadd.f32 0.0, %v5421
      %v5423 = vpop.f32.mrb[0].mxu0
      %v5424 = vpop.f32.mrb[0].mxu0
      %v5425 = vadd.f32 0.0, %v5424
      %v5426 = vpop.f32.mrb[0].mxu0
      %5427 = vmatprep.mubr.bf16.mxu0 0
      %5428 = vmatmul.mubr.bf16.gmra.mrb[0].mxu0 %v5330
      %v5429 = vpop.f32.mrb[0].mxu0
      %v5430 = vadd.f32 0.0, %v5429
      %v5431 = vpop.f32.mrb[0].mxu0
      %v5432 = vpop.f32.mrb[0].mxu0
      %v5433 = vadd.f32 0.0, %v5432
      %v5434 = vpop.f32.mrb[0].mxu0
      %5435 = vmatprep.mubr.bf16.mxu0 0
      %5436 = vmatmul.mubr.bf16.gmra.mrb[0].mxu0 %v5333
      %v5437 = vpop.f32.mrb[0].mxu0
      %v5438 = vadd.f32 0.0, %v5437
      %v5439 = vpop.f32.mrb[0].mxu0
      %v5440 = vpop.f32.mrb[0].mxu0
      %v5441 = vadd.f32 0.0, %v5440
      %v5442 = vpop.f32.mrb[0].mxu0
      %5443 = vmatprep.mubr.bf16.mxu0 0
      %5444 = vmatmul.mubr.bf16.gmra.mrb[0].mxu0 %v5336
      %v5445 = vpop.f32.mrb[0].mxu0
      %v5446 = vadd.f32 0.0, %v5445
      %v5447 = vpop.f32.mrb[0].mxu0
      %v5448 = vpop.f32.mrb[0].mxu0
      %v5449 = vadd.f32 0.0, %v5448
      %v5450 = vpop.f32.mrb[0].mxu0
      %5451 = vmatprep.mubr.bf16.mxu0 0
      %5452 = vmatmul.mubr.bf16.gmra.mrb[0].mxu0 %v5339
      %v5453 = vpop.f32.mrb[0].mxu0
      %v5454 = vadd.f32 0.0, %v5453
      %v5455 = vpop.f32.mrb[0].mxu0
      %v5456 = vpop.f32.mrb[0].mxu0
      %v5457 = vadd.f32 0.0, %v5456
      %v5458 = vpop.f32.mrb[0].mxu0
      %5459 = vmatprep.mubr.bf16.mxu0 0
      %5460 = vmatmul.mubr.bf16.gmra.mrb[0].mxu0 %v5342
      %v5461 = vpop.f32.mrb[0].mxu0
      %v5462 = vadd.f32 0.0, %v5461
      %v5463 = vpop.f32.mrb[0].mxu0
      %v5464 = vpop.f32.mrb[0].mxu0
      %v5465 = vadd.f32 0.0, %v5464
      %v5466 = vpop.f32.mrb[0].mxu0
      %5467 = vmatprep.mubr.bf16.mxu0 0
      %5468 = vmatmul.mubr.bf16.gmra.mrb[0].mxu0 %v5345
      %v5469 = vpop.f32.mrb[0].mxu0
      %v5470 = vadd.f32 0.0, %v5469
      %v5471 = vpop.f32.mrb[0].mxu0
      %v5472 = vpop.f32.mrb[0].mxu0
      %v5473 = vadd.f32 0.0, %v5472
      %v5474 = vpop.f32.mrb[0].mxu0
      %5475 = vmatprep.mubr.bf16.mxu0 0
      %5476 = vmatmul.mubr.bf16.gmra.mrb[0].mxu0 %v5348
      %v5477 = vpop.f32.mrb[0].mxu0
      %v5478 = vadd.f32 0.0, %v5477
      %v5479 = vpop.f32.mrb[0].mxu0
      %v5480 = vpop.f32.mrb[0].mxu0
      %v5481 = vadd.f32 0.0, %v5480
      %v5482 = vpop.f32.mrb[0].mxu0
      %5483 = vmatprep.mubr.bf16.mxu0 0
      %5484 = vmatmul.mubr.bf16.gmra.mrb[0].mxu0 %v5351
      %v5485 = vpop.f32.mrb[0].mxu0
      %v5486 = vadd.f32 0.0, %v5485
      %v5487 = vpop.f32.mrb[0].mxu0
      %v5488 = vpop.f32.mrb[0].mxu0
      %v5489 = vadd.f32 0.0, %v5488
      %v5490 = vpop.f32.mrb[0].mxu0
      %5491 = vmatprep.mubr.bf16.mxu0 0
      %5492 = vmatmul.mubr.bf16.gmra.mrb[0].mxu0 %v5354
      %v5493 = vpop.f32.mrb[0].mxu0
      %v5494 = vadd.f32 0.0, %v5493
      %v5495 = vpop.f32.mrb[0].mxu0
      %v5496 = vpop.f32.mrb[0].mxu0
      %v5497 = vadd.f32 0.0, %v5496
      %v5498 = vpop.f32.mrb[0].mxu0
      %5499 = vmatprep.mubr.bf16.mxu0 0
      %5500 = vmatmul.mubr.bf16.gmra.mrb[0].mxu0 %v5357
      %v5501 = vpop.f32.mrb[0].mxu0
      %v5502 = vadd.f32 0.0, %v5501
      %v5503 = vpop.f32.mrb[0].mxu0
      %v5504 = vpop.f32.mrb[0].mxu0
      %v5505 = vadd.f32 0.0, %v5504
      %v5506 = vpop.f32.mrb[0].mxu0
      %5507 = vmatprep.mubr.bf16.mxu0 0
      %5508 = vmatmul.mubr.bf16.gmra.mrb[0].mxu0 %v5360
      %v5509 = vpop.f32.mrb[0].mxu0
      %v5510 = vadd.f32 0.0, %v5509
      %v5511 = vpop.f32.mrb[0].mxu0
      %v5512 = vpop.f32.mrb[0].mxu0
      %v5513 = vadd.f32 0.0, %v5512
      %v5514 = vpop.f32.mrb[0].mxu0
      %5515 = vmatprep.mubr.bf16.mxu0 0
      %5516 = vmatmul.mubr.bf16.gmra.mrb[0].mxu0 %v5363
      %v5517 = vpop.f32.mrb[0].mxu0
      %v5518 = vadd.f32 0.0, %v5517
      %v5519 = vpop.f32.mrb[0].mxu0
      %v5520 = vpop.f32.mrb[0].mxu0
      %v5521 = vadd.f32 0.0, %v5520
      %v5522 = vpop.f32.mrb[0].mxu0
      %5523 = vmatprep.mubr.bf16.mxu0 0
      %5524 = vmatmul.mubr.bf16.gmra.mrb[0].mxu0 %v5366
      %v5525 = vpop.f32.mrb[0].mxu0
      %v5526 = vadd.f32 0.0, %v5525
      %v5527 = vpop.f32.mrb[0].mxu0
      %v5528 = vpop.f32.mrb[0].mxu0
      %v5529 = vadd.f32 0.0, %v5528
      %v5530 = vpop.f32.mrb[0].mxu0
      %5531 = vdwg.mxu0
      %v5532 = vmul.f32 %v5406, %v1417
      %v5533 = vmul.f32 %v5409, %v1422
      %v5534 = vmul.f32 %v5414, %v1427
      %v5535 = vmul.f32 %v5417, %v1432
      %v5536 = vmul.f32 %v5422, %v1437
      %v5537 = vmul.f32 %v5425, %v1442
      %v5538 = vmul.f32 %v5430, %v1447
      %v5539 = vmul.f32 %v5433, %v1452
      %v5540 = vmul.f32 %v5438, %v1457
      %v5541 = vmul.f32 %v5441, %v1462
      %v5542 = vmul.f32 %v5446, %v1467
      %v5543 = vmul.f32 %v5449, %v1472
      %v5544 = vmul.f32 %v5454, %v1477
      %v5545 = vmul.f32 %v5457, %v1482
      %v5546 = vmul.f32 %v5462, %v1487
      %v5547 = vmul.f32 %v5465, %v1492
      %v5548 = vmul.f32 %v5470, %v1497
      %v5549 = vmul.f32 %v5473, %v1502
      %v5550 = vmul.f32 %v5478, %v1507
      %v5551 = vmul.f32 %v5481, %v1512
      %v5552 = vmul.f32 %v5486, %v1517
      %v5553 = vmul.f32 %v5489, %v1522
      %v5554 = vmul.f32 %v5494, %v1527
      %v5555 = vmul.f32 %v5497, %v1532
      %v5556 = vmul.f32 %v5502, %v1537
      %v5557 = vmul.f32 %v5505, %v1542
      %v5558 = vmul.f32 %v5510, %v1547
      %v5559 = vmul.f32 %v5513, %v1552
      %v5560 = vmul.f32 %v5518, %v1557
      %v5561 = vmul.f32 %v5521, %v1562
      %v5562 = vmul.f32 %v5526, %v1567
      %v5563 = vmul.f32 %v5529, %v1572
      %v5564 = vadd.f32 %v5238, %v5532
      %v5565 = vadd.f32 %v5239, %v5533
      %v5566 = vadd.f32 %v5240, %v5534
      %v5567 = vadd.f32 %v5241, %v5535
      %v5568 = vadd.f32 %v5242, %v5536
      %v5569 = vadd.f32 %v5243, %v5537
      %v5570 = vadd.f32 %v5244, %v5538
      %v5571 = vadd.f32 %v5245, %v5539
      %v5572 = vadd.f32 %v5246, %v5540
      %v5573 = vadd.f32 %v5247, %v5541
      %v5574 = vadd.f32 %v5248, %v5542
      %v5575 = vadd.f32 %v5249, %v5543
      %v5576 = vadd.f32 %v5250, %v5544
      %v5577 = vadd.f32 %v5251, %v5545
      %v5578 = vadd.f32 %v5252, %v5546
      %v5579 = vadd.f32 %v5253, %v5547
      %v5580 = vadd.f32 %v5254, %v5548
      %v5581 = vadd.f32 %v5255, %v5549
      %v5582 = vadd.f32 %v5256, %v5550
      %v5583 = vadd.f32 %v5257, %v5551
      %v5584 = vadd.f32 %v5258, %v5552
      %v5585 = vadd.f32 %v5259, %v5553
      %v5586 = vadd.f32 %v5260, %v5554
      %v5587 = vadd.f32 %v5261, %v5555
      %v5588 = vadd.f32 %v5262, %v5556
      %v5589 = vadd.f32 %v5263, %v5557
      %v5590 = vadd.f32 %v5264, %v5558
      %v5591 = vadd.f32 %v5265, %v5559
      %v5592 = vadd.f32 %v5266, %v5560
      %v5593 = vadd.f32 %v5267, %v5561
      %v5594 = vadd.f32 %v5268, %v5562
      %v5595 = vadd.f32 %v5269, %v5563
      %v5596 = vld [vmem:[#allocation2 + $0x27] sm:$0xff]
      %v5597 = vld [vmem:[#allocation2 + $0x2f] sm:$0xff]
      %v5598 = vld [vmem:[#allocation2 + $0x37] sm:$0xff]
      %v5599 = vld [vmem:[#allocation2 + $0x3f] sm:$0xff]
      %v5600 = vld [vmem:[#allocation2 + $0x47] sm:$0xff]
      %v5601 = vld [vmem:[#allocation2 + $0x4f] sm:$0xff]
      %v5602 = vld [vmem:[#allocation2 + $0x57] sm:$0xff]
      %v5603 = vld [vmem:[#allocation2 + $0x5f] sm:$0xff]
      %v5604 = vld [vmem:[#allocation2 + $0x67] sm:$0xff]
      %v5605 = vld [vmem:[#allocation2 + $0x6f] sm:$0xff]
      %v5606 = vld [vmem:[#allocation2 + $0x77] sm:$0xff]
      %v5607 = vld [vmem:[#allocation2 + $0x7f] sm:$0xff]
      %v5608 = vld [vmem:[#allocation2 + $0x87] sm:$0xff]
      %v5609 = vld [vmem:[#allocation2 + $0x8f] sm:$0xff]
      %v5610 = vld [vmem:[#allocation2 + $0x97] sm:$0xff]
      %v5611 = vld [vmem:[#allocation2 + $0x9f] sm:$0xff]
      %v5612 = vld [vmem:[#allocation2 + $0xa7] sm:$0xff]
      %v5613 = vld [vmem:[#allocation2 + $0xaf] sm:$0xff]
      %v5614 = vld [vmem:[#allocation2 + $0xb7] sm:$0xff]
      %v5615 = vld [vmem:[#allocation2 + $0xbf] sm:$0xff]
      %v5616 = vld [vmem:[#allocation2 + $0xc7] sm:$0xff]
      %v5617 = vld [vmem:[#allocation2 + $0xcf] sm:$0xff]
      %v5618 = vld [vmem:[#allocation2 + $0xd7] sm:$0xff]
      %v5619 = vld [vmem:[#allocation2 + $0xdf] sm:$0xff]
      %v5620 = vld [vmem:[#allocation2 + $0xe7] sm:$0xff]
      %v5621 = vld [vmem:[#allocation2 + $0xef] sm:$0xff]
      %v5622 = vld [vmem:[#allocation2 + $0xf7] sm:$0xff]
      %v5623 = vld [vmem:[#allocation2 + $0xff] sm:$0xff]
      %v5624 = vld [vmem:[#allocation2 + $0x107] sm:$0xff]
      %v5625 = vld [vmem:[#allocation2 + $0x10f] sm:$0xff]
      %v5626 = vld [vmem:[#allocation2 + $0x117] sm:$0xff]
      %v5627 = vld [vmem:[#allocation2 + $0x11f] sm:$0xff]
      %v5628 = vpack.c.bf16 %v5597, %v5596
      %v5629 = vpack.c.bf16 %v5599, %v5598
      %v5630 = vpack.c.bf16 %v5601, %v5600
      %v5631 = vpack.c.bf16 %v5603, %v5602
      %v5632 = vpack.c.bf16 %v5605, %v5604
      %v5633 = vpack.c.bf16 %v5607, %v5606
      %v5634 = vpack.c.bf16 %v5609, %v5608
      %v5635 = vpack.c.bf16 %v5611, %v5610
      %v5636 = vpack.c.bf16 %v5613, %v5612
      %v5637 = vpack.c.bf16 %v5615, %v5614
      %v5638 = vpack.c.bf16 %v5617, %v5616
      %v5639 = vpack.c.bf16 %v5619, %v5618
      %v5640 = vpack.c.bf16 %v5621, %v5620
      %v5641 = vpack.c.bf16 %v5623, %v5622
      %v5642 = vpack.c.bf16 %v5625, %v5624
      %v5643 = vpack.c.bf16 %v5627, %v5626
      %s5644 = scalar_lea.vmem %s3, 24
      %v5645 = vld [vmem:[%s5644] sm:$0xf]
      %v5647 = vsel %vm3665, %v5628, 0
      %v5650 = vsel %vm3665, %v5629, 0
      %v5653 = vsel %vm3665, %v5630, 0
      %v5656 = vsel %vm3665, %v5631, 0
      %v5659 = vsel %vm3665, %v5632, 0
      %v5662 = vsel %vm3665, %v5633, 0
      %v5665 = vsel %vm3665, %v5634, 0
      %v5668 = vsel %vm3665, %v5635, 0
      %v5671 = vsel %vm3665, %v5636, 0
      %v5674 = vsel %vm3665, %v5637, 0
      %v5677 = vsel %vm3665, %v5638, 0
      %v5680 = vsel %vm3665, %v5639, 0
      %v5683 = vsel %vm3665, %v5640, 0
      %v5686 = vsel %vm3665, %v5641, 0
      %v5689 = vsel %vm3665, %v5642, 0
      %v5692 = vsel %vm3665, %v5643, 0
      %v5695 = vsel %vm3801, %v5645, 0
      %5697 = vmatprep.subr.bf16.mxu0 0
      %5698 = vmatpush1.bf16.msra.mxu0 %v5695
      %5699 = vmatprep.subr.bf16.mxu0 0
      %5700 = vmatpush1.bf16.msra.mxu0 0
      %5701 = vmatprep.subr.bf16.mxu0 0
      %5702 = vmatpush1.bf16.msra.mxu0 0
      %5703 = vmatprep.subr.bf16.mxu0 0
      %5704 = vmatpush1.bf16.msra.mxu0 0
      %5705 = vmatprep.subr.bf16.mxu0 0
      %5706 = vmatpush1.bf16.msra.mxu0 0
      %5707 = vmatprep.subr.bf16.mxu0 0
      %5708 = vmatpush1.bf16.msra.mxu0 0
      %5709 = vmatprep.subr.bf16.mxu0 0
      %5710 = vmatpush1.bf16.msra.mxu0 0
      %5711 = vmatprep.subr.bf16.mxu0 0
      %5712 = vmatpush1.bf16.msra.mxu0 0
      %5713 = vmatprep.subr.bf16.mxu0 0
      %5714 = vmatpush1.bf16.msra.mxu0 0
      %5715 = vmatprep.subr.bf16.mxu0 0
      %5716 = vmatpush1.bf16.msra.mxu0 0
      %5717 = vmatprep.subr.bf16.mxu0 0
      %5718 = vmatpush1.bf16.msra.mxu0 0
      %5719 = vmatprep.subr.bf16.mxu0 0
      %5720 = vmatpush1.bf16.msra.mxu0 0
      %5721 = vmatprep.subr.bf16.mxu0 0
      %5722 = vmatpush1.bf16.msra.mxu0 0
      %5723 = vmatprep.subr.bf16.mxu0 0
      %5724 = vmatpush1.bf16.msra.mxu0 0
      %5725 = vmatprep.subr.bf16.mxu0 0
      %5726 = vmatpush1.bf16.msra.mxu0 0
      %5727 = vmatprep.subr.bf16.mxu0 0
      %5728 = vmatpush1.bf16.msra.mxu0 0
      %5729 = vmatprep.mubr.bf16.mxu0 0
      %5730 = vmatmul.mubr.bf16.gmra.mrb[0].mxu0 %v5647
      %v5731 = vpop.f32.mrb[0].mxu0
      %v5732 = vadd.f32 0.0, %v5731
      %v5733 = vpop.f32.mrb[0].mxu0
      %v5734 = vpop.f32.mrb[0].mxu0
      %v5735 = vadd.f32 0.0, %v5734
      %v5736 = vpop.f32.mrb[0].mxu0
      %5737 = vmatprep.mubr.bf16.mxu0 0
      %5738 = vmatmul.mubr.bf16.gmra.mrb[0].mxu0 %v5650
      %v5739 = vpop.f32.mrb[0].mxu0
      %v5740 = vadd.f32 0.0, %v5739
      %v5741 = vpop.f32.mrb[0].mxu0
      %v5742 = vpop.f32.mrb[0].mxu0
      %v5743 = vadd.f32 0.0, %v5742
      %v5744 = vpop.f32.mrb[0].mxu0
      %5745 = vmatprep.mubr.bf16.mxu0 0
      %5746 = vmatmul.mubr.bf16.gmra.mrb[0].mxu0 %v5653
      %v5747 = vpop.f32.mrb[0].mxu0
      %v5748 = vadd.f32 0.0, %v5747
      %v5749 = vpop.f32.mrb[0].mxu0
      %v5750 = vpop.f32.mrb[0].mxu0
      %v5751 = vadd.f32 0.0, %v5750
      %v5752 = vpop.f32.mrb[0].mxu0
      %5753 = vmatprep.mubr.bf16.mxu0 0
      %5754 = vmatmul.mubr.bf16.gmra.mrb[0].mxu0 %v5656
      %v5755 = vpop.f32.mrb[0].mxu0
      %v5756 = vadd.f32 0.0, %v5755
      %v5757 = vpop.f32.mrb[0].mxu0
      %v5758 = vpop.f32.mrb[0].mxu0
      %v5759 = vadd.f32 0.0, %v5758
      %v5760 = vpop.f32.mrb[0].mxu0
      %5761 = vmatprep.mubr.bf16.mxu0 0
      %5762 = vmatmul.mubr.bf16.gmra.mrb[0].mxu0 %v5659
      %v5763 = vpop.f32.mrb[0].mxu0
      %v5764 = vadd.f32 0.0, %v5763
      %v5765 = vpop.f32.mrb[0].mxu0
      %v5766 = vpop.f32.mrb[0].mxu0
      %v5767 = vadd.f32 0.0, %v5766
      %v5768 = vpop.f32.mrb[0].mxu0
      %5769 = vmatprep.mubr.bf16.mxu0 0
      %5770 = vmatmul.mubr.bf16.gmra.mrb[0].mxu0 %v5662
      %v5771 = vpop.f32.mrb[0].mxu0
      %v5772 = vadd.f32 0.0, %v5771
      %v5773 = vpop.f32.mrb[0].mxu0
      %v5774 = vpop.f32.mrb[0].mxu0
      %v5775 = vadd.f32 0.0, %v5774
      %v5776 = vpop.f32.mrb[0].mxu0
      %5777 = vmatprep.mubr.bf16.mxu0 0
      %5778 = vmatmul.mubr.bf16.gmra.mrb[0].mxu0 %v5665
      %v5779 = vpop.f32.mrb[0].mxu0
      %v5780 = vadd.f32 0.0, %v5779
      %v5781 = vpop.f32.mrb[0].mxu0
      %v5782 = vpop.f32.mrb[0].mxu0
      %v5783 = vadd.f32 0.0, %v5782
      %v5784 = vpop.f32.mrb[0].mxu0
      %5785 = vmatprep.mubr.bf16.mxu0 0
      %5786 = vmatmul.mubr.bf16.gmra.mrb[0].mxu0 %v5668
      %v5787 = vpop.f32.mrb[0].mxu0
      %v5788 = vadd.f32 0.0, %v5787
      %v5789 = vpop.f32.mrb[0].mxu0
      %v5790 = vpop.f32.mrb[0].mxu0
      %v5791 = vadd.f32 0.0, %v5790
      %v5792 = vpop.f32.mrb[0].mxu0
      %5793 = vmatprep.mubr.bf16.mxu0 0
      %5794 = vmatmul.mubr.bf16.gmra.mrb[0].mxu0 %v5671
      %v5795 = vpop.f32.mrb[0].mxu0
      %v5796 = vadd.f32 0.0, %v5795
      %v5797 = vpop.f32.mrb[0].mxu0
      %v5798 = vpop.f32.mrb[0].mxu0
      %v5799 = vadd.f32 0.0, %v5798
      %v5800 = vpop.f32.mrb[0].mxu0
      %5801 = vmatprep.mubr.bf16.mxu0 0
      %5802 = vmatmul.mubr.bf16.gmra.mrb[0].mxu0 %v5674
      %v5803 = vpop.f32.mrb[0].mxu0
      %v5804 = vadd.f32 0.0, %v5803
      %v5805 = vpop.f32.mrb[0].mxu0
      %v5806 = vpop.f32.mrb[0].mxu0
      %v5807 = vadd.f32 0.0, %v5806
      %v5808 = vpop.f32.mrb[0].mxu0
      %5809 = vmatprep.mubr.bf16.mxu0 0
      %5810 = vmatmul.mubr.bf16.gmra.mrb[0].mxu0 %v5677
      %v5811 = vpop.f32.mrb[0].mxu0
      %v5812 = vadd.f32 0.0, %v5811
      %v5813 = vpop.f32.mrb[0].mxu0
      %v5814 = vpop.f32.mrb[0].mxu0
      %v5815 = vadd.f32 0.0, %v5814
      %v5816 = vpop.f32.mrb[0].mxu0
      %5817 = vmatprep.mubr.bf16.mxu0 0
      %5818 = vmatmul.mubr.bf16.gmra.mrb[0].mxu0 %v5680
      %v5819 = vpop.f32.mrb[0].mxu0
      %v5820 = vadd.f32 0.0, %v5819
      %v5821 = vpop.f32.mrb[0].mxu0
      %v5822 = vpop.f32.mrb[0].mxu0
      %v5823 = vadd.f32 0.0, %v5822
      %v5824 = vpop.f32.mrb[0].mxu0
      %5825 = vmatprep.mubr.bf16.mxu0 0
      %5826 = vmatmul.mubr.bf16.gmra.mrb[0].mxu0 %v5683
      %v5827 = vpop.f32.mrb[0].mxu0
      %v5828 = vadd.f32 0.0, %v5827
      %v5829 = vpop.f32.mrb[0].mxu0
      %v5830 = vpop.f32.mrb[0].mxu0
      %v5831 = vadd.f32 0.0, %v5830
      %v5832 = vpop.f32.mrb[0].mxu0
      %5833 = vmatprep.mubr.bf16.mxu0 0
      %5834 = vmatmul.mubr.bf16.gmra.mrb[0].mxu0 %v5686
      %v5835 = vpop.f32.mrb[0].mxu0
      %v5836 = vadd.f32 0.0, %v5835
      %v5837 = vpop.f32.mrb[0].mxu0
      %v5838 = vpop.f32.mrb[0].mxu0
      %v5839 = vadd.f32 0.0, %v5838
      %v5840 = vpop.f32.mrb[0].mxu0
      %5841 = vmatprep.mubr.bf16.mxu0 0
      %5842 = vmatmul.mubr.bf16.gmra.mrb[0].mxu0 %v5689
      %v5843 = vpop.f32.mrb[0].mxu0
      %v5844 = vadd.f32 0.0, %v5843
      %v5845 = vpop.f32.mrb[0].mxu0
      %v5846 = vpop.f32.mrb[0].mxu0
      %v5847 = vadd.f32 0.0, %v5846
      %v5848 = vpop.f32.mrb[0].mxu0
      %5849 = vmatprep.mubr.bf16.mxu0 0
      %5850 = vmatmul.mubr.bf16.gmra.mrb[0].mxu0 %v5692
      %v5851 = vpop.f32.mrb[0].mxu0
      %v5852 = vadd.f32 0.0, %v5851
      %v5853 = vpop.f32.mrb[0].mxu0
      %v5854 = vpop.f32.mrb[0].mxu0
      %v5855 = vadd.f32 0.0, %v5854
      %v5856 = vpop.f32.mrb[0].mxu0
      %5857 = vdwg.mxu0
      %v5858 = vmul.f32 %v5732, %v637
      %v5859 = vmul.f32 %v5735, %v642
      %v5860 = vmul.f32 %v5740, %v647
      %v5861 = vmul.f32 %v5743, %v652
      %v5862 = vmul.f32 %v5748, %v657
      %v5863 = vmul.f32 %v5751, %v662
      %v5864 = vmul.f32 %v5756, %v667
      %v5865 = vmul.f32 %v5759, %v672
      %v5866 = vmul.f32 %v5764, %v677
      %v5867 = vmul.f32 %v5767, %v682
      %v5868 = vmul.f32 %v5772, %v687
      %v5869 = vmul.f32 %v5775, %v692
      %v5870 = vmul.f32 %v5780, %v697
      %v5871 = vmul.f32 %v5783, %v702
      %v5872 = vmul.f32 %v5788, %v707
      %v5873 = vmul.f32 %v5791, %v712
      %v5874 = vmul.f32 %v5796, %v717
      %v5875 = vmul.f32 %v5799, %v722
      %v5876 = vmul.f32 %v5804, %v727
      %v5877 = vmul.f32 %v5807, %v732
      %v5878 = vmul.f32 %v5812, %v737
      %v5879 = vmul.f32 %v5815, %v742
      %v5880 = vmul.f32 %v5820, %v747
      %v5881 = vmul.f32 %v5823, %v752
      %v5882 = vmul.f32 %v5828, %v757
      %v5883 = vmul.f32 %v5831, %v762
      %v5884 = vmul.f32 %v5836, %v767
      %v5885 = vmul.f32 %v5839, %v772
      %v5886 = vmul.f32 %v5844, %v777
      %v5887 = vmul.f32 %v5847, %v782
      %v5888 = vmul.f32 %v5852, %v787
      %v5889 = vmul.f32 %v5855, %v792
      %v5890 = vadd.f32 %v5564, %v5858
      %v5891 = vadd.f32 %v5565, %v5859
      %v5892 = vadd.f32 %v5566, %v5860
      %v5893 = vadd.f32 %v5567, %v5861
      %v5894 = vadd.f32 %v5568, %v5862
      %v5895 = vadd.f32 %v5569, %v5863
      %v5896 = vadd.f32 %v5570, %v5864
      %v5897 = vadd.f32 %v5571, %v5865
      %v5898 = vadd.f32 %v5572, %v5866
      %v5899 = vadd.f32 %v5573, %v5867
      %v5900 = vadd.f32 %v5574, %v5868
      %v5901 = vadd.f32 %v5575, %v5869
      %v5902 = vadd.f32 %v5576, %v5870
      %v5903 = vadd.f32 %v5577, %v5871
      %v5904 = vadd.f32 %v5578, %v5872
      %v5905 = vadd.f32 %v5579, %v5873
      %v5906 = vadd.f32 %v5580, %v5874
      %v5907 = vadd.f32 %v5581, %v5875
      %v5908 = vadd.f32 %v5582, %v5876
      %v5909 = vadd.f32 %v5583, %v5877
      %v5910 = vadd.f32 %v5584, %v5878
      %v5911 = vadd.f32 %v5585, %v5879
      %v5912 = vadd.f32 %v5586, %v5880
      %v5913 = vadd.f32 %v5587, %v5881
      %v5914 = vadd.f32 %v5588, %v5882
      %v5915 = vadd.f32 %v5589, %v5883
      %v5916 = vadd.f32 %v5590, %v5884
      %v5917 = vadd.f32 %v5591, %v5885
      %v5918 = vadd.f32 %v5592, %v5886
      %v5919 = vadd.f32 %v5593, %v5887
      %v5920 = vadd.f32 %v5594, %v5888
      %v5921 = vadd.f32 %v5595, %v5889
      %v5922 = vld [vmem:[#allocation2 + $0x28] sm:$0xff]
      %v5923 = vld [vmem:[#allocation2 + $0x30] sm:$0xff]
      %v5924 = vld [vmem:[#allocation2 + $0x38] sm:$0xff]
      %v5925 = vld [vmem:[#allocation2 + $0x40] sm:$0xff]
      %v5926 = vld [vmem:[#allocation2 + $0x48] sm:$0xff]
      %v5927 = vld [vmem:[#allocation2 + $0x50] sm:$0xff]
      %v5928 = vld [vmem:[#allocation2 + $0x58] sm:$0xff]
      %v5929 = vld [vmem:[#allocation2 + $0x60] sm:$0xff]
      %v5930 = vld [vmem:[#allocation2 + $0x68] sm:$0xff]
      %v5931 = vld [vmem:[#allocation2 + $0x70] sm:$0xff]
      %v5932 = vld [vmem:[#allocation2 + $0x78] sm:$0xff]
      %v5933 = vld [vmem:[#allocation2 + $0x80] sm:$0xff]
      %v5934 = vld [vmem:[#allocation2 + $0x88] sm:$0xff]
      %v5935 = vld [vmem:[#allocation2 + $0x90] sm:$0xff]
      %v5936 = vld [vmem:[#allocation2 + $0x98] sm:$0xff]
      %v5937 = vld [vmem:[#allocation2 + $0xa0] sm:$0xff]
      %v5938 = vld [vmem:[#allocation2 + $0xa8] sm:$0xff]
      %v5939 = vld [vmem:[#allocation2 + $0xb0] sm:$0xff]
      %v5940 = vld [vmem:[#allocation2 + $0xb8] sm:$0xff]
      %v5941 = vld [vmem:[#allocation2 + $0xc0] sm:$0xff]
      %v5942 = vld [vmem:[#allocation2 + $0xc8] sm:$0xff]
      %v5943 = vld [vmem:[#allocation2 + $0xd0] sm:$0xff]
      %v5944 = vld [vmem:[#allocation2 + $0xd8] sm:$0xff]
      %v5945 = vld [vmem:[#allocation2 + $0xe0] sm:$0xff]
      %v5946 = vld [vmem:[#allocation2 + $0xe8] sm:$0xff]
      %v5947 = vld [vmem:[#allocation2 + $0xf0] sm:$0xff]
      %v5948 = vld [vmem:[#allocation2 + $0xf8] sm:$0xff]
      %v5949 = vld [vmem:[#allocation2 + $0x100] sm:$0xff]
      %v5950 = vld [vmem:[#allocation2 + $0x108] sm:$0xff]
      %v5951 = vld [vmem:[#allocation2 + $0x110] sm:$0xff]
      %v5952 = vld [vmem:[#allocation2 + $0x118] sm:$0xff]
      %v5953 = vld [vmem:[#allocation2 + $0x120] sm:$0xff]
      %v5954 = vpack.c.bf16 %v5923, %v5922
      %v5955 = vpack.c.bf16 %v5925, %v5924
      %v5956 = vpack.c.bf16 %v5927, %v5926
      %v5957 = vpack.c.bf16 %v5929, %v5928
      %v5958 = vpack.c.bf16 %v5931, %v5930
      %v5959 = vpack.c.bf16 %v5933, %v5932
      %v5960 = vpack.c.bf16 %v5935, %v5934
      %v5961 = vpack.c.bf16 %v5937, %v5936
      %v5962 = vpack.c.bf16 %v5939, %v5938
      %v5963 = vpack.c.bf16 %v5941, %v5940
      %v5964 = vpack.c.bf16 %v5943, %v5942
      %v5965 = vpack.c.bf16 %v5945, %v5944
      %v5966 = vpack.c.bf16 %v5947, %v5946
      %v5967 = vpack.c.bf16 %v5949, %v5948
      %v5968 = vpack.c.bf16 %v5951, %v5950
      %v5969 = vpack.c.bf16 %v5953, %v5952
      %s5970 = scalar_lea.vmem %s3, 28
      %v5971 = vld [vmem:[%s5970] sm:$0xf]
      %v5973 = vsel %vm3665, %v5954, 0
      %v5976 = vsel %vm3665, %v5955, 0
      %v5979 = vsel %vm3665, %v5956, 0
      %v5982 = vsel %vm3665, %v5957, 0
      %v5985 = vsel %vm3665, %v5958, 0
      %v5988 = vsel %vm3665, %v5959, 0
      %v5991 = vsel %vm3665, %v5960, 0
      %v5994 = vsel %vm3665, %v5961, 0
      %v5997 = vsel %vm3665, %v5962, 0
      %v6000 = vsel %vm3665, %v5963, 0
      %v6003 = vsel %vm3665, %v5964, 0
      %v6006 = vsel %vm3665, %v5965, 0
      %v6009 = vsel %vm3665, %v5966, 0
      %v6012 = vsel %vm3665, %v5967, 0
      %v6015 = vsel %vm3665, %v5968, 0
      %v6018 = vsel %vm3665, %v5969, 0
      %v6021 = vsel %vm3801, %v5971, 0
      %6023 = vmatprep.subr.bf16.mxu0 0
      %6024 = vmatpush1.bf16.msra.mxu0 %v6021
      %6025 = vmatprep.subr.bf16.mxu0 0
      %6026 = vmatpush1.bf16.msra.mxu0 0
      %6027 = vmatprep.subr.bf16.mxu0 0
      %6028 = vmatpush1.bf16.msra.mxu0 0
      %6029 = vmatprep.subr.bf16.mxu0 0
      %6030 = vmatpush1.bf16.msra.mxu0 0
      %6031 = vmatprep.subr.bf16.mxu0 0
      %6032 = vmatpush1.bf16.msra.mxu0 0
      %6033 = vmatprep.subr.bf16.mxu0 0
      %6034 = vmatpush1.bf16.msra.mxu0 0
      %6035 = vmatprep.subr.bf16.mxu0 0
      %6036 = vmatpush1.bf16.msra.mxu0 0
      %6037 = vmatprep.subr.bf16.mxu0 0
      %6038 = vmatpush1.bf16.msra.mxu0 0
      %6039 = vmatprep.subr.bf16.mxu0 0
      %6040 = vmatpush1.bf16.msra.mxu0 0
      %6041 = vmatprep.subr.bf16.mxu0 0
      %6042 = vmatpush1.bf16.msra.mxu0 0
      %6043 = vmatprep.subr.bf16.mxu0 0
      %6044 = vmatpush1.bf16.msra.mxu0 0
      %6045 = vmatprep.subr.bf16.mxu0 0
      %6046 = vmatpush1.bf16.msra.mxu0 0
      %6047 = vmatprep.subr.bf16.mxu0 0
      %6048 = vmatpush1.bf16.msra.mxu0 0
      %6049 = vmatprep.subr.bf16.mxu0 0
      %6050 = vmatpush1.bf16.msra.mxu0 0
      %6051 = vmatprep.subr.bf16.mxu0 0
      %6052 = vmatpush1.bf16.msra.mxu0 0
      %6053 = vmatprep.subr.bf16.mxu0 0
      %6054 = vmatpush1.bf16.msra.mxu0 0
      %6055 = vmatprep.mubr.bf16.mxu0 0
      %6056 = vmatmul.mubr.bf16.gmra.mrb[0].mxu0 %v5973
      %v6057 = vpop.f32.mrb[0].mxu0
      %v6058 = vadd.f32 0.0, %v6057
      %v6059 = vpop.f32.mrb[0].mxu0
      %v6060 = vpop.f32.mrb[0].mxu0
      %v6061 = vadd.f32 0.0, %v6060
      %v6062 = vpop.f32.mrb[0].mxu0
      %6063 = vmatprep.mubr.bf16.mxu0 0
      %6064 = vmatmul.mubr.bf16.gmra.mrb[0].mxu0 %v5976
      %v6065 = vpop.f32.mrb[0].mxu0
      %v6066 = vadd.f32 0.0, %v6065
      %v6067 = vpop.f32.mrb[0].mxu0
      %v6068 = vpop.f32.mrb[0].mxu0
      %v6069 = vadd.f32 0.0, %v6068
      %v6070 = vpop.f32.mrb[0].mxu0
      %6071 = vmatprep.mubr.bf16.mxu0 0
      %6072 = vmatmul.mubr.bf16.gmra.mrb[0].mxu0 %v5979
      %v6073 = vpop.f32.mrb[0].mxu0
      %v6074 = vadd.f32 0.0, %v6073
      %v6075 = vpop.f32.mrb[0].mxu0
      %v6076 = vpop.f32.mrb[0].mxu0
      %v6077 = vadd.f32 0.0, %v6076
      %v6078 = vpop.f32.mrb[0].mxu0
      %6079 = vmatprep.mubr.bf16.mxu0 0
      %6080 = vmatmul.mubr.bf16.gmra.mrb[0].mxu0 %v5982
      %v6081 = vpop.f32.mrb[0].mxu0
      %v6082 = vadd.f32 0.0, %v6081
      %v6083 = vpop.f32.mrb[0].mxu0
      %v6084 = vpop.f32.mrb[0].mxu0
      %v6085 = vadd.f32 0.0, %v6084
      %v6086 = vpop.f32.mrb[0].mxu0
      %6087 = vmatprep.mubr.bf16.mxu0 0
      %6088 = vmatmul.mubr.bf16.gmra.mrb[0].mxu0 %v5985
      %v6089 = vpop.f32.mrb[0].mxu0
      %v6090 = vadd.f32 0.0, %v6089
      %v6091 = vpop.f32.mrb[0].mxu0
      %v6092 = vpop.f32.mrb[0].mxu0
      %v6093 = vadd.f32 0.0, %v6092
      %v6094 = vpop.f32.mrb[0].mxu0
      %6095 = vmatprep.mubr.bf16.mxu0 0
      %6096 = vmatmul.mubr.bf16.gmra.mrb[0].mxu0 %v5988
      %v6097 = vpop.f32.mrb[0].mxu0
      %v6098 = vadd.f32 0.0, %v6097
      %v6099 = vpop.f32.mrb[0].mxu0
      %v6100 = vpop.f32.mrb[0].mxu0
      %v6101 = vadd.f32 0.0, %v6100
      %v6102 = vpop.f32.mrb[0].mxu0
      %6103 = vmatprep.mubr.bf16.mxu0 0
      %6104 = vmatmul.mubr.bf16.gmra.mrb[0].mxu0 %v5991
      %v6105 = vpop.f32.mrb[0].mxu0
      %v6106 = vadd.f32 0.0, %v6105
      %v6107 = vpop.f32.mrb[0].mxu0
      %v6108 = vpop.f32.mrb[0].mxu0
      %v6109 = vadd.f32 0.0, %v6108
      %v6110 = vpop.f32.mrb[0].mxu0
      %6111 = vmatprep.mubr.bf16.mxu0 0
      %6112 = vmatmul.mubr.bf16.gmra.mrb[0].mxu0 %v5994
      %v6113 = vpop.f32.mrb[0].mxu0
      %v6114 = vadd.f32 0.0, %v6113
      %v6115 = vpop.f32.mrb[0].mxu0
      %v6116 = vpop.f32.mrb[0].mxu0
      %v6117 = vadd.f32 0.0, %v6116
      %v6118 = vpop.f32.mrb[0].mxu0
      %6119 = vmatprep.mubr.bf16.mxu0 0
      %6120 = vmatmul.mubr.bf16.gmra.mrb[0].mxu0 %v5997
      %v6121 = vpop.f32.mrb[0].mxu0
      %v6122 = vadd.f32 0.0, %v6121
      %v6123 = vpop.f32.mrb[0].mxu0
      %v6124 = vpop.f32.mrb[0].mxu0
      %v6125 = vadd.f32 0.0, %v6124
      %v6126 = vpop.f32.mrb[0].mxu0
      %6127 = vmatprep.mubr.bf16.mxu0 0
      %6128 = vmatmul.mubr.bf16.gmra.mrb[0].mxu0 %v6000
      %v6129 = vpop.f32.mrb[0].mxu0
      %v6130 = vadd.f32 0.0, %v6129
      %v6131 = vpop.f32.mrb[0].mxu0
      %v6132 = vpop.f32.mrb[0].mxu0
      %v6133 = vadd.f32 0.0, %v6132
      %v6134 = vpop.f32.mrb[0].mxu0
      %6135 = vmatprep.mubr.bf16.mxu0 0
      %6136 = vmatmul.mubr.bf16.gmra.mrb[0].mxu0 %v6003
      %v6137 = vpop.f32.mrb[0].mxu0
      %v6138 = vadd.f32 0.0, %v6137
      %v6139 = vpop.f32.mrb[0].mxu0
      %v6140 = vpop.f32.mrb[0].mxu0
      %v6141 = vadd.f32 0.0, %v6140
      %v6142 = vpop.f32.mrb[0].mxu0
      %6143 = vmatprep.mubr.bf16.mxu0 0
      %6144 = vmatmul.mubr.bf16.gmra.mrb[0].mxu0 %v6006
      %v6145 = vpop.f32.mrb[0].mxu0
      %v6146 = vadd.f32 0.0, %v6145
      %v6147 = vpop.f32.mrb[0].mxu0
      %v6148 = vpop.f32.mrb[0].mxu0
      %v6149 = vadd.f32 0.0, %v6148
      %v6150 = vpop.f32.mrb[0].mxu0
      %6151 = vmatprep.mubr.bf16.mxu0 0
      %6152 = vmatmul.mubr.bf16.gmra.mrb[0].mxu0 %v6009
      %v6153 = vpop.f32.mrb[0].mxu0
      %v6154 = vadd.f32 0.0, %v6153
      %v6155 = vpop.f32.mrb[0].mxu0
      %v6156 = vpop.f32.mrb[0].mxu0
      %v6157 = vadd.f32 0.0, %v6156
      %v6158 = vpop.f32.mrb[0].mxu0
      %6159 = vmatprep.mubr.bf16.mxu0 0
      %6160 = vmatmul.mubr.bf16.gmra.mrb[0].mxu0 %v6012
      %v6161 = vpop.f32.mrb[0].mxu0
      %v6162 = vadd.f32 0.0, %v6161
      %v6163 = vpop.f32.mrb[0].mxu0
      %v6164 = vpop.f32.mrb[0].mxu0
      %v6165 = vadd.f32 0.0, %v6164
      %v6166 = vpop.f32.mrb[0].mxu0
      %6167 = vmatprep.mubr.bf16.mxu0 0
      %6168 = vmatmul.mubr.bf16.gmra.mrb[0].mxu0 %v6015
      %v6169 = vpop.f32.mrb[0].mxu0
      %v6170 = vadd.f32 0.0, %v6169
      %v6171 = vpop.f32.mrb[0].mxu0
      %v6172 = vpop.f32.mrb[0].mxu0
      %v6173 = vadd.f32 0.0, %v6172
      %v6174 = vpop.f32.mrb[0].mxu0
      %6175 = vmatprep.mubr.bf16.mxu0 0
      %6176 = vmatmul.mubr.bf16.gmra.mrb[0].mxu0 %v6018
      %v6177 = vpop.f32.mrb[0].mxu0
      %v6178 = vadd.f32 0.0, %v6177
      %v6179 = vpop.f32.mrb[0].mxu0
      %v6180 = vpop.f32.mrb[0].mxu0
      %v6181 = vadd.f32 0.0, %v6180
      %v6182 = vpop.f32.mrb[0].mxu0
      %6183 = vdwg.mxu0
      %v6184 = vadd.f32 %v5890, %v6058
      %v6185 = vadd.f32 %v5891, %v6061
      %v6186 = vadd.f32 %v5892, %v6066
      %v6187 = vadd.f32 %v5893, %v6069
      %v6188 = vadd.f32 %v5894, %v6074
      %v6189 = vadd.f32 %v5895, %v6077
      %v6190 = vadd.f32 %v5896, %v6082
      %v6191 = vadd.f32 %v5897, %v6085
      %v6192 = vadd.f32 %v5898, %v6090
      %v6193 = vadd.f32 %v5899, %v6093
      %v6194 = vadd.f32 %v5900, %v6098
      %v6195 = vadd.f32 %v5901, %v6101
      %v6196 = vadd.f32 %v5902, %v6106
      %v6197 = vadd.f32 %v5903, %v6109
      %v6198 = vadd.f32 %v5904, %v6114
      %v6199 = vadd.f32 %v5905, %v6117
      %v6200 = vadd.f32 %v5906, %v6122
      %v6201 = vadd.f32 %v5907, %v6125
      %v6202 = vadd.f32 %v5908, %v6130
      %v6203 = vadd.f32 %v5909, %v6133
      %v6204 = vadd.f32 %v5910, %v6138
      %v6205 = vadd.f32 %v5911, %v6141
      %v6206 = vadd.f32 %v5912, %v6146
      %v6207 = vadd.f32 %v5913, %v6149
      %v6208 = vadd.f32 %v5914, %v6154
      %v6209 = vadd.f32 %v5915, %v6157
      %v6210 = vadd.f32 %v5916, %v6162
      %v6211 = vadd.f32 %v5917, %v6165
      %v6212 = vadd.f32 %v5918, %v6170
      %v6213 = vadd.f32 %v5919, %v6173
      %v6214 = vadd.f32 %v5920, %v6178
      %v6215 = vadd.f32 %v5921, %v6181
      %v6216 = vld [vmem:[#allocation2 + $0x29] sm:$0xff]
      %v6217 = vld [vmem:[#allocation2 + $0x31] sm:$0xff]
      %v6218 = vld [vmem:[#allocation2 + $0x39] sm:$0xff]
      %v6219 = vld [vmem:[#allocation2 + $0x41] sm:$0xff]
      %v6220 = vld [vmem:[#allocation2 + $0x49] sm:$0xff]
      %v6221 = vld [vmem:[#allocation2 + $0x51] sm:$0xff]
      %v6222 = vld [vmem:[#allocation2 + $0x59] sm:$0xff]
      %v6223 = vld [vmem:[#allocation2 + $0x61] sm:$0xff]
      %v6224 = vld [vmem:[#allocation2 + $0x69] sm:$0xff]
      %v6225 = vld [vmem:[#allocation2 + $0x71] sm:$0xff]
      %v6226 = vld [vmem:[#allocation2 + $0x79] sm:$0xff]
      %v6227 = vld [vmem:[#allocation2 + $0x81] sm:$0xff]
      %v6228 = vld [vmem:[#allocation2 + $0x89] sm:$0xff]
      %v6229 = vld [vmem:[#allocation2 + $0x91] sm:$0xff]
      %v6230 = vld [vmem:[#allocation2 + $0x99] sm:$0xff]
      %v6231 = vld [vmem:[#allocation2 + $0xa1] sm:$0xff]
      %v6232 = vld [vmem:[#allocation2 + $0xa9] sm:$0xff]
      %v6233 = vld [vmem:[#allocation2 + $0xb1] sm:$0xff]
      %v6234 = vld [vmem:[#allocation2 + $0xb9] sm:$0xff]
      %v6235 = vld [vmem:[#allocation2 + $0xc1] sm:$0xff]
      %v6236 = vld [vmem:[#allocation2 + $0xc9] sm:$0xff]
      %v6237 = vld [vmem:[#allocation2 + $0xd1] sm:$0xff]
      %v6238 = vld [vmem:[#allocation2 + $0xd9] sm:$0xff]
      %v6239 = vld [vmem:[#allocation2 + $0xe1] sm:$0xff]
      %v6240 = vld [vmem:[#allocation2 + $0xe9] sm:$0xff]
      %v6241 = vld [vmem:[#allocation2 + $0xf1] sm:$0xff]
      %v6242 = vld [vmem:[#allocation2 + $0xf9] sm:$0xff]
      %v6243 = vld [vmem:[#allocation2 + $0x101] sm:$0xff]
      %v6244 = vld [vmem:[#allocation2 + $0x109] sm:$0xff]
      %v6245 = vld [vmem:[#allocation2 + $0x111] sm:$0xff]
      %v6246 = vld [vmem:[#allocation2 + $0x119] sm:$0xff]
      %v6247 = vld [vmem:[#allocation2 + $0x121] sm:$0xff]
      %v6248 = vpack.c.bf16 %v6217, %v6216
      %v6249 = vpack.c.bf16 %v6219, %v6218
      %v6250 = vpack.c.bf16 %v6221, %v6220
      %v6251 = vpack.c.bf16 %v6223, %v6222
      %v6252 = vpack.c.bf16 %v6225, %v6224
      %v6253 = vpack.c.bf16 %v6227, %v6226
      %v6254 = vpack.c.bf16 %v6229, %v6228
      %v6255 = vpack.c.bf16 %v6231, %v6230
      %v6256 = vpack.c.bf16 %v6233, %v6232
      %v6257 = vpack.c.bf16 %v6235, %v6234
      %v6258 = vpack.c.bf16 %v6237, %v6236
      %v6259 = vpack.c.bf16 %v6239, %v6238
      %v6260 = vpack.c.bf16 %v6241, %v6240
      %v6261 = vpack.c.bf16 %v6243, %v6242
      %v6262 = vpack.c.bf16 %v6245, %v6244
      %v6263 = vpack.c.bf16 %v6247, %v6246
      %s6264 = scalar_lea.vmem %s3, 32
      %v6265 = vld [vmem:[%s6264] sm:$0xf]
      %v6267 = vsel %vm3665, %v6248, 0
      %v6270 = vsel %vm3665, %v6249, 0
      %v6273 = vsel %vm3665, %v6250, 0
      %v6276 = vsel %vm3665, %v6251, 0
      %v6279 = vsel %vm3665, %v6252, 0
      %v6282 = vsel %vm3665, %v6253, 0
      %v6285 = vsel %vm3665, %v6254, 0
      %v6288 = vsel %vm3665, %v6255, 0
      %v6291 = vsel %vm3665, %v6256, 0
      %v6294 = vsel %vm3665, %v6257, 0
      %v6297 = vsel %vm3665, %v6258, 0
      %v6300 = vsel %vm3665, %v6259, 0
      %v6303 = vsel %vm3665, %v6260, 0
      %v6306 = vsel %vm3665, %v6261, 0
      %v6309 = vsel %vm3665, %v6262, 0
      %v6312 = vsel %vm3665, %v6263, 0
      %v6315 = vsel %vm3801, %v6265, 0
      %6317 = vmatprep.subr.bf16.mxu0 0
      %6318 = vmatpush1.bf16.msra.mxu0 %v6315
      %6319 = vmatprep.subr.bf16.mxu0 0
      %6320 = vmatpush1.bf16.msra.mxu0 0
      %6321 = vmatprep.subr.bf16.mxu0 0
      %6322 = vmatpush1.bf16.msra.mxu0 0
      %6323 = vmatprep.subr.bf16.mxu0 0
      %6324 = vmatpush1.bf16.msra.mxu0 0
      %6325 = vmatprep.subr.bf16.mxu0 0
      %6326 = vmatpush1.bf16.msra.mxu0 0
      %6327 = vmatprep.subr.bf16.mxu0 0
      %6328 = vmatpush1.bf16.msra.mxu0 0
      %6329 = vmatprep.subr.bf16.mxu0 0
      %6330 = vmatpush1.bf16.msra.mxu0 0
      %6331 = vmatprep.subr.bf16.mxu0 0
      %6332 = vmatpush1.bf16.msra.mxu0 0
      %6333 = vmatprep.subr.bf16.mxu0 0
      %6334 = vmatpush1.bf16.msra.mxu0 0
      %6335 = vmatprep.subr.bf16.mxu0 0
      %6336 = vmatpush1.bf16.msra.mxu0 0
      %6337 = vmatprep.subr.bf16.mxu0 0
      %6338 = vmatpush1.bf16.msra.mxu0 0
      %6339 = vmatprep.subr.bf16.mxu0 0
      %6340 = vmatpush1.bf16.msra.mxu0 0
      %6341 = vmatprep.subr.bf16.mxu0 0
      %6342 = vmatpush1.bf16.msra.mxu0 0
      %6343 = vmatprep.subr.bf16.mxu0 0
      %6344 = vmatpush1.bf16.msra.mxu0 0
      %6345 = vmatprep.subr.bf16.mxu0 0
      %6346 = vmatpush1.bf16.msra.mxu0 0
      %6347 = vmatprep.subr.bf16.mxu0 0
      %6348 = vmatpush1.bf16.msra.mxu0 0
      %6349 = vmatprep.mubr.bf16.mxu0 0
      %6350 = vmatmul.mubr.bf16.gmra.mrb[0].mxu0 %v6267
      %v6351 = vpop.f32.mrb[0].mxu0
      %v6352 = vadd.f32 0.0, %v6351
      %v6353 = vpop.f32.mrb[0].mxu0
      %v6354 = vpop.f32.mrb[0].mxu0
      %v6355 = vadd.f32 0.0, %v6354
      %v6356 = vpop.f32.mrb[0].mxu0
      %6357 = vmatprep.mubr.bf16.mxu0 0
      %6358 = vmatmul.mubr.bf16.gmra.mrb[0].mxu0 %v6270
      %v6359 = vpop.f32.mrb[0].mxu0
      %v6360 = vadd.f32 0.0, %v6359
      %v6361 = vpop.f32.mrb[0].mxu0
      %v6362 = vpop.f32.mrb[0].mxu0
      %v6363 = vadd.f32 0.0, %v6362
      %v6364 = vpop.f32.mrb[0].mxu0
      %6365 = vmatprep.mubr.bf16.mxu0 0
      %6366 = vmatmul.mubr.bf16.gmra.mrb[0].mxu0 %v6273
      %v6367 = vpop.f32.mrb[0].mxu0
      %v6368 = vadd.f32 0.0, %v6367
      %v6369 = vpop.f32.mrb[0].mxu0
      %v6370 = vpop.f32.mrb[0].mxu0
      %v6371 = vadd.f32 0.0, %v6370
      %v6372 = vpop.f32.mrb[0].mxu0
      %6373 = vmatprep.mubr.bf16.mxu0 0
      %6374 = vmatmul.mubr.bf16.gmra.mrb[0].mxu0 %v6276
      %v6375 = vpop.f32.mrb[0].mxu0
      %v6376 = vadd.f32 0.0, %v6375
      %v6377 = vpop.f32.mrb[0].mxu0
      %v6378 = vpop.f32.mrb[0].mxu0
      %v6379 = vadd.f32 0.0, %v6378
      %v6380 = vpop.f32.mrb[0].mxu0
      %6381 = vmatprep.mubr.bf16.mxu0 0
      %6382 = vmatmul.mubr.bf16.gmra.mrb[0].mxu0 %v6279
      %v6383 = vpop.f32.mrb[0].mxu0
      %v6384 = vadd.f32 0.0, %v6383
      %v6385 = vpop.f32.mrb[0].mxu0
      %v6386 = vpop.f32.mrb[0].mxu0
      %v6387 = vadd.f32 0.0, %v6386
      %v6388 = vpop.f32.mrb[0].mxu0
      %6389 = vmatprep.mubr.bf16.mxu0 0
      %6390 = vmatmul.mubr.bf16.gmra.mrb[0].mxu0 %v6282
      %v6391 = vpop.f32.mrb[0].mxu0
      %v6392 = vadd.f32 0.0, %v6391
      %v6393 = vpop.f32.mrb[0].mxu0
      %v6394 = vpop.f32.mrb[0].mxu0
      %v6395 = vadd.f32 0.0, %v6394
      %v6396 = vpop.f32.mrb[0].mxu0
      %6397 = vmatprep.mubr.bf16.mxu0 0
      %6398 = vmatmul.mubr.bf16.gmra.mrb[0].mxu0 %v6285
      %v6399 = vpop.f32.mrb[0].mxu0
      %v6400 = vadd.f32 0.0, %v6399
      %v6401 = vpop.f32.mrb[0].mxu0
      %v6402 = vpop.f32.mrb[0].mxu0
      %v6403 = vadd.f32 0.0, %v6402
      %v6404 = vpop.f32.mrb[0].mxu0
      %6405 = vmatprep.mubr.bf16.mxu0 0
      %6406 = vmatmul.mubr.bf16.gmra.mrb[0].mxu0 %v6288
      %v6407 = vpop.f32.mrb[0].mxu0
      %v6408 = vadd.f32 0.0, %v6407
      %v6409 = vpop.f32.mrb[0].mxu0
      %v6410 = vpop.f32.mrb[0].mxu0
      %v6411 = vadd.f32 0.0, %v6410
      %v6412 = vpop.f32.mrb[0].mxu0
      %6413 = vmatprep.mubr.bf16.mxu0 0
      %6414 = vmatmul.mubr.bf16.gmra.mrb[0].mxu0 %v6291
      %v6415 = vpop.f32.mrb[0].mxu0
      %v6416 = vadd.f32 0.0, %v6415
      %v6417 = vpop.f32.mrb[0].mxu0
      %v6418 = vpop.f32.mrb[0].mxu0
      %v6419 = vadd.f32 0.0, %v6418
      %v6420 = vpop.f32.mrb[0].mxu0
      %6421 = vmatprep.mubr.bf16.mxu0 0
      %6422 = vmatmul.mubr.bf16.gmra.mrb[0].mxu0 %v6294
      %v6423 = vpop.f32.mrb[0].mxu0
      %v6424 = vadd.f32 0.0, %v6423
      %v6425 = vpop.f32.mrb[0].mxu0
      %v6426 = vpop.f32.mrb[0].mxu0
      %v6427 = vadd.f32 0.0, %v6426
      %v6428 = vpop.f32.mrb[0].mxu0
      %6429 = vmatprep.mubr.bf16.mxu0 0
      %6430 = vmatmul.mubr.bf16.gmra.mrb[0].mxu0 %v6297
      %v6431 = vpop.f32.mrb[0].mxu0
      %v6432 = vadd.f32 0.0, %v6431
      %v6433 = vpop.f32.mrb[0].mxu0
      %v6434 = vpop.f32.mrb[0].mxu0
      %v6435 = vadd.f32 0.0, %v6434
      %v6436 = vpop.f32.mrb[0].mxu0
      %6437 = vmatprep.mubr.bf16.mxu0 0
      %6438 = vmatmul.mubr.bf16.gmra.mrb[0].mxu0 %v6300
      %v6439 = vpop.f32.mrb[0].mxu0
      %v6440 = vadd.f32 0.0, %v6439
      %v6441 = vpop.f32.mrb[0].mxu0
      %v6442 = vpop.f32.mrb[0].mxu0
      %v6443 = vadd.f32 0.0, %v6442
      %v6444 = vpop.f32.mrb[0].mxu0
      %6445 = vmatprep.mubr.bf16.mxu0 0
      %6446 = vmatmul.mubr.bf16.gmra.mrb[0].mxu0 %v6303
      %v6447 = vpop.f32.mrb[0].mxu0
      %v6448 = vadd.f32 0.0, %v6447
      %v6449 = vpop.f32.mrb[0].mxu0
      %v6450 = vpop.f32.mrb[0].mxu0
      %v6451 = vadd.f32 0.0, %v6450
      %v6452 = vpop.f32.mrb[0].mxu0
      %6453 = vmatprep.mubr.bf16.mxu0 0
      %6454 = vmatmul.mubr.bf16.gmra.mrb[0].mxu0 %v6306
      %v6455 = vpop.f32.mrb[0].mxu0
      %v6456 = vadd.f32 0.0, %v6455
      %v6457 = vpop.f32.mrb[0].mxu0
      %v6458 = vpop.f32.mrb[0].mxu0
      %v6459 = vadd.f32 0.0, %v6458
      %v6460 = vpop.f32.mrb[0].mxu0
      %6461 = vmatprep.mubr.bf16.mxu0 0
      %6462 = vmatmul.mubr.bf16.gmra.mrb[0].mxu0 %v6309
      %v6463 = vpop.f32.mrb[0].mxu0
      %v6464 = vadd.f32 0.0, %v6463
      %v6465 = vpop.f32.mrb[0].mxu0
      %v6466 = vpop.f32.mrb[0].mxu0
      %v6467 = vadd.f32 0.0, %v6466
      %v6468 = vpop.f32.mrb[0].mxu0
      %6469 = vmatprep.mubr.bf16.mxu0 0
      %6470 = vmatmul.mubr.bf16.gmra.mrb[0].mxu0 %v6312
      %v6471 = vpop.f32.mrb[0].mxu0
      %v6472 = vadd.f32 0.0, %v6471
      %v6473 = vpop.f32.mrb[0].mxu0
      %v6474 = vpop.f32.mrb[0].mxu0
      %v6475 = vadd.f32 0.0, %v6474
      %v6476 = vpop.f32.mrb[0].mxu0
      %6477 = vdwg.mxu0
      %v6478 = vmul.f32 %v6352, %v1417
      %v6479 = vmul.f32 %v6355, %v1422
      %v6480 = vmul.f32 %v6360, %v1427
      %v6481 = vmul.f32 %v6363, %v1432
      %v6482 = vmul.f32 %v6368, %v1437
      %v6483 = vmul.f32 %v6371, %v1442
      %v6484 = vmul.f32 %v6376, %v1447
      %v6485 = vmul.f32 %v6379, %v1452
      %v6486 = vmul.f32 %v6384, %v1457
      %v6487 = vmul.f32 %v6387, %v1462
      %v6488 = vmul.f32 %v6392, %v1467
      %v6489 = vmul.f32 %v6395, %v1472
      %v6490 = vmul.f32 %v6400, %v1477
      %v6491 = vmul.f32 %v6403, %v1482
      %v6492 = vmul.f32 %v6408, %v1487
      %v6493 = vmul.f32 %v6411, %v1492
      %v6494 = vmul.f32 %v6416, %v1497
      %v6495 = vmul.f32 %v6419, %v1502
      %v6496 = vmul.f32 %v6424, %v1507
      %v6497 = vmul.f32 %v6427, %v1512
      %v6498 = vmul.f32 %v6432, %v1517
      %v6499 = vmul.f32 %v6435, %v1522
      %v6500 = vmul.f32 %v6440, %v1527
      %v6501 = vmul.f32 %v6443, %v1532
      %v6502 = vmul.f32 %v6448, %v1537
      %v6503 = vmul.f32 %v6451, %v1542
      %v6504 = vmul.f32 %v6456, %v1547
      %v6505 = vmul.f32 %v6459, %v1552
      %v6506 = vmul.f32 %v6464, %v1557
      %v6507 = vmul.f32 %v6467, %v1562
      %v6508 = vmul.f32 %v6472, %v1567
      %v6509 = vmul.f32 %v6475, %v1572
      %v6510 = vadd.f32 %v6184, %v6478
      %v6511 = vadd.f32 %v6185, %v6479
      %v6512 = vadd.f32 %v6186, %v6480
      %v6513 = vadd.f32 %v6187, %v6481
      %v6514 = vadd.f32 %v6188, %v6482
      %v6515 = vadd.f32 %v6189, %v6483
      %v6516 = vadd.f32 %v6190, %v6484
      %v6517 = vadd.f32 %v6191, %v6485
      %v6518 = vadd.f32 %v6192, %v6486
      %v6519 = vadd.f32 %v6193, %v6487
      %v6520 = vadd.f32 %v6194, %v6488
      %v6521 = vadd.f32 %v6195, %v6489
      %v6522 = vadd.f32 %v6196, %v6490
      %v6523 = vadd.f32 %v6197, %v6491
      %v6524 = vadd.f32 %v6198, %v6492
      %v6525 = vadd.f32 %v6199, %v6493
      %v6526 = vadd.f32 %v6200, %v6494
      %v6527 = vadd.f32 %v6201, %v6495
      %v6528 = vadd.f32 %v6202, %v6496
      %v6529 = vadd.f32 %v6203, %v6497
      %v6530 = vadd.f32 %v6204, %v6498
      %v6531 = vadd.f32 %v6205, %v6499
      %v6532 = vadd.f32 %v6206, %v6500
      %v6533 = vadd.f32 %v6207, %v6501
      %v6534 = vadd.f32 %v6208, %v6502
      %v6535 = vadd.f32 %v6209, %v6503
      %v6536 = vadd.f32 %v6210, %v6504
      %v6537 = vadd.f32 %v6211, %v6505
      %v6538 = vadd.f32 %v6212, %v6506
      %v6539 = vadd.f32 %v6213, %v6507
      %v6540 = vadd.f32 %v6214, %v6508
      %v6541 = vadd.f32 %v6215, %v6509
      %v6542 = vld [vmem:[%s4] sm:$0x1]
      %v6544 = vlaneseq
      %v6545 = vshrl.u32 %v6544, 7
      %v6546 = vsub.s32 0, %v6545
      %v6547 = vrot.slane %v6542, %v6546
      %v6549 = vadd.f32 %v6510, %v6547
      %v6550 = vadd.f32 %v6511, %v6547
      %v6551 = vadd.f32 %v6512, %v6547
      %v6552 = vadd.f32 %v6513, %v6547
      %v6553 = vadd.f32 %v6514, %v6547
      %v6554 = vadd.f32 %v6515, %v6547
      %v6555 = vadd.f32 %v6516, %v6547
      %v6556 = vadd.f32 %v6517, %v6547
      %v6557 = vadd.f32 %v6518, %v6547
      %v6558 = vadd.f32 %v6519, %v6547
      %v6559 = vadd.f32 %v6520, %v6547
      %v6560 = vadd.f32 %v6521, %v6547
      %v6561 = vadd.f32 %v6522, %v6547
      %v6562 = vadd.f32 %v6523, %v6547
      %v6563 = vadd.f32 %v6524, %v6547
      %v6564 = vadd.f32 %v6525, %v6547
      %v6565 = vadd.f32 %v6526, %v6547
      %v6566 = vadd.f32 %v6527, %v6547
      %v6567 = vadd.f32 %v6528, %v6547
      %v6568 = vadd.f32 %v6529, %v6547
      %v6569 = vadd.f32 %v6530, %v6547
      %v6570 = vadd.f32 %v6531, %v6547
      %v6571 = vadd.f32 %v6532, %v6547
      %v6572 = vadd.f32 %v6533, %v6547
      %v6573 = vadd.f32 %v6534, %v6547
      %v6574 = vadd.f32 %v6535, %v6547
      %v6575 = vadd.f32 %v6536, %v6547
      %v6576 = vadd.f32 %v6537, %v6547
      %v6577 = vadd.f32 %v6538, %v6547
      %v6578 = vadd.f32 %v6539, %v6547
      %v6579 = vadd.f32 %v6540, %v6547
      %v6580 = vadd.f32 %v6541, %v6547
      %vm6581 = vcmp.gt.f32.partialorder %v6549, 0.0
      %vm6582 = vcmp.gt.f32.partialorder %v6550, 0.0
      %vm6583 = vcmp.gt.f32.partialorder %v6551, 0.0
      %vm6584 = vcmp.gt.f32.partialorder %v6552, 0.0
      %vm6585 = vcmp.gt.f32.partialorder %v6553, 0.0
      %vm6586 = vcmp.gt.f32.partialorder %v6554, 0.0
      %vm6587 = vcmp.gt.f32.partialorder %v6555, 0.0
      %vm6588 = vcmp.gt.f32.partialorder %v6556, 0.0
      %vm6589 = vcmp.gt.f32.partialorder %v6557, 0.0
      %vm6590 = vcmp.gt.f32.partialorder %v6558, 0.0
      %vm6591 = vcmp.gt.f32.partialorder %v6559, 0.0
      %vm6592 = vcmp.gt.f32.partialorder %v6560, 0.0
      %vm6593 = vcmp.gt.f32.partialorder %v6561, 0.0
      %vm6594 = vcmp.gt.f32.partialorder %v6562, 0.0
      %vm6595 = vcmp.gt.f32.partialorder %v6563, 0.0
      %vm6596 = vcmp.gt.f32.partialorder %v6564, 0.0
      %vm6597 = vcmp.gt.f32.partialorder %v6565, 0.0
      %vm6598 = vcmp.gt.f32.partialorder %v6566, 0.0
      %vm6599 = vcmp.gt.f32.partialorder %v6567, 0.0
      %vm6600 = vcmp.gt.f32.partialorder %v6568, 0.0
      %vm6601 = vcmp.gt.f32.partialorder %v6569, 0.0
      %vm6602 = vcmp.gt.f32.partialorder %v6570, 0.0
      %vm6603 = vcmp.gt.f32.partialorder %v6571, 0.0
      %vm6604 = vcmp.gt.f32.partialorder %v6572, 0.0
      %vm6605 = vcmp.gt.f32.partialorder %v6573, 0.0
      %vm6606 = vcmp.gt.f32.partialorder %v6574, 0.0
      %vm6607 = vcmp.gt.f32.partialorder %v6575, 0.0
      %vm6608 = vcmp.gt.f32.partialorder %v6576, 0.0
      %vm6609 = vcmp.gt.f32.partialorder %v6577, 0.0
      %vm6610 = vcmp.gt.f32.partialorder %v6578, 0.0
      %vm6611 = vcmp.gt.f32.partialorder %v6579, 0.0
      %vm6612 = vcmp.gt.f32.partialorder %v6580, 0.0
      %v6613 = vmul.f32 %v6549, 0.2
      %v6614 = vmul.f32 %v6550, 0.2
      %v6615 = vmul.f32 %v6551, 0.2
      %v6616 = vmul.f32 %v6552, 0.2
      %v6617 = vmul.f32 %v6553, 0.2
      %v6618 = vmul.f32 %v6554, 0.2
      %v6619 = vmul.f32 %v6555, 0.2
      %v6620 = vmul.f32 %v6556, 0.2
      %v6621 = vmul.f32 %v6557, 0.2
      %v6622 = vmul.f32 %v6558, 0.2
      %v6623 = vmul.f32 %v6559, 0.2
      %v6624 = vmul.f32 %v6560, 0.2
      %v6625 = vmul.f32 %v6561, 0.2
      %v6626 = vmul.f32 %v6562, 0.2
      %v6627 = vmul.f32 %v6563, 0.2
      %v6628 = vmul.f32 %v6564, 0.2
      %v6629 = vmul.f32 %v6565, 0.2
      %v6630 = vmul.f32 %v6566, 0.2
      %v6631 = vmul.f32 %v6567, 0.2
      %v6632 = vmul.f32 %v6568, 0.2
      %v6633 = vmul.f32 %v6569, 0.2
      %v6634 = vmul.f32 %v6570, 0.2
      %v6635 = vmul.f32 %v6571, 0.2
      %v6636 = vmul.f32 %v6572, 0.2
      %v6637 = vmul.f32 %v6573, 0.2
      %v6638 = vmul.f32 %v6574, 0.2
      %v6639 = vmul.f32 %v6575, 0.2
      %v6640 = vmul.f32 %v6576, 0.2
      %v6641 = vmul.f32 %v6577, 0.2
      %v6642 = vmul.f32 %v6578, 0.2
      %v6643 = vmul.f32 %v6579, 0.2
      %v6644 = vmul.f32 %v6580, 0.2
      %v6645 = vsel %vm6581, %v6549, %v6613
      %v6646 = vsel %vm6582, %v6550, %v6614
      %v6647 = vsel %vm6583, %v6551, %v6615
      %v6648 = vsel %vm6584, %v6552, %v6616
      %v6649 = vsel %vm6585, %v6553, %v6617
      %v6650 = vsel %vm6586, %v6554, %v6618
      %v6651 = vsel %vm6587, %v6555, %v6619
      %v6652 = vsel %vm6588, %v6556, %v6620
      %v6653 = vsel %vm6589, %v6557, %v6621
      %v6654 = vsel %vm6590, %v6558, %v6622
      %v6655 = vsel %vm6591, %v6559, %v6623
      %v6656 = vsel %vm6592, %v6560, %v6624
      %v6657 = vsel %vm6593, %v6561, %v6625
      %v6658 = vsel %vm6594, %v6562, %v6626
      %v6659 = vsel %vm6595, %v6563, %v6627
      %v6660 = vsel %vm6596, %v6564, %v6628
      %v6661 = vsel %vm6597, %v6565, %v6629
      %v6662 = vsel %vm6598, %v6566, %v6630
      %v6663 = vsel %vm6599, %v6567, %v6631
      %v6664 = vsel %vm6600, %v6568, %v6632
      %v6665 = vsel %vm6601, %v6569, %v6633
      %v6666 = vsel %vm6602, %v6570, %v6634
      %v6667 = vsel %vm6603, %v6571, %v6635
      %v6668 = vsel %vm6604, %v6572, %v6636
      %v6669 = vsel %vm6605, %v6573, %v6637
      %v6670 = vsel %vm6606, %v6574, %v6638
      %v6671 = vsel %vm6607, %v6575, %v6639
      %v6672 = vsel %vm6608, %v6576, %v6640
      %v6673 = vsel %vm6609, %v6577, %v6641
      %v6674 = vsel %vm6610, %v6578, %v6642
      %v6675 = vsel %vm6611, %v6579, %v6643
      %v6676 = vsel %vm6612, %v6580, %v6644
      %v6677 = vld [vmem:[%s7] sm:$0xff]
      %v6678 = vld [vmem:[%s7 + $0x8] sm:$0xff]
      %v6679 = vld [vmem:[%s7 + $0x10] sm:$0xff]
      %v6680 = vld [vmem:[%s7 + $0x18] sm:$0xff]
      %v6681 = vld [vmem:[%s7 + $0x20] sm:$0xff]
      %v6682 = vld [vmem:[%s7 + $0x28] sm:$0xff]
      %v6683 = vld [vmem:[%s7 + $0x30] sm:$0xff]
      %v6684 = vld [vmem:[%s7 + $0x38] sm:$0xff]
      %v6685 = vld [vmem:[%s7 + $0x40] sm:$0xff]
      %v6686 = vld [vmem:[%s7 + $0x48] sm:$0xff]
      %v6687 = vld [vmem:[%s7 + $0x50] sm:$0xff]
      %v6688 = vld [vmem:[%s7 + $0x58] sm:$0xff]
      %v6689 = vld [vmem:[%s7 + $0x60] sm:$0xff]
      %v6690 = vld [vmem:[%s7 + $0x68] sm:$0xff]
      %v6691 = vld [vmem:[%s7 + $0x70] sm:$0xff]
      %v6692 = vld [vmem:[%s7 + $0x78] sm:$0xff]
      %6693 = vmatprep.subr.mxu0 0.0
      %6694 = vmatpush1.msra.mxu0 %v6645
      %6695 = vmatprep.subr.mxu0 0.0
      %6696 = vmatpush1.msra.mxu0 %v6646
      %6697 = vmatprep.subr.mxu0 0.0
      %6698 = vmatpush1.msra.mxu0 %v6647
      %6699 = vmatprep.subr.mxu0 0.0
      %6700 = vmatpush1.msra.mxu0 %v6648
      %6701 = vmatprep.subr.mxu0 0.0
      %6702 = vmatpush1.msra.mxu0 %v6649
      %6703 = vmatprep.subr.mxu0 0.0
      %6704 = vmatpush1.msra.mxu0 %v6650
      %6705 = vmatprep.subr.mxu0 0.0
      %6706 = vmatpush1.msra.mxu0 %v6651
      %6707 = vmatprep.subr.mxu0 0.0
      %6708 = vmatpush1.msra.mxu0 %v6652
      %6709 = vmatprep.subr.mxu0 0.0
      %6710 = vmatpush1.msra.mxu0 %v6653
      %6711 = vmatprep.subr.mxu0 0.0
      %6712 = vmatpush1.msra.mxu0 %v6654
      %6713 = vmatprep.subr.mxu0 0.0
      %6714 = vmatpush1.msra.mxu0 %v6655
      %6715 = vmatprep.subr.mxu0 0.0
      %6716 = vmatpush1.msra.mxu0 %v6656
      %6717 = vmatprep.subr.mxu0 0.0
      %6718 = vmatpush1.msra.mxu0 %v6657
      %6719 = vmatprep.subr.mxu0 0.0
      %6720 = vmatpush1.msra.mxu0 %v6658
      %6721 = vmatprep.subr.mxu0 0.0
      %6722 = vmatpush1.msra.mxu0 %v6659
      %6723 = vmatprep.subr.mxu0 0.0
      %6724 = vmatpush1.msra.mxu0 %v6660
      %6725 = vmatprep.subr.mxu0 0.0
      %6726 = vmatpush1.msra.mxu0 %v6661
      %6727 = vmatprep.subr.mxu0 0.0
      %6728 = vmatpush1.msra.mxu0 %v6662
      %6729 = vmatprep.subr.mxu0 0.0
      %6730 = vmatpush1.msra.mxu0 %v6663
      %6731 = vmatprep.subr.mxu0 0.0
      %6732 = vmatpush1.msra.mxu0 %v6664
      %6733 = vmatprep.subr.mxu0 0.0
      %6734 = vmatpush1.msra.mxu0 %v6665
      %6735 = vmatprep.subr.mxu0 0.0
      %6736 = vmatpush1.msra.mxu0 %v6666
      %6737 = vmatprep.subr.mxu0 0.0
      %6738 = vmatpush1.msra.mxu0 %v6667
      %6739 = vmatprep.subr.mxu0 0.0
      %6740 = vmatpush1.msra.mxu0 %v6668
      %6741 = vmatprep.subr.mxu0 0.0
      %6742 = vmatpush1.msra.mxu0 %v6669
      %6743 = vmatprep.subr.mxu0 0.0
      %6744 = vmatpush1.msra.mxu0 %v6670
      %6745 = vmatprep.subr.mxu0 0.0
      %6746 = vmatpush1.msra.mxu0 %v6671
      %6747 = vmatprep.subr.mxu0 0.0
      %6748 = vmatpush1.msra.mxu0 %v6672
      %6749 = vmatprep.subr.mxu0 0.0
      %6750 = vmatpush1.msra.mxu0 %v6673
      %6751 = vmatprep.subr.mxu0 0.0
      %6752 = vmatpush1.msra.mxu0 %v6674
      %6753 = vmatprep.subr.mxu0 0.0
      %6754 = vmatpush1.msra.mxu0 %v6675
      %6755 = vmatprep.subr.mxu0 0.0
      %6756 = vmatpush1.msra.mxu0 %v6676
      %6757 = vmatprep.mubr.f32.mxu0 %v6678
      %6758 = vmatmul.mubr.f32.gmra.mrb[0].mxu0 %v6677
      %v6759 = vpop.f32.mrb[0].mxu0
      %v6760 = vadd.f32 0.0, %v6759
      %v6761 = vpop.f32.mrb[0].mxu0
      %6762 = vmatprep.mubr.f32.mxu0 %v6680
      %6763 = vmatmul.mubr.f32.gmra.mrb[0].mxu0 %v6679
      %v6764 = vpop.f32.mrb[0].mxu0
      %v6765 = vadd.f32 0.0, %v6764
      %v6766 = vpop.f32.mrb[0].mxu0
      %6767 = vmatprep.mubr.f32.mxu0 %v6682
      %6768 = vmatmul.mubr.f32.gmra.mrb[0].mxu0 %v6681
      %v6769 = vpop.f32.mrb[0].mxu0
      %v6770 = vadd.f32 0.0, %v6769
      %v6771 = vpop.f32.mrb[0].mxu0
      %6772 = vmatprep.mubr.f32.mxu0 %v6684
      %6773 = vmatmul.mubr.f32.gmra.mrb[0].mxu0 %v6683
      %v6774 = vpop.f32.mrb[0].mxu0
      %v6775 = vadd.f32 0.0, %v6774
      %v6776 = vpop.f32.mrb[0].mxu0
      %6777 = vmatprep.mubr.f32.mxu0 %v6686
      %6778 = vmatmul.mubr.f32.gmra.mrb[0].mxu0 %v6685
      %v6779 = vpop.f32.mrb[0].mxu0
      %v6780 = vadd.f32 0.0, %v6779
      %v6781 = vpop.f32.mrb[0].mxu0
      %6782 = vmatprep.mubr.f32.mxu0 %v6688
      %6783 = vmatmul.mubr.f32.gmra.mrb[0].mxu0 %v6687
      %v6784 = vpop.f32.mrb[0].mxu0
      %v6785 = vadd.f32 0.0, %v6784
      %v6786 = vpop.f32.mrb[0].mxu0
      %6787 = vmatprep.mubr.f32.mxu0 %v6690
      %6788 = vmatmul.mubr.f32.gmra.mrb[0].mxu0 %v6689
      %v6789 = vpop.f32.mrb[0].mxu0
      %v6790 = vadd.f32 0.0, %v6789
      %v6791 = vpop.f32.mrb[0].mxu0
      %6792 = vmatprep.mubr.f32.mxu0 %v6692
      %6793 = vmatmul.mubr.f32.gmra.mrb[0].mxu0 %v6691
      %v6794 = vpop.f32.mrb[0].mxu0
      %v6795 = vadd.f32 0.0, %v6794
      %v6796 = vpop.f32.mrb[0].mxu0
      %6797 = vdwg.mxu0
      %6798 = vst.msk [vmem:[%s305] sm:$0xff] %vm3665, %v6760
      %6799 = vst.msk [vmem:[%s305 + $0x8] sm:$0xff] %vm3665, %v6765
      %6800 = vst.msk [vmem:[%s305 + $0x10] sm:$0xff] %vm3665, %v6770
      %6801 = vst.msk [vmem:[%s305 + $0x18] sm:$0xff] %vm3665, %v6775
      %6802 = vst.msk [vmem:[%s305 + $0x20] sm:$0xff] %vm3665, %v6780
      %6803 = vst.msk [vmem:[%s305 + $0x28] sm:$0xff] %vm3665, %v6785
      %6804 = vst.msk [vmem:[%s305 + $0x30] sm:$0xff] %vm3665, %v6790
      %6805 = vst.msk [vmem:[%s305 + $0x38] sm:$0xff] %vm3665, %v6795
      %p6806 = scmp.lt.s32.totalorder %s19, 1
      %s6807 = scalar_select %p6806, %s19, 1
      %s6808 = smul.addr %s6807, 8
      %s6809 = smul.addr %s6808, 8
      %s6810 = scalar_lea.vmem %s8, %s6809
      // Predicated region
      $region53: #{forward.1} parent=51 // pred_check
        %p6811 = pneg %p210
      $region54: #{forward.1} parent=51 // pred_check_branch
        %6813 = sbr.rel (%p6811) target = $region56
      $region55: #{forward.1} parent=51 // pred_region
        _
      $region56: #{forward.1} parent=51 // pred_fallthru
        _
    $region52: #{forward.1} parent=5 // pred_fallthru
      _
    %p6814 = scmp.le.s32.totalorder 2, %s14
    // Predicated region
    $region57: #{forward.1} parent=5 // pred_check
      %p6815 = pneg %p6814
    $region58: #{forward.1} parent=5 // pred_check_branch
      %6817 = sbr.rel (%p6815) target = $region60
    $region59: #{forward.1} parent=5 // pred_region
      %s6818 = ssub.s32 %s14, 2
      // Predicated region
      $region61: #{forward.1} parent=59 // pred_check
        %p6819 = pneg %p216
      $region62: #{forward.1} parent=59 // pred_check_branch
        %6821 = sbr.rel (%p6819) target = $region64
      $region63: #{forward.1} parent=59 // pred_region
        %p6822 = scmp.lt.s32.totalorder %s20, 1
        %s6823 = scalar_select %p6822, %s20, 1
        %s6824 = smul.addr %s6823, 8
        %s6825 = smul.addr %s6824, 8
        %s6826 = scalar_lea.vmem %s8, %s6825
      $region64: #{forward.1} parent=59 // pred_fallthru
        _
    $region60: #{forward.1} parent=5 // pred_fallthru
      _
  $region6: #{forward.1} parent=0 // loop_footer
    %s18 = sadd.s32 1, %s14
  $region7: #{forward.1} parent=0 // loop_footer_branch
    %13 = sbr.rel target = $region3
  $region8: #{forward.1} parent=0 // loop_exit
    _

</llo_original>
